<compile_context>
chip_gen: v6e
topology: v6e:2x2x1
jax: 0.10.0
libtpu: 0.0.40
codegen_flags: <defaults>
</compile_context>

<pallas_src>
import functools

import jax
import jax.numpy as jnp
from jax.experimental import pallas as pl
from jax.experimental.pallas import tpu as pltpu

# SkipFFTransformerBlock hard-codes eps=1e-6 for its RMSNorms in diffusers,
# independent of layer_norm_eps (which only feeds the ConvNext RMSNorm).
_ATTN_EPS = 1e-6


# ---------------------------------------------------------------------------
# Fused (ConvNextBlock + SkipFFTransformerBlock) kernel, one batch item per
# grid step.
# ---------------------------------------------------------------------------
def _uvit_fused_kernel(x_ref, scale_ref, shift_ref, kp_ref, vp_ref,
                       dww_ref, dwb_ref, rmsw_ref,
                       w1_ref, b1_ref, gamma_ref, beta_ref, w2_ref, b2_ref,
                       normw_ref, wq_ref, bq_ref, wo_ref, bo_ref, seg_ref,
                       out_ref, xpad_scr, *, num_heads, eps):
    _, H, W, C = x_ref.shape
    HW = H * W
    bf16 = jnp.bfloat16
    f32 = jnp.float32

    x = x_ref[0].astype(f32)                                   # (H, W, C)

    # ------------------------- ConvNextBlock -------------------------------
    # Depthwise 3x3 conv, padding=1.  The interior lives at a sublane-aligned
    # column offset (8) in the VMEM scratch; only the halo strips are zeroed
    # (every step, so megacore sharding of the batch axis stays correct).
    xpad_scr[0:1, :, :] = jnp.zeros((1, W + 9, C), f32)
    xpad_scr[H + 1:H + 2, :, :] = jnp.zeros((1, W + 9, C), f32)
    xpad_scr[1:H + 1, 0:8, :] = jnp.zeros((H, 8, C), f32)
    xpad_scr[1:H + 1, W + 8:W + 9, :] = jnp.zeros((H, 1, C), f32)
    xpad_scr[1:H + 1, 8:8 + W, :] = x

    c0 = xpad_scr[:, 7:7 + W, :]       # tap at column w-1 (zero at w=0)
    c1 = xpad_scr[:, 8:8 + W, :]       # tap at column w
    c2 = xpad_scr[:, 9:9 + W, :]       # tap at column w+1 (zero at w=W-1)

    r0 = c0 * dww_ref[0, 0] + c1 * dww_ref[0, 1] + c2 * dww_ref[0, 2]
    r1 = c0 * dww_ref[1, 0] + c1 * dww_ref[1, 1] + c2 * dww_ref[1, 2]
    r2 = c0 * dww_ref[2, 0] + c1 * dww_ref[2, 1] + c2 * dww_ref[2, 2]
    acc = r0[0:H] + r1[1:H + 1] + r2[2:H + 2] + dwb_ref[...]   # (H, W, C)

    # RMSNorm over channels (elementwise affine), layer_norm_eps.
    var = jnp.mean(acc * acc, axis=-1, keepdims=True)
    hmid = (acc * jax.lax.rsqrt(var + eps) * rmsw_ref[...]).reshape(HW, C)

    # Channelwise MLP: Linear -> GELU -> GlobalResponseNorm -> Linear.
    ff = jnp.dot(hmid.astype(bf16), w1_ref[...],
                 preferred_element_type=f32) + b1_ref[...]
    # tanh-approx GELU (native EUP tanh); exact-erf reference stays in tol.
    ff3 = ff * ff * ff
    ff = 0.5 * ff * (1.0 + jnp.tanh(0.7978845608028654 * (ff + 0.044715 * ff3)))
    gx = jnp.sqrt(jnp.sum(ff * ff, axis=0, keepdims=True))      # (1, 4C)
    nx = gx * pl.reciprocal(jnp.mean(gx, axis=-1, keepdims=True) + 1e-6,
                            approx=True)
    ff = gamma_ref[...] * (ff * nx) + beta_ref[...] + ff
    out = jnp.dot(ff.astype(bf16), w2_ref[...],
                  preferred_element_type=f32) + b2_ref[...]
    # hidden_dropout is identity in eval mode.

    # Residual + conditioning scale/shift (precomputed and split in wrapper).
    h = out + x.reshape(HW, C)
    h = h * (1.0 + scale_ref[0]) + shift_ref[0]

    # -------------------- SkipFFTransformerBlock ---------------------------
    # Packed block-diagonal K^T (C, P) / V (P, C), P = num_heads * S, built in
    # the XLA wrapper (encoder-only, hidden-state independent).  One score
    # matmul, one PV matmul, one K=C out-projection; no per-head loop.
    inv_sqrt_dh = 1.0 / float(C // num_heads) ** 0.5
    for blk in range(2):                   # (norm1, attn1), (norm2, attn2)
        var = jnp.mean(h * h, axis=-1, keepdims=True)
        nh = h * jax.lax.rsqrt(var + _ATTN_EPS) * normw_ref[blk]
        q = jnp.dot(nh.astype(bf16), wq_ref[blk],
                    preferred_element_type=f32) + bq_ref[blk]
        s = jnp.dot(q.astype(bf16), kp_ref[0, blk],
                    preferred_element_type=f32) * inv_sqrt_dh   # (HW, P)
        # Row-global max subtraction cancels exactly inside each head segment.
        s = s - jnp.max(s, axis=-1, keepdims=True)
        p = jnp.exp(s)
        # Per-head-segment softmax denominator via segment-ones matmul (f32).
        denom = jnp.dot(p, seg_ref[...], preferred_element_type=f32)
        p = p * pl.reciprocal(denom, approx=True)
        o = jnp.dot(p.astype(bf16), vp_ref[0, blk],
                    preferred_element_type=f32)                 # (HW, C) heads concat
        attn = jnp.dot(o.astype(bf16), wo_ref[blk],
                       preferred_element_type=f32) + bo_ref[blk]
        h = h + attn                        # attention_dropout identity in eval

    out_ref[0] = h.reshape(H, W, C).astype(out_ref.dtype)


def uvit_fused_block(x_nhwc, scale, shift, kp, vp, seg, rp, ap,
                     *, num_heads, eps):
    """One (ConvNextBlock, SkipFFTransformerBlock) pair, fused."""
    B, H, W, C = x_nhwc.shape
    P = seg.shape[0]
    C4 = rp["w1"].shape[1]
    kernel = functools.partial(_uvit_fused_kernel, num_heads=num_heads, eps=eps)
    f2 = lambda b: (0, 0)
    f3 = lambda b: (0, 0, 0)
    f4 = lambda b: (0, 0, 0, 0)
    return pl.pallas_call(
        kernel,
        out_shape=jax.ShapeDtypeStruct((B, H, W, C), x_nhwc.dtype),
        grid_spec=pltpu.PrefetchScalarGridSpec(
            num_scalar_prefetch=0,
            grid=(B,),
            in_specs=[
                pl.BlockSpec((1, H, W, C), lambda b: (b, 0, 0, 0)),  # hidden NHWC (bf16)
                pl.BlockSpec((1, 1, C), lambda b: (b, 0, 0)),        # cond scale
                pl.BlockSpec((1, 1, C), lambda b: (b, 0, 0)),        # cond shift
                pl.BlockSpec((1, 2, C, P), lambda b: (b, 0, 0, 0)),  # packed K^T x2 (bf16)
                pl.BlockSpec((1, 2, P, C), lambda b: (b, 0, 0, 0)),  # packed V   x2 (bf16)
                pl.BlockSpec((3, 3, 1, C), f4),                      # depthwise w
                pl.BlockSpec((1, C), f2),                            # depthwise b
                pl.BlockSpec((1, C), f2),                            # rms weight
                pl.BlockSpec((C, C4), f2),                           # linear1 w (bf16)
                pl.BlockSpec((1, C4), f2),                           # linear1 b
                pl.BlockSpec((1, C4), f2),                           # GRN gamma
                pl.BlockSpec((1, C4), f2),                           # GRN beta
                pl.BlockSpec((C4, C), f2),                           # linear2 w (bf16)
                pl.BlockSpec((1, C), f2),                            # linear2 b
                pl.BlockSpec((2, 1, C), f3),                         # attn rms weights
                pl.BlockSpec((2, C, C), f3),                         # Wq x2 (bf16)
                pl.BlockSpec((2, 1, C), f3),                         # bq x2
                pl.BlockSpec((2, C, C), f3),                         # Wout x2 (bf16)
                pl.BlockSpec((2, 1, C), f3),                         # bout x2
                pl.BlockSpec((P, P), f2),                            # segment-ones
            ],
            out_specs=pl.BlockSpec((1, H, W, C), lambda b: (b, 0, 0, 0)),
            scratch_shapes=[pltpu.VMEM((H + 2, W + 9, C), jnp.float32)],
        ),
        compiler_params=pltpu.CompilerParams(
            dimension_semantics=("parallel",),   # batch items independent
            vmem_limit_bytes=48 * 1024 * 1024,
        ),
    )(x_nhwc, scale, shift, kp, vp,
      rp["dw_w"], rp["dw_b"], rp["rms_w"], rp["w1"], rp["b1"],
      rp["grn_gamma"], rp["grn_beta"], rp["w2"], rp["b2"],
      ap["norm_w"], ap["wq"], ap["bq"], ap["wo"], ap["bo"], seg)


# ---------------------------------------------------------------------------
# Block-diagonal head packing (XLA wrapper side).
# TODO(synk): at production S (e.g. 77) pad each head segment to a multiple of
# 128 (v5e) / 256 (v6e, v7x) and mask padded columns with a -inf bias row.
# ---------------------------------------------------------------------------
def _pack_k_blockdiag(k, num_heads):
    """(B, S, C) -> block-diagonal K^T of shape (B, C, num_heads*S)."""
    B, S, C = k.shape
    dh = C // num_heads
    kh = k.reshape(B, S, num_heads, dh)
    eye = jnp.eye(num_heads, dtype=k.dtype)
    kp = jnp.einsum("bshd,hg->bgdhs", kh, eye)
    return kp.reshape(B, C, num_heads * S)


def _pack_v_blockdiag(v, num_heads):
    """(B, S, C) -> block-diagonal V of shape (B, num_heads*S, C)."""
    B, S, C = v.shape
    dh = C // num_heads
    vh = v.reshape(B, S, num_heads, dh)
    eye = jnp.eye(num_heads, dtype=v.dtype)
    vp = jnp.einsum("bshd,hg->bhsgd", vh, eye)
    return vp.reshape(B, num_heads * S, C)


# ---------------------------------------------------------------------------
# UVitBlock forward (glue): hoists the tiny per-block conditioning, kv_mapper
# and K/V projections (hidden-state independent) to XLA, then runs one fused
# kernel per res block.  Hidden state travels between blocks as bf16.
# ---------------------------------------------------------------------------
def uvit_block_forward(x, pooled_text_emb, encoder_hidden_states, params,
                       *, num_heads, eps):
    B, C, H, W = x.shape
    S = encoder_hidden_states.shape[1]
    h = jnp.transpose(x, (0, 2, 3, 1)).astype(jnp.bfloat16)     # NCHW -> NHWC
    cond = pooled_text_emb * jax.nn.sigmoid(pooled_text_emb)    # silu
    enc_act = encoder_hidden_states * jax.nn.sigmoid(encoder_hidden_states)
    seg = jnp.kron(jnp.eye(num_heads, dtype=jnp.float32),
                   jnp.ones((S, S), jnp.float32))               # (P, P)
    for rb, ab in zip(params["res_blocks"], params["attn_blocks"]):
        ss = cond @ rb["wc"] + rb["bc"]                         # (B, 2C)
        scale = ss[:, None, :C]
        shift = ss[:, None, C:]
        # kv_mapper (hidden_size != channels in this config).
        enc_kv = jnp.einsum("bsd,dc->bsc", enc_act, ab["kv_w"]) + ab["kv_b"]
        kp_l, vp_l = [], []
        for blk in range(2):
            k = jnp.einsum("bsc,cd->bsd", enc_kv, ab["wk"][blk]) + ab["bk"][blk]
            v = jnp.einsum("bsc,cd->bsd", enc_kv, ab["wv"][blk]) + ab["bv"][blk]
            kp_l.append(_pack_k_blockdiag(k, num_heads))
            vp_l.append(_pack_v_blockdiag(v, num_heads))
        kp = jnp.stack(kp_l, axis=1).astype(jnp.bfloat16)       # (B, 2, C, P)
        vp = jnp.stack(vp_l, axis=1).astype(jnp.bfloat16)       # (B, 2, P, C)
        h = uvit_fused_block(h, scale, shift, kp, vp, seg, rb, ab,
                             num_heads=num_heads, eps=eps)
    return jnp.transpose(h, (0, 3, 1, 2)).astype(jnp.float32)   # NHWC -> NCHW


# ---------------------------------------------------------------------------
# Deterministic synthetic parameters (matmul weights stored in bf16).
# ---------------------------------------------------------------------------
def init_uvit_params(key, channels, hidden_size, num_res_blocks, res_ffn_factor=4):
    C, C4 = channels, channels * res_ffn_factor
    bf = lambda a: a.astype(jnp.bfloat16)
    res_blocks, attn_blocks = [], []
    for _ in range(num_res_blocks):
        key, *ks = jax.random.split(key, 12)
        res_blocks.append(dict(
            dw_w=0.2 * jax.random.normal(ks[0], (3, 3, 1, C), jnp.float32),
            dw_b=0.02 * jax.random.normal(ks[1], (1, C), jnp.float32),
            rms_w=1.0 + 0.1 * jax.random.normal(ks[2], (1, C), jnp.float32),
            w1=bf(0.05 * jax.random.normal(ks[3], (C, C4), jnp.float32)),
            b1=0.02 * jax.random.normal(ks[4], (1, C4), jnp.float32),
            grn_gamma=0.1 * jax.random.normal(ks[5], (1, C4), jnp.float32),
            grn_beta=0.1 * jax.random.normal(ks[6], (1, C4), jnp.float32),
            w2=bf(0.05 * jax.random.normal(ks[7], (C4, C), jnp.float32)),
            b2=0.02 * jax.random.normal(ks[8], (1, C), jnp.float32),
            wc=0.05 * jax.random.normal(ks[9], (hidden_size, 2 * C), jnp.float32),
            bc=0.02 * jax.random.normal(ks[10], (1, 2 * C), jnp.float32),
        ))
        key, *ks = jax.random.split(key, 12)
        attn_blocks.append(dict(
            kv_w=0.05 * jax.random.normal(ks[0], (hidden_size, C), jnp.float32),
            kv_b=0.02 * jax.random.normal(ks[1], (1, C), jnp.float32),
            norm_w=1.0 + 0.1 * jax.random.normal(ks[2], (2, 1, C), jnp.float32),
            wq=bf(0.05 * jax.random.normal(ks[3], (2, C, C), jnp.float32)),
            bq=0.02 * jax.random.normal(ks[4], (2, 1, C), jnp.float32),
            wk=bf(0.05 * jax.random.normal(ks[5], (2, C, C), jnp.float32)),
            bk=0.02 * jax.random.normal(ks[6], (2, 1, C), jnp.float32),
            wv=bf(0.05 * jax.random.normal(ks[7], (2, C, C), jnp.float32)),
            bv=0.02 * jax.random.normal(ks[8], (2, 1, C), jnp.float32),
            wo=bf(0.05 * jax.random.normal(ks[9], (2, C, C), jnp.float32)),
            bo=0.02 * jax.random.normal(ks[10], (2, 1, C), jnp.float32),
        ))
    return dict(res_blocks=res_blocks, attn_blocks=attn_blocks)


# ---------------------------------------------------------------------------
# Pure-JAX reference with the same precision policy (bf16 matmul operands,
# f32 accumulation, bf16 inter-block state) but exact erf-GELU and exact
# per-head softmax, so the tolerance check validates the kernel structure,
# indexing and the head-packing math tightly.
# ---------------------------------------------------------------------------
def _mmbf(a, w):
    return jnp.dot(a.astype(jnp.bfloat16), w.astype(jnp.bfloat16),
                   preferred_element_type=jnp.float32)


def _convnext_ref(x, cond, p, eps):
    B, H, W, C = x.shape
    xpad = jnp.pad(x, ((0, 0), (1, 1), (1, 1), (0, 0)))
    acc = jnp.zeros_like(x)
    for dh in range(3):
        for dw in range(3):
            acc = acc + xpad[:, dh:dh + H, dw:dw + W, :] * p["dw_w"][dh, dw]
    acc = acc + p["dw_b"]
    var = jnp.mean(acc * acc, axis=-1, keepdims=True)
    h = acc * jax.lax.rsqrt(var + eps) * p["rms_w"]
    ff = _mmbf(h.reshape(B, H * W, C), p["w1"]) + p["b1"]
    ff = 0.5 * ff * (1.0 + jax.lax.erf(ff / jnp.sqrt(2.0)))      # exact GELU
    gx = jnp.sqrt(jnp.sum(ff * ff, axis=1, keepdims=True))
    nx = gx / (jnp.mean(gx, axis=-1, keepdims=True) + 1e-6)
    ff = p["grn_gamma"] * (ff * nx) + p["grn_beta"] + ff
    out = (_mmbf(ff, p["w2"]) + p["b2"]).reshape(B, H, W, C) + x
    cs = cond * jax.nn.sigmoid(cond)
    ss = cs @ p["wc"] + p["bc"]
    return out * (1.0 + ss[:, None, None, :C]) + ss[:, None, None, C:]


def _skipff_ref(h, enc_kv, p, num_heads):
    B, HW, C = h.shape
    dh = C // num_heads
    scale = 1.0 / float(dh) ** 0.5
    for blk in range(2):
        var = jnp.mean(h * h, axis=-1, keepdims=True)
        nh = h * jax.lax.rsqrt(var + _ATTN_EPS) * p["norm_w"][blk]
        q = _mmbf(nh, p["wq"][blk]) + p["bq"][blk]
        k = jnp.einsum("bsc,cd->bsd", enc_kv,
                       p["wk"][blk].astype(jnp.float32)) + p["bk"][blk]
        v = jnp.einsum("bsc,cd->bsd", enc_kv,
                       p["wv"][blk].astype(jnp.float32)) + p["bv"][blk]
        q = q.reshape(B, HW, num_heads, dh).astype(jnp.bfloat16)
        k = k.reshape(B, -1, num_heads, dh).astype(jnp.bfloat16)
        v = v.reshape(B, -1, num_heads, dh).astype(jnp.bfloat16)
        s = jnp.einsum("bqhd,bkhd->bhqk", q, k,
                       preferred_element_type=jnp.float32) * scale
        pa = jax.nn.softmax(s, axis=-1)
        o = jnp.einsum("bhqk,bkhd->bqhd", pa.astype(jnp.bfloat16), v,
                       preferred_element_type=jnp.float32).reshape(B, HW, C)
        o = _mmbf(o, p["wo"][blk]) + p["bo"][blk]
        h = o + h
    return h


def uvit_block_reference(x, pooled, enc, params, *, num_heads, eps):
    B, C, H, W = x.shape
    h = jnp.transpose(x, (0, 2, 3, 1)).astype(jnp.bfloat16)
    enc_act = enc * jax.nn.sigmoid(enc)
    for rb, ab in zip(params["res_blocks"], params["attn_blocks"]):
        hf = _convnext_ref(h.astype(jnp.float32), pooled, rb, eps)
        ekv = jnp.einsum("bsd,dc->bsc", enc_act, ab["kv_w"]) + ab["kv_b"]
        hs = _skipff_ref(hf.reshape(B, H * W, C), ekv, ab, num_heads)
        h = hs.reshape(B, H, W, C).astype(jnp.bfloat16)
    return jnp.transpose(h, (0, 3, 1, 2)).astype(jnp.float32)


if __name__ == "__main__":
    B, C, H, W = 2, 32, 16, 16       # channels=32
    hidden_size = 64                 # != channels so kv_mapper branch is active
    S = 8                            # encoder sequence length
    num_res_blocks = 2
    num_heads = 2                    # block_num_heads; head_dim = 16
    eps = 1e-6                       # layer_norm_eps

    key = jax.random.PRNGKey(0)
    k_x, k_cond, k_enc, k_p = jax.random.split(key, 4)
    x = jax.random.normal(k_x, (B, C, H, W), jnp.float32)                 # NCHW
    pooled_text_emb = jax.random.normal(k_cond, (B, hidden_size), jnp.float32)
    encoder_hidden_states = jax.random.normal(k_enc, (B, S, hidden_size),
                                              jnp.float32)

    params = init_uvit_params(k_p, C, hidden_size, num_res_blocks)

    fwd = jax.jit(uvit_block_forward, static_argnames=("num_heads", "eps"))
    out = fwd(x, pooled_text_emb, encoder_hidden_states, params,
              num_heads=num_heads, eps=eps)
    out = jax.block_until_ready(out)

    ref = uvit_block_reference(x, pooled_text_emb, encoder_hidden_states, params,
                               num_heads=num_heads, eps=eps)
    ref = jax.block_until_ready(ref)
    assert out.shape == (B, C, H, W)
    max_err = float(jnp.max(jnp.abs(out - ref)))
    # Remaining differences: tanh-GELU vs erf-GELU, approximate EUP reciprocals
    # (softmax/GRN) and f32 accumulation order; all well inside this tolerance.
    assert max_err < 5e-2, f"mismatch vs reference: {max_err}"
    print("KERNEL_OK")
</pallas_src>

<mosaic_0001>
module attributes {stable_mosaic.version = 11 : i64} {
  func.func @_uvit_fused_kernel(%arg0: i32, %arg1: memref<1x16x16x32xbf16, #tpu.memory_space<vmem>>, %arg2: memref<1x1x32xf32, #tpu.memory_space<vmem>>, %arg3: memref<1x1x32xf32, #tpu.memory_space<vmem>>, %arg4: memref<1x2x32x16xbf16, #tpu.memory_space<vmem>>, %arg5: memref<1x2x16x32xbf16, #tpu.memory_space<vmem>>, %arg6: memref<3x3x1x32xf32, #tpu.memory_space<vmem>>, %arg7: memref<1x32xf32, #tpu.memory_space<vmem>>, %arg8: memref<1x32xf32, #tpu.memory_space<vmem>>, %arg9: memref<32x128xbf16, #tpu.memory_space<vmem>>, %arg10: memref<1x128xf32, #tpu.memory_space<vmem>>, %arg11: memref<1x128xf32, #tpu.memory_space<vmem>>, %arg12: memref<1x128xf32, #tpu.memory_space<vmem>>, %arg13: memref<128x32xbf16, #tpu.memory_space<vmem>>, %arg14: memref<1x32xf32, #tpu.memory_space<vmem>>, %arg15: memref<2x1x32xf32, #tpu.memory_space<vmem>>, %arg16: memref<2x32x32xbf16, #tpu.memory_space<vmem>>, %arg17: memref<2x1x32xf32, #tpu.memory_space<vmem>>, %arg18: memref<2x32x32xbf16, #tpu.memory_space<vmem>>, %arg19: memref<2x1x32xf32, #tpu.memory_space<vmem>>, %arg20: memref<16x16xf32, #tpu.memory_space<vmem>>, %arg21: memref<1x16x16x32xbf16, #tpu.memory_space<vmem>>, %arg22: memref<18x25x32xf32, #tpu.memory_space<vmem>>) attributes {dimension_semantics = [#tpu.dimension_semantics<parallel>], iteration_bounds = array<i64: 2>, scalar_prefetch = 0 : i64, scratch_operands = 1 : i64, tpu.core_type = #tpu.core_type<tc>, window_params = [{transform_indices = @transform_0, window_bounds = array<i64: 1, 16, 16, 32>}, {transform_indices = @transform_1, window_bounds = array<i64: 1, 1, 32>}, {transform_indices = @transform_2, window_bounds = array<i64: 1, 1, 32>}, {transform_indices = @transform_3, window_bounds = array<i64: 1, 2, 32, 16>}, {transform_indices = @transform_4, window_bounds = array<i64: 1, 2, 16, 32>}, {pipeline_mode = #tpu.pipeline_mode<synchronous>, transform_indices = @transform_5, window_bounds = array<i64: 3, 3, 1, 32>}, {pipeline_mode = #tpu.pipeline_mode<synchronous>, transform_indices = @transform_6, window_bounds = array<i64: 1, 32>}, {pipeline_mode = #tpu.pipeline_mode<synchronous>, transform_indices = @transform_7, window_bounds = array<i64: 1, 32>}, {pipeline_mode = #tpu.pipeline_mode<synchronous>, transform_indices = @transform_8, window_bounds = array<i64: 32, 128>}, {pipeline_mode = #tpu.pipeline_mode<synchronous>, transform_indices = @transform_9, window_bounds = array<i64: 1, 128>}, {pipeline_mode = #tpu.pipeline_mode<synchronous>, transform_indices = @transform_10, window_bounds = array<i64: 1, 128>}, {pipeline_mode = #tpu.pipeline_mode<synchronous>, transform_indices = @transform_11, window_bounds = array<i64: 1, 128>}, {pipeline_mode = #tpu.pipeline_mode<synchronous>, transform_indices = @transform_12, window_bounds = array<i64: 128, 32>}, {pipeline_mode = #tpu.pipeline_mode<synchronous>, transform_indices = @transform_13, window_bounds = array<i64: 1, 32>}, {pipeline_mode = #tpu.pipeline_mode<synchronous>, transform_indices = @transform_14, window_bounds = array<i64: 2, 1, 32>}, {pipeline_mode = #tpu.pipeline_mode<synchronous>, transform_indices = @transform_15, window_bounds = array<i64: 2, 32, 32>}, {pipeline_mode = #tpu.pipeline_mode<synchronous>, transform_indices = @transform_16, window_bounds = array<i64: 2, 1, 32>}, {pipeline_mode = #tpu.pipeline_mode<synchronous>, transform_indices = @transform_17, window_bounds = array<i64: 2, 32, 32>}, {pipeline_mode = #tpu.pipeline_mode<synchronous>, transform_indices = @transform_18, window_bounds = array<i64: 2, 1, 32>}, {pipeline_mode = #tpu.pipeline_mode<synchronous>, transform_indices = @transform_19, window_bounds = array<i64: 16, 16>}, {transform_indices = @transform_20, window_bounds = array<i64: 1, 16, 16, 32>}]} {
    %c0 = arith.constant 0 : index
    %c0_0 = arith.constant 0 : index
    %c0_1 = arith.constant 0 : index
    %c0_2 = arith.constant 0 : index
    %0 = vector.load %arg1[%c0, %c0_0, %c0_1, %c0_2] : memref<1x16x16x32xbf16, #tpu.memory_space<vmem>>, vector<1x16x16x32xbf16>
    %1 = vector.shape_cast %0 : vector<1x16x16x32xbf16> to vector<16x16x32xbf16>
    %2 = arith.extf %1 : vector<16x16x32xbf16> to vector<16x16x32xf32>
    %cst = arith.constant 0.000000e+00 : f32
    %3 = vector.broadcast %cst : f32 to vector<1x25x32xf32>
    %c0_3 = arith.constant 0 : index
    %c0_4 = arith.constant 0 : index
    %c0_5 = arith.constant 0 : index
    %4 = vector.load %arg22[%c0_3, %c0_4, %c0_5] : memref<18x25x32xf32, #tpu.memory_space<vmem>>, vector<1x25x32xf32>
    tpu.vector_store %arg22[%c0_3, %c0_4, %c0_5], %3 {strides = array<i32>} : memref<18x25x32xf32, #tpu.memory_space<vmem>>, vector<1x25x32xf32>,
    %cst_6 = arith.constant 0.000000e+00 : f32
    %5 = vector.broadcast %cst_6 : f32 to vector<1x25x32xf32>
    %c17 = arith.constant 17 : index
    %c0_7 = arith.constant 0 : index
    %c0_8 = arith.constant 0 : index
    %6 = vector.load %arg22[%c17, %c0_7, %c0_8] : memref<18x25x32xf32, #tpu.memory_space<vmem>>, vector<1x25x32xf32>
    tpu.vector_store %arg22[%c17, %c0_7, %c0_8], %5 {strides = array<i32>} : memref<18x25x32xf32, #tpu.memory_space<vmem>>, vector<1x25x32xf32>,
    %cst_9 = arith.constant 0.000000e+00 : f32
    %7 = vector.broadcast %cst_9 : f32 to vector<16x8x32xf32>
    %c1 = arith.constant 1 : index
    %c0_10 = arith.constant 0 : index
    %c0_11 = arith.constant 0 : index
    %8 = vector.load %arg22[%c1, %c0_10, %c0_11] : memref<18x25x32xf32, #tpu.memory_space<vmem>>, vector<16x8x32xf32>
    tpu.vector_store %arg22[%c1, %c0_10, %c0_11], %7 {strides = array<i32>} : memref<18x25x32xf32, #tpu.memory_space<vmem>>, vector<16x8x32xf32>,
    %cst_12 = arith.constant 0.000000e+00 : f32
    %9 = vector.broadcast %cst_12 : f32 to vector<16x1x32xf32>
    %c1_13 = arith.constant 1 : index
    %c24 = arith.constant 24 : index
    %c0_14 = arith.constant 0 : index
    %10 = vector.load %arg22[%c1_13, %c24, %c0_14] : memref<18x25x32xf32, #tpu.memory_space<vmem>>, vector<16x1x32xf32>
    tpu.vector_store %arg22[%c1_13, %c24, %c0_14], %9 {strides = array<i32>} : memref<18x25x32xf32, #tpu.memory_space<vmem>>, vector<16x1x32xf32>,
    %c1_15 = arith.constant 1 : index
    %c8 = arith.constant 8 : index
    %c0_16 = arith.constant 0 : index
    %11 = vector.load %arg22[%c1_15, %c8, %c0_16] : memref<18x25x32xf32, #tpu.memory_space<vmem>>, vector<16x16x32xf32>
    tpu.vector_store %arg22[%c1_15, %c8, %c0_16], %2 {strides = array<i32>} : memref<18x25x32xf32, #tpu.memory_space<vmem>>, vector<16x16x32xf32>,
    %c0_17 = arith.constant 0 : index
    %c7 = arith.constant 7 : index
    %c0_18 = arith.constant 0 : index
    %12 = vector.load %arg22[%c0_17, %c7, %c0_18] : memref<18x25x32xf32, #tpu.memory_space<vmem>>, vector<18x16x32xf32>
    %c0_19 = arith.constant 0 : index
    %c8_20 = arith.constant 8 : index
    %c0_21 = arith.constant 0 : index
    %13 = vector.load %arg22[%c0_19, %c8_20, %c0_21] : memref<18x25x32xf32, #tpu.memory_space<vmem>>, vector<18x16x32xf32>
    %c0_22 = arith.constant 0 : index
    %c9 = arith.constant 9 : index
    %c0_23 = arith.constant 0 : index
    %14 = vector.load %arg22[%c0_22, %c9, %c0_23] : memref<18x25x32xf32, #tpu.memory_space<vmem>>, vector<18x16x32xf32>
    %c0_24 = arith.constant 0 : index
    %c0_25 = arith.constant 0 : index
    %c0_26 = arith.constant 0 : index
    %c0_27 = arith.constant 0 : index
    %15 = vector.load %arg6[%c0_24, %c0_25, %c0_26, %c0_27] : memref<3x3x1x32xf32, #tpu.memory_space<vmem>>, vector<1x1x1x32xf32>
    %16 = vector.shape_cast %15 : vector<1x1x1x32xf32> to vector<1x32xf32>
    %17 = vector.shape_cast %16 : vector<1x32xf32> to vector<1x1x32xf32>
    %18 = vector.broadcast %17 : vector<1x1x32xf32> to vector<18x16x32xf32>
    %19 = arith.mulf %12, %18 : vector<18x16x32xf32>
    %c0_28 = arith.constant 0 : index
    %c1_29 = arith.constant 1 : index
    %c0_30 = arith.constant 0 : index
    %c0_31 = arith.constant 0 : index
    %20 = vector.load %arg6[%c0_28, %c1_29, %c0_30, %c0_31] : memref<3x3x1x32xf32, #tpu.memory_space<vmem>>, vector<1x1x1x32xf32>
    %21 = vector.shape_cast %20 : vector<1x1x1x32xf32> to vector<1x32xf32>
    %22 = vector.shape_cast %21 : vector<1x32xf32> to vector<1x1x32xf32>
    %23 = vector.broadcast %22 : vector<1x1x32xf32> to vector<18x16x32xf32>
    %24 = arith.mulf %13, %23 : vector<18x16x32xf32>
    %25 = arith.addf %19, %24 : vector<18x16x32xf32>
    %c0_32 = arith.constant 0 : index
    %c2 = arith.constant 2 : index
    %c0_33 = arith.constant 0 : index
    %c0_34 = arith.constant 0 : index
    %26 = vector.load %arg6[%c0_32, %c2, %c0_33, %c0_34] : memref<3x3x1x32xf32, #tpu.memory_space<vmem>>, vector<1x1x1x32xf32>
    %27 = vector.shape_cast %26 : vector<1x1x1x32xf32> to vector<1x32xf32>
    %28 = vector.shape_cast %27 : vector<1x32xf32> to vector<1x1x32xf32>
    %29 = vector.broadcast %28 : vector<1x1x32xf32> to vector<18x16x32xf32>
    %30 = arith.mulf %14, %29 : vector<18x16x32xf32>
    %31 = arith.addf %25, %30 : vector<18x16x32xf32>
    %c1_35 = arith.constant 1 : index
    %c0_36 = arith.constant 0 : index
    %c0_37 = arith.constant 0 : index
    %c0_38 = arith.constant 0 : index
    %32 = vector.load %arg6[%c1_35, %c0_36, %c0_37, %c0_38] : memref<3x3x1x32xf32, #tpu.memory_space<vmem>>, vector<1x1x1x32xf32>
    %33 = vector.shape_cast %32 : vector<1x1x1x32xf32> to vector<1x32xf32>
    %34 = vector.shape_cast %33 : vector<1x32xf32> to vector<1x1x32xf32>
    %35 = vector.broadcast %34 : vector<1x1x32xf32> to vector<18x16x32xf32>
    %36 = arith.mulf %12, %35 : vector<18x16x32xf32>
    %c1_39 = arith.constant 1 : index
    %c1_40 = arith.constant 1 : index
    %c0_41 = arith.constant 0 : index
    %c0_42 = arith.constant 0 : index
    %37 = vector.load %arg6[%c1_39, %c1_40, %c0_41, %c0_42] : memref<3x3x1x32xf32, #tpu.memory_space<vmem>>, vector<1x1x1x32xf32>
    %38 = vector.shape_cast %37 : vector<1x1x1x32xf32> to vector<1x32xf32>
    %39 = vector.shape_cast %38 : vector<1x32xf32> to vector<1x1x32xf32>
    %40 = vector.broadcast %39 : vector<1x1x32xf32> to vector<18x16x32xf32>
    %41 = arith.mulf %13, %40 : vector<18x16x32xf32>
    %42 = arith.addf %36, %41 : vector<18x16x32xf32>
    %c1_43 = arith.constant 1 : index
    %c2_44 = arith.constant 2 : index
    %c0_45 = arith.constant 0 : index
    %c0_46 = arith.constant 0 : index
    %43 = vector.load %arg6[%c1_43, %c2_44, %c0_45, %c0_46] : memref<3x3x1x32xf32, #tpu.memory_space<vmem>>, vector<1x1x1x32xf32>
    %44 = vector.shape_cast %43 : vector<1x1x1x32xf32> to vector<1x32xf32>
    %45 = vector.shape_cast %44 : vector<1x32xf32> to vector<1x1x32xf32>
    %46 = vector.broadcast %45 : vector<1x1x32xf32> to vector<18x16x32xf32>
    %47 = arith.mulf %14, %46 : vector<18x16x32xf32>
    %48 = arith.addf %42, %47 : vector<18x16x32xf32>
    %c2_47 = arith.constant 2 : index
    %c0_48 = arith.constant 0 : index
    %c0_49 = arith.constant 0 : index
    %c0_50 = arith.constant 0 : index
    %49 = vector.load %arg6[%c2_47, %c0_48, %c0_49, %c0_50] : memref<3x3x1x32xf32, #tpu.memory_space<vmem>>, vector<1x1x1x32xf32>
    %50 = vector.shape_cast %49 : vector<1x1x1x32xf32> to vector<1x32xf32>
    %51 = vector.shape_cast %50 : vector<1x32xf32> to vector<1x1x32xf32>
    %52 = vector.broadcast %51 : vector<1x1x32xf32> to vector<18x16x32xf32>
    %53 = arith.mulf %12, %52 : vector<18x16x32xf32>
    %c2_51 = arith.constant 2 : index
    %c1_52 = arith.constant 1 : index
    %c0_53 = arith.constant 0 : index
    %c0_54 = arith.constant 0 : index
    %54 = vector.load %arg6[%c2_51, %c1_52, %c0_53, %c0_54] : memref<3x3x1x32xf32, #tpu.memory_space<vmem>>, vector<1x1x1x32xf32>
    %55 = vector.shape_cast %54 : vector<1x1x1x32xf32> to vector<1x32xf32>
    %56 = vector.shape_cast %55 : vector<1x32xf32> to vector<1x1x32xf32>
    %57 = vector.broadcast %56 : vector<1x1x32xf32> to vector<18x16x32xf32>
    %58 = arith.mulf %13, %57 : vector<18x16x32xf32>
    %59 = arith.addf %53, %58 : vector<18x16x32xf32>
    %c2_55 = arith.constant 2 : index
    %c2_56 = arith.constant 2 : index
    %c0_57 = arith.constant 0 : index
    %c0_58 = arith.constant 0 : index
    %60 = vector.load %arg6[%c2_55, %c2_56, %c0_57, %c0_58] : memref<3x3x1x32xf32, #tpu.memory_space<vmem>>, vector<1x1x1x32xf32>
    %61 = vector.shape_cast %60 : vector<1x1x1x32xf32> to vector<1x32xf32>
    %62 = vector.shape_cast %61 : vector<1x32xf32> to vector<1x1x32xf32>
    %63 = vector.broadcast %62 : vector<1x1x32xf32> to vector<18x16x32xf32>
    %64 = arith.mulf %14, %63 : vector<18x16x32xf32>
    %65 = arith.addf %59, %64 : vector<18x16x32xf32>
    %66 = vector.extract_strided_slice %31 {offsets = [0, 0, 0], sizes = [16, 16, 32], strides = [1, 1, 1]} : vector<18x16x32xf32> to vector<16x16x32xf32>
    %67 = vector.extract_strided_slice %48 {offsets = [1, 0, 0], sizes = [16, 16, 32], strides = [1, 1, 1]} : vector<18x16x32xf32> to vector<16x16x32xf32>
    %68 = arith.addf %66, %67 : vector<16x16x32xf32>
    %69 = vector.extract_strided_slice %65 {offsets = [2, 0, 0], sizes = [16, 16, 32], strides = [1, 1, 1]} : vector<18x16x32xf32> to vector<16x16x32xf32>
    %70 = arith.addf %68, %69 : vector<16x16x32xf32>
    %c0_59 = arith.constant 0 : index
    %c0_60 = arith.constant 0 : index
    %71 = vector.load %arg7[%c0_59, %c0_60] : memref<1x32xf32, #tpu.memory_space<vmem>>, vector<1x32xf32>
    %72 = vector.shape_cast %71 : vector<1x32xf32> to vector<1x1x32xf32>
    %73 = vector.broadcast %72 : vector<1x1x32xf32> to vector<16x16x32xf32>
    %74 = arith.addf %70, %73 : vector<16x16x32xf32>
    %75 = arith.mulf %74, %74 : vector<16x16x32xf32>
    %cst_61 = arith.constant dense<0.000000e+00> : vector<16x16xf32>
    %76 = vector.multi_reduction <add>, %75, %cst_61 [2] : vector<16x16x32xf32> to vector<16x16xf32>
    %77 = vector.shape_cast %76 : vector<16x16xf32> to vector<16x16x1xf32>
    %cst_62 = arith.constant 3.200000e+01 : f32
    %78 = vector.broadcast %cst_62 : f32 to vector<16x16x1xf32>
    %79 = arith.divf %77, %78 : vector<16x16x1xf32>
    %cst_63 = arith.constant 9.99999997E-7 : f32
    %80 = vector.broadcast %cst_63 : f32 to vector<16x16x1xf32>
    %81 = arith.addf %79, %80 : vector<16x16x1xf32>
    %82 = math.rsqrt %81 : vector<16x16x1xf32>
    %83 = vector.broadcast %82 : vector<16x16x1xf32> to vector<16x16x32xf32>
    %84 = arith.mulf %74, %83 : vector<16x16x32xf32>
    %c0_64 = arith.constant 0 : index
    %c0_65 = arith.constant 0 : index
    %85 = vector.load %arg8[%c0_64, %c0_65] : memref<1x32xf32, #tpu.memory_space<vmem>>, vector<1x32xf32>
    %86 = vector.shape_cast %85 : vector<1x32xf32> to vector<1x1x32xf32>
    %87 = vector.broadcast %86 : vector<1x1x32xf32> to vector<16x16x32xf32>
    %88 = arith.mulf %84, %87 : vector<16x16x32xf32>
    %89 = vector.shape_cast %88 : vector<16x16x32xf32> to vector<256x32xf32>
    %90 = arith.truncf %89 : vector<256x32xf32> to vector<256x32xbf16>
    %c0_66 = arith.constant 0 : index
    %c0_67 = arith.constant 0 : index
    %91 = vector.load %arg9[%c0_66, %c0_67] : memref<32x128xbf16, #tpu.memory_space<vmem>>, vector<32x128xbf16>
    %cst_68 = arith.constant dense<0.000000e+00> : vector<256x128xf32>
    %92 = tpu.matmul %90, %91, %cst_68 {dimension_numbers = #tpu.dot_dimension_numbers<[1], [0], [0], [1], [0, 0, 1, 1], [], []>} : vector<256x32xbf16>, vector<32x128xbf16>, vector<256x128xf32> -> vector<256x128xf32>
    %c0_69 = arith.constant 0 : index
    %c0_70 = arith.constant 0 : index
    %93 = vector.load %arg10[%c0_69, %c0_70] : memref<1x128xf32, #tpu.memory_space<vmem>>, vector<1x128xf32>
    %94 = vector.broadcast %93 : vector<1x128xf32> to vector<256x128xf32>
    %95 = arith.addf %92, %94 : vector<256x128xf32>
    %96 = arith.mulf %95, %95 : vector<256x128xf32>
    %97 = arith.mulf %96, %95 : vector<256x128xf32>
    %cst_71 = arith.constant 5.000000e-01 : f32
    %98 = vector.broadcast %cst_71 : f32 to vector<256x128xf32>
    %99 = arith.mulf %98, %95 : vector<256x128xf32>
    %cst_72 = arith.constant 4.471500e-02 : f32
    %100 = vector.broadcast %cst_72 : f32 to vector<256x128xf32>
    %101 = arith.mulf %100, %97 : vector<256x128xf32>
    %102 = arith.addf %95, %101 : vector<256x128xf32>
    %cst_73 = arith.constant 0.797884583 : f32
    %103 = vector.broadcast %cst_73 : f32 to vector<256x128xf32>
    %104 = arith.mulf %103, %102 : vector<256x128xf32>
    %105 = math.tanh %104 : vector<256x128xf32>
    %cst_74 = arith.constant 1.000000e+00 : f32
    %106 = vector.broadcast %cst_74 : f32 to vector<256x128xf32>
    %107 = arith.addf %106, %105 : vector<256x128xf32>
    %108 = arith.mulf %99, %107 : vector<256x128xf32>
    %109 = arith.mulf %108, %108 : vector<256x128xf32>
    %cst_75 = arith.constant dense<0.000000e+00> : vector<128xf32>
    %110 = vector.multi_reduction <add>, %109, %cst_75 [0] : vector<256x128xf32> to vector<128xf32>
    %111 = vector.shape_cast %110 : vector<128xf32> to vector<1x128xf32>
    %112 = math.sqrt %111 : vector<1x128xf32>
    %cst_76 = arith.constant dense<0.000000e+00> : vector<1xf32>
    %113 = vector.multi_reduction <add>, %112, %cst_76 [1] : vector<1x128xf32> to vector<1xf32>
    %114 = vector.shape_cast %113 : vector<1xf32> to vector<1x1xf32>
    %cst_77 = arith.constant 1.280000e+02 : f32
    %115 = vector.broadcast %cst_77 : f32 to vector<1x1xf32>
    %116 = arith.divf %114, %115 : vector<1x1xf32>
    %cst_78 = arith.constant 9.99999997E-7 : f32
    %117 = vector.broadcast %cst_78 : f32 to vector<1x1xf32>
    %118 = arith.addf %116, %117 : vector<1x1xf32>
    %119 = tpu.reciprocal %118 {approx = true} : vector<1x1xf32> -> vector<1x1xf32>
    %120 = vector.broadcast %119 : vector<1x1xf32> to vector<1x128xf32>
    %121 = arith.mulf %112, %120 : vector<1x128xf32>
    %c0_79 = arith.constant 0 : index
    %c0_80 = arith.constant 0 : index
    %122 = vector.load %arg11[%c0_79, %c0_80] : memref<1x128xf32, #tpu.memory_space<vmem>>, vector<1x128xf32>
    %123 = vector.broadcast %121 : vector<1x128xf32> to vector<256x128xf32>
    %124 = arith.mulf %108, %123 : vector<256x128xf32>
    %125 = vector.broadcast %122 : vector<1x128xf32> to vector<256x128xf32>
    %126 = arith.mulf %125, %124 : vector<256x128xf32>
    %c0_81 = arith.constant 0 : index
    %c0_82 = arith.constant 0 : index
    %127 = vector.load %arg12[%c0_81, %c0_82] : memref<1x128xf32, #tpu.memory_space<vmem>>, vector<1x128xf32>
    %128 = vector.broadcast %127 : vector<1x128xf32> to vector<256x128xf32>
    %129 = arith.addf %126, %128 : vector<256x128xf32>
    %130 = arith.addf %129, %108 : vector<256x128xf32>
    %131 = arith.truncf %130 : vector<256x128xf32> to vector<256x128xbf16>
    %c0_83 = arith.constant 0 : index
    %c0_84 = arith.constant 0 : index
    %132 = vector.load %arg13[%c0_83, %c0_84] : memref<128x32xbf16, #tpu.memory_space<vmem>>, vector<128x32xbf16>
    %cst_85 = arith.constant dense<0.000000e+00> : vector<256x32xf32>
    %133 = tpu.matmul %131, %132, %cst_85 {dimension_numbers = #tpu.dot_dimension_numbers<[1], [0], [0], [1], [0, 0, 1, 1], [], []>} : vector<256x128xbf16>, vector<128x32xbf16>, vector<256x32xf32> -> vector<256x32xf32>
    %c0_86 = arith.constant 0 : index
    %c0_87 = arith.constant 0 : index
    %134 = vector.load %arg14[%c0_86, %c0_87] : memref<1x32xf32, #tpu.memory_space<vmem>>, vector<1x32xf32>
    %135 = vector.broadcast %134 : vector<1x32xf32> to vector<256x32xf32>
    %136 = arith.addf %133, %135 : vector<256x32xf32>
    %137 = vector.shape_cast %2 : vector<16x16x32xf32> to vector<256x32xf32>
    %138 = arith.addf %136, %137 : vector<256x32xf32>
    %c0_88 = arith.constant 0 : index
    %c0_89 = arith.constant 0 : index
    %c0_90 = arith.constant 0 : index
    %139 = vector.load %arg2[%c0_88, %c0_89, %c0_90] : memref<1x1x32xf32, #tpu.memory_space<vmem>>, vector<1x1x32xf32>
    %140 = vector.shape_cast %139 : vector<1x1x32xf32> to vector<1x32xf32>
    %cst_91 = arith.constant 1.000000e+00 : f32
    %141 = vector.broadcast %cst_91 : f32 to vector<1x32xf32>
    %142 = arith.addf %141, %140 : vector<1x32xf32>
    %143 = vector.broadcast %142 : vector<1x32xf32> to vector<256x32xf32>
    %144 = arith.mulf %138, %143 : vector<256x32xf32>
    %c0_92 = arith.constant 0 : index
    %c0_93 = arith.constant 0 : index
    %c0_94 = arith.constant 0 : index
    %145 = vector.load %arg3[%c0_92, %c0_93, %c0_94] : memref<1x1x32xf32, #tpu.memory_space<vmem>>, vector<1x1x32xf32>
    %146 = vector.shape_cast %145 : vector<1x1x32xf32> to vector<1x32xf32>
    %147 = vector.broadcast %146 : vector<1x32xf32> to vector<256x32xf32>
    %148 = arith.addf %144, %147 : vector<256x32xf32>
    %149 = arith.mulf %148, %148 : vector<256x32xf32>
    %cst_95 = arith.constant dense<0.000000e+00> : vector<256xf32>
    %150 = vector.multi_reduction <add>, %149, %cst_95 [1] : vector<256x32xf32> to vector<256xf32>
    %151 = vector.shape_cast %150 : vector<256xf32> to vector<256x1xf32>
    %cst_96 = arith.constant 3.200000e+01 : f32
    %152 = vector.broadcast %cst_96 : f32 to vector<256x1xf32>
    %153 = arith.divf %151, %152 : vector<256x1xf32>
    %cst_97 = arith.constant 9.99999997E-7 : f32
    %154 = vector.broadcast %cst_97 : f32 to vector<256x1xf32>
    %155 = arith.addf %153, %154 : vector<256x1xf32>
    %156 = math.rsqrt %155 : vector<256x1xf32>
    %157 = vector.broadcast %156 : vector<256x1xf32> to vector<256x32xf32>
    %158 = arith.mulf %148, %157 : vector<256x32xf32>
    %c0_98 = arith.constant 0 : index
    %c0_99 = arith.constant 0 : index
    %c0_100 = arith.constant 0 : index
    %159 = vector.load %arg15[%c0_98, %c0_99, %c0_100] : memref<2x1x32xf32, #tpu.memory_space<vmem>>, vector<1x1x32xf32>
    %160 = vector.shape_cast %159 : vector<1x1x32xf32> to vector<1x32xf32>
    %161 = vector.broadcast %160 : vector<1x32xf32> to vector<256x32xf32>
    %162 = arith.mulf %158, %161 : vector<256x32xf32>
    %163 = arith.truncf %162 : vector<256x32xf32> to vector<256x32xbf16>
    %c0_101 = arith.constant 0 : index
    %c0_102 = arith.constant 0 : index
    %c0_103 = arith.constant 0 : index
    %164 = vector.load %arg16[%c0_101, %c0_102, %c0_103] : memref<2x32x32xbf16, #tpu.memory_space<vmem>>, vector<1x32x32xbf16>
    %165 = vector.shape_cast %164 : vector<1x32x32xbf16> to vector<32x32xbf16>
    %cst_104 = arith.constant dense<0.000000e+00> : vector<256x32xf32>
    %166 = tpu.matmul %163, %165, %cst_104 {dimension_numbers = #tpu.dot_dimension_numbers<[1], [0], [0], [1], [0, 0, 1, 1], [], []>} : vector<256x32xbf16>, vector<32x32xbf16>, vector<256x32xf32> -> vector<256x32xf32>
    %c0_105 = arith.constant 0 : index
    %c0_106 = arith.constant 0 : index
    %c0_107 = arith.constant 0 : index
    %167 = vector.load %arg17[%c0_105, %c0_106, %c0_107] : memref<2x1x32xf32, #tpu.memory_space<vmem>>, vector<1x1x32xf32>
    %168 = vector.shape_cast %167 : vector<1x1x32xf32> to vector<1x32xf32>
    %169 = vector.broadcast %168 : vector<1x32xf32> to vector<256x32xf32>
    %170 = arith.addf %166, %169 : vector<256x32xf32>
    %171 = arith.truncf %170 : vector<256x32xf32> to vector<256x32xbf16>
    %c0_108 = arith.constant 0 : index
    %c0_109 = arith.constant 0 : index
    %c0_110 = arith.constant 0 : index
    %c0_111 = arith.constant 0 : index
    %172 = vector.load %arg4[%c0_108, %c0_109, %c0_110, %c0_111] : memref<1x2x32x16xbf16, #tpu.memory_space<vmem>>, vector<1x1x32x16xbf16>
    %173 = vector.shape_cast %172 : vector<1x1x32x16xbf16> to vector<32x16xbf16>
    %cst_112 = arith.constant dense<0.000000e+00> : vector<256x16xf32>
    %174 = tpu.matmul %171, %173, %cst_112 {dimension_numbers = #tpu.dot_dimension_numbers<[1], [0], [0], [1], [0, 0, 1, 1], [], []>} : vector<256x32xbf16>, vector<32x16xbf16>, vector<256x16xf32> -> vector<256x16xf32>
    %cst_113 = arith.constant 2.500000e-01 : f32
    %175 = vector.broadcast %cst_113 : f32 to vector<256x16xf32>
    %176 = arith.mulf %174, %175 : vector<256x16xf32>
    %cst_114 = arith.constant dense<0xFF800000> : vector<256xf32>
    %177 = vector.multi_reduction <maximumf>, %176, %cst_114 [1] : vector<256x16xf32> to vector<256xf32>
    %178 = vector.shape_cast %177 : vector<256xf32> to vector<256x1xf32>
    %179 = vector.broadcast %178 : vector<256x1xf32> to vector<256x16xf32>
    %180 = arith.subf %176, %179 : vector<256x16xf32>
    %181 = math.exp %180 : vector<256x16xf32>
    %c0_115 = arith.constant 0 : index
    %c0_116 = arith.constant 0 : index
    %182 = vector.load %arg20[%c0_115, %c0_116] : memref<16x16xf32, #tpu.memory_space<vmem>>, vector<16x16xf32>
    %cst_117 = arith.constant dense<0.000000e+00> : vector<256x16xf32>
    %183 = tpu.matmul %181, %182, %cst_117 {dimension_numbers = #tpu.dot_dimension_numbers<[1], [0], [0], [1], [0, 0, 1, 1], [], []>} : vector<256x16xf32>, vector<16x16xf32>, vector<256x16xf32> -> vector<256x16xf32>
    %184 = tpu.reciprocal %183 {approx = true} : vector<256x16xf32> -> vector<256x16xf32>
    %185 = arith.mulf %181, %184 : vector<256x16xf32>
    %186 = arith.truncf %185 : vector<256x16xf32> to vector<256x16xbf16>
    %c0_118 = arith.constant 0 : index
    %c0_119 = arith.constant 0 : index
    %c0_120 = arith.constant 0 : index
    %c0_121 = arith.constant 0 : index
    %187 = vector.load %arg5[%c0_118, %c0_119, %c0_120, %c0_121] : memref<1x2x16x32xbf16, #tpu.memory_space<vmem>>, vector<1x1x16x32xbf16>
    %188 = vector.shape_cast %187 : vector<1x1x16x32xbf16> to vector<16x32xbf16>
    %cst_122 = arith.constant dense<0.000000e+00> : vector<256x32xf32>
    %189 = tpu.matmul %186, %188, %cst_122 {dimension_numbers = #tpu.dot_dimension_numbers<[1], [0], [0], [1], [0, 0, 1, 1], [], []>} : vector<256x16xbf16>, vector<16x32xbf16>, vector<256x32xf32> -> vector<256x32xf32>
    %190 = arith.truncf %189 : vector<256x32xf32> to vector<256x32xbf16>
    %c0_123 = arith.constant 0 : index
    %c0_124 = arith.constant 0 : index
    %c0_125 = arith.constant 0 : index
    %191 = vector.load %arg18[%c0_123, %c0_124, %c0_125] : memref<2x32x32xbf16, #tpu.memory_space<vmem>>, vector<1x32x32xbf16>
    %192 = vector.shape_cast %191 : vector<1x32x32xbf16> to vector<32x32xbf16>
    %cst_126 = arith.constant dense<0.000000e+00> : vector<256x32xf32>
    %193 = tpu.matmul %190, %192, %cst_126 {dimension_numbers = #tpu.dot_dimension_numbers<[1], [0], [0], [1], [0, 0, 1, 1], [], []>} : vector<256x32xbf16>, vector<32x32xbf16>, vector<256x32xf32> -> vector<256x32xf32>
    %c0_127 = arith.constant 0 : index
    %c0_128 = arith.constant 0 : index
    %c0_129 = arith.constant 0 : index
    %194 = vector.load %arg19[%c0_127, %c0_128, %c0_129] : memref<2x1x32xf32, #tpu.memory_space<vmem>>, vector<1x1x32xf32>
    %195 = vector.shape_cast %194 : vector<1x1x32xf32> to vector<1x32xf32>
    %196 = vector.broadcast %195 : vector<1x32xf32> to vector<256x32xf32>
    %197 = arith.addf %193, %196 : vector<256x32xf32>
    %198 = arith.addf %148, %197 : vector<256x32xf32>
    %199 = arith.mulf %198, %198 : vector<256x32xf32>
    %cst_130 = arith.constant dense<0.000000e+00> : vector<256xf32>
    %200 = vector.multi_reduction <add>, %199, %cst_130 [1] : vector<256x32xf32> to vector<256xf32>
    %201 = vector.shape_cast %200 : vector<256xf32> to vector<256x1xf32>
    %cst_131 = arith.constant 3.200000e+01 : f32
    %202 = vector.broadcast %cst_131 : f32 to vector<256x1xf32>
    %203 = arith.divf %201, %202 : vector<256x1xf32>
    %cst_132 = arith.constant 9.99999997E-7 : f32
    %204 = vector.broadcast %cst_132 : f32 to vector<256x1xf32>
    %205 = arith.addf %203, %204 : vector<256x1xf32>
    %206 = math.rsqrt %205 : vector<256x1xf32>
    %207 = vector.broadcast %206 : vector<256x1xf32> to vector<256x32xf32>
    %208 = arith.mulf %198, %207 : vector<256x32xf32>
    %c1_133 = arith.constant 1 : index
    %c0_134 = arith.constant 0 : index
    %c0_135 = arith.constant 0 : index
    %209 = vector.load %arg15[%c1_133, %c0_134, %c0_135] : memref<2x1x32xf32, #tpu.memory_space<vmem>>, vector<1x1x32xf32>
    %210 = vector.shape_cast %209 : vector<1x1x32xf32> to vector<1x32xf32>
    %211 = vector.broadcast %210 : vector<1x32xf32> to vector<256x32xf32>
    %212 = arith.mulf %208, %211 : vector<256x32xf32>
    %213 = arith.truncf %212 : vector<256x32xf32> to vector<256x32xbf16>
    %c1_136 = arith.constant 1 : index
    %c0_137 = arith.constant 0 : index
    %c0_138 = arith.constant 0 : index
    %214 = vector.load %arg16[%c1_136, %c0_137, %c0_138] : memref<2x32x32xbf16, #tpu.memory_space<vmem>>, vector<1x32x32xbf16>
    %215 = vector.shape_cast %214 : vector<1x32x32xbf16> to vector<32x32xbf16>
    %cst_139 = arith.constant dense<0.000000e+00> : vector<256x32xf32>
    %216 = tpu.matmul %213, %215, %cst_139 {dimension_numbers = #tpu.dot_dimension_numbers<[1], [0], [0], [1], [0, 0, 1, 1], [], []>} : vector<256x32xbf16>, vector<32x32xbf16>, vector<256x32xf32> -> vector<256x32xf32>
    %c1_140 = arith.constant 1 : index
    %c0_141 = arith.constant 0 : index
    %c0_142 = arith.constant 0 : index
    %217 = vector.load %arg17[%c1_140, %c0_141, %c0_142] : memref<2x1x32xf32, #tpu.memory_space<vmem>>, vector<1x1x32xf32>
    %218 = vector.shape_cast %217 : vector<1x1x32xf32> to vector<1x32xf32>
    %219 = vector.broadcast %218 : vector<1x32xf32> to vector<256x32xf32>
    %220 = arith.addf %216, %219 : vector<256x32xf32>
    %221 = arith.truncf %220 : vector<256x32xf32> to vector<256x32xbf16>
    %c0_143 = arith.constant 0 : index
    %c1_144 = arith.constant 1 : index
    %c0_145 = arith.constant 0 : index
    %c0_146 = arith.constant 0 : index
    %222 = vector.load %arg4[%c0_143, %c1_144, %c0_145, %c0_146] : memref<1x2x32x16xbf16, #tpu.memory_space<vmem>>, vector<1x1x32x16xbf16>
    %223 = vector.shape_cast %222 : vector<1x1x32x16xbf16> to vector<32x16xbf16>
    %cst_147 = arith.constant dense<0.000000e+00> : vector<256x16xf32>
    %224 = tpu.matmul %221, %223, %cst_147 {dimension_numbers = #tpu.dot_dimension_numbers<[1], [0], [0], [1], [0, 0, 1, 1], [], []>} : vector<256x32xbf16>, vector<32x16xbf16>, vector<256x16xf32> -> vector<256x16xf32>
    %cst_148 = arith.constant 2.500000e-01 : f32
    %225 = vector.broadcast %cst_148 : f32 to vector<256x16xf32>
    %226 = arith.mulf %224, %225 : vector<256x16xf32>
    %cst_149 = arith.constant dense<0xFF800000> : vector<256xf32>
    %227 = vector.multi_reduction <maximumf>, %226, %cst_149 [1] : vector<256x16xf32> to vector<256xf32>
    %228 = vector.shape_cast %227 : vector<256xf32> to vector<256x1xf32>
    %229 = vector.broadcast %228 : vector<256x1xf32> to vector<256x16xf32>
    %230 = arith.subf %226, %229 : vector<256x16xf32>
    %231 = math.exp %230 : vector<256x16xf32>
    %c0_150 = arith.constant 0 : index
    %c0_151 = arith.constant 0 : index
    %232 = vector.load %arg20[%c0_150, %c0_151] : memref<16x16xf32, #tpu.memory_space<vmem>>, vector<16x16xf32>
    %cst_152 = arith.constant dense<0.000000e+00> : vector<256x16xf32>
    %233 = tpu.matmul %231, %232, %cst_152 {dimension_numbers = #tpu.dot_dimension_numbers<[1], [0], [0], [1], [0, 0, 1, 1], [], []>} : vector<256x16xf32>, vector<16x16xf32>, vector<256x16xf32> -> vector<256x16xf32>
    %234 = tpu.reciprocal %233 {approx = true} : vector<256x16xf32> -> vector<256x16xf32>
    %235 = arith.mulf %231, %234 : vector<256x16xf32>
    %236 = arith.truncf %235 : vector<256x16xf32> to vector<256x16xbf16>
    %c0_153 = arith.constant 0 : index
    %c1_154 = arith.constant 1 : index
    %c0_155 = arith.constant 0 : index
    %c0_156 = arith.constant 0 : index
    %237 = vector.load %arg5[%c0_153, %c1_154, %c0_155, %c0_156] : memref<1x2x16x32xbf16, #tpu.memory_space<vmem>>, vector<1x1x16x32xbf16>
    %238 = vector.shape_cast %237 : vector<1x1x16x32xbf16> to vector<16x32xbf16>
    %cst_157 = arith.constant dense<0.000000e+00> : vector<256x32xf32>
    %239 = tpu.matmul %236, %238, %cst_157 {dimension_numbers = #tpu.dot_dimension_numbers<[1], [0], [0], [1], [0, 0, 1, 1], [], []>} : vector<256x16xbf16>, vector<16x32xbf16>, vector<256x32xf32> -> vector<256x32xf32>
    %240 = arith.truncf %239 : vector<256x32xf32> to vector<256x32xbf16>
    %c1_158 = arith.constant 1 : index
    %c0_159 = arith.constant 0 : index
    %c0_160 = arith.constant 0 : index
    %241 = vector.load %arg18[%c1_158, %c0_159, %c0_160] : memref<2x32x32xbf16, #tpu.memory_space<vmem>>, vector<1x32x32xbf16>
    %242 = vector.shape_cast %241 : vector<1x32x32xbf16> to vector<32x32xbf16>
    %cst_161 = arith.constant dense<0.000000e+00> : vector<256x32xf32>
    %243 = tpu.matmul %240, %242, %cst_161 {dimension_numbers = #tpu.dot_dimension_numbers<[1], [0], [0], [1], [0, 0, 1, 1], [], []>} : vector<256x32xbf16>, vector<32x32xbf16>, vector<256x32xf32> -> vector<256x32xf32>
    %c1_162 = arith.constant 1 : index
    %c0_163 = arith.constant 0 : index
    %c0_164 = arith.constant 0 : index
    %244 = vector.load %arg19[%c1_162, %c0_163, %c0_164] : memref<2x1x32xf32, #tpu.memory_space<vmem>>, vector<1x1x32xf32>
    %245 = vector.shape_cast %244 : vector<1x1x32xf32> to vector<1x32xf32>
    %246 = vector.broadcast %245 : vector<1x32xf32> to vector<256x32xf32>
    %247 = arith.addf %243, %246 : vector<256x32xf32>
    %248 = arith.addf %198, %247 : vector<256x32xf32>
    %249 = vector.shape_cast %248 : vector<256x32xf32> to vector<16x16x32xf32>
    %250 = arith.truncf %249 : vector<16x16x32xf32> to vector<16x16x32xbf16>
    %c0_165 = arith.constant 0 : index
    %c0_166 = arith.constant 0 : index
    %c0_167 = arith.constant 0 : index
    %c0_168 = arith.constant 0 : index
    %251 = vector.load %arg21[%c0_165, %c0_166, %c0_167, %c0_168] : memref<1x16x16x32xbf16, #tpu.memory_space<vmem>>, vector<1x16x16x32xbf16>
    %252 = vector.shape_cast %251 : vector<1x16x16x32xbf16> to vector<16x16x32xbf16>
    %253 = vector.shape_cast %250 : vector<16x16x32xbf16> to vector<1x16x16x32xbf16>
    tpu.vector_store %arg21[%c0_165, %c0_166, %c0_167, %c0_168], %253 {strides = array<i32>} : memref<1x16x16x32xbf16, #tpu.memory_space<vmem>>, vector<1x16x16x32xbf16>,
    return
  }
  func.func @transform_0(%arg0: i32) -> (i32, i32, i32, i32) {
    %c0_i32 = arith.constant 0 : i32
    %c0_i32_0 = arith.constant 0 : i32
    %c0_i32_1 = arith.constant 0 : i32
    %c0_i32_2 = arith.constant 0 : i32
    return %arg0, %c0_i32, %c0_i32_0, %c0_i32_1 : i32, i32, i32, i32
  }
  func.func @transform_1(%arg0: i32) -> (i32, i32, i32) {
    %c0_i32 = arith.constant 0 : i32
    %c0_i32_0 = arith.constant 0 : i32
    %c0_i32_1 = arith.constant 0 : i32
    return %arg0, %c0_i32, %c0_i32_0 : i32, i32, i32
  }
  func.func @transform_2(%arg0: i32) -> (i32, i32, i32) {
    %c0_i32 = arith.constant 0 : i32
    %c0_i32_0 = arith.constant 0 : i32
    %c0_i32_1 = arith.constant 0 : i32
    return %arg0, %c0_i32, %c0_i32_0 : i32, i32, i32
  }
  func.func @transform_3(%arg0: i32) -> (i32, i32, i32, i32) {
    %c0_i32 = arith.constant 0 : i32
    %c0_i32_0 = arith.constant 0 : i32
    %c0_i32_1 = arith.constant 0 : i32
    %c0_i32_2 = arith.constant 0 : i32
    return %arg0, %c0_i32, %c0_i32_0, %c0_i32_1 : i32, i32, i32, i32
  }
  func.func @transform_4(%arg0: i32) -> (i32, i32, i32, i32) {
    %c0_i32 = arith.constant 0 : i32
    %c0_i32_0 = arith.constant 0 : i32
    %c0_i32_1 = arith.constant 0 : i32
    %c0_i32_2 = arith.constant 0 : i32
    return %arg0, %c0_i32, %c0_i32_0, %c0_i32_1 : i32, i32, i32, i32
  }
  func.func @transform_5(%arg0: i32) -> (i32, i32, i32, i32) {
    %c0_i32 = arith.constant 0 : i32
    %c0_i32_0 = arith.constant 0 : i32
    %c0_i32_1 = arith.constant 0 : i32
    %c0_i32_2 = arith.constant 0 : i32
    %c0_i32_3 = arith.constant 0 : i32
    return %c0_i32, %c0_i32_0, %c0_i32_1, %c0_i32_2 : i32, i32, i32, i32
  }
  func.func @transform_6(%arg0: i32) -> (i32, i32) {
    %c0_i32 = arith.constant 0 : i32
    %c0_i32_0 = arith.constant 0 : i32
    %c0_i32_1 = arith.constant 0 : i32
    return %c0_i32, %c0_i32_0 : i32, i32
  }
  func.func @transform_7(%arg0: i32) -> (i32, i32) {
    %c0_i32 = arith.constant 0 : i32
    %c0_i32_0 = arith.constant 0 : i32
    %c0_i32_1 = arith.constant 0 : i32
    return %c0_i32, %c0_i32_0 : i32, i32
  }
  func.func @transform_8(%arg0: i32) -> (i32, i32) {
    %c0_i32 = arith.constant 0 : i32
    %c0_i32_0 = arith.constant 0 : i32
    %c0_i32_1 = arith.constant 0 : i32
    return %c0_i32, %c0_i32_0 : i32, i32
  }
  func.func @transform_9(%arg0: i32) -> (i32, i32) {
    %c0_i32 = arith.constant 0 : i32
    %c0_i32_0 = arith.constant 0 : i32
    %c0_i32_1 = arith.constant 0 : i32
    return %c0_i32, %c0_i32_0 : i32, i32
  }
  func.func @transform_10(%arg0: i32) -> (i32, i32) {
    %c0_i32 = arith.constant 0 : i32
    %c0_i32_0 = arith.constant 0 : i32
    %c0_i32_1 = arith.constant 0 : i32
    return %c0_i32, %c0_i32_0 : i32, i32
  }
  func.func @transform_11(%arg0: i32) -> (i32, i32) {
    %c0_i32 = arith.constant 0 : i32
    %c0_i32_0 = arith.constant 0 : i32
    %c0_i32_1 = arith.constant 0 : i32
    return %c0_i32, %c0_i32_0 : i32, i32
  }
  func.func @transform_12(%arg0: i32) -> (i32, i32) {
    %c0_i32 = arith.constant 0 : i32
    %c0_i32_0 = arith.constant 0 : i32
    %c0_i32_1 = arith.constant 0 : i32
    return %c0_i32, %c0_i32_0 : i32, i32
  }
  func.func @transform_13(%arg0: i32) -> (i32, i32) {
    %c0_i32 = arith.constant 0 : i32
    %c0_i32_0 = arith.constant 0 : i32
    %c0_i32_1 = arith.constant 0 : i32
    return %c0_i32, %c0_i32_0 : i32, i32
  }
  func.func @transform_14(%arg0: i32) -> (i32, i32, i32) {
    %c0_i32 = arith.constant 0 : i32
    %c0_i32_0 = arith.constant 0 : i32
    %c0_i32_1 = arith.constant 0 : i32
    %c0_i32_2 = arith.constant 0 : i32
    return %c0_i32, %c0_i32_0, %c0_i32_1 : i32, i32, i32
  }
  func.func @transform_15(%arg0: i32) -> (i32, i32, i32) {
    %c0_i32 = arith.constant 0 : i32
    %c0_i32_0 = arith.constant 0 : i32
    %c0_i32_1 = arith.constant 0 : i32
    %c0_i32_2 = arith.constant 0 : i32
    return %c0_i32, %c0_i32_0, %c0_i32_1 : i32, i32, i32
  }
  func.func @transform_16(%arg0: i32) -> (i32, i32, i32) {
    %c0_i32 = arith.constant 0 : i32
    %c0_i32_0 = arith.constant 0 : i32
    %c0_i32_1 = arith.constant 0 : i32
    %c0_i32_2 = arith.constant 0 : i32
    return %c0_i32, %c0_i32_0, %c0_i32_1 : i32, i32, i32
  }
  func.func @transform_17(%arg0: i32) -> (i32, i32, i32) {
    %c0_i32 = arith.constant 0 : i32
    %c0_i32_0 = arith.constant 0 : i32
    %c0_i32_1 = arith.constant 0 : i32
    %c0_i32_2 = arith.constant 0 : i32
    return %c0_i32, %c0_i32_0, %c0_i32_1 : i32, i32, i32
  }
  func.func @transform_18(%arg0: i32) -> (i32, i32, i32) {
    %c0_i32 = arith.constant 0 : i32
    %c0_i32_0 = arith.constant 0 : i32
    %c0_i32_1 = arith.constant 0 : i32
    %c0_i32_2 = arith.constant 0 : i32
    return %c0_i32, %c0_i32_0, %c0_i32_1 : i32, i32, i32
  }
  func.func @transform_19(%arg0: i32) -> (i32, i32) {
    %c0_i32 = arith.constant 0 : i32
    %c0_i32_0 = arith.constant 0 : i32
    %c0_i32_1 = arith.constant 0 : i32
    return %c0_i32, %c0_i32_0 : i32, i32
  }
  func.func @transform_20(%arg0: i32) -> (i32, i32, i32, i32) {
    %c0_i32 = arith.constant 0 : i32
    %c0_i32_0 = arith.constant 0 : i32
    %c0_i32_1 = arith.constant 0 : i32
    %c0_i32_2 = arith.constant 0 : i32
    return %arg0, %c0_i32, %c0_i32_0, %c0_i32_1 : i32, i32, i32, i32
  }
}

</mosaic_0001>

<llo_original>
// kernel: uvit_block_forward.2
$region0: #{uvit_block_forward.2}
  #allocation0 [shape = 'u32[]', space=smem, size = 0x4, offset = 0x4, fixed_abs, tag = 'smem constant byte address 0x4 - core index']
  #allocation1 [shape = 'u32[144,128]{1,0:T(1,128)}', space=vmem, size = 0x12000, scoped, tag = 'internal scratch']
  #allocation2 [shape = 'f32[18,25,32]{2,1,0:T(8,128)}', space=vmem, size = 0x48000, scoped, tag = 'scratch operand']
  %s0 = inlined_call_operand.vmem [shape: bf16[2,16,16,32], index: 0, kind: input, shape index: {}]
  %s1 = inlined_call_operand.vmem [shape: f32[2,1,32], index: 1, kind: input, shape index: {}]
  %s2 = inlined_call_operand.vmem [shape: f32[2,1,32], index: 2, kind: input, shape index: {}]
  %s3 = inlined_call_operand.vmem [shape: bf16[2,2,32,16], index: 3, kind: input, shape index: {}]
  %s4 = inlined_call_operand.vmem [shape: bf16[2,2,16,32], index: 4, kind: input, shape index: {}]
  %s5 = inlined_call_operand.vmem [shape: f32[3,3,1,32], index: 5, kind: input, shape index: {}]
  %s6 = inlined_call_operand.vmem [shape: f32[1,32], index: 6, kind: input, shape index: {}]
  %s7 = inlined_call_operand.vmem [shape: f32[1,32], index: 7, kind: input, shape index: {}]
  %s8 = inlined_call_operand.vmem [shape: bf16[32,128], index: 8, kind: input, shape index: {}]
  %s9 = inlined_call_operand.vmem [shape: f32[1,128], index: 9, kind: input, shape index: {}]
  %s10 = inlined_call_operand.vmem [shape: f32[1,128], index: 10, kind: input, shape index: {}]
  %s11 = inlined_call_operand.vmem [shape: f32[1,128], index: 11, kind: input, shape index: {}]
  %s12 = inlined_call_operand.vmem [shape: bf16[128,32], index: 12, kind: input, shape index: {}]
  %s13 = inlined_call_operand.vmem [shape: f32[1,32], index: 13, kind: input, shape index: {}]
  %s14 = inlined_call_operand.vmem [shape: f32[2,1,32], index: 14, kind: input, shape index: {}]
  %s15 = inlined_call_operand.vmem [shape: bf16[2,32,32], index: 15, kind: input, shape index: {}]
  %s16 = inlined_call_operand.vmem [shape: f32[2,1,32], index: 16, kind: input, shape index: {}]
  %s17 = inlined_call_operand.vmem [shape: bf16[2,32,32], index: 17, kind: input, shape index: {}]
  %s18 = inlined_call_operand.vmem [shape: f32[2,1,32], index: 18, kind: input, shape index: {}]
  %s19 = inlined_call_operand.vmem [shape: f32[16,16], index: 19, kind: input, shape index: {}]
  %s20 = inlined_call_operand.vmem [shape: bf16[2,16,16,32], index: 20, kind: output, shape index: {}]
  %s21 = sld [smem:[#allocation0]]
  $region113: #{uvit_block_forward.2} parent=0
    _
  %s23 = ssub.s32 1, %s21
  %s24 = scalar_select 0, %s23, %s21
  loop: start=0, step=1, limit=4
  $region2: #{uvit_block_forward.2} parent=0 // loop_pre_header
    _
  $region3: #{uvit_block_forward.2} parent=0 // loop_header
    %s26 = sphi 0, %s30
    %p27 = scmp.ge.s32.totalorder %s26, 4
    %s36 = sphi 0, %s38
    %s39 = sphi 0, %s36
    %s40 = sphi 0, %s39
    %s56 = sphi 0, %s40
    %s62 = sphi 0, %s64
    %s65 = sphi 0, %s62
    %s66 = sphi 0, %s65
    %s82 = sphi 0, %s66
    %s88 = sphi 0, %s90
    %s91 = sphi 0, %s88
    %s92 = sphi 0, %s91
    %s108 = sphi 0, %s92
    %s114 = sphi 0, %s116
    %s117 = sphi 0, %s114
    %s118 = sphi 0, %s117
    %s134 = sphi 0, %s118
    %s140 = sphi 0, %s142
    %s143 = sphi 0, %s140
    %s144 = sphi 0, %s143
    %s160 = sphi 0, %s144
    %s164 = sphi 0, %s164
    %s166 = sphi 0, %s164
    %s167 = sphi 0, %s166
    %s181 = sphi 0, %s167
    %s185 = sphi 0, %s185
    %s187 = sphi 0, %s185
    %s188 = sphi 0, %s187
    %s202 = sphi 0, %s188
    %s206 = sphi 0, %s206
    %s208 = sphi 0, %s206
    %s209 = sphi 0, %s208
    %s223 = sphi 0, %s209
    %s227 = sphi 0, %s227
    %s229 = sphi 0, %s227
    %s230 = sphi 0, %s229
    %s244 = sphi 0, %s230
    %s248 = sphi 0, %s248
    %s250 = sphi 0, %s248
    %s251 = sphi 0, %s250
    %s265 = sphi 0, %s251
    %s269 = sphi 0, %s269
    %s271 = sphi 0, %s269
    %s272 = sphi 0, %s271
    %s286 = sphi 0, %s272
    %s290 = sphi 0, %s290
    %s292 = sphi 0, %s290
    %s293 = sphi 0, %s292
    %s307 = sphi 0, %s293
    %s311 = sphi 0, %s311
    %s313 = sphi 0, %s311
    %s314 = sphi 0, %s313
    %s328 = sphi 0, %s314
    %s332 = sphi 0, %s332
    %s334 = sphi 0, %s332
    %s335 = sphi 0, %s334
    %s349 = sphi 0, %s335
    %s353 = sphi 0, %s353
    %s355 = sphi 0, %s353
    %s356 = sphi 0, %s355
    %s370 = sphi 0, %s356
    %s374 = sphi 0, %s374
    %s376 = sphi 0, %s374
    %s377 = sphi 0, %s376
    %s391 = sphi 0, %s377
    %s395 = sphi 0, %s395
    %s397 = sphi 0, %s395
    %s398 = sphi 0, %s397
    %s412 = sphi 0, %s398
    %s416 = sphi 0, %s416
    %s418 = sphi 0, %s416
    %s419 = sphi 0, %s418
    %s433 = sphi 0, %s419
    %s437 = sphi 0, %s437
    %s439 = sphi 0, %s437
    %s440 = sphi 0, %s439
    %s454 = sphi 0, %s440
    %s458 = sphi 0, %s458
    %s460 = sphi 0, %s458
    %s461 = sphi 0, %s460
    %s475 = sphi 0, %s461
    %s481 = sphi 0, %s483
    %s484 = sphi 0, %s481
    %s485 = sphi 0, %s484
    %s501 = sphi 0, %s485
  $region4: #{uvit_block_forward.2} parent=0 // loop_header_branch
    %29 = sbr.rel (%p27) target = $region8
  $region5: #{uvit_block_forward.2} parent=0 // loop_body
    %s31 = ssub.s32 %s26, 1
    %s32 = ssub.s32 %s26, 2
    %s33 = sadd.s32 %s26, 1
    %s34 = ssub.s32 %s26, %s33
    %p35 = scmp.eq.s32.totalorder %s34, 0
    %s37 = sadd.s32 %s36, 1
    %s38 = scalar_select %p35, %s36, %s37
    %p41 = pneg %p35
    %p42 = scmp.eq.s32.totalorder %s26, 1
    %p43 = por %p41, %p42
    %p44 = scmp.ne.s32.totalorder %s36, %s39
    %p45 = scmp.eq.s32.totalorder %s26, 0
    %p46 = por %p44, %p45
    %p47 = scmp.ne.s32.totalorder %s36, %s39
    %p48 = scmp.eq.s32.totalorder %s31, 1
    %p49 = por %p47, %p48
    %p50 = scmp.ne.s32.totalorder %s39, %s40
    %p51 = scmp.eq.s32.totalorder %s31, 0
    %p52 = por %p50, %p51
    %p53 = scmp.ne.s32.totalorder %s39, %s40
    %p54 = scmp.eq.s32.totalorder %s32, 1
    %p55 = por %p53, %p54
    %p57 = scmp.ne.s32.totalorder %s40, %s56
    %p58 = scmp.eq.s32.totalorder %s32, 0
    %p59 = por %p57, %p58
    %s60 = ssub.s32 %s26, %s33
    %p61 = scmp.eq.s32.totalorder %s60, 0
    %s63 = sadd.s32 %s62, 1
    %s64 = scalar_select %p61, %s62, %s63
    %p67 = pneg %p61
    %p68 = scmp.eq.s32.totalorder %s26, 1
    %p69 = por %p67, %p68
    %p70 = scmp.ne.s32.totalorder %s62, %s65
    %p71 = scmp.eq.s32.totalorder %s26, 0
    %p72 = por %p70, %p71
    %p73 = scmp.ne.s32.totalorder %s62, %s65
    %p74 = scmp.eq.s32.totalorder %s31, 1
    %p75 = por %p73, %p74
    %p76 = scmp.ne.s32.totalorder %s65, %s66
    %p77 = scmp.eq.s32.totalorder %s31, 0
    %p78 = por %p76, %p77
    %p79 = scmp.ne.s32.totalorder %s65, %s66
    %p80 = scmp.eq.s32.totalorder %s32, 1
    %p81 = por %p79, %p80
    %p83 = scmp.ne.s32.totalorder %s66, %s82
    %p84 = scmp.eq.s32.totalorder %s32, 0
    %p85 = por %p83, %p84
    %s86 = ssub.s32 %s26, %s33
    %p87 = scmp.eq.s32.totalorder %s86, 0
    %s89 = sadd.s32 %s88, 1
    %s90 = scalar_select %p87, %s88, %s89
    %p93 = pneg %p87
    %p94 = scmp.eq.s32.totalorder %s26, 1
    %p95 = por %p93, %p94
    %p96 = scmp.ne.s32.totalorder %s88, %s91
    %p97 = scmp.eq.s32.totalorder %s26, 0
    %p98 = por %p96, %p97
    %p99 = scmp.ne.s32.totalorder %s88, %s91
    %p100 = scmp.eq.s32.totalorder %s31, 1
    %p101 = por %p99, %p100
    %p102 = scmp.ne.s32.totalorder %s91, %s92
    %p103 = scmp.eq.s32.totalorder %s31, 0
    %p104 = por %p102, %p103
    %p105 = scmp.ne.s32.totalorder %s91, %s92
    %p106 = scmp.eq.s32.totalorder %s32, 1
    %p107 = por %p105, %p106
    %p109 = scmp.ne.s32.totalorder %s92, %s108
    %p110 = scmp.eq.s32.totalorder %s32, 0
    %p111 = por %p109, %p110
    %s112 = ssub.s32 %s26, %s33
    %p113 = scmp.eq.s32.totalorder %s112, 0
    %s115 = sadd.s32 %s114, 1
    %s116 = scalar_select %p113, %s114, %s115
    %p119 = pneg %p113
    %p120 = scmp.eq.s32.totalorder %s26, 1
    %p121 = por %p119, %p120
    %p122 = scmp.ne.s32.totalorder %s114, %s117
    %p123 = scmp.eq.s32.totalorder %s26, 0
    %p124 = por %p122, %p123
    %p125 = scmp.ne.s32.totalorder %s114, %s117
    %p126 = scmp.eq.s32.totalorder %s31, 1
    %p127 = por %p125, %p126
    %p128 = scmp.ne.s32.totalorder %s117, %s118
    %p129 = scmp.eq.s32.totalorder %s31, 0
    %p130 = por %p128, %p129
    %p131 = scmp.ne.s32.totalorder %s117, %s118
    %p132 = scmp.eq.s32.totalorder %s32, 1
    %p133 = por %p131, %p132
    %p135 = scmp.ne.s32.totalorder %s118, %s134
    %p136 = scmp.eq.s32.totalorder %s32, 0
    %p137 = por %p135, %p136
    %s138 = ssub.s32 %s26, %s33
    %p139 = scmp.eq.s32.totalorder %s138, 0
    %s141 = sadd.s32 %s140, 1
    %s142 = scalar_select %p139, %s140, %s141
    %p145 = pneg %p139
    %p146 = scmp.eq.s32.totalorder %s26, 1
    %p147 = por %p145, %p146
    %p148 = scmp.ne.s32.totalorder %s140, %s143
    %p149 = scmp.eq.s32.totalorder %s26, 0
    %p150 = por %p148, %p149
    %p151 = scmp.ne.s32.totalorder %s140, %s143
    %p152 = scmp.eq.s32.totalorder %s31, 1
    %p153 = por %p151, %p152
    %p154 = scmp.ne.s32.totalorder %s143, %s144
    %p155 = scmp.eq.s32.totalorder %s31, 0
    %p156 = por %p154, %p155
    %p157 = scmp.ne.s32.totalorder %s143, %s144
    %p158 = scmp.eq.s32.totalorder %s32, 1
    %p159 = por %p157, %p158
    %p161 = scmp.ne.s32.totalorder %s144, %s160
    %p162 = scmp.eq.s32.totalorder %s32, 0
    %p163 = por %p161, %p162
    %s165 = sadd.s32 %s164, 1
    %p168 = scmp.eq.s32.totalorder %s26, 1
    %p169 = scmp.ne.s32.totalorder %s164, %s166
    %p170 = scmp.eq.s32.totalorder %s26, 0
    %p171 = por %p169, %p170
    %p172 = scmp.ne.s32.totalorder %s164, %s166
    %p173 = scmp.eq.s32.totalorder %s31, 1
    %p174 = por %p172, %p173
    %p175 = scmp.ne.s32.totalorder %s166, %s167
    %p176 = scmp.eq.s32.totalorder %s31, 0
    %p177 = por %p175, %p176
    %p178 = scmp.ne.s32.totalorder %s166, %s167
    %p179 = scmp.eq.s32.totalorder %s32, 1
    %p180 = por %p178, %p179
    %p182 = scmp.ne.s32.totalorder %s167, %s181
    %p183 = scmp.eq.s32.totalorder %s32, 0
    %p184 = por %p182, %p183
    %s186 = sadd.s32 %s185, 1
    %p189 = scmp.eq.s32.totalorder %s26, 1
    %p190 = scmp.ne.s32.totalorder %s185, %s187
    %p191 = scmp.eq.s32.totalorder %s26, 0
    %p192 = por %p190, %p191
    %p193 = scmp.ne.s32.totalorder %s185, %s187
    %p194 = scmp.eq.s32.totalorder %s31, 1
    %p195 = por %p193, %p194
    %p196 = scmp.ne.s32.totalorder %s187, %s188
    %p197 = scmp.eq.s32.totalorder %s31, 0
    %p198 = por %p196, %p197
    %p199 = scmp.ne.s32.totalorder %s187, %s188
    %p200 = scmp.eq.s32.totalorder %s32, 1
    %p201 = por %p199, %p200
    %p203 = scmp.ne.s32.totalorder %s188, %s202
    %p204 = scmp.eq.s32.totalorder %s32, 0
    %p205 = por %p203, %p204
    %s207 = sadd.s32 %s206, 1
    %p210 = scmp.eq.s32.totalorder %s26, 1
    %p211 = scmp.ne.s32.totalorder %s206, %s208
    %p212 = scmp.eq.s32.totalorder %s26, 0
    %p213 = por %p211, %p212
    %p214 = scmp.ne.s32.totalorder %s206, %s208
    %p215 = scmp.eq.s32.totalorder %s31, 1
    %p216 = por %p214, %p215
    %p217 = scmp.ne.s32.totalorder %s208, %s209
    %p218 = scmp.eq.s32.totalorder %s31, 0
    %p219 = por %p217, %p218
    %p220 = scmp.ne.s32.totalorder %s208, %s209
    %p221 = scmp.eq.s32.totalorder %s32, 1
    %p222 = por %p220, %p221
    %p224 = scmp.ne.s32.totalorder %s209, %s223
    %p225 = scmp.eq.s32.totalorder %s32, 0
    %p226 = por %p224, %p225
    %s228 = sadd.s32 %s227, 1
    %p231 = scmp.eq.s32.totalorder %s26, 1
    %p232 = scmp.ne.s32.totalorder %s227, %s229
    %p233 = scmp.eq.s32.totalorder %s26, 0
    %p234 = por %p232, %p233
    %p235 = scmp.ne.s32.totalorder %s227, %s229
    %p236 = scmp.eq.s32.totalorder %s31, 1
    %p237 = por %p235, %p236
    %p238 = scmp.ne.s32.totalorder %s229, %s230
    %p239 = scmp.eq.s32.totalorder %s31, 0
    %p240 = por %p238, %p239
    %p241 = scmp.ne.s32.totalorder %s229, %s230
    %p242 = scmp.eq.s32.totalorder %s32, 1
    %p243 = por %p241, %p242
    %p245 = scmp.ne.s32.totalorder %s230, %s244
    %p246 = scmp.eq.s32.totalorder %s32, 0
    %p247 = por %p245, %p246
    %s249 = sadd.s32 %s248, 1
    %p252 = scmp.eq.s32.totalorder %s26, 1
    %p253 = scmp.ne.s32.totalorder %s248, %s250
    %p254 = scmp.eq.s32.totalorder %s26, 0
    %p255 = por %p253, %p254
    %p256 = scmp.ne.s32.totalorder %s248, %s250
    %p257 = scmp.eq.s32.totalorder %s31, 1
    %p258 = por %p256, %p257
    %p259 = scmp.ne.s32.totalorder %s250, %s251
    %p260 = scmp.eq.s32.totalorder %s31, 0
    %p261 = por %p259, %p260
    %p262 = scmp.ne.s32.totalorder %s250, %s251
    %p263 = scmp.eq.s32.totalorder %s32, 1
    %p264 = por %p262, %p263
    %p266 = scmp.ne.s32.totalorder %s251, %s265
    %p267 = scmp.eq.s32.totalorder %s32, 0
    %p268 = por %p266, %p267
    %s270 = sadd.s32 %s269, 1
    %p273 = scmp.eq.s32.totalorder %s26, 1
    %p274 = scmp.ne.s32.totalorder %s269, %s271
    %p275 = scmp.eq.s32.totalorder %s26, 0
    %p276 = por %p274, %p275
    %p277 = scmp.ne.s32.totalorder %s269, %s271
    %p278 = scmp.eq.s32.totalorder %s31, 1
    %p279 = por %p277, %p278
    %p280 = scmp.ne.s32.totalorder %s271, %s272
    %p281 = scmp.eq.s32.totalorder %s31, 0
    %p282 = por %p280, %p281
    %p283 = scmp.ne.s32.totalorder %s271, %s272
    %p284 = scmp.eq.s32.totalorder %s32, 1
    %p285 = por %p283, %p284
    %p287 = scmp.ne.s32.totalorder %s272, %s286
    %p288 = scmp.eq.s32.totalorder %s32, 0
    %p289 = por %p287, %p288
    %s291 = sadd.s32 %s290, 1
    %p294 = scmp.eq.s32.totalorder %s26, 1
    %p295 = scmp.ne.s32.totalorder %s290, %s292
    %p296 = scmp.eq.s32.totalorder %s26, 0
    %p297 = por %p295, %p296
    %p298 = scmp.ne.s32.totalorder %s290, %s292
    %p299 = scmp.eq.s32.totalorder %s31, 1
    %p300 = por %p298, %p299
    %p301 = scmp.ne.s32.totalorder %s292, %s293
    %p302 = scmp.eq.s32.totalorder %s31, 0
    %p303 = por %p301, %p302
    %p304 = scmp.ne.s32.totalorder %s292, %s293
    %p305 = scmp.eq.s32.totalorder %s32, 1
    %p306 = por %p304, %p305
    %p308 = scmp.ne.s32.totalorder %s293, %s307
    %p309 = scmp.eq.s32.totalorder %s32, 0
    %p310 = por %p308, %p309
    %s312 = sadd.s32 %s311, 1
    %p315 = scmp.eq.s32.totalorder %s26, 1
    %p316 = scmp.ne.s32.totalorder %s311, %s313
    %p317 = scmp.eq.s32.totalorder %s26, 0
    %p318 = por %p316, %p317
    %p319 = scmp.ne.s32.totalorder %s311, %s313
    %p320 = scmp.eq.s32.totalorder %s31, 1
    %p321 = por %p319, %p320
    %p322 = scmp.ne.s32.totalorder %s313, %s314
    %p323 = scmp.eq.s32.totalorder %s31, 0
    %p324 = por %p322, %p323
    %p325 = scmp.ne.s32.totalorder %s313, %s314
    %p326 = scmp.eq.s32.totalorder %s32, 1
    %p327 = por %p325, %p326
    %p329 = scmp.ne.s32.totalorder %s314, %s328
    %p330 = scmp.eq.s32.totalorder %s32, 0
    %p331 = por %p329, %p330
    %s333 = sadd.s32 %s332, 1
    %p336 = scmp.eq.s32.totalorder %s26, 1
    %p337 = scmp.ne.s32.totalorder %s332, %s334
    %p338 = scmp.eq.s32.totalorder %s26, 0
    %p339 = por %p337, %p338
    %p340 = scmp.ne.s32.totalorder %s332, %s334
    %p341 = scmp.eq.s32.totalorder %s31, 1
    %p342 = por %p340, %p341
    %p343 = scmp.ne.s32.totalorder %s334, %s335
    %p344 = scmp.eq.s32.totalorder %s31, 0
    %p345 = por %p343, %p344
    %p346 = scmp.ne.s32.totalorder %s334, %s335
    %p347 = scmp.eq.s32.totalorder %s32, 1
    %p348 = por %p346, %p347
    %p350 = scmp.ne.s32.totalorder %s335, %s349
    %p351 = scmp.eq.s32.totalorder %s32, 0
    %p352 = por %p350, %p351
    %s354 = sadd.s32 %s353, 1
    %p357 = scmp.eq.s32.totalorder %s26, 1
    %p358 = scmp.ne.s32.totalorder %s353, %s355
    %p359 = scmp.eq.s32.totalorder %s26, 0
    %p360 = por %p358, %p359
    %p361 = scmp.ne.s32.totalorder %s353, %s355
    %p362 = scmp.eq.s32.totalorder %s31, 1
    %p363 = por %p361, %p362
    %p364 = scmp.ne.s32.totalorder %s355, %s356
    %p365 = scmp.eq.s32.totalorder %s31, 0
    %p366 = por %p364, %p365
    %p367 = scmp.ne.s32.totalorder %s355, %s356
    %p368 = scmp.eq.s32.totalorder %s32, 1
    %p369 = por %p367, %p368
    %p371 = scmp.ne.s32.totalorder %s356, %s370
    %p372 = scmp.eq.s32.totalorder %s32, 0
    %p373 = por %p371, %p372
    %s375 = sadd.s32 %s374, 1
    %p378 = scmp.eq.s32.totalorder %s26, 1
    %p379 = scmp.ne.s32.totalorder %s374, %s376
    %p380 = scmp.eq.s32.totalorder %s26, 0
    %p381 = por %p379, %p380
    %p382 = scmp.ne.s32.totalorder %s374, %s376
    %p383 = scmp.eq.s32.totalorder %s31, 1
    %p384 = por %p382, %p383
    %p385 = scmp.ne.s32.totalorder %s376, %s377
    %p386 = scmp.eq.s32.totalorder %s31, 0
    %p387 = por %p385, %p386
    %p388 = scmp.ne.s32.totalorder %s376, %s377
    %p389 = scmp.eq.s32.totalorder %s32, 1
    %p390 = por %p388, %p389
    %p392 = scmp.ne.s32.totalorder %s377, %s391
    %p393 = scmp.eq.s32.totalorder %s32, 0
    %p394 = por %p392, %p393
    %s396 = sadd.s32 %s395, 1
    %p399 = scmp.eq.s32.totalorder %s26, 1
    %p400 = scmp.ne.s32.totalorder %s395, %s397
    %p401 = scmp.eq.s32.totalorder %s26, 0
    %p402 = por %p400, %p401
    %p403 = scmp.ne.s32.totalorder %s395, %s397
    %p404 = scmp.eq.s32.totalorder %s31, 1
    %p405 = por %p403, %p404
    %p406 = scmp.ne.s32.totalorder %s397, %s398
    %p407 = scmp.eq.s32.totalorder %s31, 0
    %p408 = por %p406, %p407
    %p409 = scmp.ne.s32.totalorder %s397, %s398
    %p410 = scmp.eq.s32.totalorder %s32, 1
    %p411 = por %p409, %p410
    %p413 = scmp.ne.s32.totalorder %s398, %s412
    %p414 = scmp.eq.s32.totalorder %s32, 0
    %p415 = por %p413, %p414
    %s417 = sadd.s32 %s416, 1
    %p420 = scmp.eq.s32.totalorder %s26, 1
    %p421 = scmp.ne.s32.totalorder %s416, %s418
    %p422 = scmp.eq.s32.totalorder %s26, 0
    %p423 = por %p421, %p422
    %p424 = scmp.ne.s32.totalorder %s416, %s418
    %p425 = scmp.eq.s32.totalorder %s31, 1
    %p426 = por %p424, %p425
    %p427 = scmp.ne.s32.totalorder %s418, %s419
    %p428 = scmp.eq.s32.totalorder %s31, 0
    %p429 = por %p427, %p428
    %p430 = scmp.ne.s32.totalorder %s418, %s419
    %p431 = scmp.eq.s32.totalorder %s32, 1
    %p432 = por %p430, %p431
    %p434 = scmp.ne.s32.totalorder %s419, %s433
    %p435 = scmp.eq.s32.totalorder %s32, 0
    %p436 = por %p434, %p435
    %s438 = sadd.s32 %s437, 1
    %p441 = scmp.eq.s32.totalorder %s26, 1
    %p442 = scmp.ne.s32.totalorder %s437, %s439
    %p443 = scmp.eq.s32.totalorder %s26, 0
    %p444 = por %p442, %p443
    %p445 = scmp.ne.s32.totalorder %s437, %s439
    %p446 = scmp.eq.s32.totalorder %s31, 1
    %p447 = por %p445, %p446
    %p448 = scmp.ne.s32.totalorder %s439, %s440
    %p449 = scmp.eq.s32.totalorder %s31, 0
    %p450 = por %p448, %p449
    %p451 = scmp.ne.s32.totalorder %s439, %s440
    %p452 = scmp.eq.s32.totalorder %s32, 1
    %p453 = por %p451, %p452
    %p455 = scmp.ne.s32.totalorder %s440, %s454
    %p456 = scmp.eq.s32.totalorder %s32, 0
    %p457 = por %p455, %p456
    %s459 = sadd.s32 %s458, 1
    %p462 = scmp.eq.s32.totalorder %s26, 1
    %p463 = scmp.ne.s32.totalorder %s458, %s460
    %p464 = scmp.eq.s32.totalorder %s26, 0
    %p465 = por %p463, %p464
    %p466 = scmp.ne.s32.totalorder %s458, %s460
    %p467 = scmp.eq.s32.totalorder %s31, 1
    %p468 = por %p466, %p467
    %p469 = scmp.ne.s32.totalorder %s460, %s461
    %p470 = scmp.eq.s32.totalorder %s31, 0
    %p471 = por %p469, %p470
    %p472 = scmp.ne.s32.totalorder %s460, %s461
    %p473 = scmp.eq.s32.totalorder %s32, 1
    %p474 = por %p472, %p473
    %p476 = scmp.ne.s32.totalorder %s461, %s475
    %p477 = scmp.eq.s32.totalorder %s32, 0
    %p478 = por %p476, %p477
    %s479 = ssub.s32 %s26, %s33
    %p480 = scmp.eq.s32.totalorder %s479, 0
    %s482 = sadd.s32 %s481, 1
    %s483 = scalar_select %p480, %s481, %s482
    %p486 = pneg %p480
    %p487 = scmp.eq.s32.totalorder %s26, 1
    %p488 = por %p486, %p487
    %p489 = scmp.ne.s32.totalorder %s481, %s484
    %p490 = scmp.eq.s32.totalorder %s26, 0
    %p491 = por %p489, %p490
    %p492 = scmp.ne.s32.totalorder %s481, %s484
    %p493 = scmp.eq.s32.totalorder %s31, 1
    %p494 = por %p492, %p493
    %p495 = scmp.ne.s32.totalorder %s484, %s485
    %p496 = scmp.eq.s32.totalorder %s31, 0
    %p497 = por %p495, %p496
    %p498 = scmp.ne.s32.totalorder %s484, %s485
    %p499 = scmp.eq.s32.totalorder %s32, 1
    %p500 = por %p498, %p499
    %p502 = scmp.ne.s32.totalorder %s485, %s501
    %p503 = scmp.eq.s32.totalorder %s32, 0
    %p504 = por %p502, %p503
    %p505 = scmp.le.s32.totalorder 1, %s26
    %p506 = scmp.lt.s32.totalorder %s26, 3
    %p507 = pnand %p505, %p506
    %p508 = pneg %p507
    // Predicated region
    $region9: #{uvit_block_forward.2} parent=5 // pred_check
      _
    $region10: #{uvit_block_forward.2} parent=5 // pred_check_branch
      %510 = sbr.rel (%p507) target = $region12
    $region11: #{uvit_block_forward.2} parent=5 // pred_region
      %s511 = ssub.s32 %s26, 1
      // Predicated region
      $region13: #{uvit_block_forward.2} parent=11 // pred_check
        %p512 = pneg %p177
      $region14: #{uvit_block_forward.2} parent=11 // pred_check_branch
        %514 = sbr.rel (%p512) target = $region16
      $region15: #{uvit_block_forward.2} parent=11 // pred_region
        _
      $region16: #{uvit_block_forward.2} parent=11 // pred_fallthru
        _
      // Predicated region
      $region17: #{uvit_block_forward.2} parent=11 // pred_check
        %p515 = pneg %p198
      $region18: #{uvit_block_forward.2} parent=11 // pred_check_branch
        %517 = sbr.rel (%p515) target = $region20
      $region19: #{uvit_block_forward.2} parent=11 // pred_region
        _
      $region20: #{uvit_block_forward.2} parent=11 // pred_fallthru
        _
      // Predicated region
      $region21: #{uvit_block_forward.2} parent=11 // pred_check
        %p518 = pneg %p219
      $region22: #{uvit_block_forward.2} parent=11 // pred_check_branch
        %520 = sbr.rel (%p518) target = $region24
      $region23: #{uvit_block_forward.2} parent=11 // pred_region
        _
      $region24: #{uvit_block_forward.2} parent=11 // pred_fallthru
        _
      // Predicated region
      $region25: #{uvit_block_forward.2} parent=11 // pred_check
        %p521 = pneg %p240
      $region26: #{uvit_block_forward.2} parent=11 // pred_check_branch
        %523 = sbr.rel (%p521) target = $region28
      $region27: #{uvit_block_forward.2} parent=11 // pred_region
        _
      $region28: #{uvit_block_forward.2} parent=11 // pred_fallthru
        _
      // Predicated region
      $region29: #{uvit_block_forward.2} parent=11 // pred_check
        %p524 = pneg %p261
      $region30: #{uvit_block_forward.2} parent=11 // pred_check_branch
        %526 = sbr.rel (%p524) target = $region32
      $region31: #{uvit_block_forward.2} parent=11 // pred_region
        _
      $region32: #{uvit_block_forward.2} parent=11 // pred_fallthru
        _
      // Predicated region
      $region33: #{uvit_block_forward.2} parent=11 // pred_check
        %p527 = pneg %p282
      $region34: #{uvit_block_forward.2} parent=11 // pred_check_branch
        %529 = sbr.rel (%p527) target = $region36
      $region35: #{uvit_block_forward.2} parent=11 // pred_region
        _
      $region36: #{uvit_block_forward.2} parent=11 // pred_fallthru
        _
      // Predicated region
      $region37: #{uvit_block_forward.2} parent=11 // pred_check
        %p530 = pneg %p303
      $region38: #{uvit_block_forward.2} parent=11 // pred_check_branch
        %532 = sbr.rel (%p530) target = $region40
      $region39: #{uvit_block_forward.2} parent=11 // pred_region
        _
      $region40: #{uvit_block_forward.2} parent=11 // pred_fallthru
        _
      // Predicated region
      $region41: #{uvit_block_forward.2} parent=11 // pred_check
        %p533 = pneg %p324
      $region42: #{uvit_block_forward.2} parent=11 // pred_check_branch
        %535 = sbr.rel (%p533) target = $region44
      $region43: #{uvit_block_forward.2} parent=11 // pred_region
        _
      $region44: #{uvit_block_forward.2} parent=11 // pred_fallthru
        _
      // Predicated region
      $region45: #{uvit_block_forward.2} parent=11 // pred_check
        %p536 = pneg %p345
      $region46: #{uvit_block_forward.2} parent=11 // pred_check_branch
        %538 = sbr.rel (%p536) target = $region48
      $region47: #{uvit_block_forward.2} parent=11 // pred_region
        _
      $region48: #{uvit_block_forward.2} parent=11 // pred_fallthru
        _
      // Predicated region
      $region49: #{uvit_block_forward.2} parent=11 // pred_check
        %p539 = pneg %p366
      $region50: #{uvit_block_forward.2} parent=11 // pred_check_branch
        %541 = sbr.rel (%p539) target = $region52
      $region51: #{uvit_block_forward.2} parent=11 // pred_region
        _
      $region52: #{uvit_block_forward.2} parent=11 // pred_fallthru
        _
      // Predicated region
      $region53: #{uvit_block_forward.2} parent=11 // pred_check
        %p542 = pneg %p387
      $region54: #{uvit_block_forward.2} parent=11 // pred_check_branch
        %544 = sbr.rel (%p542) target = $region56
      $region55: #{uvit_block_forward.2} parent=11 // pred_region
        _
      $region56: #{uvit_block_forward.2} parent=11 // pred_fallthru
        _
      // Predicated region
      $region57: #{uvit_block_forward.2} parent=11 // pred_check
        %p545 = pneg %p408
      $region58: #{uvit_block_forward.2} parent=11 // pred_check_branch
        %547 = sbr.rel (%p545) target = $region60
      $region59: #{uvit_block_forward.2} parent=11 // pred_region
        _
      $region60: #{uvit_block_forward.2} parent=11 // pred_fallthru
        _
      // Predicated region
      $region61: #{uvit_block_forward.2} parent=11 // pred_check
        %p548 = pneg %p429
      $region62: #{uvit_block_forward.2} parent=11 // pred_check_branch
        %550 = sbr.rel (%p548) target = $region64
      $region63: #{uvit_block_forward.2} parent=11 // pred_region
        _
      $region64: #{uvit_block_forward.2} parent=11 // pred_fallthru
        _
      // Predicated region
      $region65: #{uvit_block_forward.2} parent=11 // pred_check
        %p551 = pneg %p450
      $region66: #{uvit_block_forward.2} parent=11 // pred_check_branch
        %553 = sbr.rel (%p551) target = $region68
      $region67: #{uvit_block_forward.2} parent=11 // pred_region
        _
      $region68: #{uvit_block_forward.2} parent=11 // pred_fallthru
        _
      // Predicated region
      $region69: #{uvit_block_forward.2} parent=11 // pred_check
        %p554 = pneg %p471
      $region70: #{uvit_block_forward.2} parent=11 // pred_check_branch
        %556 = sbr.rel (%p554) target = $region72
      $region71: #{uvit_block_forward.2} parent=11 // pred_region
        _
      $region72: #{uvit_block_forward.2} parent=11 // pred_fallthru
        _
    $region12: #{uvit_block_forward.2} parent=5 // pred_fallthru
      _
    %p557 = scmp.lt.s32.totalorder %s26, 2
    // Predicated region
    $region73: #{uvit_block_forward.2} parent=5 // pred_check
      %p558 = pneg %p557
    $region74: #{uvit_block_forward.2} parent=5 // pred_check_branch
      %560 = sbr.rel (%p558) target = $region76
    $region75: #{uvit_block_forward.2} parent=5 // pred_region
      // Predicated region
      $region77: #{uvit_block_forward.2} parent=75 // pred_check
        %p561 = pneg %p46
      $region78: #{uvit_block_forward.2} parent=75 // pred_check_branch
        %563 = sbr.rel (%p561) target = $region80
      $region79: #{uvit_block_forward.2} parent=75 // pred_region
        %p564 = scmp.lt.s32.totalorder %s26, 1
        %s565 = scalar_select %p564, %s26, 1
        %s566 = smul.addr %s565, 32
        %s567 = smul.addr %s566, 4
        %s568 = scalar_lea.vmem %s0, %s567
      $region80: #{uvit_block_forward.2} parent=75 // pred_fallthru
        _
      // Predicated region
      $region81: #{uvit_block_forward.2} parent=75 // pred_check
        %p569 = pneg %p72
      $region82: #{uvit_block_forward.2} parent=75 // pred_check_branch
        %571 = sbr.rel (%p569) target = $region84
      $region83: #{uvit_block_forward.2} parent=75 // pred_region
        %p572 = scmp.lt.s32.totalorder %s26, 1
        %s573 = scalar_select %p572, %s26, 1
        %s574 = scalar_lea.vmem %s1, %s573
      $region84: #{uvit_block_forward.2} parent=75 // pred_fallthru
        _
      // Predicated region
      $region85: #{uvit_block_forward.2} parent=75 // pred_check
        %p575 = pneg %p98
      $region86: #{uvit_block_forward.2} parent=75 // pred_check_branch
        %577 = sbr.rel (%p575) target = $region88
      $region87: #{uvit_block_forward.2} parent=75 // pred_region
        %p578 = scmp.lt.s32.totalorder %s26, 1
        %s579 = scalar_select %p578, %s26, 1
        %s580 = scalar_lea.vmem %s2, %s579
      $region88: #{uvit_block_forward.2} parent=75 // pred_fallthru
        _
      // Predicated region
      $region89: #{uvit_block_forward.2} parent=75 // pred_check
        %p581 = pneg %p124
      $region90: #{uvit_block_forward.2} parent=75 // pred_check_branch
        %583 = sbr.rel (%p581) target = $region92
      $region91: #{uvit_block_forward.2} parent=75 // pred_region
        %p584 = scmp.lt.s32.totalorder %s26, 1
        %s585 = scalar_select %p584, %s26, 1
        %s586 = smul.addr %s585, 8
        %s587 = smul.addr %s586, 4
        %s588 = scalar_lea.vmem %s3, %s587
      $region92: #{uvit_block_forward.2} parent=75 // pred_fallthru
        _
      // Predicated region
      $region93: #{uvit_block_forward.2} parent=75 // pred_check
        %p589 = pneg %p150
      $region94: #{uvit_block_forward.2} parent=75 // pred_check_branch
        %591 = sbr.rel (%p589) target = $region96
      $region95: #{uvit_block_forward.2} parent=75 // pred_region
        %p592 = scmp.lt.s32.totalorder %s26, 1
        %s593 = scalar_select %p592, %s26, 1
        %s594 = smul.addr %s593, 4
        %s595 = smul.addr %s594, 4
        %s596 = scalar_lea.vmem %s4, %s595
      $region96: #{uvit_block_forward.2} parent=75 // pred_fallthru
        _
    $region76: #{uvit_block_forward.2} parent=5 // pred_fallthru
      _
    %p597 = scmp.le.s32.totalorder 1, %s26
    %p598 = scmp.lt.s32.totalorder %s26, 3
    %p599 = pnand %p597, %p598
    %p600 = pneg %p599
    // Predicated region
    $region97: #{uvit_block_forward.2} parent=5 // pred_check
      _
    $region98: #{uvit_block_forward.2} parent=5 // pred_check_branch
      %602 = sbr.rel (%p599) target = $region100
    $region99: #{uvit_block_forward.2} parent=5 // pred_region
      %s603 = ssub.s32 %s26, 1
      %p604 = scmp.lt.s32.totalorder %s31, 1
      %s605 = scalar_select %p604, %s31, 1
      %s606 = smul.addr %s605, 32
      %s607 = smul.addr %s606, 4
      %s608 = scalar_lea.vmem %s0, %s607
      %p609 = pneg %p52
      %p610 = pneg %p49
      %p611 = scmp.lt.s32.totalorder %s31, 1
      %s612 = scalar_select %p611, %s31, 1
      %s613 = scalar_lea.vmem %s1, %s612
      %p614 = pneg %p78
      %p615 = pneg %p75
      %p616 = scmp.lt.s32.totalorder %s31, 1
      %s617 = scalar_select %p616, %s31, 1
      %s618 = scalar_lea.vmem %s2, %s617
      %p619 = pneg %p104
      %p620 = pneg %p101
      %p621 = scmp.lt.s32.totalorder %s31, 1
      %s622 = scalar_select %p621, %s31, 1
      %s623 = smul.addr %s622, 8
      %s624 = smul.addr %s623, 4
      %s625 = scalar_lea.vmem %s3, %s624
      %p626 = pneg %p130
      %p627 = pneg %p127
      %p628 = scmp.lt.s32.totalorder %s31, 1
      %s629 = scalar_select %p628, %s31, 1
      %s630 = smul.addr %s629, 4
      %s631 = smul.addr %s630, 4
      %s632 = scalar_lea.vmem %s4, %s631
      %p633 = pneg %p156
      %p634 = pneg %p153
      %p635 = pneg %p177
      %p636 = pneg %p174
      %p637 = pneg %p198
      %p638 = pneg %p195
      %p639 = pneg %p219
      %p640 = pneg %p216
      %p641 = pneg %p240
      %p642 = pneg %p237
      %p643 = pneg %p261
      %p644 = pneg %p258
      %p645 = pneg %p282
      %p646 = pneg %p279
      %p647 = pneg %p303
      %p648 = pneg %p300
      %p649 = pneg %p324
      %p650 = pneg %p321
      %p651 = pneg %p345
      %p652 = pneg %p342
      %p653 = pneg %p366
      %p654 = pneg %p363
      %p655 = pneg %p387
      %p656 = pneg %p384
      %p657 = pneg %p408
      %p658 = pneg %p405
      %p659 = pneg %p429
      %p660 = pneg %p426
      %p661 = pneg %p450
      %p662 = pneg %p447
      %p663 = pneg %p471
      %p664 = pneg %p468
      %p665 = pneg %p497
      %p666 = pneg %p494
      %p667 = scmp.lt.s32.totalorder %s31, 1
      %s668 = scalar_select %p667, %s31, 1
      %s669 = smul.addr %s668, 32
      %s670 = smul.addr %s669, 4
      %s671 = scalar_lea.vmem %s20, %s670
      %p672 = scmp.lt.s32.totalorder %s31, 1
      %s673 = scalar_select %p672, %s31, 1
      %s674 = smul.addr %s673, 32
      %s675 = smul.addr %s674, 4
      %s676 = scalar_lea.vmem %s0, %s675
      %p677 = scmp.lt.s32.totalorder %s31, 1
      %s678 = scalar_select %p677, %s31, 1
      %s679 = scalar_lea.vmem %s1, %s678
      %p680 = scmp.lt.s32.totalorder %s31, 1
      %s681 = scalar_select %p680, %s31, 1
      %s682 = scalar_lea.vmem %s2, %s681
      %p683 = scmp.lt.s32.totalorder %s31, 1
      %s684 = scalar_select %p683, %s31, 1
      %s685 = smul.addr %s684, 8
      %s686 = smul.addr %s685, 4
      %s687 = scalar_lea.vmem %s3, %s686
      %p688 = scmp.lt.s32.totalorder %s31, 1
      %s689 = scalar_select %p688, %s31, 1
      %s690 = smul.addr %s689, 4
      %s691 = smul.addr %s690, 4
      %s692 = scalar_lea.vmem %s4, %s691
      %p693 = scmp.lt.s32.totalorder %s31, 1
      %s694 = scalar_select %p693, %s31, 1
      %s695 = smul.addr %s694, 32
      %s696 = smul.addr %s695, 4
      %s697 = scalar_lea.vmem %s20, %s696
      %v699 = vld [vmem:[%s676] sm:$0xf]
      %v700 = vld [vmem:[%s676 + $0x4] sm:$0xf]
      %v701 = vld [vmem:[%s676 + $0x8] sm:$0xf]
      %v702 = vld [vmem:[%s676 + $0xc] sm:$0xf]
      %v703 = vld [vmem:[%s676 + $0x10] sm:$0xf]
      %v704 = vld [vmem:[%s676 + $0x14] sm:$0xf]
      %v705 = vld [vmem:[%s676 + $0x18] sm:$0xf]
      %v706 = vld [vmem:[%s676 + $0x1c] sm:$0xf]
      %v707 = vld [vmem:[%s676 + $0x20] sm:$0xf]
      %v708 = vld [vmem:[%s676 + $0x24] sm:$0xf]
      %v709 = vld [vmem:[%s676 + $0x28] sm:$0xf]
      %v710 = vld [vmem:[%s676 + $0x2c] sm:$0xf]
      %v711 = vld [vmem:[%s676 + $0x30] sm:$0xf]
      %v712 = vld [vmem:[%s676 + $0x34] sm:$0xf]
      %v713 = vld [vmem:[%s676 + $0x38] sm:$0xf]
      %v714 = vld [vmem:[%s676 + $0x3c] sm:$0xf]
      %v715 = vld [vmem:[%s676 + $0x40] sm:$0xf]
      %v716 = vld [vmem:[%s676 + $0x44] sm:$0xf]
      %v717 = vld [vmem:[%s676 + $0x48] sm:$0xf]
      %v718 = vld [vmem:[%s676 + $0x4c] sm:$0xf]
      %v719 = vld [vmem:[%s676 + $0x50] sm:$0xf]
      %v720 = vld [vmem:[%s676 + $0x54] sm:$0xf]
      %v721 = vld [vmem:[%s676 + $0x58] sm:$0xf]
      %v722 = vld [vmem:[%s676 + $0x5c] sm:$0xf]
      %v723 = vld [vmem:[%s676 + $0x60] sm:$0xf]
      %v724 = vld [vmem:[%s676 + $0x64] sm:$0xf]
      %v725 = vld [vmem:[%s676 + $0x68] sm:$0xf]
      %v726 = vld [vmem:[%s676 + $0x6c] sm:$0xf]
      %v727 = vld [vmem:[%s676 + $0x70] sm:$0xf]
      %v728 = vld [vmem:[%s676 + $0x74] sm:$0xf]
      %v729 = vld [vmem:[%s676 + $0x78] sm:$0xf]
      %v730 = vld [vmem:[%s676 + $0x7c] sm:$0xf]
      %v731 = vunpack.c.l.bf16 %v699
      %v732 = vunpack.c.l.bf16 %v700
      %v733 = vunpack.c.l.bf16 %v701
      %v734 = vunpack.c.l.bf16 %v702
      %v735 = vunpack.c.l.bf16 %v703
      %v736 = vunpack.c.l.bf16 %v704
      %v737 = vunpack.c.l.bf16 %v705
      %v738 = vunpack.c.l.bf16 %v706
      %v739 = vunpack.c.l.bf16 %v707
      %v740 = vunpack.c.l.bf16 %v708
      %v741 = vunpack.c.l.bf16 %v709
      %v742 = vunpack.c.l.bf16 %v710
      %v743 = vunpack.c.l.bf16 %v711
      %v744 = vunpack.c.l.bf16 %v712
      %v745 = vunpack.c.l.bf16 %v713
      %v746 = vunpack.c.l.bf16 %v714
      %v747 = vunpack.c.l.bf16 %v715
      %v748 = vunpack.c.l.bf16 %v716
      %v749 = vunpack.c.l.bf16 %v717
      %v750 = vunpack.c.l.bf16 %v718
      %v751 = vunpack.c.l.bf16 %v719
      %v752 = vunpack.c.l.bf16 %v720
      %v753 = vunpack.c.l.bf16 %v721
      %v754 = vunpack.c.l.bf16 %v722
      %v755 = vunpack.c.l.bf16 %v723
      %v756 = vunpack.c.l.bf16 %v724
      %v757 = vunpack.c.l.bf16 %v725
      %v758 = vunpack.c.l.bf16 %v726
      %v759 = vunpack.c.l.bf16 %v727
      %v760 = vunpack.c.l.bf16 %v728
      %v761 = vunpack.c.l.bf16 %v729
      %v762 = vunpack.c.l.bf16 %v730
      %vm763 = vcmask 261120
      %764 = vst.msk [vmem:[#allocation2] sm:$0xff] %vm763, 0.0
      %765 = vst.msk [vmem:[#allocation2 + $0x8] sm:$0xff] %vm763, 0.0
      %766 = vst.msk [vmem:[#allocation2 + $0x10] sm:$0xff] %vm763, 0.0
      %vm767 = vcmask 253952
      %768 = vst.msk [vmem:[#allocation2 + $0x18] sm:$0x1] %vm767, 0.0
      %s769 = scalar_lea.vmem [#allocation2], 544
      %770 = vst.msk [vmem:[%s769] sm:$0xff] %vm763, 0.0
      %771 = vst.msk [vmem:[%s769 + $0x8] sm:$0xff] %vm763, 0.0
      %772 = vst.msk [vmem:[%s769 + $0x10] sm:$0xff] %vm763, 0.0
      %773 = vst.msk [vmem:[%s769 + $0x18] sm:$0x1] %vm767, 0.0
      %s774 = scalar_lea.vmem [#allocation2], 32
      %775 = vst.msk [vmem:[%s774] sm:$0xff] %vm763, 0.0
      %776 = vst.msk [vmem:[%s774 + $0x20] sm:$0xff] %vm763, 0.0
      %777 = vst.msk [vmem:[%s774 + $0x40] sm:$0xff] %vm763, 0.0
      %778 = vst.msk [vmem:[%s774 + $0x60] sm:$0xff] %vm763, 0.0
      %779 = vst.msk [vmem:[%s774 + $0x80] sm:$0xff] %vm763, 0.0
      %780 = vst.msk [vmem:[%s774 + $0xa0] sm:$0xff] %vm763, 0.0
      %781 = vst.msk [vmem:[%s774 + $0xc0] sm:$0xff] %vm763, 0.0
      %782 = vst.msk [vmem:[%s774 + $0xe0] sm:$0xff] %vm763, 0.0
      %783 = vst.msk [vmem:[%s774 + $0x100] sm:$0xff] %vm763, 0.0
      %784 = vst.msk [vmem:[%s774 + $0x120] sm:$0xff] %vm763, 0.0
      %785 = vst.msk [vmem:[%s774 + $0x140] sm:$0xff] %vm763, 0.0
      %786 = vst.msk [vmem:[%s774 + $0x160] sm:$0xff] %vm763, 0.0
      %787 = vst.msk [vmem:[%s774 + $0x180] sm:$0xff] %vm763, 0.0
      %788 = vst.msk [vmem:[%s774 + $0x1a0] sm:$0xff] %vm763, 0.0
      %789 = vst.msk [vmem:[%s774 + $0x1c0] sm:$0xff] %vm763, 0.0
      %790 = vst.msk [vmem:[%s774 + $0x1e0] sm:$0xff] %vm763, 0.0
      %791 = vst.msk [vmem:[%s774 + $0x18] sm:$0x1] %vm767, 0.0
      %792 = vst.msk [vmem:[%s774 + $0x38] sm:$0x1] %vm767, 0.0
      %793 = vst.msk [vmem:[%s774 + $0x58] sm:$0x1] %vm767, 0.0
      %794 = vst.msk [vmem:[%s774 + $0x78] sm:$0x1] %vm767, 0.0
      %795 = vst.msk [vmem:[%s774 + $0x98] sm:$0x1] %vm767, 0.0
      %796 = vst.msk [vmem:[%s774 + $0xb8] sm:$0x1] %vm767, 0.0
      %797 = vst.msk [vmem:[%s774 + $0xd8] sm:$0x1] %vm767, 0.0
      %798 = vst.msk [vmem:[%s774 + $0xf8] sm:$0x1] %vm767, 0.0
      %799 = vst.msk [vmem:[%s774 + $0x118] sm:$0x1] %vm767, 0.0
      %800 = vst.msk [vmem:[%s774 + $0x138] sm:$0x1] %vm767, 0.0
      %801 = vst.msk [vmem:[%s774 + $0x158] sm:$0x1] %vm767, 0.0
      %802 = vst.msk [vmem:[%s774 + $0x178] sm:$0x1] %vm767, 0.0
      %803 = vst.msk [vmem:[%s774 + $0x198] sm:$0x1] %vm767, 0.0
      %804 = vst.msk [vmem:[%s774 + $0x1b8] sm:$0x1] %vm767, 0.0
      %805 = vst.msk [vmem:[%s774 + $0x1d8] sm:$0x1] %vm767, 0.0
      %806 = vst.msk [vmem:[%s774 + $0x1f8] sm:$0x1] %vm767, 0.0
      %807 = vst.msk [vmem:[%s774 + $0x8] sm:$0xff] %vm763, %v731
      %808 = vst.msk [vmem:[%s774 + $0x10] sm:$0xff] %vm763, %v732
      %809 = vst.msk [vmem:[%s774 + $0x28] sm:$0xff] %vm763, %v733
      %810 = vst.msk [vmem:[%s774 + $0x30] sm:$0xff] %vm763, %v734
      %811 = vst.msk [vmem:[%s774 + $0x48] sm:$0xff] %vm763, %v735
      %812 = vst.msk [vmem:[%s774 + $0x50] sm:$0xff] %vm763, %v736
      %813 = vst.msk [vmem:[%s774 + $0x68] sm:$0xff] %vm763, %v737
      %814 = vst.msk [vmem:[%s774 + $0x70] sm:$0xff] %vm763, %v738
      %815 = vst.msk [vmem:[%s774 + $0x88] sm:$0xff] %vm763, %v739
      %816 = vst.msk [vmem:[%s774 + $0x90] sm:$0xff] %vm763, %v740
      %817 = vst.msk [vmem:[%s774 + $0xa8] sm:$0xff] %vm763, %v741
      %818 = vst.msk [vmem:[%s774 + $0xb0] sm:$0xff] %vm763, %v742
      %819 = vst.msk [vmem:[%s774 + $0xc8] sm:$0xff] %vm763, %v743
      %820 = vst.msk [vmem:[%s774 + $0xd0] sm:$0xff] %vm763, %v744
      %821 = vst.msk [vmem:[%s774 + $0xe8] sm:$0xff] %vm763, %v745
      %822 = vst.msk [vmem:[%s774 + $0xf0] sm:$0xff] %vm763, %v746
      %823 = vst.msk [vmem:[%s774 + $0x108] sm:$0xff] %vm763, %v747
      %824 = vst.msk [vmem:[%s774 + $0x110] sm:$0xff] %vm763, %v748
      %825 = vst.msk [vmem:[%s774 + $0x128] sm:$0xff] %vm763, %v749
      %826 = vst.msk [vmem:[%s774 + $0x130] sm:$0xff] %vm763, %v750
      %827 = vst.msk [vmem:[%s774 + $0x148] sm:$0xff] %vm763, %v751
      %828 = vst.msk [vmem:[%s774 + $0x150] sm:$0xff] %vm763, %v752
      %829 = vst.msk [vmem:[%s774 + $0x168] sm:$0xff] %vm763, %v753
      %830 = vst.msk [vmem:[%s774 + $0x170] sm:$0xff] %vm763, %v754
      %831 = vst.msk [vmem:[%s774 + $0x188] sm:$0xff] %vm763, %v755
      %832 = vst.msk [vmem:[%s774 + $0x190] sm:$0xff] %vm763, %v756
      %833 = vst.msk [vmem:[%s774 + $0x1a8] sm:$0xff] %vm763, %v757
      %834 = vst.msk [vmem:[%s774 + $0x1b0] sm:$0xff] %vm763, %v758
      %835 = vst.msk [vmem:[%s774 + $0x1c8] sm:$0xff] %vm763, %v759
      %836 = vst.msk [vmem:[%s774 + $0x1d0] sm:$0xff] %vm763, %v760
      %837 = vst.msk [vmem:[%s774 + $0x1e8] sm:$0xff] %vm763, %v761
      %838 = vst.msk [vmem:[%s774 + $0x1f0] sm:$0xff] %vm763, %v762
      %v839 = vld [vmem:[#allocation2 + $0x7] sm:$0xff]
      %v840 = vld [vmem:[#allocation2 + $0xf] sm:$0xff]
      %v841 = vld [vmem:[#allocation2 + $0x27] sm:$0xff]
      %v842 = vld [vmem:[#allocation2 + $0x2f] sm:$0xff]
      %v843 = vld [vmem:[#allocation2 + $0x47] sm:$0xff]
      %v844 = vld [vmem:[#allocation2 + $0x4f] sm:$0xff]
      %v845 = vld [vmem:[#allocation2 + $0x67] sm:$0xff]
      %v846 = vld [vmem:[#allocation2 + $0x6f] sm:$0xff]
      %v847 = vld [vmem:[#allocation2 + $0x87] sm:$0xff]
      %v848 = vld [vmem:[#allocation2 + $0x8f] sm:$0xff]
      %v849 = vld [vmem:[#allocation2 + $0xa7] sm:$0xff]
      %v850 = vld [vmem:[#allocation2 + $0xaf] sm:$0xff]
      %v851 = vld [vmem:[#allocation2 + $0xc7] sm:$0xff]
      %v852 = vld [vmem:[#allocation2 + $0xcf] sm:$0xff]
      %v853 = vld [vmem:[#allocation2 + $0xe7] sm:$0xff]
      %v854 = vld [vmem:[#allocation2 + $0xef] sm:$0xff]
      %v855 = vld [vmem:[#allocation2 + $0x107] sm:$0xff]
      %v856 = vld [vmem:[#allocation2 + $0x10f] sm:$0xff]
      %v857 = vld [vmem:[#allocation2 + $0x127] sm:$0xff]
      %v858 = vld [vmem:[#allocation2 + $0x12f] sm:$0xff]
      %v859 = vld [vmem:[#allocation2 + $0x147] sm:$0xff]
      %v860 = vld [vmem:[#allocation2 + $0x14f] sm:$0xff]
      %v861 = vld [vmem:[#allocation2 + $0x167] sm:$0xff]
      %v862 = vld [vmem:[#allocation2 + $0x16f] sm:$0xff]
      %v863 = vld [vmem:[#allocation2 + $0x187] sm:$0xff]
      %v864 = vld [vmem:[#allocation2 + $0x18f] sm:$0xff]
      %v865 = vld [vmem:[#allocation2 + $0x1a7] sm:$0xff]
      %v866 = vld [vmem:[#allocation2 + $0x1af] sm:$0xff]
      %v867 = vld [vmem:[#allocation2 + $0x1c7] sm:$0xff]
      %v868 = vld [vmem:[#allocation2 + $0x1cf] sm:$0xff]
      %v869 = vld [vmem:[#allocation2 + $0x1e7] sm:$0xff]
      %v870 = vld [vmem:[#allocation2 + $0x1ef] sm:$0xff]
      %v871 = vld [vmem:[#allocation2 + $0x207] sm:$0xff]
      %v872 = vld [vmem:[#allocation2 + $0x20f] sm:$0xff]
      %v873 = vld [vmem:[#allocation2 + $0x227] sm:$0xff]
      %v874 = vld [vmem:[#allocation2 + $0x22f] sm:$0xff]
      %v875 = vld [vmem:[#allocation2 + $0x8] sm:$0xff]
      %v876 = vld [vmem:[#allocation2 + $0x10] sm:$0xff]
      %v877 = vld [vmem:[#allocation2 + $0x28] sm:$0xff]
      %v878 = vld [vmem:[#allocation2 + $0x30] sm:$0xff]
      %v879 = vld [vmem:[#allocation2 + $0x48] sm:$0xff]
      %v880 = vld [vmem:[#allocation2 + $0x50] sm:$0xff]
      %v881 = vld [vmem:[#allocation2 + $0x68] sm:$0xff]
      %v882 = vld [vmem:[#allocation2 + $0x70] sm:$0xff]
      %v883 = vld [vmem:[#allocation2 + $0x88] sm:$0xff]
      %v884 = vld [vmem:[#allocation2 + $0x90] sm:$0xff]
      %v885 = vld [vmem:[#allocation2 + $0xa8] sm:$0xff]
      %v886 = vld [vmem:[#allocation2 + $0xb0] sm:$0xff]
      %v887 = vld [vmem:[#allocation2 + $0xc8] sm:$0xff]
      %v888 = vld [vmem:[#allocation2 + $0xd0] sm:$0xff]
      %v889 = vld [vmem:[#allocation2 + $0xe8] sm:$0xff]
      %v890 = vld [vmem:[#allocation2 + $0xf0] sm:$0xff]
      %v891 = vld [vmem:[#allocation2 + $0x108] sm:$0xff]
      %v892 = vld [vmem:[#allocation2 + $0x110] sm:$0xff]
      %v893 = vld [vmem:[#allocation2 + $0x128] sm:$0xff]
      %v894 = vld [vmem:[#allocation2 + $0x130] sm:$0xff]
      %v895 = vld [vmem:[#allocation2 + $0x148] sm:$0xff]
      %v896 = vld [vmem:[#allocation2 + $0x150] sm:$0xff]
      %v897 = vld [vmem:[#allocation2 + $0x168] sm:$0xff]
      %v898 = vld [vmem:[#allocation2 + $0x170] sm:$0xff]
      %v899 = vld [vmem:[#allocation2 + $0x188] sm:$0xff]
      %v900 = vld [vmem:[#allocation2 + $0x190] sm:$0xff]
      %v901 = vld [vmem:[#allocation2 + $0x1a8] sm:$0xff]
      %v902 = vld [vmem:[#allocation2 + $0x1b0] sm:$0xff]
      %v903 = vld [vmem:[#allocation2 + $0x1c8] sm:$0xff]
      %v904 = vld [vmem:[#allocation2 + $0x1d0] sm:$0xff]
      %v905 = vld [vmem:[#allocation2 + $0x1e8] sm:$0xff]
      %v906 = vld [vmem:[#allocation2 + $0x1f0] sm:$0xff]
      %v907 = vld [vmem:[#allocation2 + $0x208] sm:$0xff]
      %v908 = vld [vmem:[#allocation2 + $0x210] sm:$0xff]
      %v909 = vld [vmem:[#allocation2 + $0x228] sm:$0xff]
      %v910 = vld [vmem:[#allocation2 + $0x230] sm:$0xff]
      %v911 = vld [vmem:[#allocation2 + $0x9] sm:$0xff]
      %v912 = vld [vmem:[#allocation2 + $0x11] sm:$0xff]
      %v913 = vld [vmem:[#allocation2 + $0x29] sm:$0xff]
      %v914 = vld [vmem:[#allocation2 + $0x31] sm:$0xff]
      %v915 = vld [vmem:[#allocation2 + $0x49] sm:$0xff]
      %v916 = vld [vmem:[#allocation2 + $0x51] sm:$0xff]
      %v917 = vld [vmem:[#allocation2 + $0x69] sm:$0xff]
      %v918 = vld [vmem:[#allocation2 + $0x71] sm:$0xff]
      %v919 = vld [vmem:[#allocation2 + $0x89] sm:$0xff]
      %v920 = vld [vmem:[#allocation2 + $0x91] sm:$0xff]
      %v921 = vld [vmem:[#allocation2 + $0xa9] sm:$0xff]
      %v922 = vld [vmem:[#allocation2 + $0xb1] sm:$0xff]
      %v923 = vld [vmem:[#allocation2 + $0xc9] sm:$0xff]
      %v924 = vld [vmem:[#allocation2 + $0xd1] sm:$0xff]
      %v925 = vld [vmem:[#allocation2 + $0xe9] sm:$0xff]
      %v926 = vld [vmem:[#allocation2 + $0xf1] sm:$0xff]
      %v927 = vld [vmem:[#allocation2 + $0x109] sm:$0xff]
      %v928 = vld [vmem:[#allocation2 + $0x111] sm:$0xff]
      %v929 = vld [vmem:[#allocation2 + $0x129] sm:$0xff]
      %v930 = vld [vmem:[#allocation2 + $0x131] sm:$0xff]
      %v931 = vld [vmem:[#allocation2 + $0x149] sm:$0xff]
      %v932 = vld [vmem:[#allocation2 + $0x151] sm:$0xff]
      %v933 = vld [vmem:[#allocation2 + $0x169] sm:$0xff]
      %v934 = vld [vmem:[#allocation2 + $0x171] sm:$0xff]
      %v935 = vld [vmem:[#allocation2 + $0x189] sm:$0xff]
      %v936 = vld [vmem:[#allocation2 + $0x191] sm:$0xff]
      %v937 = vld [vmem:[#allocation2 + $0x1a9] sm:$0xff]
      %v938 = vld [vmem:[#allocation2 + $0x1b1] sm:$0xff]
      %v939 = vld [vmem:[#allocation2 + $0x1c9] sm:$0xff]
      %v940 = vld [vmem:[#allocation2 + $0x1d1] sm:$0xff]
      %v941 = vld [vmem:[#allocation2 + $0x1e9] sm:$0xff]
      %v942 = vld [vmem:[#allocation2 + $0x1f1] sm:$0xff]
      %v943 = vld [vmem:[#allocation2 + $0x209] sm:$0xff]
      %v944 = vld [vmem:[#allocation2 + $0x211] sm:$0xff]
      %v945 = vld [vmem:[#allocation2 + $0x229] sm:$0xff]
      %v946 = vld [vmem:[#allocation2 + $0x231] sm:$0xff]
      %v947 = vld [vmem:[%s5] sm:$0x1]
      %v949 = vlaneseq
      %v950 = vshrl.u32 %v949, 7
      %v951 = vsub.s32 0, %v950
      %v952 = vrot.slane %v947, %v951
      %v954 = vmul.f32 %v839, %v952
      %v955 = vmul.f32 %v840, %v952
      %v956 = vmul.f32 %v841, %v952
      %v957 = vmul.f32 %v842, %v952
      %v958 = vmul.f32 %v843, %v952
      %v959 = vmul.f32 %v844, %v952
      %v960 = vmul.f32 %v845, %v952
      %v961 = vmul.f32 %v846, %v952
      %v962 = vmul.f32 %v847, %v952
      %v963 = vmul.f32 %v848, %v952
      %v964 = vmul.f32 %v849, %v952
      %v965 = vmul.f32 %v850, %v952
      %v966 = vmul.f32 %v851, %v952
      %v967 = vmul.f32 %v852, %v952
      %v968 = vmul.f32 %v853, %v952
      %v969 = vmul.f32 %v854, %v952
      %v970 = vmul.f32 %v855, %v952
      %v971 = vmul.f32 %v856, %v952
      %v972 = vmul.f32 %v857, %v952
      %v973 = vmul.f32 %v858, %v952
      %v974 = vmul.f32 %v859, %v952
      %v975 = vmul.f32 %v860, %v952
      %v976 = vmul.f32 %v861, %v952
      %v977 = vmul.f32 %v862, %v952
      %v978 = vmul.f32 %v863, %v952
      %v979 = vmul.f32 %v864, %v952
      %v980 = vmul.f32 %v865, %v952
      %v981 = vmul.f32 %v866, %v952
      %v982 = vmul.f32 %v867, %v952
      %v983 = vmul.f32 %v868, %v952
      %v984 = vmul.f32 %v869, %v952
      %v985 = vmul.f32 %v870, %v952
      %s986 = scalar_lea.vmem %s5, 1
      %v987 = vld [vmem:[%s986] sm:$0x1]
      %v989 = vlaneseq
      %v990 = vshrl.u32 %v989, 7
      %v991 = vsub.s32 0, %v990
      %v992 = vrot.slane %v987, %v991
      %v994 = vmul.f32 %v875, %v992
      %v995 = vmul.f32 %v876, %v992
      %v996 = vmul.f32 %v877, %v992
      %v997 = vmul.f32 %v878, %v992
      %v998 = vmul.f32 %v879, %v992
      %v999 = vmul.f32 %v880, %v992
      %v1000 = vmul.f32 %v881, %v992
      %v1001 = vmul.f32 %v882, %v992
      %v1002 = vmul.f32 %v883, %v992
      %v1003 = vmul.f32 %v884, %v992
      %v1004 = vmul.f32 %v885, %v992
      %v1005 = vmul.f32 %v886, %v992
      %v1006 = vmul.f32 %v887, %v992
      %v1007 = vmul.f32 %v888, %v992
      %v1008 = vmul.f32 %v889, %v992
      %v1009 = vmul.f32 %v890, %v992
      %v1010 = vmul.f32 %v891, %v992
      %v1011 = vmul.f32 %v892, %v992
      %v1012 = vmul.f32 %v893, %v992
      %v1013 = vmul.f32 %v894, %v992
      %v1014 = vmul.f32 %v895, %v992
      %v1015 = vmul.f32 %v896, %v992
      %v1016 = vmul.f32 %v897, %v992
      %v1017 = vmul.f32 %v898, %v992
      %v1018 = vmul.f32 %v899, %v992
      %v1019 = vmul.f32 %v900, %v992
      %v1020 = vmul.f32 %v901, %v992
      %v1021 = vmul.f32 %v902, %v992
      %v1022 = vmul.f32 %v903, %v992
      %v1023 = vmul.f32 %v904, %v992
      %v1024 = vmul.f32 %v905, %v992
      %v1025 = vmul.f32 %v906, %v992
      %v1026 = vadd.f32 %v954, %v994
      %v1027 = vadd.f32 %v955, %v995
      %v1028 = vadd.f32 %v956, %v996
      %v1029 = vadd.f32 %v957, %v997
      %v1030 = vadd.f32 %v958, %v998
      %v1031 = vadd.f32 %v959, %v999
      %v1032 = vadd.f32 %v960, %v1000
      %v1033 = vadd.f32 %v961, %v1001
      %v1034 = vadd.f32 %v962, %v1002
      %v1035 = vadd.f32 %v963, %v1003
      %v1036 = vadd.f32 %v964, %v1004
      %v1037 = vadd.f32 %v965, %v1005
      %v1038 = vadd.f32 %v966, %v1006
      %v1039 = vadd.f32 %v967, %v1007
      %v1040 = vadd.f32 %v968, %v1008
      %v1041 = vadd.f32 %v969, %v1009
      %v1042 = vadd.f32 %v970, %v1010
      %v1043 = vadd.f32 %v971, %v1011
      %v1044 = vadd.f32 %v972, %v1012
      %v1045 = vadd.f32 %v973, %v1013
      %v1046 = vadd.f32 %v974, %v1014
      %v1047 = vadd.f32 %v975, %v1015
      %v1048 = vadd.f32 %v976, %v1016
      %v1049 = vadd.f32 %v977, %v1017
      %v1050 = vadd.f32 %v978, %v1018
      %v1051 = vadd.f32 %v979, %v1019
      %v1052 = vadd.f32 %v980, %v1020
      %v1053 = vadd.f32 %v981, %v1021
      %v1054 = vadd.f32 %v982, %v1022
      %v1055 = vadd.f32 %v983, %v1023
      %v1056 = vadd.f32 %v984, %v1024
      %v1057 = vadd.f32 %v985, %v1025
      %s1058 = scalar_lea.vmem %s5, 2
      %v1059 = vld [vmem:[%s1058] sm:$0x1]
      %v1061 = vlaneseq
      %v1062 = vshrl.u32 %v1061, 7
      %v1063 = vsub.s32 0, %v1062
      %v1064 = vrot.slane %v1059, %v1063
      %v1066 = vmul.f32 %v911, %v1064
      %v1067 = vmul.f32 %v912, %v1064
      %v1068 = vmul.f32 %v913, %v1064
      %v1069 = vmul.f32 %v914, %v1064
      %v1070 = vmul.f32 %v915, %v1064
      %v1071 = vmul.f32 %v916, %v1064
      %v1072 = vmul.f32 %v917, %v1064
      %v1073 = vmul.f32 %v918, %v1064
      %v1074 = vmul.f32 %v919, %v1064
      %v1075 = vmul.f32 %v920, %v1064
      %v1076 = vmul.f32 %v921, %v1064
      %v1077 = vmul.f32 %v922, %v1064
      %v1078 = vmul.f32 %v923, %v1064
      %v1079 = vmul.f32 %v924, %v1064
      %v1080 = vmul.f32 %v925, %v1064
      %v1081 = vmul.f32 %v926, %v1064
      %v1082 = vmul.f32 %v927, %v1064
      %v1083 = vmul.f32 %v928, %v1064
      %v1084 = vmul.f32 %v929, %v1064
      %v1085 = vmul.f32 %v930, %v1064
      %v1086 = vmul.f32 %v931, %v1064
      %v1087 = vmul.f32 %v932, %v1064
      %v1088 = vmul.f32 %v933, %v1064
      %v1089 = vmul.f32 %v934, %v1064
      %v1090 = vmul.f32 %v935, %v1064
      %v1091 = vmul.f32 %v936, %v1064
      %v1092 = vmul.f32 %v937, %v1064
      %v1093 = vmul.f32 %v938, %v1064
      %v1094 = vmul.f32 %v939, %v1064
      %v1095 = vmul.f32 %v940, %v1064
      %v1096 = vmul.f32 %v941, %v1064
      %v1097 = vmul.f32 %v942, %v1064
      %v1098 = vadd.f32 %v1026, %v1066
      %v1099 = vadd.f32 %v1027, %v1067
      %v1100 = vadd.f32 %v1028, %v1068
      %v1101 = vadd.f32 %v1029, %v1069
      %v1102 = vadd.f32 %v1030, %v1070
      %v1103 = vadd.f32 %v1031, %v1071
      %v1104 = vadd.f32 %v1032, %v1072
      %v1105 = vadd.f32 %v1033, %v1073
      %v1106 = vadd.f32 %v1034, %v1074
      %v1107 = vadd.f32 %v1035, %v1075
      %v1108 = vadd.f32 %v1036, %v1076
      %v1109 = vadd.f32 %v1037, %v1077
      %v1110 = vadd.f32 %v1038, %v1078
      %v1111 = vadd.f32 %v1039, %v1079
      %v1112 = vadd.f32 %v1040, %v1080
      %v1113 = vadd.f32 %v1041, %v1081
      %v1114 = vadd.f32 %v1042, %v1082
      %v1115 = vadd.f32 %v1043, %v1083
      %v1116 = vadd.f32 %v1044, %v1084
      %v1117 = vadd.f32 %v1045, %v1085
      %v1118 = vadd.f32 %v1046, %v1086
      %v1119 = vadd.f32 %v1047, %v1087
      %v1120 = vadd.f32 %v1048, %v1088
      %v1121 = vadd.f32 %v1049, %v1089
      %v1122 = vadd.f32 %v1050, %v1090
      %v1123 = vadd.f32 %v1051, %v1091
      %v1124 = vadd.f32 %v1052, %v1092
      %v1125 = vadd.f32 %v1053, %v1093
      %v1126 = vadd.f32 %v1054, %v1094
      %v1127 = vadd.f32 %v1055, %v1095
      %v1128 = vadd.f32 %v1056, %v1096
      %v1129 = vadd.f32 %v1057, %v1097
      %s1130 = scalar_lea.vmem %s5, 3
      %v1131 = vld [vmem:[%s1130] sm:$0x1]
      %v1133 = vlaneseq
      %v1134 = vshrl.u32 %v1133, 7
      %v1135 = vsub.s32 0, %v1134
      %v1136 = vrot.slane %v1131, %v1135
      %v1138 = vmul.f32 %v841, %v1136
      %v1139 = vmul.f32 %v842, %v1136
      %v1140 = vmul.f32 %v843, %v1136
      %v1141 = vmul.f32 %v844, %v1136
      %v1142 = vmul.f32 %v845, %v1136
      %v1143 = vmul.f32 %v846, %v1136
      %v1144 = vmul.f32 %v847, %v1136
      %v1145 = vmul.f32 %v848, %v1136
      %v1146 = vmul.f32 %v849, %v1136
      %v1147 = vmul.f32 %v850, %v1136
      %v1148 = vmul.f32 %v851, %v1136
      %v1149 = vmul.f32 %v852, %v1136
      %v1150 = vmul.f32 %v853, %v1136
      %v1151 = vmul.f32 %v854, %v1136
      %v1152 = vmul.f32 %v855, %v1136
      %v1153 = vmul.f32 %v856, %v1136
      %v1154 = vmul.f32 %v857, %v1136
      %v1155 = vmul.f32 %v858, %v1136
      %v1156 = vmul.f32 %v859, %v1136
      %v1157 = vmul.f32 %v860, %v1136
      %v1158 = vmul.f32 %v861, %v1136
      %v1159 = vmul.f32 %v862, %v1136
      %v1160 = vmul.f32 %v863, %v1136
      %v1161 = vmul.f32 %v864, %v1136
      %v1162 = vmul.f32 %v865, %v1136
      %v1163 = vmul.f32 %v866, %v1136
      %v1164 = vmul.f32 %v867, %v1136
      %v1165 = vmul.f32 %v868, %v1136
      %v1166 = vmul.f32 %v869, %v1136
      %v1167 = vmul.f32 %v870, %v1136
      %v1168 = vmul.f32 %v871, %v1136
      %v1169 = vmul.f32 %v872, %v1136
      %s1170 = scalar_lea.vmem %s5, 4
      %v1171 = vld [vmem:[%s1170] sm:$0x1]
      %v1173 = vlaneseq
      %v1174 = vshrl.u32 %v1173, 7
      %v1175 = vsub.s32 0, %v1174
      %v1176 = vrot.slane %v1171, %v1175
      %v1178 = vmul.f32 %v877, %v1176
      %v1179 = vmul.f32 %v878, %v1176
      %v1180 = vmul.f32 %v879, %v1176
      %v1181 = vmul.f32 %v880, %v1176
      %v1182 = vmul.f32 %v881, %v1176
      %v1183 = vmul.f32 %v882, %v1176
      %v1184 = vmul.f32 %v883, %v1176
      %v1185 = vmul.f32 %v884, %v1176
      %v1186 = vmul.f32 %v885, %v1176
      %v1187 = vmul.f32 %v886, %v1176
      %v1188 = vmul.f32 %v887, %v1176
      %v1189 = vmul.f32 %v888, %v1176
      %v1190 = vmul.f32 %v889, %v1176
      %v1191 = vmul.f32 %v890, %v1176
      %v1192 = vmul.f32 %v891, %v1176
      %v1193 = vmul.f32 %v892, %v1176
      %v1194 = vmul.f32 %v893, %v1176
      %v1195 = vmul.f32 %v894, %v1176
      %v1196 = vmul.f32 %v895, %v1176
      %v1197 = vmul.f32 %v896, %v1176
      %v1198 = vmul.f32 %v897, %v1176
      %v1199 = vmul.f32 %v898, %v1176
      %v1200 = vmul.f32 %v899, %v1176
      %v1201 = vmul.f32 %v900, %v1176
      %v1202 = vmul.f32 %v901, %v1176
      %v1203 = vmul.f32 %v902, %v1176
      %v1204 = vmul.f32 %v903, %v1176
      %v1205 = vmul.f32 %v904, %v1176
      %v1206 = vmul.f32 %v905, %v1176
      %v1207 = vmul.f32 %v906, %v1176
      %v1208 = vmul.f32 %v907, %v1176
      %v1209 = vmul.f32 %v908, %v1176
      %v1210 = vadd.f32 %v1138, %v1178
      %v1211 = vadd.f32 %v1139, %v1179
      %v1212 = vadd.f32 %v1140, %v1180
      %v1213 = vadd.f32 %v1141, %v1181
      %v1214 = vadd.f32 %v1142, %v1182
      %v1215 = vadd.f32 %v1143, %v1183
      %v1216 = vadd.f32 %v1144, %v1184
      %v1217 = vadd.f32 %v1145, %v1185
      %v1218 = vadd.f32 %v1146, %v1186
      %v1219 = vadd.f32 %v1147, %v1187
      %v1220 = vadd.f32 %v1148, %v1188
      %v1221 = vadd.f32 %v1149, %v1189
      %v1222 = vadd.f32 %v1150, %v1190
      %v1223 = vadd.f32 %v1151, %v1191
      %v1224 = vadd.f32 %v1152, %v1192
      %v1225 = vadd.f32 %v1153, %v1193
      %v1226 = vadd.f32 %v1154, %v1194
      %v1227 = vadd.f32 %v1155, %v1195
      %v1228 = vadd.f32 %v1156, %v1196
      %v1229 = vadd.f32 %v1157, %v1197
      %v1230 = vadd.f32 %v1158, %v1198
      %v1231 = vadd.f32 %v1159, %v1199
      %v1232 = vadd.f32 %v1160, %v1200
      %v1233 = vadd.f32 %v1161, %v1201
      %v1234 = vadd.f32 %v1162, %v1202
      %v1235 = vadd.f32 %v1163, %v1203
      %v1236 = vadd.f32 %v1164, %v1204
      %v1237 = vadd.f32 %v1165, %v1205
      %v1238 = vadd.f32 %v1166, %v1206
      %v1239 = vadd.f32 %v1167, %v1207
      %v1240 = vadd.f32 %v1168, %v1208
      %v1241 = vadd.f32 %v1169, %v1209
      %s1242 = scalar_lea.vmem %s5, 5
      %v1243 = vld [vmem:[%s1242] sm:$0x1]
      %v1245 = vlaneseq
      %v1246 = vshrl.u32 %v1245, 7
      %v1247 = vsub.s32 0, %v1246
      %v1248 = vrot.slane %v1243, %v1247
      %v1250 = vmul.f32 %v913, %v1248
      %v1251 = vmul.f32 %v914, %v1248
      %v1252 = vmul.f32 %v915, %v1248
      %v1253 = vmul.f32 %v916, %v1248
      %v1254 = vmul.f32 %v917, %v1248
      %v1255 = vmul.f32 %v918, %v1248
      %v1256 = vmul.f32 %v919, %v1248
      %v1257 = vmul.f32 %v920, %v1248
      %v1258 = vmul.f32 %v921, %v1248
      %v1259 = vmul.f32 %v922, %v1248
      %v1260 = vmul.f32 %v923, %v1248
      %v1261 = vmul.f32 %v924, %v1248
      %v1262 = vmul.f32 %v925, %v1248
      %v1263 = vmul.f32 %v926, %v1248
      %v1264 = vmul.f32 %v927, %v1248
      %v1265 = vmul.f32 %v928, %v1248
      %v1266 = vmul.f32 %v929, %v1248
      %v1267 = vmul.f32 %v930, %v1248
      %v1268 = vmul.f32 %v931, %v1248
      %v1269 = vmul.f32 %v932, %v1248
      %v1270 = vmul.f32 %v933, %v1248
      %v1271 = vmul.f32 %v934, %v1248
      %v1272 = vmul.f32 %v935, %v1248
      %v1273 = vmul.f32 %v936, %v1248
      %v1274 = vmul.f32 %v937, %v1248
      %v1275 = vmul.f32 %v938, %v1248
      %v1276 = vmul.f32 %v939, %v1248
      %v1277 = vmul.f32 %v940, %v1248
      %v1278 = vmul.f32 %v941, %v1248
      %v1279 = vmul.f32 %v942, %v1248
      %v1280 = vmul.f32 %v943, %v1248
      %v1281 = vmul.f32 %v944, %v1248
      %v1282 = vadd.f32 %v1210, %v1250
      %v1283 = vadd.f32 %v1211, %v1251
      %v1284 = vadd.f32 %v1212, %v1252
      %v1285 = vadd.f32 %v1213, %v1253
      %v1286 = vadd.f32 %v1214, %v1254
      %v1287 = vadd.f32 %v1215, %v1255
      %v1288 = vadd.f32 %v1216, %v1256
      %v1289 = vadd.f32 %v1217, %v1257
      %v1290 = vadd.f32 %v1218, %v1258
      %v1291 = vadd.f32 %v1219, %v1259
      %v1292 = vadd.f32 %v1220, %v1260
      %v1293 = vadd.f32 %v1221, %v1261
      %v1294 = vadd.f32 %v1222, %v1262
      %v1295 = vadd.f32 %v1223, %v1263
      %v1296 = vadd.f32 %v1224, %v1264
      %v1297 = vadd.f32 %v1225, %v1265
      %v1298 = vadd.f32 %v1226, %v1266
      %v1299 = vadd.f32 %v1227, %v1267
      %v1300 = vadd.f32 %v1228, %v1268
      %v1301 = vadd.f32 %v1229, %v1269
      %v1302 = vadd.f32 %v1230, %v1270
      %v1303 = vadd.f32 %v1231, %v1271
      %v1304 = vadd.f32 %v1232, %v1272
      %v1305 = vadd.f32 %v1233, %v1273
      %v1306 = vadd.f32 %v1234, %v1274
      %v1307 = vadd.f32 %v1235, %v1275
      %v1308 = vadd.f32 %v1236, %v1276
      %v1309 = vadd.f32 %v1237, %v1277
      %v1310 = vadd.f32 %v1238, %v1278
      %v1311 = vadd.f32 %v1239, %v1279
      %v1312 = vadd.f32 %v1240, %v1280
      %v1313 = vadd.f32 %v1241, %v1281
      %s1314 = scalar_lea.vmem %s5, 6
      %v1315 = vld [vmem:[%s1314] sm:$0x1]
      %v1317 = vlaneseq
      %v1318 = vshrl.u32 %v1317, 7
      %v1319 = vsub.s32 0, %v1318
      %v1320 = vrot.slane %v1315, %v1319
      %v1322 = vmul.f32 %v843, %v1320
      %v1323 = vmul.f32 %v844, %v1320
      %v1324 = vmul.f32 %v845, %v1320
      %v1325 = vmul.f32 %v846, %v1320
      %v1326 = vmul.f32 %v847, %v1320
      %v1327 = vmul.f32 %v848, %v1320
      %v1328 = vmul.f32 %v849, %v1320
      %v1329 = vmul.f32 %v850, %v1320
      %v1330 = vmul.f32 %v851, %v1320
      %v1331 = vmul.f32 %v852, %v1320
      %v1332 = vmul.f32 %v853, %v1320
      %v1333 = vmul.f32 %v854, %v1320
      %v1334 = vmul.f32 %v855, %v1320
      %v1335 = vmul.f32 %v856, %v1320
      %v1336 = vmul.f32 %v857, %v1320
      %v1337 = vmul.f32 %v858, %v1320
      %v1338 = vmul.f32 %v859, %v1320
      %v1339 = vmul.f32 %v860, %v1320
      %v1340 = vmul.f32 %v861, %v1320
      %v1341 = vmul.f32 %v862, %v1320
      %v1342 = vmul.f32 %v863, %v1320
      %v1343 = vmul.f32 %v864, %v1320
      %v1344 = vmul.f32 %v865, %v1320
      %v1345 = vmul.f32 %v866, %v1320
      %v1346 = vmul.f32 %v867, %v1320
      %v1347 = vmul.f32 %v868, %v1320
      %v1348 = vmul.f32 %v869, %v1320
      %v1349 = vmul.f32 %v870, %v1320
      %v1350 = vmul.f32 %v871, %v1320
      %v1351 = vmul.f32 %v872, %v1320
      %v1352 = vmul.f32 %v873, %v1320
      %v1353 = vmul.f32 %v874, %v1320
      %s1354 = scalar_lea.vmem %s5, 7
      %v1355 = vld [vmem:[%s1354] sm:$0x1]
      %v1357 = vlaneseq
      %v1358 = vshrl.u32 %v1357, 7
      %v1359 = vsub.s32 0, %v1358
      %v1360 = vrot.slane %v1355, %v1359
      %v1362 = vmul.f32 %v879, %v1360
      %v1363 = vmul.f32 %v880, %v1360
      %v1364 = vmul.f32 %v881, %v1360
      %v1365 = vmul.f32 %v882, %v1360
      %v1366 = vmul.f32 %v883, %v1360
      %v1367 = vmul.f32 %v884, %v1360
      %v1368 = vmul.f32 %v885, %v1360
      %v1369 = vmul.f32 %v886, %v1360
      %v1370 = vmul.f32 %v887, %v1360
      %v1371 = vmul.f32 %v888, %v1360
      %v1372 = vmul.f32 %v889, %v1360
      %v1373 = vmul.f32 %v890, %v1360
      %v1374 = vmul.f32 %v891, %v1360
      %v1375 = vmul.f32 %v892, %v1360
      %v1376 = vmul.f32 %v893, %v1360
      %v1377 = vmul.f32 %v894, %v1360
      %v1378 = vmul.f32 %v895, %v1360
      %v1379 = vmul.f32 %v896, %v1360
      %v1380 = vmul.f32 %v897, %v1360
      %v1381 = vmul.f32 %v898, %v1360
      %v1382 = vmul.f32 %v899, %v1360
      %v1383 = vmul.f32 %v900, %v1360
      %v1384 = vmul.f32 %v901, %v1360
      %v1385 = vmul.f32 %v902, %v1360
      %v1386 = vmul.f32 %v903, %v1360
      %v1387 = vmul.f32 %v904, %v1360
      %v1388 = vmul.f32 %v905, %v1360
      %v1389 = vmul.f32 %v906, %v1360
      %v1390 = vmul.f32 %v907, %v1360
      %v1391 = vmul.f32 %v908, %v1360
      %v1392 = vmul.f32 %v909, %v1360
      %v1393 = vmul.f32 %v910, %v1360
      %v1394 = vadd.f32 %v1322, %v1362
      %v1395 = vadd.f32 %v1323, %v1363
      %v1396 = vadd.f32 %v1324, %v1364
      %v1397 = vadd.f32 %v1325, %v1365
      %v1398 = vadd.f32 %v1326, %v1366
      %v1399 = vadd.f32 %v1327, %v1367
      %v1400 = vadd.f32 %v1328, %v1368
      %v1401 = vadd.f32 %v1329, %v1369
      %v1402 = vadd.f32 %v1330, %v1370
      %v1403 = vadd.f32 %v1331, %v1371
      %v1404 = vadd.f32 %v1332, %v1372
      %v1405 = vadd.f32 %v1333, %v1373
      %v1406 = vadd.f32 %v1334, %v1374
      %v1407 = vadd.f32 %v1335, %v1375
      %v1408 = vadd.f32 %v1336, %v1376
      %v1409 = vadd.f32 %v1337, %v1377
      %v1410 = vadd.f32 %v1338, %v1378
      %v1411 = vadd.f32 %v1339, %v1379
      %v1412 = vadd.f32 %v1340, %v1380
      %v1413 = vadd.f32 %v1341, %v1381
      %v1414 = vadd.f32 %v1342, %v1382
      %v1415 = vadd.f32 %v1343, %v1383
      %v1416 = vadd.f32 %v1344, %v1384
      %v1417 = vadd.f32 %v1345, %v1385
      %v1418 = vadd.f32 %v1346, %v1386
      %v1419 = vadd.f32 %v1347, %v1387
      %v1420 = vadd.f32 %v1348, %v1388
      %v1421 = vadd.f32 %v1349, %v1389
      %v1422 = vadd.f32 %v1350, %v1390
      %v1423 = vadd.f32 %v1351, %v1391
      %v1424 = vadd.f32 %v1352, %v1392
      %v1425 = vadd.f32 %v1353, %v1393
      %s1426 = scalar_lea.vmem %s5, 8
      %v1427 = vld [vmem:[%s1426] sm:$0x1]
      %v1429 = vlaneseq
      %v1430 = vshrl.u32 %v1429, 7
      %v1431 = vsub.s32 0, %v1430
      %v1432 = vrot.slane %v1427, %v1431
      %v1434 = vmul.f32 %v915, %v1432
      %v1435 = vmul.f32 %v916, %v1432
      %v1436 = vmul.f32 %v917, %v1432
      %v1437 = vmul.f32 %v918, %v1432
      %v1438 = vmul.f32 %v919, %v1432
      %v1439 = vmul.f32 %v920, %v1432
      %v1440 = vmul.f32 %v921, %v1432
      %v1441 = vmul.f32 %v922, %v1432
      %v1442 = vmul.f32 %v923, %v1432
      %v1443 = vmul.f32 %v924, %v1432
      %v1444 = vmul.f32 %v925, %v1432
      %v1445 = vmul.f32 %v926, %v1432
      %v1446 = vmul.f32 %v927, %v1432
      %v1447 = vmul.f32 %v928, %v1432
      %v1448 = vmul.f32 %v929, %v1432
      %v1449 = vmul.f32 %v930, %v1432
      %v1450 = vmul.f32 %v931, %v1432
      %v1451 = vmul.f32 %v932, %v1432
      %v1452 = vmul.f32 %v933, %v1432
      %v1453 = vmul.f32 %v934, %v1432
      %v1454 = vmul.f32 %v935, %v1432
      %v1455 = vmul.f32 %v936, %v1432
      %v1456 = vmul.f32 %v937, %v1432
      %v1457 = vmul.f32 %v938, %v1432
      %v1458 = vmul.f32 %v939, %v1432
      %v1459 = vmul.f32 %v940, %v1432
      %v1460 = vmul.f32 %v941, %v1432
      %v1461 = vmul.f32 %v942, %v1432
      %v1462 = vmul.f32 %v943, %v1432
      %v1463 = vmul.f32 %v944, %v1432
      %v1464 = vmul.f32 %v945, %v1432
      %v1465 = vmul.f32 %v946, %v1432
      %v1466 = vadd.f32 %v1394, %v1434
      %v1467 = vadd.f32 %v1395, %v1435
      %v1468 = vadd.f32 %v1396, %v1436
      %v1469 = vadd.f32 %v1397, %v1437
      %v1470 = vadd.f32 %v1398, %v1438
      %v1471 = vadd.f32 %v1399, %v1439
      %v1472 = vadd.f32 %v1400, %v1440
      %v1473 = vadd.f32 %v1401, %v1441
      %v1474 = vadd.f32 %v1402, %v1442
      %v1475 = vadd.f32 %v1403, %v1443
      %v1476 = vadd.f32 %v1404, %v1444
      %v1477 = vadd.f32 %v1405, %v1445
      %v1478 = vadd.f32 %v1406, %v1446
      %v1479 = vadd.f32 %v1407, %v1447
      %v1480 = vadd.f32 %v1408, %v1448
      %v1481 = vadd.f32 %v1409, %v1449
      %v1482 = vadd.f32 %v1410, %v1450
      %v1483 = vadd.f32 %v1411, %v1451
      %v1484 = vadd.f32 %v1412, %v1452
      %v1485 = vadd.f32 %v1413, %v1453
      %v1486 = vadd.f32 %v1414, %v1454
      %v1487 = vadd.f32 %v1415, %v1455
      %v1488 = vadd.f32 %v1416, %v1456
      %v1489 = vadd.f32 %v1417, %v1457
      %v1490 = vadd.f32 %v1418, %v1458
      %v1491 = vadd.f32 %v1419, %v1459
      %v1492 = vadd.f32 %v1420, %v1460
      %v1493 = vadd.f32 %v1421, %v1461
      %v1494 = vadd.f32 %v1422, %v1462
      %v1495 = vadd.f32 %v1423, %v1463
      %v1496 = vadd.f32 %v1424, %v1464
      %v1497 = vadd.f32 %v1425, %v1465
      %v1498 = vadd.f32 %v1098, %v1282
      %v1499 = vadd.f32 %v1099, %v1283
      %v1500 = vadd.f32 %v1100, %v1284
      %v1501 = vadd.f32 %v1101, %v1285
      %v1502 = vadd.f32 %v1102, %v1286
      %v1503 = vadd.f32 %v1103, %v1287
      %v1504 = vadd.f32 %v1104, %v1288
      %v1505 = vadd.f32 %v1105, %v1289
      %v1506 = vadd.f32 %v1106, %v1290
      %v1507 = vadd.f32 %v1107, %v1291
      %v1508 = vadd.f32 %v1108, %v1292
      %v1509 = vadd.f32 %v1109, %v1293
      %v1510 = vadd.f32 %v1110, %v1294
      %v1511 = vadd.f32 %v1111, %v1295
      %v1512 = vadd.f32 %v1112, %v1296
      %v1513 = vadd.f32 %v1113, %v1297
      %v1514 = vadd.f32 %v1114, %v1298
      %v1515 = vadd.f32 %v1115, %v1299
      %v1516 = vadd.f32 %v1116, %v1300
      %v1517 = vadd.f32 %v1117, %v1301
      %v1518 = vadd.f32 %v1118, %v1302
      %v1519 = vadd.f32 %v1119, %v1303
      %v1520 = vadd.f32 %v1120, %v1304
      %v1521 = vadd.f32 %v1121, %v1305
      %v1522 = vadd.f32 %v1122, %v1306
      %v1523 = vadd.f32 %v1123, %v1307
      %v1524 = vadd.f32 %v1124, %v1308
      %v1525 = vadd.f32 %v1125, %v1309
      %v1526 = vadd.f32 %v1126, %v1310
      %v1527 = vadd.f32 %v1127, %v1311
      %v1528 = vadd.f32 %v1128, %v1312
      %v1529 = vadd.f32 %v1129, %v1313
      %v1530 = vadd.f32 %v1498, %v1466
      %v1531 = vadd.f32 %v1499, %v1467
      %v1532 = vadd.f32 %v1500, %v1468
      %v1533 = vadd.f32 %v1501, %v1469
      %v1534 = vadd.f32 %v1502, %v1470
      %v1535 = vadd.f32 %v1503, %v1471
      %v1536 = vadd.f32 %v1504, %v1472
      %v1537 = vadd.f32 %v1505, %v1473
      %v1538 = vadd.f32 %v1506, %v1474
      %v1539 = vadd.f32 %v1507, %v1475
      %v1540 = vadd.f32 %v1508, %v1476
      %v1541 = vadd.f32 %v1509, %v1477
      %v1542 = vadd.f32 %v1510, %v1478
      %v1543 = vadd.f32 %v1511, %v1479
      %v1544 = vadd.f32 %v1512, %v1480
      %v1545 = vadd.f32 %v1513, %v1481
      %v1546 = vadd.f32 %v1514, %v1482
      %v1547 = vadd.f32 %v1515, %v1483
      %v1548 = vadd.f32 %v1516, %v1484
      %v1549 = vadd.f32 %v1517, %v1485
      %v1550 = vadd.f32 %v1518, %v1486
      %v1551 = vadd.f32 %v1519, %v1487
      %v1552 = vadd.f32 %v1520, %v1488
      %v1553 = vadd.f32 %v1521, %v1489
      %v1554 = vadd.f32 %v1522, %v1490
      %v1555 = vadd.f32 %v1523, %v1491
      %v1556 = vadd.f32 %v1524, %v1492
      %v1557 = vadd.f32 %v1525, %v1493
      %v1558 = vadd.f32 %v1526, %v1494
      %v1559 = vadd.f32 %v1527, %v1495
      %v1560 = vadd.f32 %v1528, %v1496
      %v1561 = vadd.f32 %v1529, %v1497
      %v1562 = vld [vmem:[%s6] sm:$0x1]
      %v1564 = vlaneseq
      %v1565 = vshrl.u32 %v1564, 7
      %v1566 = vsub.s32 0, %v1565
      %v1567 = vrot.slane %v1562, %v1566
      %v1569 = vadd.f32 %v1530, %v1567
      %v1570 = vadd.f32 %v1531, %v1567
      %v1571 = vadd.f32 %v1532, %v1567
      %v1572 = vadd.f32 %v1533, %v1567
      %v1573 = vadd.f32 %v1534, %v1567
      %v1574 = vadd.f32 %v1535, %v1567
      %v1575 = vadd.f32 %v1536, %v1567
      %v1576 = vadd.f32 %v1537, %v1567
      %v1577 = vadd.f32 %v1538, %v1567
      %v1578 = vadd.f32 %v1539, %v1567
      %v1579 = vadd.f32 %v1540, %v1567
      %v1580 = vadd.f32 %v1541, %v1567
      %v1581 = vadd.f32 %v1542, %v1567
      %v1582 = vadd.f32 %v1543, %v1567
      %v1583 = vadd.f32 %v1544, %v1567
      %v1584 = vadd.f32 %v1545, %v1567
      %v1585 = vadd.f32 %v1546, %v1567
      %v1586 = vadd.f32 %v1547, %v1567
      %v1587 = vadd.f32 %v1548, %v1567
      %v1588 = vadd.f32 %v1549, %v1567
      %v1589 = vadd.f32 %v1550, %v1567
      %v1590 = vadd.f32 %v1551, %v1567
      %v1591 = vadd.f32 %v1552, %v1567
      %v1592 = vadd.f32 %v1553, %v1567
      %v1593 = vadd.f32 %v1554, %v1567
      %v1594 = vadd.f32 %v1555, %v1567
      %v1595 = vadd.f32 %v1556, %v1567
      %v1596 = vadd.f32 %v1557, %v1567
      %v1597 = vadd.f32 %v1558, %v1567
      %v1598 = vadd.f32 %v1559, %v1567
      %v1599 = vadd.f32 %v1560, %v1567
      %v1600 = vadd.f32 %v1561, %v1567
      %v1601 = vmul.f32 %v1569, %v1569
      %v1602 = vmul.f32 %v1570, %v1570
      %v1603 = vmul.f32 %v1571, %v1571
      %v1604 = vmul.f32 %v1572, %v1572
      %v1605 = vmul.f32 %v1573, %v1573
      %v1606 = vmul.f32 %v1574, %v1574
      %v1607 = vmul.f32 %v1575, %v1575
      %v1608 = vmul.f32 %v1576, %v1576
      %v1609 = vmul.f32 %v1577, %v1577
      %v1610 = vmul.f32 %v1578, %v1578
      %v1611 = vmul.f32 %v1579, %v1579
      %v1612 = vmul.f32 %v1580, %v1580
      %v1613 = vmul.f32 %v1581, %v1581
      %v1614 = vmul.f32 %v1582, %v1582
      %v1615 = vmul.f32 %v1583, %v1583
      %v1616 = vmul.f32 %v1584, %v1584
      %v1617 = vmul.f32 %v1585, %v1585
      %v1618 = vmul.f32 %v1586, %v1586
      %v1619 = vmul.f32 %v1587, %v1587
      %v1620 = vmul.f32 %v1588, %v1588
      %v1621 = vmul.f32 %v1589, %v1589
      %v1622 = vmul.f32 %v1590, %v1590
      %v1623 = vmul.f32 %v1591, %v1591
      %v1624 = vmul.f32 %v1592, %v1592
      %v1625 = vmul.f32 %v1593, %v1593
      %v1626 = vmul.f32 %v1594, %v1594
      %v1627 = vmul.f32 %v1595, %v1595
      %v1628 = vmul.f32 %v1596, %v1596
      %v1629 = vmul.f32 %v1597, %v1597
      %v1630 = vmul.f32 %v1598, %v1598
      %v1631 = vmul.f32 %v1599, %v1599
      %v1632 = vmul.f32 %v1600, %v1600
      %v1633 = vsel %vm763, %v1601, 0.0
      %1634 = vadd.xlane.f32.xlu0 %v1633
      %v1635 = vpop.xlane.xlu0 %1634
      %v1636 = vsel %vm763, %v1602, 0.0
      %1637 = vadd.xlane.f32.xlu0 %v1636
      %v1638 = vpop.xlane.xlu0 %1637
      %v1639 = vsel %vm763, %v1603, 0.0
      %1640 = vadd.xlane.f32.xlu0 %v1639
      %v1641 = vpop.xlane.xlu0 %1640
      %v1642 = vsel %vm763, %v1604, 0.0
      %1643 = vadd.xlane.f32.xlu0 %v1642
      %v1644 = vpop.xlane.xlu0 %1643
      %v1645 = vsel %vm763, %v1605, 0.0
      %1646 = vadd.xlane.f32.xlu0 %v1645
      %v1647 = vpop.xlane.xlu0 %1646
      %v1648 = vsel %vm763, %v1606, 0.0
      %1649 = vadd.xlane.f32.xlu0 %v1648
      %v1650 = vpop.xlane.xlu0 %1649
      %v1651 = vsel %vm763, %v1607, 0.0
      %1652 = vadd.xlane.f32.xlu0 %v1651
      %v1653 = vpop.xlane.xlu0 %1652
      %v1654 = vsel %vm763, %v1608, 0.0
      %1655 = vadd.xlane.f32.xlu0 %v1654
      %v1656 = vpop.xlane.xlu0 %1655
      %v1657 = vsel %vm763, %v1609, 0.0
      %1658 = vadd.xlane.f32.xlu0 %v1657
      %v1659 = vpop.xlane.xlu0 %1658
      %v1660 = vsel %vm763, %v1610, 0.0
      %1661 = vadd.xlane.f32.xlu0 %v1660
      %v1662 = vpop.xlane.xlu0 %1661
      %v1663 = vsel %vm763, %v1611, 0.0
      %1664 = vadd.xlane.f32.xlu0 %v1663
      %v1665 = vpop.xlane.xlu0 %1664
      %v1666 = vsel %vm763, %v1612, 0.0
      %1667 = vadd.xlane.f32.xlu0 %v1666
      %v1668 = vpop.xlane.xlu0 %1667
      %v1669 = vsel %vm763, %v1613, 0.0
      %1670 = vadd.xlane.f32.xlu0 %v1669
      %v1671 = vpop.xlane.xlu0 %1670
      %v1672 = vsel %vm763, %v1614, 0.0
      %1673 = vadd.xlane.f32.xlu0 %v1672
      %v1674 = vpop.xlane.xlu0 %1673
      %v1675 = vsel %vm763, %v1615, 0.0
      %1676 = vadd.xlane.f32.xlu0 %v1675
      %v1677 = vpop.xlane.xlu0 %1676
      %v1678 = vsel %vm763, %v1616, 0.0
      %1679 = vadd.xlane.f32.xlu0 %v1678
      %v1680 = vpop.xlane.xlu0 %1679
      %v1681 = vsel %vm763, %v1617, 0.0
      %1682 = vadd.xlane.f32.xlu0 %v1681
      %v1683 = vpop.xlane.xlu0 %1682
      %v1684 = vsel %vm763, %v1618, 0.0
      %1685 = vadd.xlane.f32.xlu0 %v1684
      %v1686 = vpop.xlane.xlu0 %1685
      %v1687 = vsel %vm763, %v1619, 0.0
      %1688 = vadd.xlane.f32.xlu0 %v1687
      %v1689 = vpop.xlane.xlu0 %1688
      %v1690 = vsel %vm763, %v1620, 0.0
      %1691 = vadd.xlane.f32.xlu0 %v1690
      %v1692 = vpop.xlane.xlu0 %1691
      %v1693 = vsel %vm763, %v1621, 0.0
      %1694 = vadd.xlane.f32.xlu0 %v1693
      %v1695 = vpop.xlane.xlu0 %1694
      %v1696 = vsel %vm763, %v1622, 0.0
      %1697 = vadd.xlane.f32.xlu0 %v1696
      %v1698 = vpop.xlane.xlu0 %1697
      %v1699 = vsel %vm763, %v1623, 0.0
      %1700 = vadd.xlane.f32.xlu0 %v1699
      %v1701 = vpop.xlane.xlu0 %1700
      %v1702 = vsel %vm763, %v1624, 0.0
      %1703 = vadd.xlane.f32.xlu0 %v1702
      %v1704 = vpop.xlane.xlu0 %1703
      %v1705 = vsel %vm763, %v1625, 0.0
      %1706 = vadd.xlane.f32.xlu0 %v1705
      %v1707 = vpop.xlane.xlu0 %1706
      %v1708 = vsel %vm763, %v1626, 0.0
      %1709 = vadd.xlane.f32.xlu0 %v1708
      %v1710 = vpop.xlane.xlu0 %1709
      %v1711 = vsel %vm763, %v1627, 0.0
      %1712 = vadd.xlane.f32.xlu0 %v1711
      %v1713 = vpop.xlane.xlu0 %1712
      %v1714 = vsel %vm763, %v1628, 0.0
      %1715 = vadd.xlane.f32.xlu0 %v1714
      %v1716 = vpop.xlane.xlu0 %1715
      %v1717 = vsel %vm763, %v1629, 0.0
      %1718 = vadd.xlane.f32.xlu0 %v1717
      %v1719 = vpop.xlane.xlu0 %1718
      %v1720 = vsel %vm763, %v1630, 0.0
      %1721 = vadd.xlane.f32.xlu0 %v1720
      %v1722 = vpop.xlane.xlu0 %1721
      %v1723 = vsel %vm763, %v1631, 0.0
      %1724 = vadd.xlane.f32.xlu0 %v1723
      %v1725 = vpop.xlane.xlu0 %1724
      %v1726 = vsel %vm763, %v1632, 0.0
      %1727 = vadd.xlane.f32.xlu0 %v1726
      %v1728 = vpop.xlane.xlu0 %1727
      %v1729 = vrcp.pop 32.0
      %v1730 = vmul.f32 %v1635, %v1729
      %v1731 = vmul.f32 %v1638, %v1729
      %v1732 = vmul.f32 %v1641, %v1729
      %v1733 = vmul.f32 %v1644, %v1729
      %v1734 = vmul.f32 %v1647, %v1729
      %v1735 = vmul.f32 %v1650, %v1729
      %v1736 = vmul.f32 %v1653, %v1729
      %v1737 = vmul.f32 %v1656, %v1729
      %v1738 = vmul.f32 %v1659, %v1729
      %v1739 = vmul.f32 %v1662, %v1729
      %v1740 = vmul.f32 %v1665, %v1729
      %v1741 = vmul.f32 %v1668, %v1729
      %v1742 = vmul.f32 %v1671, %v1729
      %v1743 = vmul.f32 %v1674, %v1729
      %v1744 = vmul.f32 %v1677, %v1729
      %v1745 = vmul.f32 %v1680, %v1729
      %v1746 = vmul.f32 %v1683, %v1729
      %v1747 = vmul.f32 %v1686, %v1729
      %v1748 = vmul.f32 %v1689, %v1729
      %v1749 = vmul.f32 %v1692, %v1729
      %v1750 = vmul.f32 %v1695, %v1729
      %v1751 = vmul.f32 %v1698, %v1729
      %v1752 = vmul.f32 %v1701, %v1729
      %v1753 = vmul.f32 %v1704, %v1729
      %v1754 = vmul.f32 %v1707, %v1729
      %v1755 = vmul.f32 %v1710, %v1729
      %v1756 = vmul.f32 %v1713, %v1729
      %v1757 = vmul.f32 %v1716, %v1729
      %v1758 = vmul.f32 %v1719, %v1729
      %v1759 = vmul.f32 %v1722, %v1729
      %v1760 = vmul.f32 %v1725, %v1729
      %v1761 = vmul.f32 %v1728, %v1729
      %v1762 = vadd.f32 %v1730, 1e-06
      %v1763 = vadd.f32 %v1731, 1e-06
      %v1764 = vadd.f32 %v1732, 1e-06
      %v1765 = vadd.f32 %v1733, 1e-06
      %v1766 = vadd.f32 %v1734, 1e-06
      %v1767 = vadd.f32 %v1735, 1e-06
      %v1768 = vadd.f32 %v1736, 1e-06
      %v1769 = vadd.f32 %v1737, 1e-06
      %v1770 = vadd.f32 %v1738, 1e-06
      %v1771 = vadd.f32 %v1739, 1e-06
      %v1772 = vadd.f32 %v1740, 1e-06
      %v1773 = vadd.f32 %v1741, 1e-06
      %v1774 = vadd.f32 %v1742, 1e-06
      %v1775 = vadd.f32 %v1743, 1e-06
      %v1776 = vadd.f32 %v1744, 1e-06
      %v1777 = vadd.f32 %v1745, 1e-06
      %v1778 = vadd.f32 %v1746, 1e-06
      %v1779 = vadd.f32 %v1747, 1e-06
      %v1780 = vadd.f32 %v1748, 1e-06
      %v1781 = vadd.f32 %v1749, 1e-06
      %v1782 = vadd.f32 %v1750, 1e-06
      %v1783 = vadd.f32 %v1751, 1e-06
      %v1784 = vadd.f32 %v1752, 1e-06
      %v1785 = vadd.f32 %v1753, 1e-06
      %v1786 = vadd.f32 %v1754, 1e-06
      %v1787 = vadd.f32 %v1755, 1e-06
      %v1788 = vadd.f32 %v1756, 1e-06
      %v1789 = vadd.f32 %v1757, 1e-06
      %v1790 = vadd.f32 %v1758, 1e-06
      %v1791 = vadd.f32 %v1759, 1e-06
      %v1792 = vadd.f32 %v1760, 1e-06
      %v1793 = vadd.f32 %v1761, 1e-06
      %v1794 = vrsqrt.pop %v1762
      %v1795 = vrsqrt.pop %v1763
      %v1796 = vrsqrt.pop %v1764
      %v1797 = vrsqrt.pop %v1765
      %v1798 = vrsqrt.pop %v1766
      %v1799 = vrsqrt.pop %v1767
      %v1800 = vrsqrt.pop %v1768
      %v1801 = vrsqrt.pop %v1769
      %v1802 = vrsqrt.pop %v1770
      %v1803 = vrsqrt.pop %v1771
      %v1804 = vrsqrt.pop %v1772
      %v1805 = vrsqrt.pop %v1773
      %v1806 = vrsqrt.pop %v1774
      %v1807 = vrsqrt.pop %v1775
      %v1808 = vrsqrt.pop %v1776
      %v1809 = vrsqrt.pop %v1777
      %v1810 = vrsqrt.pop %v1778
      %v1811 = vrsqrt.pop %v1779
      %v1812 = vrsqrt.pop %v1780
      %v1813 = vrsqrt.pop %v1781
      %v1814 = vrsqrt.pop %v1782
      %v1815 = vrsqrt.pop %v1783
      %v1816 = vrsqrt.pop %v1784
      %v1817 = vrsqrt.pop %v1785
      %v1818 = vrsqrt.pop %v1786
      %v1819 = vrsqrt.pop %v1787
      %v1820 = vrsqrt.pop %v1788
      %v1821 = vrsqrt.pop %v1789
      %v1822 = vrsqrt.pop %v1790
      %v1823 = vrsqrt.pop %v1791
      %v1824 = vrsqrt.pop %v1792
      %v1825 = vrsqrt.pop %v1793
      %v1826 = vmul.f32 %v1569, %v1794
      %v1827 = vmul.f32 %v1570, %v1795
      %v1828 = vmul.f32 %v1571, %v1796
      %v1829 = vmul.f32 %v1572, %v1797
      %v1830 = vmul.f32 %v1573, %v1798
      %v1831 = vmul.f32 %v1574, %v1799
      %v1832 = vmul.f32 %v1575, %v1800
      %v1833 = vmul.f32 %v1576, %v1801
      %v1834 = vmul.f32 %v1577, %v1802
      %v1835 = vmul.f32 %v1578, %v1803
      %v1836 = vmul.f32 %v1579, %v1804
      %v1837 = vmul.f32 %v1580, %v1805
      %v1838 = vmul.f32 %v1581, %v1806
      %v1839 = vmul.f32 %v1582, %v1807
      %v1840 = vmul.f32 %v1583, %v1808
      %v1841 = vmul.f32 %v1584, %v1809
      %v1842 = vmul.f32 %v1585, %v1810
      %v1843 = vmul.f32 %v1586, %v1811
      %v1844 = vmul.f32 %v1587, %v1812
      %v1845 = vmul.f32 %v1588, %v1813
      %v1846 = vmul.f32 %v1589, %v1814
      %v1847 = vmul.f32 %v1590, %v1815
      %v1848 = vmul.f32 %v1591, %v1816
      %v1849 = vmul.f32 %v1592, %v1817
      %v1850 = vmul.f32 %v1593, %v1818
      %v1851 = vmul.f32 %v1594, %v1819
      %v1852 = vmul.f32 %v1595, %v1820
      %v1853 = vmul.f32 %v1596, %v1821
      %v1854 = vmul.f32 %v1597, %v1822
      %v1855 = vmul.f32 %v1598, %v1823
      %v1856 = vmul.f32 %v1599, %v1824
      %v1857 = vmul.f32 %v1600, %v1825
      %v1858 = vld [vmem:[%s7] sm:$0x1]
      %v1860 = vlaneseq
      %v1861 = vshrl.u32 %v1860, 7
      %v1862 = vsub.s32 0, %v1861
      %v1863 = vrot.slane %v1858, %v1862
      %v1865 = vmul.f32 %v1826, %v1863
      %v1866 = vmul.f32 %v1827, %v1863
      %v1867 = vmul.f32 %v1828, %v1863
      %v1868 = vmul.f32 %v1829, %v1863
      %v1869 = vmul.f32 %v1830, %v1863
      %v1870 = vmul.f32 %v1831, %v1863
      %v1871 = vmul.f32 %v1832, %v1863
      %v1872 = vmul.f32 %v1833, %v1863
      %v1873 = vmul.f32 %v1834, %v1863
      %v1874 = vmul.f32 %v1835, %v1863
      %v1875 = vmul.f32 %v1836, %v1863
      %v1876 = vmul.f32 %v1837, %v1863
      %v1877 = vmul.f32 %v1838, %v1863
      %v1878 = vmul.f32 %v1839, %v1863
      %v1879 = vmul.f32 %v1840, %v1863
      %v1880 = vmul.f32 %v1841, %v1863
      %v1881 = vmul.f32 %v1842, %v1863
      %v1882 = vmul.f32 %v1843, %v1863
      %v1883 = vmul.f32 %v1844, %v1863
      %v1884 = vmul.f32 %v1845, %v1863
      %v1885 = vmul.f32 %v1846, %v1863
      %v1886 = vmul.f32 %v1847, %v1863
      %v1887 = vmul.f32 %v1848, %v1863
      %v1888 = vmul.f32 %v1849, %v1863
      %v1889 = vmul.f32 %v1850, %v1863
      %v1890 = vmul.f32 %v1851, %v1863
      %v1891 = vmul.f32 %v1852, %v1863
      %v1892 = vmul.f32 %v1853, %v1863
      %v1893 = vmul.f32 %v1854, %v1863
      %v1894 = vmul.f32 %v1855, %v1863
      %v1895 = vmul.f32 %v1856, %v1863
      %v1896 = vmul.f32 %v1857, %v1863
      %v1897 = vpack.c.bf16 %v1866, %v1865
      %v1898 = vpack.c.bf16 %v1868, %v1867
      %v1899 = vpack.c.bf16 %v1870, %v1869
      %v1900 = vpack.c.bf16 %v1872, %v1871
      %v1901 = vpack.c.bf16 %v1874, %v1873
      %v1902 = vpack.c.bf16 %v1876, %v1875
      %v1903 = vpack.c.bf16 %v1878, %v1877
      %v1904 = vpack.c.bf16 %v1880, %v1879
      %v1905 = vpack.c.bf16 %v1882, %v1881
      %v1906 = vpack.c.bf16 %v1884, %v1883
      %v1907 = vpack.c.bf16 %v1886, %v1885
      %v1908 = vpack.c.bf16 %v1888, %v1887
      %v1909 = vpack.c.bf16 %v1890, %v1889
      %v1910 = vpack.c.bf16 %v1892, %v1891
      %v1911 = vpack.c.bf16 %v1894, %v1893
      %v1912 = vpack.c.bf16 %v1896, %v1895
      %v1913 = vld [vmem:[%s8] sm:$0xf]
      %v1914 = vld [vmem:[%s8 + $0x4] sm:$0xf]
      %v1915 = vld [vmem:[%s8 + $0x8] sm:$0xf]
      %v1916 = vld [vmem:[%s8 + $0xc] sm:$0xf]
      %v1917 = vld [vmem:[%s9] sm:$0x1]
      %v1919 = vlaneseq
      %v1920 = vshrl.u32 %v1919, 7
      %v1921 = vsub.s32 0, %v1920
      %v1922 = vrot.slane %v1917, %v1921
      %v1928 = vunpack.c.l.b16 %v1913
      %v1929 = vunpack.c.l.b16 %v1914
      %v1930 = vunpack.c.l.b16 %v1915
      %v1931 = vunpack.c.l.b16 %v1916
      %v1932 = vpack.c.b16 %v1929, %v1928
      %v1933 = vpack.c.b16 %v1931, %v1930
      %v1937 = vsel %vm763, %v1897, 0
      %v1940 = vsel %vm763, %v1898, 0
      %v1943 = vsel %vm763, %v1899, 0
      %v1946 = vsel %vm763, %v1900, 0
      %v1949 = vsel %vm763, %v1901, 0
      %v1952 = vsel %vm763, %v1902, 0
      %v1955 = vsel %vm763, %v1903, 0
      %v1958 = vsel %vm763, %v1904, 0
      %v1961 = vsel %vm763, %v1905, 0
      %v1964 = vsel %vm763, %v1906, 0
      %v1967 = vsel %vm763, %v1907, 0
      %v1970 = vsel %vm763, %v1908, 0
      %v1973 = vsel %vm763, %v1909, 0
      %v1976 = vsel %vm763, %v1910, 0
      %v1979 = vsel %vm763, %v1911, 0
      %v1982 = vsel %vm763, %v1912, 0
      %1984 = vmatprep.subr.bf16.mxu0 0
      %1985 = vmatpush1.bf16.msra.mxu0 0
      %1986 = vmatprep.subr.bf16.mxu0 0
      %1987 = vmatpush1.bf16.msra.mxu0 0
      %1988 = vmatprep.subr.bf16.mxu0 0
      %1989 = vmatpush1.bf16.msra.mxu0 0
      %1990 = vmatprep.subr.bf16.mxu0 0
      %1991 = vmatpush1.bf16.msra.mxu0 0
      %1992 = vmatprep.subr.bf16.mxu0 0
      %1993 = vmatpush1.bf16.msra.mxu0 0
      %1994 = vmatprep.subr.bf16.mxu0 0
      %1995 = vmatpush1.bf16.msra.mxu0 0
      %1996 = vmatprep.subr.bf16.mxu0 0
      %1997 = vmatpush1.bf16.msra.mxu0 %v1933
      %1998 = vmatprep.subr.bf16.mxu0 0
      %1999 = vmatpush1.bf16.msra.mxu0 %v1932
      %2000 = vmatprep.subr.bf16.mxu0 0
      %2001 = vmatpush2.bf16.msra.mxu0 0
      %2002 = vmatprep.subr.bf16.mxu0 0
      %2003 = vmatpush2.bf16.msra.mxu0 0
      %2004 = vmatprep.subr.bf16.mxu0 0
      %2005 = vmatpush2.bf16.msra.mxu0 0
      %2006 = vmatprep.subr.bf16.mxu0 0
      %2007 = vmatpush2.bf16.msra.mxu0 0
      %2008 = vmatprep.subr.bf16.mxu0 0
      %2009 = vmatpush2.bf16.msra.mxu0 0
      %2010 = vmatprep.subr.bf16.mxu0 0
      %2011 = vmatpush2.bf16.msra.mxu0 0
      %2012 = vmatprep.subr.bf16.mxu0 0
      %2013 = vmatpush2.bf16.msra.mxu0 0
      %2014 = vmatprep.subr.bf16.mxu0 0
      %2015 = vmatpush2.bf16.msra.mxu0 0
      %2016 = vmatprep.mubr.bf16.mxu0 0
      %2017 = vmatmul.mubr.bf16.gmra.mxu0 %v1937
      %v2018 = vpop.f32.mrf.mxu0
      %v2019 = vadd.f32 %v1922, %v2018
      %v2020 = vpop.f32.mrf.mxu0
      %v2021 = vpop.f32.mrf.mxu0
      %v2022 = vadd.f32 %v1922, %v2021
      %v2023 = vpop.f32.mrf.mxu0
      %2024 = vmatprep.mubr.bf16.mxu0 0
      %2025 = vmatmul.mubr.bf16.gmra.mxu0 %v1940
      %v2026 = vpop.f32.mrf.mxu0
      %v2027 = vadd.f32 %v1922, %v2026
      %v2028 = vpop.f32.mrf.mxu0
      %v2029 = vpop.f32.mrf.mxu0
      %v2030 = vadd.f32 %v1922, %v2029
      %v2031 = vpop.f32.mrf.mxu0
      %2032 = vmatprep.mubr.bf16.mxu0 0
      %2033 = vmatmul.mubr.bf16.gmra.mxu0 %v1943
      %v2034 = vpop.f32.mrf.mxu0
      %v2035 = vadd.f32 %v1922, %v2034
      %v2036 = vpop.f32.mrf.mxu0
      %v2037 = vpop.f32.mrf.mxu0
      %v2038 = vadd.f32 %v1922, %v2037
      %v2039 = vpop.f32.mrf.mxu0
      %2040 = vmatprep.mubr.bf16.mxu0 0
      %2041 = vmatmul.mubr.bf16.gmra.mxu0 %v1946
      %v2042 = vpop.f32.mrf.mxu0
      %v2043 = vadd.f32 %v1922, %v2042
      %v2044 = vpop.f32.mrf.mxu0
      %v2045 = vpop.f32.mrf.mxu0
      %v2046 = vadd.f32 %v1922, %v2045
      %v2047 = vpop.f32.mrf.mxu0
      %2048 = vmatprep.mubr.bf16.mxu0 0
      %2049 = vmatmul.mubr.bf16.gmra.mxu0 %v1949
      %v2050 = vpop.f32.mrf.mxu0
      %v2051 = vadd.f32 %v1922, %v2050
      %v2052 = vpop.f32.mrf.mxu0
      %v2053 = vpop.f32.mrf.mxu0
      %v2054 = vadd.f32 %v1922, %v2053
      %v2055 = vpop.f32.mrf.mxu0
      %2056 = vmatprep.mubr.bf16.mxu0 0
      %2057 = vmatmul.mubr.bf16.gmra.mxu0 %v1952
      %v2058 = vpop.f32.mrf.mxu0
      %v2059 = vadd.f32 %v1922, %v2058
      %v2060 = vpop.f32.mrf.mxu0
      %v2061 = vpop.f32.mrf.mxu0
      %v2062 = vadd.f32 %v1922, %v2061
      %v2063 = vpop.f32.mrf.mxu0
      %2064 = vmatprep.mubr.bf16.mxu0 0
      %2065 = vmatmul.mubr.bf16.gmra.mxu0 %v1955
      %v2066 = vpop.f32.mrf.mxu0
      %v2067 = vadd.f32 %v1922, %v2066
      %v2068 = vpop.f32.mrf.mxu0
      %v2069 = vpop.f32.mrf.mxu0
      %v2070 = vadd.f32 %v1922, %v2069
      %v2071 = vpop.f32.mrf.mxu0
      %2072 = vmatprep.mubr.bf16.mxu0 0
      %2073 = vmatmul.mubr.bf16.gmra.mxu0 %v1958
      %v2074 = vpop.f32.mrf.mxu0
      %v2075 = vadd.f32 %v1922, %v2074
      %v2076 = vpop.f32.mrf.mxu0
      %v2077 = vpop.f32.mrf.mxu0
      %v2078 = vadd.f32 %v1922, %v2077
      %v2079 = vpop.f32.mrf.mxu0
      %2080 = vmatprep.mubr.bf16.mxu0 0
      %2081 = vmatmul.mubr.bf16.gmra.mxu0 %v1961
      %v2082 = vpop.f32.mrf.mxu0
      %v2083 = vadd.f32 %v1922, %v2082
      %v2084 = vpop.f32.mrf.mxu0
      %v2085 = vpop.f32.mrf.mxu0
      %v2086 = vadd.f32 %v1922, %v2085
      %v2087 = vpop.f32.mrf.mxu0
      %2088 = vmatprep.mubr.bf16.mxu0 0
      %2089 = vmatmul.mubr.bf16.gmra.mxu0 %v1964
      %v2090 = vpop.f32.mrf.mxu0
      %v2091 = vadd.f32 %v1922, %v2090
      %v2092 = vpop.f32.mrf.mxu0
      %v2093 = vpop.f32.mrf.mxu0
      %v2094 = vadd.f32 %v1922, %v2093
      %v2095 = vpop.f32.mrf.mxu0
      %2096 = vmatprep.mubr.bf16.mxu0 0
      %2097 = vmatmul.mubr.bf16.gmra.mxu0 %v1967
      %v2098 = vpop.f32.mrf.mxu0
      %v2099 = vadd.f32 %v1922, %v2098
      %v2100 = vpop.f32.mrf.mxu0
      %v2101 = vpop.f32.mrf.mxu0
      %v2102 = vadd.f32 %v1922, %v2101
      %v2103 = vpop.f32.mrf.mxu0
      %2104 = vmatprep.mubr.bf16.mxu0 0
      %2105 = vmatmul.mubr.bf16.gmra.mxu0 %v1970
      %v2106 = vpop.f32.mrf.mxu0
      %v2107 = vadd.f32 %v1922, %v2106
      %v2108 = vpop.f32.mrf.mxu0
      %v2109 = vpop.f32.mrf.mxu0
      %v2110 = vadd.f32 %v1922, %v2109
      %v2111 = vpop.f32.mrf.mxu0
      %2112 = vmatprep.mubr.bf16.mxu0 0
      %2113 = vmatmul.mubr.bf16.gmra.mxu0 %v1973
      %v2114 = vpop.f32.mrf.mxu0
      %v2115 = vadd.f32 %v1922, %v2114
      %v2116 = vpop.f32.mrf.mxu0
      %v2117 = vpop.f32.mrf.mxu0
      %v2118 = vadd.f32 %v1922, %v2117
      %v2119 = vpop.f32.mrf.mxu0
      %2120 = vmatprep.mubr.bf16.mxu0 0
      %2121 = vmatmul.mubr.bf16.gmra.mxu0 %v1976
      %v2122 = vpop.f32.mrf.mxu0
      %v2123 = vadd.f32 %v1922, %v2122
      %v2124 = vpop.f32.mrf.mxu0
      %v2125 = vpop.f32.mrf.mxu0
      %v2126 = vadd.f32 %v1922, %v2125
      %v2127 = vpop.f32.mrf.mxu0
      %2128 = vmatprep.mubr.bf16.mxu0 0
      %2129 = vmatmul.mubr.bf16.gmra.mxu0 %v1979
      %v2130 = vpop.f32.mrf.mxu0
      %v2131 = vadd.f32 %v1922, %v2130
      %v2132 = vpop.f32.mrf.mxu0
      %v2133 = vpop.f32.mrf.mxu0
      %v2134 = vadd.f32 %v1922, %v2133
      %v2135 = vpop.f32.mrf.mxu0
      %2136 = vmatprep.mubr.bf16.mxu0 0
      %2137 = vmatmul.mubr.bf16.gmra.mxu0 %v1982
      %v2138 = vpop.f32.mrf.mxu0
      %v2139 = vadd.f32 %v1922, %v2138
      %v2140 = vpop.f32.mrf.mxu0
      %v2141 = vpop.f32.mrf.mxu0
      %v2142 = vadd.f32 %v1922, %v2141
      %v2143 = vpop.f32.mrf.mxu0
      %2144 = vdwg.mxu0
      %v2145 = vmul.f32 %v2019, %v2019
      %v2146 = vmul.f32 %v2022, %v2022
      %v2147 = vmul.f32 %v2027, %v2027
      %v2148 = vmul.f32 %v2030, %v2030
      %v2149 = vmul.f32 %v2035, %v2035
      %v2150 = vmul.f32 %v2038, %v2038
      %v2151 = vmul.f32 %v2043, %v2043
      %v2152 = vmul.f32 %v2046, %v2046
      %v2153 = vmul.f32 %v2051, %v2051
      %v2154 = vmul.f32 %v2054, %v2054
      %v2155 = vmul.f32 %v2059, %v2059
      %v2156 = vmul.f32 %v2062, %v2062
      %v2157 = vmul.f32 %v2067, %v2067
      %v2158 = vmul.f32 %v2070, %v2070
      %v2159 = vmul.f32 %v2075, %v2075
      %v2160 = vmul.f32 %v2078, %v2078
      %v2161 = vmul.f32 %v2083, %v2083
      %v2162 = vmul.f32 %v2086, %v2086
      %v2163 = vmul.f32 %v2091, %v2091
      %v2164 = vmul.f32 %v2094, %v2094
      %v2165 = vmul.f32 %v2099, %v2099
      %v2166 = vmul.f32 %v2102, %v2102
      %v2167 = vmul.f32 %v2107, %v2107
      %v2168 = vmul.f32 %v2110, %v2110
      %v2169 = vmul.f32 %v2115, %v2115
      %v2170 = vmul.f32 %v2118, %v2118
      %v2171 = vmul.f32 %v2123, %v2123
      %v2172 = vmul.f32 %v2126, %v2126
      %v2173 = vmul.f32 %v2131, %v2131
      %v2174 = vmul.f32 %v2134, %v2134
      %v2175 = vmul.f32 %v2139, %v2139
      %v2176 = vmul.f32 %v2142, %v2142
      %v2177 = vmul.f32 %v2145, %v2019
      %v2178 = vmul.f32 %v2146, %v2022
      %v2179 = vmul.f32 %v2147, %v2027
      %v2180 = vmul.f32 %v2148, %v2030
      %v2181 = vmul.f32 %v2149, %v2035
      %v2182 = vmul.f32 %v2150, %v2038
      %v2183 = vmul.f32 %v2151, %v2043
      %v2184 = vmul.f32 %v2152, %v2046
      %v2185 = vmul.f32 %v2153, %v2051
      %v2186 = vmul.f32 %v2154, %v2054
      %v2187 = vmul.f32 %v2155, %v2059
      %v2188 = vmul.f32 %v2156, %v2062
      %v2189 = vmul.f32 %v2157, %v2067
      %v2190 = vmul.f32 %v2158, %v2070
      %v2191 = vmul.f32 %v2159, %v2075
      %v2192 = vmul.f32 %v2160, %v2078
      %v2193 = vmul.f32 %v2161, %v2083
      %v2194 = vmul.f32 %v2162, %v2086
      %v2195 = vmul.f32 %v2163, %v2091
      %v2196 = vmul.f32 %v2164, %v2094
      %v2197 = vmul.f32 %v2165, %v2099
      %v2198 = vmul.f32 %v2166, %v2102
      %v2199 = vmul.f32 %v2167, %v2107
      %v2200 = vmul.f32 %v2168, %v2110
      %v2201 = vmul.f32 %v2169, %v2115
      %v2202 = vmul.f32 %v2170, %v2118
      %v2203 = vmul.f32 %v2171, %v2123
      %v2204 = vmul.f32 %v2172, %v2126
      %v2205 = vmul.f32 %v2173, %v2131
      %v2206 = vmul.f32 %v2174, %v2134
      %v2207 = vmul.f32 %v2175, %v2139
      %v2208 = vmul.f32 %v2176, %v2142
      %v2209 = vmul.f32 %v2019, 0.5
      %v2210 = vmul.f32 %v2022, 0.5
      %v2211 = vmul.f32 %v2027, 0.5
      %v2212 = vmul.f32 %v2030, 0.5
      %v2213 = vmul.f32 %v2035, 0.5
      %v2214 = vmul.f32 %v2038, 0.5
      %v2215 = vmul.f32 %v2043, 0.5
      %v2216 = vmul.f32 %v2046, 0.5
      %v2217 = vmul.f32 %v2051, 0.5
      %v2218 = vmul.f32 %v2054, 0.5
      %v2219 = vmul.f32 %v2059, 0.5
      %v2220 = vmul.f32 %v2062, 0.5
      %v2221 = vmul.f32 %v2067, 0.5
      %v2222 = vmul.f32 %v2070, 0.5
      %v2223 = vmul.f32 %v2075, 0.5
      %v2224 = vmul.f32 %v2078, 0.5
      %v2225 = vmul.f32 %v2083, 0.5
      %v2226 = vmul.f32 %v2086, 0.5
      %v2227 = vmul.f32 %v2091, 0.5
      %v2228 = vmul.f32 %v2094, 0.5
      %v2229 = vmul.f32 %v2099, 0.5
      %v2230 = vmul.f32 %v2102, 0.5
      %v2231 = vmul.f32 %v2107, 0.5
      %v2232 = vmul.f32 %v2110, 0.5
      %v2233 = vmul.f32 %v2115, 0.5
      %v2234 = vmul.f32 %v2118, 0.5
      %v2235 = vmul.f32 %v2123, 0.5
      %v2236 = vmul.f32 %v2126, 0.5
      %v2237 = vmul.f32 %v2131, 0.5
      %v2238 = vmul.f32 %v2134, 0.5
      %v2239 = vmul.f32 %v2139, 0.5
      %v2240 = vmul.f32 %v2142, 0.5
      %v2241 = vmul.f32 %v2177, 0.044715
      %v2242 = vmul.f32 %v2178, 0.044715
      %v2243 = vmul.f32 %v2179, 0.044715
      %v2244 = vmul.f32 %v2180, 0.044715
      %v2245 = vmul.f32 %v2181, 0.044715
      %v2246 = vmul.f32 %v2182, 0.044715
      %v2247 = vmul.f32 %v2183, 0.044715
      %v2248 = vmul.f32 %v2184, 0.044715
      %v2249 = vmul.f32 %v2185, 0.044715
      %v2250 = vmul.f32 %v2186, 0.044715
      %v2251 = vmul.f32 %v2187, 0.044715
      %v2252 = vmul.f32 %v2188, 0.044715
      %v2253 = vmul.f32 %v2189, 0.044715
      %v2254 = vmul.f32 %v2190, 0.044715
      %v2255 = vmul.f32 %v2191, 0.044715
      %v2256 = vmul.f32 %v2192, 0.044715
      %v2257 = vmul.f32 %v2193, 0.044715
      %v2258 = vmul.f32 %v2194, 0.044715
      %v2259 = vmul.f32 %v2195, 0.044715
      %v2260 = vmul.f32 %v2196, 0.044715
      %v2261 = vmul.f32 %v2197, 0.044715
      %v2262 = vmul.f32 %v2198, 0.044715
      %v2263 = vmul.f32 %v2199, 0.044715
      %v2264 = vmul.f32 %v2200, 0.044715
      %v2265 = vmul.f32 %v2201, 0.044715
      %v2266 = vmul.f32 %v2202, 0.044715
      %v2267 = vmul.f32 %v2203, 0.044715
      %v2268 = vmul.f32 %v2204, 0.044715
      %v2269 = vmul.f32 %v2205, 0.044715
      %v2270 = vmul.f32 %v2206, 0.044715
      %v2271 = vmul.f32 %v2207, 0.044715
      %v2272 = vmul.f32 %v2208, 0.044715
      %v2273 = vadd.f32 %v2019, %v2241
      %v2274 = vadd.f32 %v2022, %v2242
      %v2275 = vadd.f32 %v2027, %v2243
      %v2276 = vadd.f32 %v2030, %v2244
      %v2277 = vadd.f32 %v2035, %v2245
      %v2278 = vadd.f32 %v2038, %v2246
      %v2279 = vadd.f32 %v2043, %v2247
      %v2280 = vadd.f32 %v2046, %v2248
      %v2281 = vadd.f32 %v2051, %v2249
      %v2282 = vadd.f32 %v2054, %v2250
      %v2283 = vadd.f32 %v2059, %v2251
      %v2284 = vadd.f32 %v2062, %v2252
      %v2285 = vadd.f32 %v2067, %v2253
      %v2286 = vadd.f32 %v2070, %v2254
      %v2287 = vadd.f32 %v2075, %v2255
      %v2288 = vadd.f32 %v2078, %v2256
      %v2289 = vadd.f32 %v2083, %v2257
      %v2290 = vadd.f32 %v2086, %v2258
      %v2291 = vadd.f32 %v2091, %v2259
      %v2292 = vadd.f32 %v2094, %v2260
      %v2293 = vadd.f32 %v2099, %v2261
      %v2294 = vadd.f32 %v2102, %v2262
      %v2295 = vadd.f32 %v2107, %v2263
      %v2296 = vadd.f32 %v2110, %v2264
      %v2297 = vadd.f32 %v2115, %v2265
      %v2298 = vadd.f32 %v2118, %v2266
      %v2299 = vadd.f32 %v2123, %v2267
      %v2300 = vadd.f32 %v2126, %v2268
      %v2301 = vadd.f32 %v2131, %v2269
      %v2302 = vadd.f32 %v2134, %v2270
      %v2303 = vadd.f32 %v2139, %v2271
      %v2304 = vadd.f32 %v2142, %v2272
      %v2305 = vmul.f32 %v2273, 0.7978846
      %v2306 = vmul.f32 %v2274, 0.7978846
      %v2307 = vmul.f32 %v2275, 0.7978846
      %v2308 = vmul.f32 %v2276, 0.7978846
      %v2309 = vmul.f32 %v2277, 0.7978846
      %v2310 = vmul.f32 %v2278, 0.7978846
      %v2311 = vmul.f32 %v2279, 0.7978846
      %v2312 = vmul.f32 %v2280, 0.7978846
      %v2313 = vmul.f32 %v2281, 0.7978846
      %v2314 = vmul.f32 %v2282, 0.7978846
      %v2315 = vmul.f32 %v2283, 0.7978846
      %v2316 = vmul.f32 %v2284, 0.7978846
      %v2317 = vmul.f32 %v2285, 0.7978846
      %v2318 = vmul.f32 %v2286, 0.7978846
      %v2319 = vmul.f32 %v2287, 0.7978846
      %v2320 = vmul.f32 %v2288, 0.7978846
      %v2321 = vmul.f32 %v2289, 0.7978846
      %v2322 = vmul.f32 %v2290, 0.7978846
      %v2323 = vmul.f32 %v2291, 0.7978846
      %v2324 = vmul.f32 %v2292, 0.7978846
      %v2325 = vmul.f32 %v2293, 0.7978846
      %v2326 = vmul.f32 %v2294, 0.7978846
      %v2327 = vmul.f32 %v2295, 0.7978846
      %v2328 = vmul.f32 %v2296, 0.7978846
      %v2329 = vmul.f32 %v2297, 0.7978846
      %v2330 = vmul.f32 %v2298, 0.7978846
      %v2331 = vmul.f32 %v2299, 0.7978846
      %v2332 = vmul.f32 %v2300, 0.7978846
      %v2333 = vmul.f32 %v2301, 0.7978846
      %v2334 = vmul.f32 %v2302, 0.7978846
      %v2335 = vmul.f32 %v2303, 0.7978846
      %v2336 = vmul.f32 %v2304, 0.7978846
      %v2337 = vtanh.pop %v2305
      %v2338 = vtanh.pop %v2306
      %v2339 = vtanh.pop %v2307
      %v2340 = vtanh.pop %v2308
      %v2341 = vtanh.pop %v2309
      %v2342 = vtanh.pop %v2310
      %v2343 = vtanh.pop %v2311
      %v2344 = vtanh.pop %v2312
      %v2345 = vtanh.pop %v2313
      %v2346 = vtanh.pop %v2314
      %v2347 = vtanh.pop %v2315
      %v2348 = vtanh.pop %v2316
      %v2349 = vtanh.pop %v2317
      %v2350 = vtanh.pop %v2318
      %v2351 = vtanh.pop %v2319
      %v2352 = vtanh.pop %v2320
      %v2353 = vtanh.pop %v2321
      %v2354 = vtanh.pop %v2322
      %v2355 = vtanh.pop %v2323
      %v2356 = vtanh.pop %v2324
      %v2357 = vtanh.pop %v2325
      %v2358 = vtanh.pop %v2326
      %v2359 = vtanh.pop %v2327
      %v2360 = vtanh.pop %v2328
      %v2361 = vtanh.pop %v2329
      %v2362 = vtanh.pop %v2330
      %v2363 = vtanh.pop %v2331
      %v2364 = vtanh.pop %v2332
      %v2365 = vtanh.pop %v2333
      %v2366 = vtanh.pop %v2334
      %v2367 = vtanh.pop %v2335
      %v2368 = vtanh.pop %v2336
      %v2369 = vadd.f32 %v2337, 1.0
      %v2370 = vadd.f32 %v2338, 1.0
      %v2371 = vadd.f32 %v2339, 1.0
      %v2372 = vadd.f32 %v2340, 1.0
      %v2373 = vadd.f32 %v2341, 1.0
      %v2374 = vadd.f32 %v2342, 1.0
      %v2375 = vadd.f32 %v2343, 1.0
      %v2376 = vadd.f32 %v2344, 1.0
      %v2377 = vadd.f32 %v2345, 1.0
      %v2378 = vadd.f32 %v2346, 1.0
      %v2379 = vadd.f32 %v2347, 1.0
      %v2380 = vadd.f32 %v2348, 1.0
      %v2381 = vadd.f32 %v2349, 1.0
      %v2382 = vadd.f32 %v2350, 1.0
      %v2383 = vadd.f32 %v2351, 1.0
      %v2384 = vadd.f32 %v2352, 1.0
      %v2385 = vadd.f32 %v2353, 1.0
      %v2386 = vadd.f32 %v2354, 1.0
      %v2387 = vadd.f32 %v2355, 1.0
      %v2388 = vadd.f32 %v2356, 1.0
      %v2389 = vadd.f32 %v2357, 1.0
      %v2390 = vadd.f32 %v2358, 1.0
      %v2391 = vadd.f32 %v2359, 1.0
      %v2392 = vadd.f32 %v2360, 1.0
      %v2393 = vadd.f32 %v2361, 1.0
      %v2394 = vadd.f32 %v2362, 1.0
      %v2395 = vadd.f32 %v2363, 1.0
      %v2396 = vadd.f32 %v2364, 1.0
      %v2397 = vadd.f32 %v2365, 1.0
      %v2398 = vadd.f32 %v2366, 1.0
      %v2399 = vadd.f32 %v2367, 1.0
      %v2400 = vadd.f32 %v2368, 1.0
      %v2401 = vmul.f32 %v2209, %v2369
      %v2402 = vmul.f32 %v2210, %v2370
      %v2403 = vmul.f32 %v2211, %v2371
      %v2404 = vmul.f32 %v2212, %v2372
      %v2405 = vmul.f32 %v2213, %v2373
      %v2406 = vmul.f32 %v2214, %v2374
      %v2407 = vmul.f32 %v2215, %v2375
      %v2408 = vmul.f32 %v2216, %v2376
      %v2409 = vmul.f32 %v2217, %v2377
      %v2410 = vmul.f32 %v2218, %v2378
      %v2411 = vmul.f32 %v2219, %v2379
      %v2412 = vmul.f32 %v2220, %v2380
      %v2413 = vmul.f32 %v2221, %v2381
      %v2414 = vmul.f32 %v2222, %v2382
      %v2415 = vmul.f32 %v2223, %v2383
      %v2416 = vmul.f32 %v2224, %v2384
      %v2417 = vmul.f32 %v2225, %v2385
      %v2418 = vmul.f32 %v2226, %v2386
      %v2419 = vmul.f32 %v2227, %v2387
      %v2420 = vmul.f32 %v2228, %v2388
      %v2421 = vmul.f32 %v2229, %v2389
      %v2422 = vmul.f32 %v2230, %v2390
      %v2423 = vmul.f32 %v2231, %v2391
      %v2424 = vmul.f32 %v2232, %v2392
      %v2425 = vmul.f32 %v2233, %v2393
      %v2426 = vmul.f32 %v2234, %v2394
      %v2427 = vmul.f32 %v2235, %v2395
      %v2428 = vmul.f32 %v2236, %v2396
      %v2429 = vmul.f32 %v2237, %v2397
      %v2430 = vmul.f32 %v2238, %v2398
      %v2431 = vmul.f32 %v2239, %v2399
      %v2432 = vmul.f32 %v2240, %v2400
      %v2433 = vmul.f32 %v2401, %v2401
      %v2434 = vmul.f32 %v2402, %v2402
      %v2435 = vmul.f32 %v2403, %v2403
      %v2436 = vmul.f32 %v2404, %v2404
      %v2437 = vmul.f32 %v2405, %v2405
      %v2438 = vmul.f32 %v2406, %v2406
      %v2439 = vmul.f32 %v2407, %v2407
      %v2440 = vmul.f32 %v2408, %v2408
      %v2441 = vmul.f32 %v2409, %v2409
      %v2442 = vmul.f32 %v2410, %v2410
      %v2443 = vmul.f32 %v2411, %v2411
      %v2444 = vmul.f32 %v2412, %v2412
      %v2445 = vmul.f32 %v2413, %v2413
      %v2446 = vmul.f32 %v2414, %v2414
      %v2447 = vmul.f32 %v2415, %v2415
      %v2448 = vmul.f32 %v2416, %v2416
      %v2449 = vmul.f32 %v2417, %v2417
      %v2450 = vmul.f32 %v2418, %v2418
      %v2451 = vmul.f32 %v2419, %v2419
      %v2452 = vmul.f32 %v2420, %v2420
      %v2453 = vmul.f32 %v2421, %v2421
      %v2454 = vmul.f32 %v2422, %v2422
      %v2455 = vmul.f32 %v2423, %v2423
      %v2456 = vmul.f32 %v2424, %v2424
      %v2457 = vmul.f32 %v2425, %v2425
      %v2458 = vmul.f32 %v2426, %v2426
      %v2459 = vmul.f32 %v2427, %v2427
      %v2460 = vmul.f32 %v2428, %v2428
      %v2461 = vmul.f32 %v2429, %v2429
      %v2462 = vmul.f32 %v2430, %v2430
      %v2463 = vmul.f32 %v2431, %v2431
      %v2464 = vmul.f32 %v2432, %v2432
      %v2465 = vadd.f32 %v2433, %v2434
      %v2466 = vadd.f32 %v2465, %v2435
      %v2467 = vadd.f32 %v2466, %v2436
      %v2468 = vadd.f32 %v2467, %v2437
      %v2469 = vadd.f32 %v2468, %v2438
      %v2470 = vadd.f32 %v2469, %v2439
      %v2471 = vadd.f32 %v2470, %v2440
      %v2472 = vadd.f32 %v2471, %v2441
      %v2473 = vadd.f32 %v2472, %v2442
      %v2474 = vadd.f32 %v2473, %v2443
      %v2475 = vadd.f32 %v2474, %v2444
      %v2476 = vadd.f32 %v2475, %v2445
      %v2477 = vadd.f32 %v2476, %v2446
      %v2478 = vadd.f32 %v2477, %v2447
      %v2479 = vadd.f32 %v2478, %v2448
      %v2480 = vadd.f32 %v2479, %v2449
      %v2481 = vadd.f32 %v2480, %v2450
      %v2482 = vadd.f32 %v2481, %v2451
      %v2483 = vadd.f32 %v2482, %v2452
      %v2484 = vadd.f32 %v2483, %v2453
      %v2485 = vadd.f32 %v2484, %v2454
      %v2486 = vadd.f32 %v2485, %v2455
      %v2487 = vadd.f32 %v2486, %v2456
      %v2488 = vadd.f32 %v2487, %v2457
      %v2489 = vadd.f32 %v2488, %v2458
      %v2490 = vadd.f32 %v2489, %v2459
      %v2491 = vadd.f32 %v2490, %v2460
      %v2492 = vadd.f32 %v2491, %v2461
      %v2493 = vadd.f32 %v2492, %v2462
      %v2494 = vadd.f32 %v2493, %v2463
      %v2495 = vadd.f32 %v2494, %v2464
      %v2496 = vrot.slane %v2495, 4
      %v2497 = vadd.f32 %v2495, %v2496
      %v2498 = vrot.slane %v2497, 2
      %v2499 = vadd.f32 %v2497, %v2498
      %v2500 = vrot.slane %v2499, 1
      %v2501 = vadd.f32 %v2499, %v2500
      %v2502 = vrsqrt.pop %v2501
      %v2503 = vmul.f32 %v2501, %v2502
      %vm2504 = vcmp.eq.f32.partialorder %v2501, inf
      %v2505 = vsel %vm2504, %v2501, %v2503
      %vm2506 = vcmp.eq.f32.partialorder %v2501, 0.0
      %v2507 = vand.u32 %v2501, 2147483648
      %v2508 = vsel %vm2506, %v2507, %v2505
      %2509 = vadd.xlane.f32.xlu0 %v2508
      %v2510 = vpop.xlane.xlu0 %2509
      %v2511 = vrcp.pop 128.0
      %v2512 = vmul.f32 %v2510, %v2511
      %v2513 = vadd.f32 %v2512, 1e-06
      %v2514 = vrcp.pop %v2513
      %v2515 = vmul.f32 %v2508, %v2514
      %v2516 = vld [vmem:[%s10] sm:$0x1]
      %v2517 = vmul.f32 %v2401, %v2515
      %v2518 = vmul.f32 %v2402, %v2515
      %v2519 = vmul.f32 %v2403, %v2515
      %v2520 = vmul.f32 %v2404, %v2515
      %v2521 = vmul.f32 %v2405, %v2515
      %v2522 = vmul.f32 %v2406, %v2515
      %v2523 = vmul.f32 %v2407, %v2515
      %v2524 = vmul.f32 %v2408, %v2515
      %v2525 = vmul.f32 %v2409, %v2515
      %v2526 = vmul.f32 %v2410, %v2515
      %v2527 = vmul.f32 %v2411, %v2515
      %v2528 = vmul.f32 %v2412, %v2515
      %v2529 = vmul.f32 %v2413, %v2515
      %v2530 = vmul.f32 %v2414, %v2515
      %v2531 = vmul.f32 %v2415, %v2515
      %v2532 = vmul.f32 %v2416, %v2515
      %v2533 = vmul.f32 %v2417, %v2515
      %v2534 = vmul.f32 %v2418, %v2515
      %v2535 = vmul.f32 %v2419, %v2515
      %v2536 = vmul.f32 %v2420, %v2515
      %v2537 = vmul.f32 %v2421, %v2515
      %v2538 = vmul.f32 %v2422, %v2515
      %v2539 = vmul.f32 %v2423, %v2515
      %v2540 = vmul.f32 %v2424, %v2515
      %v2541 = vmul.f32 %v2425, %v2515
      %v2542 = vmul.f32 %v2426, %v2515
      %v2543 = vmul.f32 %v2427, %v2515
      %v2544 = vmul.f32 %v2428, %v2515
      %v2545 = vmul.f32 %v2429, %v2515
      %v2546 = vmul.f32 %v2430, %v2515
      %v2547 = vmul.f32 %v2431, %v2515
      %v2548 = vmul.f32 %v2432, %v2515
      %v2550 = vlaneseq
      %v2551 = vshrl.u32 %v2550, 7
      %v2552 = vsub.s32 0, %v2551
      %v2553 = vrot.slane %v2516, %v2552
      %v2555 = vmul.f32 %v2553, %v2517
      %v2556 = vmul.f32 %v2553, %v2518
      %v2557 = vmul.f32 %v2553, %v2519
      %v2558 = vmul.f32 %v2553, %v2520
      %v2559 = vmul.f32 %v2553, %v2521
      %v2560 = vmul.f32 %v2553, %v2522
      %v2561 = vmul.f32 %v2553, %v2523
      %v2562 = vmul.f32 %v2553, %v2524
      %v2563 = vmul.f32 %v2553, %v2525
      %v2564 = vmul.f32 %v2553, %v2526
      %v2565 = vmul.f32 %v2553, %v2527
      %v2566 = vmul.f32 %v2553, %v2528
      %v2567 = vmul.f32 %v2553, %v2529
      %v2568 = vmul.f32 %v2553, %v2530
      %v2569 = vmul.f32 %v2553, %v2531
      %v2570 = vmul.f32 %v2553, %v2532
      %v2571 = vmul.f32 %v2553, %v2533
      %v2572 = vmul.f32 %v2553, %v2534
      %v2573 = vmul.f32 %v2553, %v2535
      %v2574 = vmul.f32 %v2553, %v2536
      %v2575 = vmul.f32 %v2553, %v2537
      %v2576 = vmul.f32 %v2553, %v2538
      %v2577 = vmul.f32 %v2553, %v2539
      %v2578 = vmul.f32 %v2553, %v2540
      %v2579 = vmul.f32 %v2553, %v2541
      %v2580 = vmul.f32 %v2553, %v2542
      %v2581 = vmul.f32 %v2553, %v2543
      %v2582 = vmul.f32 %v2553, %v2544
      %v2583 = vmul.f32 %v2553, %v2545
      %v2584 = vmul.f32 %v2553, %v2546
      %v2585 = vmul.f32 %v2553, %v2547
      %v2586 = vmul.f32 %v2553, %v2548
      %v2587 = vld [vmem:[%s11] sm:$0x1]
      %v2589 = vlaneseq
      %v2590 = vshrl.u32 %v2589, 7
      %v2591 = vsub.s32 0, %v2590
      %v2592 = vrot.slane %v2587, %v2591
      %v2594 = vadd.f32 %v2555, %v2592
      %v2595 = vadd.f32 %v2556, %v2592
      %v2596 = vadd.f32 %v2557, %v2592
      %v2597 = vadd.f32 %v2558, %v2592
      %v2598 = vadd.f32 %v2559, %v2592
      %v2599 = vadd.f32 %v2560, %v2592
      %v2600 = vadd.f32 %v2561, %v2592
      %v2601 = vadd.f32 %v2562, %v2592
      %v2602 = vadd.f32 %v2563, %v2592
      %v2603 = vadd.f32 %v2564, %v2592
      %v2604 = vadd.f32 %v2565, %v2592
      %v2605 = vadd.f32 %v2566, %v2592
      %v2606 = vadd.f32 %v2567, %v2592
      %v2607 = vadd.f32 %v2568, %v2592
      %v2608 = vadd.f32 %v2569, %v2592
      %v2609 = vadd.f32 %v2570, %v2592
      %v2610 = vadd.f32 %v2571, %v2592
      %v2611 = vadd.f32 %v2572, %v2592
      %v2612 = vadd.f32 %v2573, %v2592
      %v2613 = vadd.f32 %v2574, %v2592
      %v2614 = vadd.f32 %v2575, %v2592
      %v2615 = vadd.f32 %v2576, %v2592
      %v2616 = vadd.f32 %v2577, %v2592
      %v2617 = vadd.f32 %v2578, %v2592
      %v2618 = vadd.f32 %v2579, %v2592
      %v2619 = vadd.f32 %v2580, %v2592
      %v2620 = vadd.f32 %v2581, %v2592
      %v2621 = vadd.f32 %v2582, %v2592
      %v2622 = vadd.f32 %v2583, %v2592
      %v2623 = vadd.f32 %v2584, %v2592
      %v2624 = vadd.f32 %v2585, %v2592
      %v2625 = vadd.f32 %v2586, %v2592
      %v2626 = vadd.f32 %v2594, %v2401
      %v2627 = vadd.f32 %v2595, %v2402
      %v2628 = vadd.f32 %v2596, %v2403
      %v2629 = vadd.f32 %v2597, %v2404
      %v2630 = vadd.f32 %v2598, %v2405
      %v2631 = vadd.f32 %v2599, %v2406
      %v2632 = vadd.f32 %v2600, %v2407
      %v2633 = vadd.f32 %v2601, %v2408
      %v2634 = vadd.f32 %v2602, %v2409
      %v2635 = vadd.f32 %v2603, %v2410
      %v2636 = vadd.f32 %v2604, %v2411
      %v2637 = vadd.f32 %v2605, %v2412
      %v2638 = vadd.f32 %v2606, %v2413
      %v2639 = vadd.f32 %v2607, %v2414
      %v2640 = vadd.f32 %v2608, %v2415
      %v2641 = vadd.f32 %v2609, %v2416
      %v2642 = vadd.f32 %v2610, %v2417
      %v2643 = vadd.f32 %v2611, %v2418
      %v2644 = vadd.f32 %v2612, %v2419
      %v2645 = vadd.f32 %v2613, %v2420
      %v2646 = vadd.f32 %v2614, %v2421
      %v2647 = vadd.f32 %v2615, %v2422
      %v2648 = vadd.f32 %v2616, %v2423
      %v2649 = vadd.f32 %v2617, %v2424
      %v2650 = vadd.f32 %v2618, %v2425
      %v2651 = vadd.f32 %v2619, %v2426
      %v2652 = vadd.f32 %v2620, %v2427
      %v2653 = vadd.f32 %v2621, %v2428
      %v2654 = vadd.f32 %v2622, %v2429
      %v2655 = vadd.f32 %v2623, %v2430
      %v2656 = vadd.f32 %v2624, %v2431
      %v2657 = vadd.f32 %v2625, %v2432
      %v2658 = vpack.c.bf16 %v2627, %v2626
      %v2659 = vpack.c.bf16 %v2629, %v2628
      %v2660 = vpack.c.bf16 %v2631, %v2630
      %v2661 = vpack.c.bf16 %v2633, %v2632
      %v2662 = vpack.c.bf16 %v2635, %v2634
      %v2663 = vpack.c.bf16 %v2637, %v2636
      %v2664 = vpack.c.bf16 %v2639, %v2638
      %v2665 = vpack.c.bf16 %v2641, %v2640
      %v2666 = vpack.c.bf16 %v2643, %v2642
      %v2667 = vpack.c.bf16 %v2645, %v2644
      %v2668 = vpack.c.bf16 %v2647, %v2646
      %v2669 = vpack.c.bf16 %v2649, %v2648
      %v2670 = vpack.c.bf16 %v2651, %v2650
      %v2671 = vpack.c.bf16 %v2653, %v2652
      %v2672 = vpack.c.bf16 %v2655, %v2654
      %v2673 = vpack.c.bf16 %v2657, %v2656
      %v2674 = vld [vmem:[%s12] sm:$0xf]
      %v2675 = vld [vmem:[%s12 + $0x4] sm:$0xf]
      %v2676 = vld [vmem:[%s12 + $0x8] sm:$0xf]
      %v2677 = vld [vmem:[%s12 + $0xc] sm:$0xf]
      %v2678 = vld [vmem:[%s12 + $0x10] sm:$0xf]
      %v2679 = vld [vmem:[%s12 + $0x14] sm:$0xf]
      %v2680 = vld [vmem:[%s12 + $0x18] sm:$0xf]
      %v2681 = vld [vmem:[%s12 + $0x1c] sm:$0xf]
      %v2682 = vld [vmem:[%s12 + $0x20] sm:$0xf]
      %v2683 = vld [vmem:[%s12 + $0x24] sm:$0xf]
      %v2684 = vld [vmem:[%s12 + $0x28] sm:$0xf]
      %v2685 = vld [vmem:[%s12 + $0x2c] sm:$0xf]
      %v2686 = vld [vmem:[%s12 + $0x30] sm:$0xf]
      %v2687 = vld [vmem:[%s12 + $0x34] sm:$0xf]
      %v2688 = vld [vmem:[%s12 + $0x38] sm:$0xf]
      %v2689 = vld [vmem:[%s12 + $0x3c] sm:$0xf]
      %v2690 = vld [vmem:[%s13] sm:$0x1]
      %v2692 = vlaneseq
      %v2693 = vshrl.u32 %v2692, 7
      %v2694 = vsub.s32 0, %v2693
      %v2695 = vrot.slane %v2690, %v2694
      %v2713 = vunpack.c.l.b16 %v2674
      %v2714 = vunpack.c.l.b16 %v2675
      %v2715 = vunpack.c.l.b16 %v2676
      %v2716 = vunpack.c.l.b16 %v2677
      %v2717 = vunpack.c.l.b16 %v2678
      %v2718 = vunpack.c.l.b16 %v2679
      %v2719 = vunpack.c.l.b16 %v2680
      %v2720 = vunpack.c.l.b16 %v2681
      %v2721 = vunpack.c.l.b16 %v2682
      %v2722 = vunpack.c.l.b16 %v2683
      %v2723 = vunpack.c.l.b16 %v2684
      %v2724 = vunpack.c.l.b16 %v2685
      %v2725 = vunpack.c.l.b16 %v2686
      %v2726 = vunpack.c.l.b16 %v2687
      %v2727 = vunpack.c.l.b16 %v2688
      %v2728 = vunpack.c.l.b16 %v2689
      %v2729 = vpack.c.b16 %v2714, %v2713
      %v2730 = vpack.c.b16 %v2716, %v2715
      %v2731 = vpack.c.b16 %v2718, %v2717
      %v2732 = vpack.c.b16 %v2720, %v2719
      %v2733 = vpack.c.b16 %v2722, %v2721
      %v2734 = vpack.c.b16 %v2724, %v2723
      %v2735 = vpack.c.b16 %v2726, %v2725
      %v2736 = vpack.c.b16 %v2728, %v2727
      %2745 = vmatprep.subr.bf16.mxu0 0
      %2746 = vmatpush1.bf16.msra.mxu0 %v2736
      %2747 = vmatprep.subr.bf16.mxu0 0
      %2748 = vmatpush1.bf16.msra.mxu0 %v2735
      %2749 = vmatprep.subr.bf16.mxu0 0
      %2750 = vmatpush1.bf16.msra.mxu0 %v2734
      %2751 = vmatprep.subr.bf16.mxu0 0
      %2752 = vmatpush1.bf16.msra.mxu0 %v2733
      %2753 = vmatprep.subr.bf16.mxu0 0
      %2754 = vmatpush1.bf16.msra.mxu0 %v2732
      %2755 = vmatprep.subr.bf16.mxu0 0
      %2756 = vmatpush1.bf16.msra.mxu0 %v2731
      %2757 = vmatprep.subr.bf16.mxu0 0
      %2758 = vmatpush1.bf16.msra.mxu0 %v2730
      %2759 = vmatprep.subr.bf16.mxu0 0
      %2760 = vmatpush1.bf16.msra.mxu0 %v2729
      %2761 = vmatprep.subr.bf16.mxu0 0
      %2762 = vmatpush2.bf16.msra.mxu0 0
      %2763 = vmatprep.subr.bf16.mxu0 0
      %2764 = vmatpush2.bf16.msra.mxu0 0
      %2765 = vmatprep.subr.bf16.mxu0 0
      %2766 = vmatpush2.bf16.msra.mxu0 0
      %2767 = vmatprep.subr.bf16.mxu0 0
      %2768 = vmatpush2.bf16.msra.mxu0 0
      %2769 = vmatprep.subr.bf16.mxu0 0
      %2770 = vmatpush2.bf16.msra.mxu0 0
      %2771 = vmatprep.subr.bf16.mxu0 0
      %2772 = vmatpush2.bf16.msra.mxu0 0
      %2773 = vmatprep.subr.bf16.mxu0 0
      %2774 = vmatpush2.bf16.msra.mxu0 0
      %2775 = vmatprep.subr.bf16.mxu0 0
      %2776 = vmatpush2.bf16.msra.mxu0 0
      %2777 = vmatprep.mubr.bf16.mxu0 0
      %2778 = vmatmul.mubr.bf16.gmra.mxu0 %v2658
      %v2779 = vpop.f32.mrf.mxu0
      %v2780 = vadd.f32 %v2695, %v2779
      %v2781 = vpop.f32.mrf.mxu0
      %v2782 = vpop.f32.mrf.mxu0
      %v2783 = vadd.f32 %v2695, %v2782
      %v2784 = vpop.f32.mrf.mxu0
      %2785 = vmatprep.mubr.bf16.mxu0 0
      %2786 = vmatmul.mubr.bf16.gmra.mxu0 %v2659
      %v2787 = vpop.f32.mrf.mxu0
      %v2788 = vadd.f32 %v2695, %v2787
      %v2789 = vpop.f32.mrf.mxu0
      %v2790 = vpop.f32.mrf.mxu0
      %v2791 = vadd.f32 %v2695, %v2790
      %v2792 = vpop.f32.mrf.mxu0
      %2793 = vmatprep.mubr.bf16.mxu0 0
      %2794 = vmatmul.mubr.bf16.gmra.mxu0 %v2660
      %v2795 = vpop.f32.mrf.mxu0
      %v2796 = vadd.f32 %v2695, %v2795
      %v2797 = vpop.f32.mrf.mxu0
      %v2798 = vpop.f32.mrf.mxu0
      %v2799 = vadd.f32 %v2695, %v2798
      %v2800 = vpop.f32.mrf.mxu0
      %2801 = vmatprep.mubr.bf16.mxu0 0
      %2802 = vmatmul.mubr.bf16.gmra.mxu0 %v2661
      %v2803 = vpop.f32.mrf.mxu0
      %v2804 = vadd.f32 %v2695, %v2803
      %v2805 = vpop.f32.mrf.mxu0
      %v2806 = vpop.f32.mrf.mxu0
      %v2807 = vadd.f32 %v2695, %v2806
      %v2808 = vpop.f32.mrf.mxu0
      %2809 = vmatprep.mubr.bf16.mxu0 0
      %2810 = vmatmul.mubr.bf16.gmra.mxu0 %v2662
      %v2811 = vpop.f32.mrf.mxu0
      %v2812 = vadd.f32 %v2695, %v2811
      %v2813 = vpop.f32.mrf.mxu0
      %v2814 = vpop.f32.mrf.mxu0
      %v2815 = vadd.f32 %v2695, %v2814
      %v2816 = vpop.f32.mrf.mxu0
      %2817 = vmatprep.mubr.bf16.mxu0 0
      %2818 = vmatmul.mubr.bf16.gmra.mxu0 %v2663
      %v2819 = vpop.f32.mrf.mxu0
      %v2820 = vadd.f32 %v2695, %v2819
      %v2821 = vpop.f32.mrf.mxu0
      %v2822 = vpop.f32.mrf.mxu0
      %v2823 = vadd.f32 %v2695, %v2822
      %v2824 = vpop.f32.mrf.mxu0
      %2825 = vmatprep.mubr.bf16.mxu0 0
      %2826 = vmatmul.mubr.bf16.gmra.mxu0 %v2664
      %v2827 = vpop.f32.mrf.mxu0
      %v2828 = vadd.f32 %v2695, %v2827
      %v2829 = vpop.f32.mrf.mxu0
      %v2830 = vpop.f32.mrf.mxu0
      %v2831 = vadd.f32 %v2695, %v2830
      %v2832 = vpop.f32.mrf.mxu0
      %2833 = vmatprep.mubr.bf16.mxu0 0
      %2834 = vmatmul.mubr.bf16.gmra.mxu0 %v2665
      %v2835 = vpop.f32.mrf.mxu0
      %v2836 = vadd.f32 %v2695, %v2835
      %v2837 = vpop.f32.mrf.mxu0
      %v2838 = vpop.f32.mrf.mxu0
      %v2839 = vadd.f32 %v2695, %v2838
      %v2840 = vpop.f32.mrf.mxu0
      %2841 = vmatprep.mubr.bf16.mxu0 0
      %2842 = vmatmul.mubr.bf16.gmra.mxu0 %v2666
      %v2843 = vpop.f32.mrf.mxu0
      %v2844 = vadd.f32 %v2695, %v2843
      %v2845 = vpop.f32.mrf.mxu0
      %v2846 = vpop.f32.mrf.mxu0
      %v2847 = vadd.f32 %v2695, %v2846
      %v2848 = vpop.f32.mrf.mxu0
      %2849 = vmatprep.mubr.bf16.mxu0 0
      %2850 = vmatmul.mubr.bf16.gmra.mxu0 %v2667
      %v2851 = vpop.f32.mrf.mxu0
      %v2852 = vadd.f32 %v2695, %v2851
      %v2853 = vpop.f32.mrf.mxu0
      %v2854 = vpop.f32.mrf.mxu0
      %v2855 = vadd.f32 %v2695, %v2854
      %v2856 = vpop.f32.mrf.mxu0
      %2857 = vmatprep.mubr.bf16.mxu0 0
      %2858 = vmatmul.mubr.bf16.gmra.mxu0 %v2668
      %v2859 = vpop.f32.mrf.mxu0
      %v2860 = vadd.f32 %v2695, %v2859
      %v2861 = vpop.f32.mrf.mxu0
      %v2862 = vpop.f32.mrf.mxu0
      %v2863 = vadd.f32 %v2695, %v2862
      %v2864 = vpop.f32.mrf.mxu0
      %2865 = vmatprep.mubr.bf16.mxu0 0
      %2866 = vmatmul.mubr.bf16.gmra.mxu0 %v2669
      %v2867 = vpop.f32.mrf.mxu0
      %v2868 = vadd.f32 %v2695, %v2867
      %v2869 = vpop.f32.mrf.mxu0
      %v2870 = vpop.f32.mrf.mxu0
      %v2871 = vadd.f32 %v2695, %v2870
      %v2872 = vpop.f32.mrf.mxu0
      %2873 = vmatprep.mubr.bf16.mxu0 0
      %2874 = vmatmul.mubr.bf16.gmra.mxu0 %v2670
      %v2875 = vpop.f32.mrf.mxu0
      %v2876 = vadd.f32 %v2695, %v2875
      %v2877 = vpop.f32.mrf.mxu0
      %v2878 = vpop.f32.mrf.mxu0
      %v2879 = vadd.f32 %v2695, %v2878
      %v2880 = vpop.f32.mrf.mxu0
      %2881 = vmatprep.mubr.bf16.mxu0 0
      %2882 = vmatmul.mubr.bf16.gmra.mxu0 %v2671
      %v2883 = vpop.f32.mrf.mxu0
      %v2884 = vadd.f32 %v2695, %v2883
      %v2885 = vpop.f32.mrf.mxu0
      %v2886 = vpop.f32.mrf.mxu0
      %v2887 = vadd.f32 %v2695, %v2886
      %v2888 = vpop.f32.mrf.mxu0
      %2889 = vmatprep.mubr.bf16.mxu0 0
      %2890 = vmatmul.mubr.bf16.gmra.mxu0 %v2672
      %v2891 = vpop.f32.mrf.mxu0
      %v2892 = vadd.f32 %v2695, %v2891
      %v2893 = vpop.f32.mrf.mxu0
      %v2894 = vpop.f32.mrf.mxu0
      %v2895 = vadd.f32 %v2695, %v2894
      %v2896 = vpop.f32.mrf.mxu0
      %2897 = vmatprep.mubr.bf16.mxu0 0
      %2898 = vmatmul.mubr.bf16.gmra.mxu0 %v2673
      %v2899 = vpop.f32.mrf.mxu0
      %v2900 = vadd.f32 %v2695, %v2899
      %v2901 = vpop.f32.mrf.mxu0
      %v2902 = vpop.f32.mrf.mxu0
      %v2903 = vadd.f32 %v2695, %v2902
      %v2904 = vpop.f32.mrf.mxu0
      %2905 = vdwg.mxu0
      %v2906 = vadd.f32 %v2780, %v731
      %v2907 = vadd.f32 %v2783, %v732
      %v2908 = vadd.f32 %v2788, %v733
      %v2909 = vadd.f32 %v2791, %v734
      %v2910 = vadd.f32 %v2796, %v735
      %v2911 = vadd.f32 %v2799, %v736
      %v2912 = vadd.f32 %v2804, %v737
      %v2913 = vadd.f32 %v2807, %v738
      %v2914 = vadd.f32 %v2812, %v739
      %v2915 = vadd.f32 %v2815, %v740
      %v2916 = vadd.f32 %v2820, %v741
      %v2917 = vadd.f32 %v2823, %v742
      %v2918 = vadd.f32 %v2828, %v743
      %v2919 = vadd.f32 %v2831, %v744
      %v2920 = vadd.f32 %v2836, %v745
      %v2921 = vadd.f32 %v2839, %v746
      %v2922 = vadd.f32 %v2844, %v747
      %v2923 = vadd.f32 %v2847, %v748
      %v2924 = vadd.f32 %v2852, %v749
      %v2925 = vadd.f32 %v2855, %v750
      %v2926 = vadd.f32 %v2860, %v751
      %v2927 = vadd.f32 %v2863, %v752
      %v2928 = vadd.f32 %v2868, %v753
      %v2929 = vadd.f32 %v2871, %v754
      %v2930 = vadd.f32 %v2876, %v755
      %v2931 = vadd.f32 %v2879, %v756
      %v2932 = vadd.f32 %v2884, %v757
      %v2933 = vadd.f32 %v2887, %v758
      %v2934 = vadd.f32 %v2892, %v759
      %v2935 = vadd.f32 %v2895, %v760
      %v2936 = vadd.f32 %v2900, %v761
      %v2937 = vadd.f32 %v2903, %v762
      %v2938 = vld [vmem:[%s679] sm:$0x1]
      %v2939 = vadd.f32 %v2938, 1.0
      %v2941 = vlaneseq
      %v2942 = vshrl.u32 %v2941, 7
      %v2943 = vsub.s32 0, %v2942
      %v2944 = vrot.slane %v2939, %v2943
      %v2946 = vmul.f32 %v2906, %v2944
      %v2947 = vmul.f32 %v2907, %v2944
      %v2948 = vmul.f32 %v2908, %v2944
      %v2949 = vmul.f32 %v2909, %v2944
      %v2950 = vmul.f32 %v2910, %v2944
      %v2951 = vmul.f32 %v2911, %v2944
      %v2952 = vmul.f32 %v2912, %v2944
      %v2953 = vmul.f32 %v2913, %v2944
      %v2954 = vmul.f32 %v2914, %v2944
      %v2955 = vmul.f32 %v2915, %v2944
      %v2956 = vmul.f32 %v2916, %v2944
      %v2957 = vmul.f32 %v2917, %v2944
      %v2958 = vmul.f32 %v2918, %v2944
      %v2959 = vmul.f32 %v2919, %v2944
      %v2960 = vmul.f32 %v2920, %v2944
      %v2961 = vmul.f32 %v2921, %v2944
      %v2962 = vmul.f32 %v2922, %v2944
      %v2963 = vmul.f32 %v2923, %v2944
      %v2964 = vmul.f32 %v2924, %v2944
      %v2965 = vmul.f32 %v2925, %v2944
      %v2966 = vmul.f32 %v2926, %v2944
      %v2967 = vmul.f32 %v2927, %v2944
      %v2968 = vmul.f32 %v2928, %v2944
      %v2969 = vmul.f32 %v2929, %v2944
      %v2970 = vmul.f32 %v2930, %v2944
      %v2971 = vmul.f32 %v2931, %v2944
      %v2972 = vmul.f32 %v2932, %v2944
      %v2973 = vmul.f32 %v2933, %v2944
      %v2974 = vmul.f32 %v2934, %v2944
      %v2975 = vmul.f32 %v2935, %v2944
      %v2976 = vmul.f32 %v2936, %v2944
      %v2977 = vmul.f32 %v2937, %v2944
      %v2978 = vld [vmem:[%s682] sm:$0x1]
      %v2980 = vlaneseq
      %v2981 = vshrl.u32 %v2980, 7
      %v2982 = vsub.s32 0, %v2981
      %v2983 = vrot.slane %v2978, %v2982
      %v2985 = vadd.f32 %v2946, %v2983
      %v2986 = vadd.f32 %v2947, %v2983
      %v2987 = vadd.f32 %v2948, %v2983
      %v2988 = vadd.f32 %v2949, %v2983
      %v2989 = vadd.f32 %v2950, %v2983
      %v2990 = vadd.f32 %v2951, %v2983
      %v2991 = vadd.f32 %v2952, %v2983
      %v2992 = vadd.f32 %v2953, %v2983
      %v2993 = vadd.f32 %v2954, %v2983
      %v2994 = vadd.f32 %v2955, %v2983
      %v2995 = vadd.f32 %v2956, %v2983
      %v2996 = vadd.f32 %v2957, %v2983
      %v2997 = vadd.f32 %v2958, %v2983
      %v2998 = vadd.f32 %v2959, %v2983
      %v2999 = vadd.f32 %v2960, %v2983
      %v3000 = vadd.f32 %v2961, %v2983
      %v3001 = vadd.f32 %v2962, %v2983
      %v3002 = vadd.f32 %v2963, %v2983
      %v3003 = vadd.f32 %v2964, %v2983
      %v3004 = vadd.f32 %v2965, %v2983
      %v3005 = vadd.f32 %v2966, %v2983
      %v3006 = vadd.f32 %v2967, %v2983
      %v3007 = vadd.f32 %v2968, %v2983
      %v3008 = vadd.f32 %v2969, %v2983
      %v3009 = vadd.f32 %v2970, %v2983
      %v3010 = vadd.f32 %v2971, %v2983
      %v3011 = vadd.f32 %v2972, %v2983
      %v3012 = vadd.f32 %v2973, %v2983
      %v3013 = vadd.f32 %v2974, %v2983
      %v3014 = vadd.f32 %v2975, %v2983
      %v3015 = vadd.f32 %v2976, %v2983
      %v3016 = vadd.f32 %v2977, %v2983
      %v3017 = vmul.f32 %v2985, %v2985
      %v3018 = vmul.f32 %v2986, %v2986
      %v3019 = vmul.f32 %v2987, %v2987
      %v3020 = vmul.f32 %v2988, %v2988
      %v3021 = vmul.f32 %v2989, %v2989
      %v3022 = vmul.f32 %v2990, %v2990
      %v3023 = vmul.f32 %v2991, %v2991
      %v3024 = vmul.f32 %v2992, %v2992
      %v3025 = vmul.f32 %v2993, %v2993
      %v3026 = vmul.f32 %v2994, %v2994
      %v3027 = vmul.f32 %v2995, %v2995
      %v3028 = vmul.f32 %v2996, %v2996
      %v3029 = vmul.f32 %v2997, %v2997
      %v3030 = vmul.f32 %v2998, %v2998
      %v3031 = vmul.f32 %v2999, %v2999
      %v3032 = vmul.f32 %v3000, %v3000
      %v3033 = vmul.f32 %v3001, %v3001
      %v3034 = vmul.f32 %v3002, %v3002
      %v3035 = vmul.f32 %v3003, %v3003
      %v3036 = vmul.f32 %v3004, %v3004
      %v3037 = vmul.f32 %v3005, %v3005
      %v3038 = vmul.f32 %v3006, %v3006
      %v3039 = vmul.f32 %v3007, %v3007
      %v3040 = vmul.f32 %v3008, %v3008
      %v3041 = vmul.f32 %v3009, %v3009
      %v3042 = vmul.f32 %v3010, %v3010
      %v3043 = vmul.f32 %v3011, %v3011
      %v3044 = vmul.f32 %v3012, %v3012
      %v3045 = vmul.f32 %v3013, %v3013
      %v3046 = vmul.f32 %v3014, %v3014
      %v3047 = vmul.f32 %v3015, %v3015
      %v3048 = vmul.f32 %v3016, %v3016
      %v3049 = vsel %vm763, %v3017, 0.0
      %3050 = vadd.xlane.f32.xlu0 %v3049
      %v3051 = vpop.xlane.xlu0 %3050
      %v3052 = vsel %vm763, %v3018, 0.0
      %3053 = vadd.xlane.f32.xlu0 %v3052
      %v3054 = vpop.xlane.xlu0 %3053
      %v3055 = vsel %vm763, %v3019, 0.0
      %3056 = vadd.xlane.f32.xlu0 %v3055
      %v3057 = vpop.xlane.xlu0 %3056
      %v3058 = vsel %vm763, %v3020, 0.0
      %3059 = vadd.xlane.f32.xlu0 %v3058
      %v3060 = vpop.xlane.xlu0 %3059
      %v3061 = vsel %vm763, %v3021, 0.0
      %3062 = vadd.xlane.f32.xlu0 %v3061
      %v3063 = vpop.xlane.xlu0 %3062
      %v3064 = vsel %vm763, %v3022, 0.0
      %3065 = vadd.xlane.f32.xlu0 %v3064
      %v3066 = vpop.xlane.xlu0 %3065
      %v3067 = vsel %vm763, %v3023, 0.0
      %3068 = vadd.xlane.f32.xlu0 %v3067
      %v3069 = vpop.xlane.xlu0 %3068
      %v3070 = vsel %vm763, %v3024, 0.0
      %3071 = vadd.xlane.f32.xlu0 %v3070
      %v3072 = vpop.xlane.xlu0 %3071
      %v3073 = vsel %vm763, %v3025, 0.0
      %3074 = vadd.xlane.f32.xlu0 %v3073
      %v3075 = vpop.xlane.xlu0 %3074
      %v3076 = vsel %vm763, %v3026, 0.0
      %3077 = vadd.xlane.f32.xlu0 %v3076
      %v3078 = vpop.xlane.xlu0 %3077
      %v3079 = vsel %vm763, %v3027, 0.0
      %3080 = vadd.xlane.f32.xlu0 %v3079
      %v3081 = vpop.xlane.xlu0 %3080
      %v3082 = vsel %vm763, %v3028, 0.0
      %3083 = vadd.xlane.f32.xlu0 %v3082
      %v3084 = vpop.xlane.xlu0 %3083
      %v3085 = vsel %vm763, %v3029, 0.0
      %3086 = vadd.xlane.f32.xlu0 %v3085
      %v3087 = vpop.xlane.xlu0 %3086
      %v3088 = vsel %vm763, %v3030, 0.0
      %3089 = vadd.xlane.f32.xlu0 %v3088
      %v3090 = vpop.xlane.xlu0 %3089
      %v3091 = vsel %vm763, %v3031, 0.0
      %3092 = vadd.xlane.f32.xlu0 %v3091
      %v3093 = vpop.xlane.xlu0 %3092
      %v3094 = vsel %vm763, %v3032, 0.0
      %3095 = vadd.xlane.f32.xlu0 %v3094
      %v3096 = vpop.xlane.xlu0 %3095
      %v3097 = vsel %vm763, %v3033, 0.0
      %3098 = vadd.xlane.f32.xlu0 %v3097
      %v3099 = vpop.xlane.xlu0 %3098
      %v3100 = vsel %vm763, %v3034, 0.0
      %3101 = vadd.xlane.f32.xlu0 %v3100
      %v3102 = vpop.xlane.xlu0 %3101
      %v3103 = vsel %vm763, %v3035, 0.0
      %3104 = vadd.xlane.f32.xlu0 %v3103
      %v3105 = vpop.xlane.xlu0 %3104
      %v3106 = vsel %vm763, %v3036, 0.0
      %3107 = vadd.xlane.f32.xlu0 %v3106
      %v3108 = vpop.xlane.xlu0 %3107
      %v3109 = vsel %vm763, %v3037, 0.0
      %3110 = vadd.xlane.f32.xlu0 %v3109
      %v3111 = vpop.xlane.xlu0 %3110
      %v3112 = vsel %vm763, %v3038, 0.0
      %3113 = vadd.xlane.f32.xlu0 %v3112
      %v3114 = vpop.xlane.xlu0 %3113
      %v3115 = vsel %vm763, %v3039, 0.0
      %3116 = vadd.xlane.f32.xlu0 %v3115
      %v3117 = vpop.xlane.xlu0 %3116
      %v3118 = vsel %vm763, %v3040, 0.0
      %3119 = vadd.xlane.f32.xlu0 %v3118
      %v3120 = vpop.xlane.xlu0 %3119
      %v3121 = vsel %vm763, %v3041, 0.0
      %3122 = vadd.xlane.f32.xlu0 %v3121
      %v3123 = vpop.xlane.xlu0 %3122
      %v3124 = vsel %vm763, %v3042, 0.0
      %3125 = vadd.xlane.f32.xlu0 %v3124
      %v3126 = vpop.xlane.xlu0 %3125
      %v3127 = vsel %vm763, %v3043, 0.0
      %3128 = vadd.xlane.f32.xlu0 %v3127
      %v3129 = vpop.xlane.xlu0 %3128
      %v3130 = vsel %vm763, %v3044, 0.0
      %3131 = vadd.xlane.f32.xlu0 %v3130
      %v3132 = vpop.xlane.xlu0 %3131
      %v3133 = vsel %vm763, %v3045, 0.0
      %3134 = vadd.xlane.f32.xlu0 %v3133
      %v3135 = vpop.xlane.xlu0 %3134
      %v3136 = vsel %vm763, %v3046, 0.0
      %3137 = vadd.xlane.f32.xlu0 %v3136
      %v3138 = vpop.xlane.xlu0 %3137
      %v3139 = vsel %vm763, %v3047, 0.0
      %3140 = vadd.xlane.f32.xlu0 %v3139
      %v3141 = vpop.xlane.xlu0 %3140
      %v3142 = vsel %vm763, %v3048, 0.0
      %3143 = vadd.xlane.f32.xlu0 %v3142
      %v3144 = vpop.xlane.xlu0 %3143
      %v3145 = vmul.f32 %v3051, %v1729
      %v3146 = vmul.f32 %v3054, %v1729
      %v3147 = vmul.f32 %v3057, %v1729
      %v3148 = vmul.f32 %v3060, %v1729
      %v3149 = vmul.f32 %v3063, %v1729
      %v3150 = vmul.f32 %v3066, %v1729
      %v3151 = vmul.f32 %v3069, %v1729
      %v3152 = vmul.f32 %v3072, %v1729
      %v3153 = vmul.f32 %v3075, %v1729
      %v3154 = vmul.f32 %v3078, %v1729
      %v3155 = vmul.f32 %v3081, %v1729
      %v3156 = vmul.f32 %v3084, %v1729
      %v3157 = vmul.f32 %v3087, %v1729
      %v3158 = vmul.f32 %v3090, %v1729
      %v3159 = vmul.f32 %v3093, %v1729
      %v3160 = vmul.f32 %v3096, %v1729
      %v3161 = vmul.f32 %v3099, %v1729
      %v3162 = vmul.f32 %v3102, %v1729
      %v3163 = vmul.f32 %v3105, %v1729
      %v3164 = vmul.f32 %v3108, %v1729
      %v3165 = vmul.f32 %v3111, %v1729
      %v3166 = vmul.f32 %v3114, %v1729
      %v3167 = vmul.f32 %v3117, %v1729
      %v3168 = vmul.f32 %v3120, %v1729
      %v3169 = vmul.f32 %v3123, %v1729
      %v3170 = vmul.f32 %v3126, %v1729
      %v3171 = vmul.f32 %v3129, %v1729
      %v3172 = vmul.f32 %v3132, %v1729
      %v3173 = vmul.f32 %v3135, %v1729
      %v3174 = vmul.f32 %v3138, %v1729
      %v3175 = vmul.f32 %v3141, %v1729
      %v3176 = vmul.f32 %v3144, %v1729
      %v3177 = vadd.f32 %v3145, 1e-06
      %v3178 = vadd.f32 %v3146, 1e-06
      %v3179 = vadd.f32 %v3147, 1e-06
      %v3180 = vadd.f32 %v3148, 1e-06
      %v3181 = vadd.f32 %v3149, 1e-06
      %v3182 = vadd.f32 %v3150, 1e-06
      %v3183 = vadd.f32 %v3151, 1e-06
      %v3184 = vadd.f32 %v3152, 1e-06
      %v3185 = vadd.f32 %v3153, 1e-06
      %v3186 = vadd.f32 %v3154, 1e-06
      %v3187 = vadd.f32 %v3155, 1e-06
      %v3188 = vadd.f32 %v3156, 1e-06
      %v3189 = vadd.f32 %v3157, 1e-06
      %v3190 = vadd.f32 %v3158, 1e-06
      %v3191 = vadd.f32 %v3159, 1e-06
      %v3192 = vadd.f32 %v3160, 1e-06
      %v3193 = vadd.f32 %v3161, 1e-06
      %v3194 = vadd.f32 %v3162, 1e-06
      %v3195 = vadd.f32 %v3163, 1e-06
      %v3196 = vadd.f32 %v3164, 1e-06
      %v3197 = vadd.f32 %v3165, 1e-06
      %v3198 = vadd.f32 %v3166, 1e-06
      %v3199 = vadd.f32 %v3167, 1e-06
      %v3200 = vadd.f32 %v3168, 1e-06
      %v3201 = vadd.f32 %v3169, 1e-06
      %v3202 = vadd.f32 %v3170, 1e-06
      %v3203 = vadd.f32 %v3171, 1e-06
      %v3204 = vadd.f32 %v3172, 1e-06
      %v3205 = vadd.f32 %v3173, 1e-06
      %v3206 = vadd.f32 %v3174, 1e-06
      %v3207 = vadd.f32 %v3175, 1e-06
      %v3208 = vadd.f32 %v3176, 1e-06
      %v3209 = vrsqrt.pop %v3177
      %v3210 = vrsqrt.pop %v3178
      %v3211 = vrsqrt.pop %v3179
      %v3212 = vrsqrt.pop %v3180
      %v3213 = vrsqrt.pop %v3181
      %v3214 = vrsqrt.pop %v3182
      %v3215 = vrsqrt.pop %v3183
      %v3216 = vrsqrt.pop %v3184
      %v3217 = vrsqrt.pop %v3185
      %v3218 = vrsqrt.pop %v3186
      %v3219 = vrsqrt.pop %v3187
      %v3220 = vrsqrt.pop %v3188
      %v3221 = vrsqrt.pop %v3189
      %v3222 = vrsqrt.pop %v3190
      %v3223 = vrsqrt.pop %v3191
      %v3224 = vrsqrt.pop %v3192
      %v3225 = vrsqrt.pop %v3193
      %v3226 = vrsqrt.pop %v3194
      %v3227 = vrsqrt.pop %v3195
      %v3228 = vrsqrt.pop %v3196
      %v3229 = vrsqrt.pop %v3197
      %v3230 = vrsqrt.pop %v3198
      %v3231 = vrsqrt.pop %v3199
      %v3232 = vrsqrt.pop %v3200
      %v3233 = vrsqrt.pop %v3201
      %v3234 = vrsqrt.pop %v3202
      %v3235 = vrsqrt.pop %v3203
      %v3236 = vrsqrt.pop %v3204
      %v3237 = vrsqrt.pop %v3205
      %v3238 = vrsqrt.pop %v3206
      %v3239 = vrsqrt.pop %v3207
      %v3240 = vrsqrt.pop %v3208
      %v3241 = vmul.f32 %v2985, %v3209
      %v3242 = vmul.f32 %v2986, %v3210
      %v3243 = vmul.f32 %v2987, %v3211
      %v3244 = vmul.f32 %v2988, %v3212
      %v3245 = vmul.f32 %v2989, %v3213
      %v3246 = vmul.f32 %v2990, %v3214
      %v3247 = vmul.f32 %v2991, %v3215
      %v3248 = vmul.f32 %v2992, %v3216
      %v3249 = vmul.f32 %v2993, %v3217
      %v3250 = vmul.f32 %v2994, %v3218
      %v3251 = vmul.f32 %v2995, %v3219
      %v3252 = vmul.f32 %v2996, %v3220
      %v3253 = vmul.f32 %v2997, %v3221
      %v3254 = vmul.f32 %v2998, %v3222
      %v3255 = vmul.f32 %v2999, %v3223
      %v3256 = vmul.f32 %v3000, %v3224
      %v3257 = vmul.f32 %v3001, %v3225
      %v3258 = vmul.f32 %v3002, %v3226
      %v3259 = vmul.f32 %v3003, %v3227
      %v3260 = vmul.f32 %v3004, %v3228
      %v3261 = vmul.f32 %v3005, %v3229
      %v3262 = vmul.f32 %v3006, %v3230
      %v3263 = vmul.f32 %v3007, %v3231
      %v3264 = vmul.f32 %v3008, %v3232
      %v3265 = vmul.f32 %v3009, %v3233
      %v3266 = vmul.f32 %v3010, %v3234
      %v3267 = vmul.f32 %v3011, %v3235
      %v3268 = vmul.f32 %v3012, %v3236
      %v3269 = vmul.f32 %v3013, %v3237
      %v3270 = vmul.f32 %v3014, %v3238
      %v3271 = vmul.f32 %v3015, %v3239
      %v3272 = vmul.f32 %v3016, %v3240
      %v3273 = vld [vmem:[%s14] sm:$0x1]
      %v3275 = vlaneseq
      %v3276 = vshrl.u32 %v3275, 7
      %v3277 = vsub.s32 0, %v3276
      %v3278 = vrot.slane %v3273, %v3277
      %v3280 = vmul.f32 %v3241, %v3278
      %v3281 = vmul.f32 %v3242, %v3278
      %v3282 = vmul.f32 %v3243, %v3278
      %v3283 = vmul.f32 %v3244, %v3278
      %v3284 = vmul.f32 %v3245, %v3278
      %v3285 = vmul.f32 %v3246, %v3278
      %v3286 = vmul.f32 %v3247, %v3278
      %v3287 = vmul.f32 %v3248, %v3278
      %v3288 = vmul.f32 %v3249, %v3278
      %v3289 = vmul.f32 %v3250, %v3278
      %v3290 = vmul.f32 %v3251, %v3278
      %v3291 = vmul.f32 %v3252, %v3278
      %v3292 = vmul.f32 %v3253, %v3278
      %v3293 = vmul.f32 %v3254, %v3278
      %v3294 = vmul.f32 %v3255, %v3278
      %v3295 = vmul.f32 %v3256, %v3278
      %v3296 = vmul.f32 %v3257, %v3278
      %v3297 = vmul.f32 %v3258, %v3278
      %v3298 = vmul.f32 %v3259, %v3278
      %v3299 = vmul.f32 %v3260, %v3278
      %v3300 = vmul.f32 %v3261, %v3278
      %v3301 = vmul.f32 %v3262, %v3278
      %v3302 = vmul.f32 %v3263, %v3278
      %v3303 = vmul.f32 %v3264, %v3278
      %v3304 = vmul.f32 %v3265, %v3278
      %v3305 = vmul.f32 %v3266, %v3278
      %v3306 = vmul.f32 %v3267, %v3278
      %v3307 = vmul.f32 %v3268, %v3278
      %v3308 = vmul.f32 %v3269, %v3278
      %v3309 = vmul.f32 %v3270, %v3278
      %v3310 = vmul.f32 %v3271, %v3278
      %v3311 = vmul.f32 %v3272, %v3278
      %v3312 = vpack.c.bf16 %v3281, %v3280
      %v3313 = vpack.c.bf16 %v3283, %v3282
      %v3314 = vpack.c.bf16 %v3285, %v3284
      %v3315 = vpack.c.bf16 %v3287, %v3286
      %v3316 = vpack.c.bf16 %v3289, %v3288
      %v3317 = vpack.c.bf16 %v3291, %v3290
      %v3318 = vpack.c.bf16 %v3293, %v3292
      %v3319 = vpack.c.bf16 %v3295, %v3294
      %v3320 = vpack.c.bf16 %v3297, %v3296
      %v3321 = vpack.c.bf16 %v3299, %v3298
      %v3322 = vpack.c.bf16 %v3301, %v3300
      %v3323 = vpack.c.bf16 %v3303, %v3302
      %v3324 = vpack.c.bf16 %v3305, %v3304
      %v3325 = vpack.c.bf16 %v3307, %v3306
      %v3326 = vpack.c.bf16 %v3309, %v3308
      %v3327 = vpack.c.bf16 %v3311, %v3310
      %v3328 = vld [vmem:[%s15] sm:$0xf]
      %v3329 = vld [vmem:[%s15 + $0x4] sm:$0xf]
      %v3330 = vld [vmem:[%s15 + $0x8] sm:$0xf]
      %v3331 = vld [vmem:[%s15 + $0xc] sm:$0xf]
      %v3332 = vld [vmem:[%s16] sm:$0x1]
      %v3334 = vlaneseq
      %v3335 = vshrl.u32 %v3334, 7
      %v3336 = vsub.s32 0, %v3335
      %v3337 = vrot.slane %v3332, %v3336
      %v3343 = vunpack.c.l.b16 %v3328
      %v3344 = vunpack.c.l.b16 %v3329
      %v3345 = vunpack.c.l.b16 %v3330
      %v3346 = vunpack.c.l.b16 %v3331
      %v3347 = vpack.c.b16 %v3344, %v3343
      %v3348 = vpack.c.b16 %v3346, %v3345
      %v3352 = vsel %vm763, %v3312, 0
      %v3355 = vsel %vm763, %v3313, 0
      %v3358 = vsel %vm763, %v3314, 0
      %v3361 = vsel %vm763, %v3315, 0
      %v3364 = vsel %vm763, %v3316, 0
      %v3367 = vsel %vm763, %v3317, 0
      %v3370 = vsel %vm763, %v3318, 0
      %v3373 = vsel %vm763, %v3319, 0
      %v3376 = vsel %vm763, %v3320, 0
      %v3379 = vsel %vm763, %v3321, 0
      %v3382 = vsel %vm763, %v3322, 0
      %v3385 = vsel %vm763, %v3323, 0
      %v3388 = vsel %vm763, %v3324, 0
      %v3391 = vsel %vm763, %v3325, 0
      %v3394 = vsel %vm763, %v3326, 0
      %v3397 = vsel %vm763, %v3327, 0
      %3399 = vmatprep.subr.bf16.mxu0 0
      %3400 = vmatpush1.bf16.msra.mxu0 0
      %3401 = vmatprep.subr.bf16.mxu0 0
      %3402 = vmatpush1.bf16.msra.mxu0 0
      %3403 = vmatprep.subr.bf16.mxu0 0
      %3404 = vmatpush1.bf16.msra.mxu0 0
      %3405 = vmatprep.subr.bf16.mxu0 0
      %3406 = vmatpush1.bf16.msra.mxu0 0
      %3407 = vmatprep.subr.bf16.mxu0 0
      %3408 = vmatpush1.bf16.msra.mxu0 0
      %3409 = vmatprep.subr.bf16.mxu0 0
      %3410 = vmatpush1.bf16.msra.mxu0 0
      %3411 = vmatprep.subr.bf16.mxu0 0
      %3412 = vmatpush1.bf16.msra.mxu0 %v3348
      %3413 = vmatprep.subr.bf16.mxu0 0
      %3414 = vmatpush1.bf16.msra.mxu0 %v3347
      %3415 = vmatprep.subr.bf16.mxu0 0
      %3416 = vmatpush2.bf16.msra.mxu0 0
      %3417 = vmatprep.subr.bf16.mxu0 0
      %3418 = vmatpush2.bf16.msra.mxu0 0
      %3419 = vmatprep.subr.bf16.mxu0 0
      %3420 = vmatpush2.bf16.msra.mxu0 0
      %3421 = vmatprep.subr.bf16.mxu0 0
      %3422 = vmatpush2.bf16.msra.mxu0 0
      %3423 = vmatprep.subr.bf16.mxu0 0
      %3424 = vmatpush2.bf16.msra.mxu0 0
      %3425 = vmatprep.subr.bf16.mxu0 0
      %3426 = vmatpush2.bf16.msra.mxu0 0
      %3427 = vmatprep.subr.bf16.mxu0 0
      %3428 = vmatpush2.bf16.msra.mxu0 0
      %3429 = vmatprep.subr.bf16.mxu0 0
      %3430 = vmatpush2.bf16.msra.mxu0 0
      %3431 = vmatprep.mubr.bf16.mxu0 0
      %3432 = vmatmul.mubr.bf16.gmra.mxu0 %v3352
      %v3433 = vpop.f32.mrf.mxu0
      %v3434 = vadd.f32 %v3337, %v3433
      %v3435 = vpop.f32.mrf.mxu0
      %v3436 = vpop.f32.mrf.mxu0
      %v3437 = vadd.f32 %v3337, %v3436
      %v3438 = vpop.f32.mrf.mxu0
      %3439 = vmatprep.mubr.bf16.mxu0 0
      %3440 = vmatmul.mubr.bf16.gmra.mxu0 %v3355
      %v3441 = vpop.f32.mrf.mxu0
      %v3442 = vadd.f32 %v3337, %v3441
      %v3443 = vpop.f32.mrf.mxu0
      %v3444 = vpop.f32.mrf.mxu0
      %v3445 = vadd.f32 %v3337, %v3444
      %v3446 = vpop.f32.mrf.mxu0
      %3447 = vmatprep.mubr.bf16.mxu0 0
      %3448 = vmatmul.mubr.bf16.gmra.mxu0 %v3358
      %v3449 = vpop.f32.mrf.mxu0
      %v3450 = vadd.f32 %v3337, %v3449
      %v3451 = vpop.f32.mrf.mxu0
      %v3452 = vpop.f32.mrf.mxu0
      %v3453 = vadd.f32 %v3337, %v3452
      %v3454 = vpop.f32.mrf.mxu0
      %3455 = vmatprep.mubr.bf16.mxu0 0
      %3456 = vmatmul.mubr.bf16.gmra.mxu0 %v3361
      %v3457 = vpop.f32.mrf.mxu0
      %v3458 = vadd.f32 %v3337, %v3457
      %v3459 = vpop.f32.mrf.mxu0
      %v3460 = vpop.f32.mrf.mxu0
      %v3461 = vadd.f32 %v3337, %v3460
      %v3462 = vpop.f32.mrf.mxu0
      %3463 = vmatprep.mubr.bf16.mxu0 0
      %3464 = vmatmul.mubr.bf16.gmra.mxu0 %v3364
      %v3465 = vpop.f32.mrf.mxu0
      %v3466 = vadd.f32 %v3337, %v3465
      %v3467 = vpop.f32.mrf.mxu0
      %v3468 = vpop.f32.mrf.mxu0
      %v3469 = vadd.f32 %v3337, %v3468
      %v3470 = vpop.f32.mrf.mxu0
      %3471 = vmatprep.mubr.bf16.mxu0 0
      %3472 = vmatmul.mubr.bf16.gmra.mxu0 %v3367
      %v3473 = vpop.f32.mrf.mxu0
      %v3474 = vadd.f32 %v3337, %v3473
      %v3475 = vpop.f32.mrf.mxu0
      %v3476 = vpop.f32.mrf.mxu0
      %v3477 = vadd.f32 %v3337, %v3476
      %v3478 = vpop.f32.mrf.mxu0
      %3479 = vmatprep.mubr.bf16.mxu0 0
      %3480 = vmatmul.mubr.bf16.gmra.mxu0 %v3370
      %v3481 = vpop.f32.mrf.mxu0
      %v3482 = vadd.f32 %v3337, %v3481
      %v3483 = vpop.f32.mrf.mxu0
      %v3484 = vpop.f32.mrf.mxu0
      %v3485 = vadd.f32 %v3337, %v3484
      %v3486 = vpop.f32.mrf.mxu0
      %3487 = vmatprep.mubr.bf16.mxu0 0
      %3488 = vmatmul.mubr.bf16.gmra.mxu0 %v3373
      %v3489 = vpop.f32.mrf.mxu0
      %v3490 = vadd.f32 %v3337, %v3489
      %v3491 = vpop.f32.mrf.mxu0
      %v3492 = vpop.f32.mrf.mxu0
      %v3493 = vadd.f32 %v3337, %v3492
      %v3494 = vpop.f32.mrf.mxu0
      %3495 = vmatprep.mubr.bf16.mxu0 0
      %3496 = vmatmul.mubr.bf16.gmra.mxu0 %v3376
      %v3497 = vpop.f32.mrf.mxu0
      %v3498 = vadd.f32 %v3337, %v3497
      %v3499 = vpop.f32.mrf.mxu0
      %v3500 = vpop.f32.mrf.mxu0
      %v3501 = vadd.f32 %v3337, %v3500
      %v3502 = vpop.f32.mrf.mxu0
      %3503 = vmatprep.mubr.bf16.mxu0 0
      %3504 = vmatmul.mubr.bf16.gmra.mxu0 %v3379
      %v3505 = vpop.f32.mrf.mxu0
      %v3506 = vadd.f32 %v3337, %v3505
      %v3507 = vpop.f32.mrf.mxu0
      %v3508 = vpop.f32.mrf.mxu0
      %v3509 = vadd.f32 %v3337, %v3508
      %v3510 = vpop.f32.mrf.mxu0
      %3511 = vmatprep.mubr.bf16.mxu0 0
      %3512 = vmatmul.mubr.bf16.gmra.mxu0 %v3382
      %v3513 = vpop.f32.mrf.mxu0
      %v3514 = vadd.f32 %v3337, %v3513
      %v3515 = vpop.f32.mrf.mxu0
      %v3516 = vpop.f32.mrf.mxu0
      %v3517 = vadd.f32 %v3337, %v3516
      %v3518 = vpop.f32.mrf.mxu0
      %3519 = vmatprep.mubr.bf16.mxu0 0
      %3520 = vmatmul.mubr.bf16.gmra.mxu0 %v3385
      %v3521 = vpop.f32.mrf.mxu0
      %v3522 = vadd.f32 %v3337, %v3521
      %v3523 = vpop.f32.mrf.mxu0
      %v3524 = vpop.f32.mrf.mxu0
      %v3525 = vadd.f32 %v3337, %v3524
      %v3526 = vpop.f32.mrf.mxu0
      %3527 = vmatprep.mubr.bf16.mxu0 0
      %3528 = vmatmul.mubr.bf16.gmra.mxu0 %v3388
      %v3529 = vpop.f32.mrf.mxu0
      %v3530 = vadd.f32 %v3337, %v3529
      %v3531 = vpop.f32.mrf.mxu0
      %v3532 = vpop.f32.mrf.mxu0
      %v3533 = vadd.f32 %v3337, %v3532
      %v3534 = vpop.f32.mrf.mxu0
      %3535 = vmatprep.mubr.bf16.mxu0 0
      %3536 = vmatmul.mubr.bf16.gmra.mxu0 %v3391
      %v3537 = vpop.f32.mrf.mxu0
      %v3538 = vadd.f32 %v3337, %v3537
      %v3539 = vpop.f32.mrf.mxu0
      %v3540 = vpop.f32.mrf.mxu0
      %v3541 = vadd.f32 %v3337, %v3540
      %v3542 = vpop.f32.mrf.mxu0
      %3543 = vmatprep.mubr.bf16.mxu0 0
      %3544 = vmatmul.mubr.bf16.gmra.mxu0 %v3394
      %v3545 = vpop.f32.mrf.mxu0
      %v3546 = vadd.f32 %v3337, %v3545
      %v3547 = vpop.f32.mrf.mxu0
      %v3548 = vpop.f32.mrf.mxu0
      %v3549 = vadd.f32 %v3337, %v3548
      %v3550 = vpop.f32.mrf.mxu0
      %3551 = vmatprep.mubr.bf16.mxu0 0
      %3552 = vmatmul.mubr.bf16.gmra.mxu0 %v3397
      %v3553 = vpop.f32.mrf.mxu0
      %v3554 = vadd.f32 %v3337, %v3553
      %v3555 = vpop.f32.mrf.mxu0
      %v3556 = vpop.f32.mrf.mxu0
      %v3557 = vadd.f32 %v3337, %v3556
      %v3558 = vpop.f32.mrf.mxu0
      %3559 = vdwg.mxu0
      %v3560 = vpack.c.bf16 %v3437, %v3434
      %v3561 = vpack.c.bf16 %v3445, %v3442
      %v3562 = vpack.c.bf16 %v3453, %v3450
      %v3563 = vpack.c.bf16 %v3461, %v3458
      %v3564 = vpack.c.bf16 %v3469, %v3466
      %v3565 = vpack.c.bf16 %v3477, %v3474
      %v3566 = vpack.c.bf16 %v3485, %v3482
      %v3567 = vpack.c.bf16 %v3493, %v3490
      %v3568 = vpack.c.bf16 %v3501, %v3498
      %v3569 = vpack.c.bf16 %v3509, %v3506
      %v3570 = vpack.c.bf16 %v3517, %v3514
      %v3571 = vpack.c.bf16 %v3525, %v3522
      %v3572 = vpack.c.bf16 %v3533, %v3530
      %v3573 = vpack.c.bf16 %v3541, %v3538
      %v3574 = vpack.c.bf16 %v3549, %v3546
      %v3575 = vpack.c.bf16 %v3557, %v3554
      %v3576 = vld [vmem:[%s687] sm:$0xf]
      %v3577 = vld [vmem:[%s687 + $0x4] sm:$0xf]
      %v3578 = vld [vmem:[%s687 + $0x8] sm:$0xf]
      %v3579 = vld [vmem:[%s687 + $0xc] sm:$0xf]
      %v3584 = vunpack.c.l.b16 %v3576
      %v3585 = vunpack.c.l.b16 %v3577
      %v3586 = vunpack.c.l.b16 %v3578
      %v3587 = vunpack.c.l.b16 %v3579
      %v3588 = vpack.c.b16 %v3585, %v3584
      %v3589 = vpack.c.b16 %v3587, %v3586
      %v3593 = vsel %vm763, %v3560, 0
      %v3596 = vsel %vm763, %v3561, 0
      %v3599 = vsel %vm763, %v3562, 0
      %v3602 = vsel %vm763, %v3563, 0
      %v3605 = vsel %vm763, %v3564, 0
      %v3608 = vsel %vm763, %v3565, 0
      %v3611 = vsel %vm763, %v3566, 0
      %v3614 = vsel %vm763, %v3567, 0
      %v3617 = vsel %vm763, %v3568, 0
      %v3620 = vsel %vm763, %v3569, 0
      %v3623 = vsel %vm763, %v3570, 0
      %v3626 = vsel %vm763, %v3571, 0
      %v3629 = vsel %vm763, %v3572, 0
      %v3632 = vsel %vm763, %v3573, 0
      %v3635 = vsel %vm763, %v3574, 0
      %v3638 = vsel %vm763, %v3575, 0
      %3640 = vmatprep.subr.bf16.mxu0 0
      %3641 = vmatpush1.bf16.msra.mxu0 0
      %3642 = vmatprep.subr.bf16.mxu0 0
      %3643 = vmatpush1.bf16.msra.mxu0 0
      %3644 = vmatprep.subr.bf16.mxu0 0
      %3645 = vmatpush1.bf16.msra.mxu0 0
      %3646 = vmatprep.subr.bf16.mxu0 0
      %3647 = vmatpush1.bf16.msra.mxu0 0
      %3648 = vmatprep.subr.bf16.mxu0 0
      %3649 = vmatpush1.bf16.msra.mxu0 0
      %3650 = vmatprep.subr.bf16.mxu0 0
      %3651 = vmatpush1.bf16.msra.mxu0 0
      %3652 = vmatprep.subr.bf16.mxu0 0
      %3653 = vmatpush1.bf16.msra.mxu0 %v3589
      %3654 = vmatprep.subr.bf16.mxu0 0
      %3655 = vmatpush1.bf16.msra.mxu0 %v3588
      %3656 = vmatprep.subr.bf16.mxu0 0
      %3657 = vmatpush2.bf16.msra.mxu0 0
      %3658 = vmatprep.subr.bf16.mxu0 0
      %3659 = vmatpush2.bf16.msra.mxu0 0
      %3660 = vmatprep.subr.bf16.mxu0 0
      %3661 = vmatpush2.bf16.msra.mxu0 0
      %3662 = vmatprep.subr.bf16.mxu0 0
      %3663 = vmatpush2.bf16.msra.mxu0 0
      %3664 = vmatprep.subr.bf16.mxu0 0
      %3665 = vmatpush2.bf16.msra.mxu0 0
      %3666 = vmatprep.subr.bf16.mxu0 0
      %3667 = vmatpush2.bf16.msra.mxu0 0
      %3668 = vmatprep.subr.bf16.mxu0 0
      %3669 = vmatpush2.bf16.msra.mxu0 0
      %3670 = vmatprep.subr.bf16.mxu0 0
      %3671 = vmatpush2.bf16.msra.mxu0 0
      %3672 = vmatprep.mubr.bf16.mxu0 0
      %3673 = vmatmul.mubr.bf16.gmra.mxu0 %v3593
      %v3674 = vpop.f32.mrf.mxu0
      %v3675 = vadd.f32 0.0, %v3674
      %v3676 = vpop.f32.mrf.mxu0
      %v3677 = vpop.f32.mrf.mxu0
      %v3678 = vadd.f32 0.0, %v3677
      %v3679 = vpop.f32.mrf.mxu0
      %3680 = vmatprep.mubr.bf16.mxu0 0
      %3681 = vmatmul.mubr.bf16.gmra.mxu0 %v3596
      %v3682 = vpop.f32.mrf.mxu0
      %v3683 = vadd.f32 0.0, %v3682
      %v3684 = vpop.f32.mrf.mxu0
      %v3685 = vpop.f32.mrf.mxu0
      %v3686 = vadd.f32 0.0, %v3685
      %v3687 = vpop.f32.mrf.mxu0
      %3688 = vmatprep.mubr.bf16.mxu0 0
      %3689 = vmatmul.mubr.bf16.gmra.mxu0 %v3599
      %v3690 = vpop.f32.mrf.mxu0
      %v3691 = vadd.f32 0.0, %v3690
      %v3692 = vpop.f32.mrf.mxu0
      %v3693 = vpop.f32.mrf.mxu0
      %v3694 = vadd.f32 0.0, %v3693
      %v3695 = vpop.f32.mrf.mxu0
      %3696 = vmatprep.mubr.bf16.mxu0 0
      %3697 = vmatmul.mubr.bf16.gmra.mxu0 %v3602
      %v3698 = vpop.f32.mrf.mxu0
      %v3699 = vadd.f32 0.0, %v3698
      %v3700 = vpop.f32.mrf.mxu0
      %v3701 = vpop.f32.mrf.mxu0
      %v3702 = vadd.f32 0.0, %v3701
      %v3703 = vpop.f32.mrf.mxu0
      %3704 = vmatprep.mubr.bf16.mxu0 0
      %3705 = vmatmul.mubr.bf16.gmra.mxu0 %v3605
      %v3706 = vpop.f32.mrf.mxu0
      %v3707 = vadd.f32 0.0, %v3706
      %v3708 = vpop.f32.mrf.mxu0
      %v3709 = vpop.f32.mrf.mxu0
      %v3710 = vadd.f32 0.0, %v3709
      %v3711 = vpop.f32.mrf.mxu0
      %3712 = vmatprep.mubr.bf16.mxu0 0
      %3713 = vmatmul.mubr.bf16.gmra.mxu0 %v3608
      %v3714 = vpop.f32.mrf.mxu0
      %v3715 = vadd.f32 0.0, %v3714
      %v3716 = vpop.f32.mrf.mxu0
      %v3717 = vpop.f32.mrf.mxu0
      %v3718 = vadd.f32 0.0, %v3717
      %v3719 = vpop.f32.mrf.mxu0
      %3720 = vmatprep.mubr.bf16.mxu0 0
      %3721 = vmatmul.mubr.bf16.gmra.mxu0 %v3611
      %v3722 = vpop.f32.mrf.mxu0
      %v3723 = vadd.f32 0.0, %v3722
      %v3724 = vpop.f32.mrf.mxu0
      %v3725 = vpop.f32.mrf.mxu0
      %v3726 = vadd.f32 0.0, %v3725
      %v3727 = vpop.f32.mrf.mxu0
      %3728 = vmatprep.mubr.bf16.mxu0 0
      %3729 = vmatmul.mubr.bf16.gmra.mxu0 %v3614
      %v3730 = vpop.f32.mrf.mxu0
      %v3731 = vadd.f32 0.0, %v3730
      %v3732 = vpop.f32.mrf.mxu0
      %v3733 = vpop.f32.mrf.mxu0
      %v3734 = vadd.f32 0.0, %v3733
      %v3735 = vpop.f32.mrf.mxu0
      %3736 = vmatprep.mubr.bf16.mxu0 0
      %3737 = vmatmul.mubr.bf16.gmra.mxu0 %v3617
      %v3738 = vpop.f32.mrf.mxu0
      %v3739 = vadd.f32 0.0, %v3738
      %v3740 = vpop.f32.mrf.mxu0
      %v3741 = vpop.f32.mrf.mxu0
      %v3742 = vadd.f32 0.0, %v3741
      %v3743 = vpop.f32.mrf.mxu0
      %3744 = vmatprep.mubr.bf16.mxu0 0
      %3745 = vmatmul.mubr.bf16.gmra.mxu0 %v3620
      %v3746 = vpop.f32.mrf.mxu0
      %v3747 = vadd.f32 0.0, %v3746
      %v3748 = vpop.f32.mrf.mxu0
      %v3749 = vpop.f32.mrf.mxu0
      %v3750 = vadd.f32 0.0, %v3749
      %v3751 = vpop.f32.mrf.mxu0
      %3752 = vmatprep.mubr.bf16.mxu0 0
      %3753 = vmatmul.mubr.bf16.gmra.mxu0 %v3623
      %v3754 = vpop.f32.mrf.mxu0
      %v3755 = vadd.f32 0.0, %v3754
      %v3756 = vpop.f32.mrf.mxu0
      %v3757 = vpop.f32.mrf.mxu0
      %v3758 = vadd.f32 0.0, %v3757
      %v3759 = vpop.f32.mrf.mxu0
      %3760 = vmatprep.mubr.bf16.mxu0 0
      %3761 = vmatmul.mubr.bf16.gmra.mxu0 %v3626
      %v3762 = vpop.f32.mrf.mxu0
      %v3763 = vadd.f32 0.0, %v3762
      %v3764 = vpop.f32.mrf.mxu0
      %v3765 = vpop.f32.mrf.mxu0
      %v3766 = vadd.f32 0.0, %v3765
      %v3767 = vpop.f32.mrf.mxu0
      %3768 = vmatprep.mubr.bf16.mxu0 0
      %3769 = vmatmul.mubr.bf16.gmra.mxu0 %v3629
      %v3770 = vpop.f32.mrf.mxu0
      %v3771 = vadd.f32 0.0, %v3770
      %v3772 = vpop.f32.mrf.mxu0
      %v3773 = vpop.f32.mrf.mxu0
      %v3774 = vadd.f32 0.0, %v3773
      %v3775 = vpop.f32.mrf.mxu0
      %3776 = vmatprep.mubr.bf16.mxu0 0
      %3777 = vmatmul.mubr.bf16.gmra.mxu0 %v3632
      %v3778 = vpop.f32.mrf.mxu0
      %v3779 = vadd.f32 0.0, %v3778
      %v3780 = vpop.f32.mrf.mxu0
      %v3781 = vpop.f32.mrf.mxu0
      %v3782 = vadd.f32 0.0, %v3781
      %v3783 = vpop.f32.mrf.mxu0
      %3784 = vmatprep.mubr.bf16.mxu0 0
      %3785 = vmatmul.mubr.bf16.gmra.mxu0 %v3635
      %v3786 = vpop.f32.mrf.mxu0
      %v3787 = vadd.f32 0.0, %v3786
      %v3788 = vpop.f32.mrf.mxu0
      %v3789 = vpop.f32.mrf.mxu0
      %v3790 = vadd.f32 0.0, %v3789
      %v3791 = vpop.f32.mrf.mxu0
      %3792 = vmatprep.mubr.bf16.mxu0 0
      %3793 = vmatmul.mubr.bf16.gmra.mxu0 %v3638
      %v3794 = vpop.f32.mrf.mxu0
      %v3795 = vadd.f32 0.0, %v3794
      %v3796 = vpop.f32.mrf.mxu0
      %v3797 = vpop.f32.mrf.mxu0
      %v3798 = vadd.f32 0.0, %v3797
      %v3799 = vpop.f32.mrf.mxu0
      %3800 = vdwg.mxu0
      %v3801 = vmul.f32 %v3675, 0.25
      %v3802 = vmul.f32 %v3678, 0.25
      %v3803 = vmul.f32 %v3683, 0.25
      %v3804 = vmul.f32 %v3686, 0.25
      %v3805 = vmul.f32 %v3691, 0.25
      %v3806 = vmul.f32 %v3694, 0.25
      %v3807 = vmul.f32 %v3699, 0.25
      %v3808 = vmul.f32 %v3702, 0.25
      %v3809 = vmul.f32 %v3707, 0.25
      %v3810 = vmul.f32 %v3710, 0.25
      %v3811 = vmul.f32 %v3715, 0.25
      %v3812 = vmul.f32 %v3718, 0.25
      %v3813 = vmul.f32 %v3723, 0.25
      %v3814 = vmul.f32 %v3726, 0.25
      %v3815 = vmul.f32 %v3731, 0.25
      %v3816 = vmul.f32 %v3734, 0.25
      %v3817 = vmul.f32 %v3739, 0.25
      %v3818 = vmul.f32 %v3742, 0.25
      %v3819 = vmul.f32 %v3747, 0.25
      %v3820 = vmul.f32 %v3750, 0.25
      %v3821 = vmul.f32 %v3755, 0.25
      %v3822 = vmul.f32 %v3758, 0.25
      %v3823 = vmul.f32 %v3763, 0.25
      %v3824 = vmul.f32 %v3766, 0.25
      %v3825 = vmul.f32 %v3771, 0.25
      %v3826 = vmul.f32 %v3774, 0.25
      %v3827 = vmul.f32 %v3779, 0.25
      %v3828 = vmul.f32 %v3782, 0.25
      %v3829 = vmul.f32 %v3787, 0.25
      %v3830 = vmul.f32 %v3790, 0.25
      %v3831 = vmul.f32 %v3795, 0.25
      %v3832 = vmul.f32 %v3798, 0.25
      %vm3833 = vcmask 130048
      %v3834 = vsel %vm3833, %v3801, -inf
      %3835 = vmax.xlane.f32.xlu0 %v3834
      %v3836 = vpop.xlane.xlu0 %3835
      %v3837 = vsel %vm3833, %v3802, -inf
      %3838 = vmax.xlane.f32.xlu0 %v3837
      %v3839 = vpop.xlane.xlu0 %3838
      %v3840 = vsel %vm3833, %v3803, -inf
      %3841 = vmax.xlane.f32.xlu0 %v3840
      %v3842 = vpop.xlane.xlu0 %3841
      %v3843 = vsel %vm3833, %v3804, -inf
      %3844 = vmax.xlane.f32.xlu0 %v3843
      %v3845 = vpop.xlane.xlu0 %3844
      %v3846 = vsel %vm3833, %v3805, -inf
      %3847 = vmax.xlane.f32.xlu0 %v3846
      %v3848 = vpop.xlane.xlu0 %3847
      %v3849 = vsel %vm3833, %v3806, -inf
      %3850 = vmax.xlane.f32.xlu0 %v3849
      %v3851 = vpop.xlane.xlu0 %3850
      %v3852 = vsel %vm3833, %v3807, -inf
      %3853 = vmax.xlane.f32.xlu0 %v3852
      %v3854 = vpop.xlane.xlu0 %3853
      %v3855 = vsel %vm3833, %v3808, -inf
      %3856 = vmax.xlane.f32.xlu0 %v3855
      %v3857 = vpop.xlane.xlu0 %3856
      %v3858 = vsel %vm3833, %v3809, -inf
      %3859 = vmax.xlane.f32.xlu0 %v3858
      %v3860 = vpop.xlane.xlu0 %3859
      %v3861 = vsel %vm3833, %v3810, -inf
      %3862 = vmax.xlane.f32.xlu0 %v3861
      %v3863 = vpop.xlane.xlu0 %3862
      %v3864 = vsel %vm3833, %v3811, -inf
      %3865 = vmax.xlane.f32.xlu0 %v3864
      %v3866 = vpop.xlane.xlu0 %3865
      %v3867 = vsel %vm3833, %v3812, -inf
      %3868 = vmax.xlane.f32.xlu0 %v3867
      %v3869 = vpop.xlane.xlu0 %3868
      %v3870 = vsel %vm3833, %v3813, -inf
      %3871 = vmax.xlane.f32.xlu0 %v3870
      %v3872 = vpop.xlane.xlu0 %3871
      %v3873 = vsel %vm3833, %v3814, -inf
      %3874 = vmax.xlane.f32.xlu0 %v3873
      %v3875 = vpop.xlane.xlu0 %3874
      %v3876 = vsel %vm3833, %v3815, -inf
      %3877 = vmax.xlane.f32.xlu0 %v3876
      %v3878 = vpop.xlane.xlu0 %3877
      %v3879 = vsel %vm3833, %v3816, -inf
      %3880 = vmax.xlane.f32.xlu0 %v3879
      %v3881 = vpop.xlane.xlu0 %3880
      %v3882 = vsel %vm3833, %v3817, -inf
      %3883 = vmax.xlane.f32.xlu0 %v3882
      %v3884 = vpop.xlane.xlu0 %3883
      %v3885 = vsel %vm3833, %v3818, -inf
      %3886 = vmax.xlane.f32.xlu0 %v3885
      %v3887 = vpop.xlane.xlu0 %3886
      %v3888 = vsel %vm3833, %v3819, -inf
      %3889 = vmax.xlane.f32.xlu0 %v3888
      %v3890 = vpop.xlane.xlu0 %3889
      %v3891 = vsel %vm3833, %v3820, -inf
      %3892 = vmax.xlane.f32.xlu0 %v3891
      %v3893 = vpop.xlane.xlu0 %3892
      %v3894 = vsel %vm3833, %v3821, -inf
      %3895 = vmax.xlane.f32.xlu0 %v3894
      %v3896 = vpop.xlane.xlu0 %3895
      %v3897 = vsel %vm3833, %v3822, -inf
      %3898 = vmax.xlane.f32.xlu0 %v3897
      %v3899 = vpop.xlane.xlu0 %3898
      %v3900 = vsel %vm3833, %v3823, -inf
      %3901 = vmax.xlane.f32.xlu0 %v3900
      %v3902 = vpop.xlane.xlu0 %3901
      %v3903 = vsel %vm3833, %v3824, -inf
      %3904 = vmax.xlane.f32.xlu0 %v3903
      %v3905 = vpop.xlane.xlu0 %3904
      %v3906 = vsel %vm3833, %v3825, -inf
      %3907 = vmax.xlane.f32.xlu0 %v3906
      %v3908 = vpop.xlane.xlu0 %3907
      %v3909 = vsel %vm3833, %v3826, -inf
      %3910 = vmax.xlane.f32.xlu0 %v3909
      %v3911 = vpop.xlane.xlu0 %3910
      %v3912 = vsel %vm3833, %v3827, -inf
      %3913 = vmax.xlane.f32.xlu0 %v3912
      %v3914 = vpop.xlane.xlu0 %3913
      %v3915 = vsel %vm3833, %v3828, -inf
      %3916 = vmax.xlane.f32.xlu0 %v3915
      %v3917 = vpop.xlane.xlu0 %3916
      %v3918 = vsel %vm3833, %v3829, -inf
      %3919 = vmax.xlane.f32.xlu0 %v3918
      %v3920 = vpop.xlane.xlu0 %3919
      %v3921 = vsel %vm3833, %v3830, -inf
      %3922 = vmax.xlane.f32.xlu0 %v3921
      %v3923 = vpop.xlane.xlu0 %3922
      %v3924 = vsel %vm3833, %v3831, -inf
      %3925 = vmax.xlane.f32.xlu0 %v3924
      %v3926 = vpop.xlane.xlu0 %3925
      %v3927 = vsel %vm3833, %v3832, -inf
      %3928 = vmax.xlane.f32.xlu0 %v3927
      %v3929 = vpop.xlane.xlu0 %3928
      %v3930 = vsub.f32 %v3801, %v3836
      %v3931 = vsub.f32 %v3802, %v3839
      %v3932 = vsub.f32 %v3803, %v3842
      %v3933 = vsub.f32 %v3804, %v3845
      %v3934 = vsub.f32 %v3805, %v3848
      %v3935 = vsub.f32 %v3806, %v3851
      %v3936 = vsub.f32 %v3807, %v3854
      %v3937 = vsub.f32 %v3808, %v3857
      %v3938 = vsub.f32 %v3809, %v3860
      %v3939 = vsub.f32 %v3810, %v3863
      %v3940 = vsub.f32 %v3811, %v3866
      %v3941 = vsub.f32 %v3812, %v3869
      %v3942 = vsub.f32 %v3813, %v3872
      %v3943 = vsub.f32 %v3814, %v3875
      %v3944 = vsub.f32 %v3815, %v3878
      %v3945 = vsub.f32 %v3816, %v3881
      %v3946 = vsub.f32 %v3817, %v3884
      %v3947 = vsub.f32 %v3818, %v3887
      %v3948 = vsub.f32 %v3819, %v3890
      %v3949 = vsub.f32 %v3820, %v3893
      %v3950 = vsub.f32 %v3821, %v3896
      %v3951 = vsub.f32 %v3822, %v3899
      %v3952 = vsub.f32 %v3823, %v3902
      %v3953 = vsub.f32 %v3824, %v3905
      %v3954 = vsub.f32 %v3825, %v3908
      %v3955 = vsub.f32 %v3826, %v3911
      %v3956 = vsub.f32 %v3827, %v3914
      %v3957 = vsub.f32 %v3828, %v3917
      %v3958 = vsub.f32 %v3829, %v3920
      %v3959 = vsub.f32 %v3830, %v3923
      %v3960 = vsub.f32 %v3831, %v3926
      %v3961 = vsub.f32 %v3832, %v3929
      %v3962 = vmul.f32 %v3930, 1.442695
      %v3963 = vpow.pop %v3962
      %v3964 = vmul.f32 %v3931, 1.442695
      %v3965 = vpow.pop %v3964
      %v3966 = vmul.f32 %v3932, 1.442695
      %v3967 = vpow.pop %v3966
      %v3968 = vmul.f32 %v3933, 1.442695
      %v3969 = vpow.pop %v3968
      %v3970 = vmul.f32 %v3934, 1.442695
      %v3971 = vpow.pop %v3970
      %v3972 = vmul.f32 %v3935, 1.442695
      %v3973 = vpow.pop %v3972
      %v3974 = vmul.f32 %v3936, 1.442695
      %v3975 = vpow.pop %v3974
      %v3976 = vmul.f32 %v3937, 1.442695
      %v3977 = vpow.pop %v3976
      %v3978 = vmul.f32 %v3938, 1.442695
      %v3979 = vpow.pop %v3978
      %v3980 = vmul.f32 %v3939, 1.442695
      %v3981 = vpow.pop %v3980
      %v3982 = vmul.f32 %v3940, 1.442695
      %v3983 = vpow.pop %v3982
      %v3984 = vmul.f32 %v3941, 1.442695
      %v3985 = vpow.pop %v3984
      %v3986 = vmul.f32 %v3942, 1.442695
      %v3987 = vpow.pop %v3986
      %v3988 = vmul.f32 %v3943, 1.442695
      %v3989 = vpow.pop %v3988
      %v3990 = vmul.f32 %v3944, 1.442695
      %v3991 = vpow.pop %v3990
      %v3992 = vmul.f32 %v3945, 1.442695
      %v3993 = vpow.pop %v3992
      %v3994 = vmul.f32 %v3946, 1.442695
      %v3995 = vpow.pop %v3994
      %v3996 = vmul.f32 %v3947, 1.442695
      %v3997 = vpow.pop %v3996
      %v3998 = vmul.f32 %v3948, 1.442695
      %v3999 = vpow.pop %v3998
      %v4000 = vmul.f32 %v3949, 1.442695
      %v4001 = vpow.pop %v4000
      %v4002 = vmul.f32 %v3950, 1.442695
      %v4003 = vpow.pop %v4002
      %v4004 = vmul.f32 %v3951, 1.442695
      %v4005 = vpow.pop %v4004
      %v4006 = vmul.f32 %v3952, 1.442695
      %v4007 = vpow.pop %v4006
      %v4008 = vmul.f32 %v3953, 1.442695
      %v4009 = vpow.pop %v4008
      %v4010 = vmul.f32 %v3954, 1.442695
      %v4011 = vpow.pop %v4010
      %v4012 = vmul.f32 %v3955, 1.442695
      %v4013 = vpow.pop %v4012
      %v4014 = vmul.f32 %v3956, 1.442695
      %v4015 = vpow.pop %v4014
      %v4016 = vmul.f32 %v3957, 1.442695
      %v4017 = vpow.pop %v4016
      %v4018 = vmul.f32 %v3958, 1.442695
      %v4019 = vpow.pop %v4018
      %v4020 = vmul.f32 %v3959, 1.442695
      %v4021 = vpow.pop %v4020
      %v4022 = vmul.f32 %v3960, 1.442695
      %v4023 = vpow.pop %v4022
      %v4024 = vmul.f32 %v3961, 1.442695
      %v4025 = vpow.pop %v4024
      %v4026 = vld [vmem:[%s19] sm:$0xff]
      %v4027 = vld [vmem:[%s19 + $0x8] sm:$0xff]
      %v4029 = vsel %vm3833, %v3963, 0
      %v4032 = vsel %vm3833, %v3965, 0
      %v4035 = vsel %vm3833, %v3967, 0
      %v4038 = vsel %vm3833, %v3969, 0
      %v4041 = vsel %vm3833, %v3971, 0
      %v4044 = vsel %vm3833, %v3973, 0
      %v4047 = vsel %vm3833, %v3975, 0
      %v4050 = vsel %vm3833, %v3977, 0
      %v4053 = vsel %vm3833, %v3979, 0
      %v4056 = vsel %vm3833, %v3981, 0
      %v4059 = vsel %vm3833, %v3983, 0
      %v4062 = vsel %vm3833, %v3985, 0
      %v4065 = vsel %vm3833, %v3987, 0
      %v4068 = vsel %vm3833, %v3989, 0
      %v4071 = vsel %vm3833, %v3991, 0
      %v4074 = vsel %vm3833, %v3993, 0
      %v4077 = vsel %vm3833, %v3995, 0
      %v4080 = vsel %vm3833, %v3997, 0
      %v4083 = vsel %vm3833, %v3999, 0
      %v4086 = vsel %vm3833, %v4001, 0
      %v4089 = vsel %vm3833, %v4003, 0
      %v4092 = vsel %vm3833, %v4005, 0
      %v4095 = vsel %vm3833, %v4007, 0
      %v4098 = vsel %vm3833, %v4009, 0
      %v4101 = vsel %vm3833, %v4011, 0
      %v4104 = vsel %vm3833, %v4013, 0
      %v4107 = vsel %vm3833, %v4015, 0
      %v4110 = vsel %vm3833, %v4017, 0
      %v4113 = vsel %vm3833, %v4019, 0
      %v4116 = vsel %vm3833, %v4021, 0
      %v4119 = vsel %vm3833, %v4023, 0
      %v4122 = vsel %vm3833, %v4025, 0
      %4124 = vmatprep.subr.mxu0 0.0
      %4125 = vmatpush1.msra.mxu0 0.0
      %4126 = vmatprep.subr.mxu0 0.0
      %4127 = vmatpush1.msra.mxu0 0.0
      %4128 = vmatprep.subr.mxu0 0.0
      %4129 = vmatpush1.msra.mxu0 0.0
      %4130 = vmatprep.subr.mxu0 0.0
      %4131 = vmatpush1.msra.mxu0 0.0
      %4132 = vmatprep.subr.mxu0 0.0
      %4133 = vmatpush1.msra.mxu0 0.0
      %4134 = vmatprep.subr.mxu0 0.0
      %4135 = vmatpush1.msra.mxu0 0.0
      %4136 = vmatprep.subr.mxu0 0.0
      %4137 = vmatpush1.msra.mxu0 0.0
      %4138 = vmatprep.subr.mxu0 0.0
      %4139 = vmatpush1.msra.mxu0 0.0
      %4140 = vmatprep.subr.mxu0 0.0
      %4141 = vmatpush1.msra.mxu0 0.0
      %4142 = vmatprep.subr.mxu0 0.0
      %4143 = vmatpush1.msra.mxu0 0.0
      %4144 = vmatprep.subr.mxu0 0.0
      %4145 = vmatpush1.msra.mxu0 0.0
      %4146 = vmatprep.subr.mxu0 0.0
      %4147 = vmatpush1.msra.mxu0 0.0
      %4148 = vmatprep.subr.mxu0 0.0
      %4149 = vmatpush1.msra.mxu0 0.0
      %4150 = vmatprep.subr.mxu0 0.0
      %4151 = vmatpush1.msra.mxu0 0.0
      %4152 = vmatprep.subr.mxu0 0.0
      %4153 = vmatpush1.msra.mxu0 %v4027
      %4154 = vmatprep.subr.mxu0 0.0
      %4155 = vmatpush1.msra.mxu0 %v4026
      %4156 = vmatprep.subr.mxu0 0.0
      %4157 = vmatpush2.msra.mxu0 0.0
      %4158 = vmatprep.subr.mxu0 0.0
      %4159 = vmatpush2.msra.mxu0 0.0
      %4160 = vmatprep.subr.mxu0 0.0
      %4161 = vmatpush2.msra.mxu0 0.0
      %4162 = vmatprep.subr.mxu0 0.0
      %4163 = vmatpush2.msra.mxu0 0.0
      %4164 = vmatprep.subr.mxu0 0.0
      %4165 = vmatpush2.msra.mxu0 0.0
      %4166 = vmatprep.subr.mxu0 0.0
      %4167 = vmatpush2.msra.mxu0 0.0
      %4168 = vmatprep.subr.mxu0 0.0
      %4169 = vmatpush2.msra.mxu0 0.0
      %4170 = vmatprep.subr.mxu0 0.0
      %4171 = vmatpush2.msra.mxu0 0.0
      %4172 = vmatprep.subr.mxu0 0.0
      %4173 = vmatpush2.msra.mxu0 0.0
      %4174 = vmatprep.subr.mxu0 0.0
      %4175 = vmatpush2.msra.mxu0 0.0
      %4176 = vmatprep.subr.mxu0 0.0
      %4177 = vmatpush2.msra.mxu0 0.0
      %4178 = vmatprep.subr.mxu0 0.0
      %4179 = vmatpush2.msra.mxu0 0.0
      %4180 = vmatprep.subr.mxu0 0.0
      %4181 = vmatpush2.msra.mxu0 0.0
      %4182 = vmatprep.subr.mxu0 0.0
      %4183 = vmatpush2.msra.mxu0 0.0
      %4184 = vmatprep.subr.mxu0 0.0
      %4185 = vmatpush2.msra.mxu0 0.0
      %4186 = vmatprep.subr.mxu0 0.0
      %4187 = vmatpush2.msra.mxu0 0.0
      %4188 = vmatprep.mubr.f32.mxu0 0.0
      %4189 = vmatmul.mubr.f32.gmra.mxu0 %v4029
      %v4190 = vpop.f32.mrf.mxu0
      %v4191 = vadd.f32 0.0, %v4190
      %v4192 = vpop.f32.mrf.mxu0
      %4193 = vmatprep.mubr.f32.mxu0 0.0
      %4194 = vmatmul.mubr.f32.gmra.mxu0 %v4032
      %v4195 = vpop.f32.mrf.mxu0
      %v4196 = vadd.f32 0.0, %v4195
      %v4197 = vpop.f32.mrf.mxu0
      %4198 = vmatprep.mubr.f32.mxu0 0.0
      %4199 = vmatmul.mubr.f32.gmra.mxu0 %v4035
      %v4200 = vpop.f32.mrf.mxu0
      %v4201 = vadd.f32 0.0, %v4200
      %v4202 = vpop.f32.mrf.mxu0
      %4203 = vmatprep.mubr.f32.mxu0 0.0
      %4204 = vmatmul.mubr.f32.gmra.mxu0 %v4038
      %v4205 = vpop.f32.mrf.mxu0
      %v4206 = vadd.f32 0.0, %v4205
      %v4207 = vpop.f32.mrf.mxu0
      %4208 = vmatprep.mubr.f32.mxu0 0.0
      %4209 = vmatmul.mubr.f32.gmra.mxu0 %v4041
      %v4210 = vpop.f32.mrf.mxu0
      %v4211 = vadd.f32 0.0, %v4210
      %v4212 = vpop.f32.mrf.mxu0
      %4213 = vmatprep.mubr.f32.mxu0 0.0
      %4214 = vmatmul.mubr.f32.gmra.mxu0 %v4044
      %v4215 = vpop.f32.mrf.mxu0
      %v4216 = vadd.f32 0.0, %v4215
      %v4217 = vpop.f32.mrf.mxu0
      %4218 = vmatprep.mubr.f32.mxu0 0.0
      %4219 = vmatmul.mubr.f32.gmra.mxu0 %v4047
      %v4220 = vpop.f32.mrf.mxu0
      %v4221 = vadd.f32 0.0, %v4220
      %v4222 = vpop.f32.mrf.mxu0
      %4223 = vmatprep.mubr.f32.mxu0 0.0
      %4224 = vmatmul.mubr.f32.gmra.mxu0 %v4050
      %v4225 = vpop.f32.mrf.mxu0
      %v4226 = vadd.f32 0.0, %v4225
      %v4227 = vpop.f32.mrf.mxu0
      %4228 = vmatprep.mubr.f32.mxu0 0.0
      %4229 = vmatmul.mubr.f32.gmra.mxu0 %v4053
      %v4230 = vpop.f32.mrf.mxu0
      %v4231 = vadd.f32 0.0, %v4230
      %v4232 = vpop.f32.mrf.mxu0
      %4233 = vmatprep.mubr.f32.mxu0 0.0
      %4234 = vmatmul.mubr.f32.gmra.mxu0 %v4056
      %v4235 = vpop.f32.mrf.mxu0
      %v4236 = vadd.f32 0.0, %v4235
      %v4237 = vpop.f32.mrf.mxu0
      %4238 = vmatprep.mubr.f32.mxu0 0.0
      %4239 = vmatmul.mubr.f32.gmra.mxu0 %v4059
      %v4240 = vpop.f32.mrf.mxu0
      %v4241 = vadd.f32 0.0, %v4240
      %v4242 = vpop.f32.mrf.mxu0
      %4243 = vmatprep.mubr.f32.mxu0 0.0
      %4244 = vmatmul.mubr.f32.gmra.mxu0 %v4062
      %v4245 = vpop.f32.mrf.mxu0
      %v4246 = vadd.f32 0.0, %v4245
      %v4247 = vpop.f32.mrf.mxu0
      %4248 = vmatprep.mubr.f32.mxu0 0.0
      %4249 = vmatmul.mubr.f32.gmra.mxu0 %v4065
      %v4250 = vpop.f32.mrf.mxu0
      %v4251 = vadd.f32 0.0, %v4250
      %v4252 = vpop.f32.mrf.mxu0
      %4253 = vmatprep.mubr.f32.mxu0 0.0
      %4254 = vmatmul.mubr.f32.gmra.mxu0 %v4068
      %v4255 = vpop.f32.mrf.mxu0
      %v4256 = vadd.f32 0.0, %v4255
      %v4257 = vpop.f32.mrf.mxu0
      %4258 = vmatprep.mubr.f32.mxu0 0.0
      %4259 = vmatmul.mubr.f32.gmra.mxu0 %v4071
      %v4260 = vpop.f32.mrf.mxu0
      %v4261 = vadd.f32 0.0, %v4260
      %v4262 = vpop.f32.mrf.mxu0
      %4263 = vmatprep.mubr.f32.mxu0 0.0
      %4264 = vmatmul.mubr.f32.gmra.mxu0 %v4074
      %v4265 = vpop.f32.mrf.mxu0
      %v4266 = vadd.f32 0.0, %v4265
      %v4267 = vpop.f32.mrf.mxu0
      %4268 = vmatprep.mubr.f32.mxu0 0.0
      %4269 = vmatmul.mubr.f32.gmra.mxu0 %v4077
      %v4270 = vpop.f32.mrf.mxu0
      %v4271 = vadd.f32 0.0, %v4270
      %v4272 = vpop.f32.mrf.mxu0
      %4273 = vmatprep.mubr.f32.mxu0 0.0
      %4274 = vmatmul.mubr.f32.gmra.mxu0 %v4080
      %v4275 = vpop.f32.mrf.mxu0
      %v4276 = vadd.f32 0.0, %v4275
      %v4277 = vpop.f32.mrf.mxu0
      %4278 = vmatprep.mubr.f32.mxu0 0.0
      %4279 = vmatmul.mubr.f32.gmra.mxu0 %v4083
      %v4280 = vpop.f32.mrf.mxu0
      %v4281 = vadd.f32 0.0, %v4280
      %v4282 = vpop.f32.mrf.mxu0
      %4283 = vmatprep.mubr.f32.mxu0 0.0
      %4284 = vmatmul.mubr.f32.gmra.mxu0 %v4086
      %v4285 = vpop.f32.mrf.mxu0
      %v4286 = vadd.f32 0.0, %v4285
      %v4287 = vpop.f32.mrf.mxu0
      %4288 = vmatprep.mubr.f32.mxu0 0.0
      %4289 = vmatmul.mubr.f32.gmra.mxu0 %v4089
      %v4290 = vpop.f32.mrf.mxu0
      %v4291 = vadd.f32 0.0, %v4290
      %v4292 = vpop.f32.mrf.mxu0
      %4293 = vmatprep.mubr.f32.mxu0 0.0
      %4294 = vmatmul.mubr.f32.gmra.mxu0 %v4092
      %v4295 = vpop.f32.mrf.mxu0
      %v4296 = vadd.f32 0.0, %v4295
      %v4297 = vpop.f32.mrf.mxu0
      %4298 = vmatprep.mubr.f32.mxu0 0.0
      %4299 = vmatmul.mubr.f32.gmra.mxu0 %v4095
      %v4300 = vpop.f32.mrf.mxu0
      %v4301 = vadd.f32 0.0, %v4300
      %v4302 = vpop.f32.mrf.mxu0
      %4303 = vmatprep.mubr.f32.mxu0 0.0
      %4304 = vmatmul.mubr.f32.gmra.mxu0 %v4098
      %v4305 = vpop.f32.mrf.mxu0
      %v4306 = vadd.f32 0.0, %v4305
      %v4307 = vpop.f32.mrf.mxu0
      %4308 = vmatprep.mubr.f32.mxu0 0.0
      %4309 = vmatmul.mubr.f32.gmra.mxu0 %v4101
      %v4310 = vpop.f32.mrf.mxu0
      %v4311 = vadd.f32 0.0, %v4310
      %v4312 = vpop.f32.mrf.mxu0
      %4313 = vmatprep.mubr.f32.mxu0 0.0
      %4314 = vmatmul.mubr.f32.gmra.mxu0 %v4104
      %v4315 = vpop.f32.mrf.mxu0
      %v4316 = vadd.f32 0.0, %v4315
      %v4317 = vpop.f32.mrf.mxu0
      %4318 = vmatprep.mubr.f32.mxu0 0.0
      %4319 = vmatmul.mubr.f32.gmra.mxu0 %v4107
      %v4320 = vpop.f32.mrf.mxu0
      %v4321 = vadd.f32 0.0, %v4320
      %v4322 = vpop.f32.mrf.mxu0
      %4323 = vmatprep.mubr.f32.mxu0 0.0
      %4324 = vmatmul.mubr.f32.gmra.mxu0 %v4110
      %v4325 = vpop.f32.mrf.mxu0
      %v4326 = vadd.f32 0.0, %v4325
      %v4327 = vpop.f32.mrf.mxu0
      %4328 = vmatprep.mubr.f32.mxu0 0.0
      %4329 = vmatmul.mubr.f32.gmra.mxu0 %v4113
      %v4330 = vpop.f32.mrf.mxu0
      %v4331 = vadd.f32 0.0, %v4330
      %v4332 = vpop.f32.mrf.mxu0
      %4333 = vmatprep.mubr.f32.mxu0 0.0
      %4334 = vmatmul.mubr.f32.gmra.mxu0 %v4116
      %v4335 = vpop.f32.mrf.mxu0
      %v4336 = vadd.f32 0.0, %v4335
      %v4337 = vpop.f32.mrf.mxu0
      %4338 = vmatprep.mubr.f32.mxu0 0.0
      %4339 = vmatmul.mubr.f32.gmra.mxu0 %v4119
      %v4340 = vpop.f32.mrf.mxu0
      %v4341 = vadd.f32 0.0, %v4340
      %v4342 = vpop.f32.mrf.mxu0
      %4343 = vmatprep.mubr.f32.mxu0 0.0
      %4344 = vmatmul.mubr.f32.gmra.mxu0 %v4122
      %v4345 = vpop.f32.mrf.mxu0
      %v4346 = vadd.f32 0.0, %v4345
      %v4347 = vpop.f32.mrf.mxu0
      %4348 = vdwg.mxu0
      %v4349 = vrcp.pop %v4191
      %v4350 = vrcp.pop %v4196
      %v4351 = vrcp.pop %v4201
      %v4352 = vrcp.pop %v4206
      %v4353 = vrcp.pop %v4211
      %v4354 = vrcp.pop %v4216
      %v4355 = vrcp.pop %v4221
      %v4356 = vrcp.pop %v4226
      %v4357 = vrcp.pop %v4231
      %v4358 = vrcp.pop %v4236
      %v4359 = vrcp.pop %v4241
      %v4360 = vrcp.pop %v4246
      %v4361 = vrcp.pop %v4251
      %v4362 = vrcp.pop %v4256
      %v4363 = vrcp.pop %v4261
      %v4364 = vrcp.pop %v4266
      %v4365 = vrcp.pop %v4271
      %v4366 = vrcp.pop %v4276
      %v4367 = vrcp.pop %v4281
      %v4368 = vrcp.pop %v4286
      %v4369 = vrcp.pop %v4291
      %v4370 = vrcp.pop %v4296
      %v4371 = vrcp.pop %v4301
      %v4372 = vrcp.pop %v4306
      %v4373 = vrcp.pop %v4311
      %v4374 = vrcp.pop %v4316
      %v4375 = vrcp.pop %v4321
      %v4376 = vrcp.pop %v4326
      %v4377 = vrcp.pop %v4331
      %v4378 = vrcp.pop %v4336
      %v4379 = vrcp.pop %v4341
      %v4380 = vrcp.pop %v4346
      %v4381 = vmul.f32 %v3963, %v4349
      %v4382 = vmul.f32 %v3965, %v4350
      %v4383 = vmul.f32 %v3967, %v4351
      %v4384 = vmul.f32 %v3969, %v4352
      %v4385 = vmul.f32 %v3971, %v4353
      %v4386 = vmul.f32 %v3973, %v4354
      %v4387 = vmul.f32 %v3975, %v4355
      %v4388 = vmul.f32 %v3977, %v4356
      %v4389 = vmul.f32 %v3979, %v4357
      %v4390 = vmul.f32 %v3981, %v4358
      %v4391 = vmul.f32 %v3983, %v4359
      %v4392 = vmul.f32 %v3985, %v4360
      %v4393 = vmul.f32 %v3987, %v4361
      %v4394 = vmul.f32 %v3989, %v4362
      %v4395 = vmul.f32 %v3991, %v4363
      %v4396 = vmul.f32 %v3993, %v4364
      %v4397 = vmul.f32 %v3995, %v4365
      %v4398 = vmul.f32 %v3997, %v4366
      %v4399 = vmul.f32 %v3999, %v4367
      %v4400 = vmul.f32 %v4001, %v4368
      %v4401 = vmul.f32 %v4003, %v4369
      %v4402 = vmul.f32 %v4005, %v4370
      %v4403 = vmul.f32 %v4007, %v4371
      %v4404 = vmul.f32 %v4009, %v4372
      %v4405 = vmul.f32 %v4011, %v4373
      %v4406 = vmul.f32 %v4013, %v4374
      %v4407 = vmul.f32 %v4015, %v4375
      %v4408 = vmul.f32 %v4017, %v4376
      %v4409 = vmul.f32 %v4019, %v4377
      %v4410 = vmul.f32 %v4021, %v4378
      %v4411 = vmul.f32 %v4023, %v4379
      %v4412 = vmul.f32 %v4025, %v4380
      %v4413 = vpack.c.bf16 %v4382, %v4381
      %v4414 = vpack.c.bf16 %v4384, %v4383
      %v4415 = vpack.c.bf16 %v4386, %v4385
      %v4416 = vpack.c.bf16 %v4388, %v4387
      %v4417 = vpack.c.bf16 %v4390, %v4389
      %v4418 = vpack.c.bf16 %v4392, %v4391
      %v4419 = vpack.c.bf16 %v4394, %v4393
      %v4420 = vpack.c.bf16 %v4396, %v4395
      %v4421 = vpack.c.bf16 %v4398, %v4397
      %v4422 = vpack.c.bf16 %v4400, %v4399
      %v4423 = vpack.c.bf16 %v4402, %v4401
      %v4424 = vpack.c.bf16 %v4404, %v4403
      %v4425 = vpack.c.bf16 %v4406, %v4405
      %v4426 = vpack.c.bf16 %v4408, %v4407
      %v4427 = vpack.c.bf16 %v4410, %v4409
      %v4428 = vpack.c.bf16 %v4412, %v4411
      %v4429 = vld [vmem:[%s692] sm:$0xf]
      %v4430 = vld [vmem:[%s692 + $0x4] sm:$0xf]
      %v4433 = vunpack.c.l.b16 %v4429
      %v4434 = vunpack.c.l.b16 %v4430
      %v4435 = vpack.c.b16 %v4434, %v4433
      %v4438 = vsel %vm3833, %v4413, 0
      %v4441 = vsel %vm3833, %v4414, 0
      %v4444 = vsel %vm3833, %v4415, 0
      %v4447 = vsel %vm3833, %v4416, 0
      %v4450 = vsel %vm3833, %v4417, 0
      %v4453 = vsel %vm3833, %v4418, 0
      %v4456 = vsel %vm3833, %v4419, 0
      %v4459 = vsel %vm3833, %v4420, 0
      %v4462 = vsel %vm3833, %v4421, 0
      %v4465 = vsel %vm3833, %v4422, 0
      %v4468 = vsel %vm3833, %v4423, 0
      %v4471 = vsel %vm3833, %v4424, 0
      %v4474 = vsel %vm3833, %v4425, 0
      %v4477 = vsel %vm3833, %v4426, 0
      %v4480 = vsel %vm3833, %v4427, 0
      %v4483 = vsel %vm3833, %v4428, 0
      %4485 = vmatprep.subr.bf16.mxu0 0
      %4486 = vmatpush1.bf16.msra.mxu0 0
      %4487 = vmatprep.subr.bf16.mxu0 0
      %4488 = vmatpush1.bf16.msra.mxu0 0
      %4489 = vmatprep.subr.bf16.mxu0 0
      %4490 = vmatpush1.bf16.msra.mxu0 0
      %4491 = vmatprep.subr.bf16.mxu0 0
      %4492 = vmatpush1.bf16.msra.mxu0 0
      %4493 = vmatprep.subr.bf16.mxu0 0
      %4494 = vmatpush1.bf16.msra.mxu0 0
      %4495 = vmatprep.subr.bf16.mxu0 0
      %4496 = vmatpush1.bf16.msra.mxu0 0
      %4497 = vmatprep.subr.bf16.mxu0 0
      %4498 = vmatpush1.bf16.msra.mxu0 0
      %4499 = vmatprep.subr.bf16.mxu0 0
      %4500 = vmatpush1.bf16.msra.mxu0 %v4435
      %4501 = vmatprep.subr.bf16.mxu0 0
      %4502 = vmatpush2.bf16.msra.mxu0 0
      %4503 = vmatprep.subr.bf16.mxu0 0
      %4504 = vmatpush2.bf16.msra.mxu0 0
      %4505 = vmatprep.subr.bf16.mxu0 0
      %4506 = vmatpush2.bf16.msra.mxu0 0
      %4507 = vmatprep.subr.bf16.mxu0 0
      %4508 = vmatpush2.bf16.msra.mxu0 0
      %4509 = vmatprep.subr.bf16.mxu0 0
      %4510 = vmatpush2.bf16.msra.mxu0 0
      %4511 = vmatprep.subr.bf16.mxu0 0
      %4512 = vmatpush2.bf16.msra.mxu0 0
      %4513 = vmatprep.subr.bf16.mxu0 0
      %4514 = vmatpush2.bf16.msra.mxu0 0
      %4515 = vmatprep.subr.bf16.mxu0 0
      %4516 = vmatpush2.bf16.msra.mxu0 0
      %4517 = vmatprep.mubr.bf16.mxu0 0
      %4518 = vmatmul.mubr.bf16.gmra.mxu0 %v4438
      %v4519 = vpop.f32.mrf.mxu0
      %v4520 = vadd.f32 0.0, %v4519
      %v4521 = vpop.f32.mrf.mxu0
      %v4522 = vpop.f32.mrf.mxu0
      %v4523 = vadd.f32 0.0, %v4522
      %v4524 = vpop.f32.mrf.mxu0
      %4525 = vmatprep.mubr.bf16.mxu0 0
      %4526 = vmatmul.mubr.bf16.gmra.mxu0 %v4441
      %v4527 = vpop.f32.mrf.mxu0
      %v4528 = vadd.f32 0.0, %v4527
      %v4529 = vpop.f32.mrf.mxu0
      %v4530 = vpop.f32.mrf.mxu0
      %v4531 = vadd.f32 0.0, %v4530
      %v4532 = vpop.f32.mrf.mxu0
      %4533 = vmatprep.mubr.bf16.mxu0 0
      %4534 = vmatmul.mubr.bf16.gmra.mxu0 %v4444
      %v4535 = vpop.f32.mrf.mxu0
      %v4536 = vadd.f32 0.0, %v4535
      %v4537 = vpop.f32.mrf.mxu0
      %v4538 = vpop.f32.mrf.mxu0
      %v4539 = vadd.f32 0.0, %v4538
      %v4540 = vpop.f32.mrf.mxu0
      %4541 = vmatprep.mubr.bf16.mxu0 0
      %4542 = vmatmul.mubr.bf16.gmra.mxu0 %v4447
      %v4543 = vpop.f32.mrf.mxu0
      %v4544 = vadd.f32 0.0, %v4543
      %v4545 = vpop.f32.mrf.mxu0
      %v4546 = vpop.f32.mrf.mxu0
      %v4547 = vadd.f32 0.0, %v4546
      %v4548 = vpop.f32.mrf.mxu0
      %4549 = vmatprep.mubr.bf16.mxu0 0
      %4550 = vmatmul.mubr.bf16.gmra.mxu0 %v4450
      %v4551 = vpop.f32.mrf.mxu0
      %v4552 = vadd.f32 0.0, %v4551
      %v4553 = vpop.f32.mrf.mxu0
      %v4554 = vpop.f32.mrf.mxu0
      %v4555 = vadd.f32 0.0, %v4554
      %v4556 = vpop.f32.mrf.mxu0
      %4557 = vmatprep.mubr.bf16.mxu0 0
      %4558 = vmatmul.mubr.bf16.gmra.mxu0 %v4453
      %v4559 = vpop.f32.mrf.mxu0
      %v4560 = vadd.f32 0.0, %v4559
      %v4561 = vpop.f32.mrf.mxu0
      %v4562 = vpop.f32.mrf.mxu0
      %v4563 = vadd.f32 0.0, %v4562
      %v4564 = vpop.f32.mrf.mxu0
      %4565 = vmatprep.mubr.bf16.mxu0 0
      %4566 = vmatmul.mubr.bf16.gmra.mxu0 %v4456
      %v4567 = vpop.f32.mrf.mxu0
      %v4568 = vadd.f32 0.0, %v4567
      %v4569 = vpop.f32.mrf.mxu0
      %v4570 = vpop.f32.mrf.mxu0
      %v4571 = vadd.f32 0.0, %v4570
      %v4572 = vpop.f32.mrf.mxu0
      %4573 = vmatprep.mubr.bf16.mxu0 0
      %4574 = vmatmul.mubr.bf16.gmra.mxu0 %v4459
      %v4575 = vpop.f32.mrf.mxu0
      %v4576 = vadd.f32 0.0, %v4575
      %v4577 = vpop.f32.mrf.mxu0
      %v4578 = vpop.f32.mrf.mxu0
      %v4579 = vadd.f32 0.0, %v4578
      %v4580 = vpop.f32.mrf.mxu0
      %4581 = vmatprep.mubr.bf16.mxu0 0
      %4582 = vmatmul.mubr.bf16.gmra.mxu0 %v4462
      %v4583 = vpop.f32.mrf.mxu0
      %v4584 = vadd.f32 0.0, %v4583
      %v4585 = vpop.f32.mrf.mxu0
      %v4586 = vpop.f32.mrf.mxu0
      %v4587 = vadd.f32 0.0, %v4586
      %v4588 = vpop.f32.mrf.mxu0
      %4589 = vmatprep.mubr.bf16.mxu0 0
      %4590 = vmatmul.mubr.bf16.gmra.mxu0 %v4465
      %v4591 = vpop.f32.mrf.mxu0
      %v4592 = vadd.f32 0.0, %v4591
      %v4593 = vpop.f32.mrf.mxu0
      %v4594 = vpop.f32.mrf.mxu0
      %v4595 = vadd.f32 0.0, %v4594
      %v4596 = vpop.f32.mrf.mxu0
      %4597 = vmatprep.mubr.bf16.mxu0 0
      %4598 = vmatmul.mubr.bf16.gmra.mxu0 %v4468
      %v4599 = vpop.f32.mrf.mxu0
      %v4600 = vadd.f32 0.0, %v4599
      %v4601 = vpop.f32.mrf.mxu0
      %v4602 = vpop.f32.mrf.mxu0
      %v4603 = vadd.f32 0.0, %v4602
      %v4604 = vpop.f32.mrf.mxu0
      %4605 = vmatprep.mubr.bf16.mxu0 0
      %4606 = vmatmul.mubr.bf16.gmra.mxu0 %v4471
      %v4607 = vpop.f32.mrf.mxu0
      %v4608 = vadd.f32 0.0, %v4607
      %v4609 = vpop.f32.mrf.mxu0
      %v4610 = vpop.f32.mrf.mxu0
      %v4611 = vadd.f32 0.0, %v4610
      %v4612 = vpop.f32.mrf.mxu0
      %4613 = vmatprep.mubr.bf16.mxu0 0
      %4614 = vmatmul.mubr.bf16.gmra.mxu0 %v4474
      %v4615 = vpop.f32.mrf.mxu0
      %v4616 = vadd.f32 0.0, %v4615
      %v4617 = vpop.f32.mrf.mxu0
      %v4618 = vpop.f32.mrf.mxu0
      %v4619 = vadd.f32 0.0, %v4618
      %v4620 = vpop.f32.mrf.mxu0
      %4621 = vmatprep.mubr.bf16.mxu0 0
      %4622 = vmatmul.mubr.bf16.gmra.mxu0 %v4477
      %v4623 = vpop.f32.mrf.mxu0
      %v4624 = vadd.f32 0.0, %v4623
      %v4625 = vpop.f32.mrf.mxu0
      %v4626 = vpop.f32.mrf.mxu0
      %v4627 = vadd.f32 0.0, %v4626
      %v4628 = vpop.f32.mrf.mxu0
      %4629 = vmatprep.mubr.bf16.mxu0 0
      %4630 = vmatmul.mubr.bf16.gmra.mxu0 %v4480
      %v4631 = vpop.f32.mrf.mxu0
      %v4632 = vadd.f32 0.0, %v4631
      %v4633 = vpop.f32.mrf.mxu0
      %v4634 = vpop.f32.mrf.mxu0
      %v4635 = vadd.f32 0.0, %v4634
      %v4636 = vpop.f32.mrf.mxu0
      %4637 = vmatprep.mubr.bf16.mxu0 0
      %4638 = vmatmul.mubr.bf16.gmra.mxu0 %v4483
      %v4639 = vpop.f32.mrf.mxu0
      %v4640 = vadd.f32 0.0, %v4639
      %v4641 = vpop.f32.mrf.mxu0
      %v4642 = vpop.f32.mrf.mxu0
      %v4643 = vadd.f32 0.0, %v4642
      %v4644 = vpop.f32.mrf.mxu0
      %4645 = vdwg.mxu0
      %v4646 = vpack.c.bf16 %v4523, %v4520
      %v4647 = vpack.c.bf16 %v4531, %v4528
      %v4648 = vpack.c.bf16 %v4539, %v4536
      %v4649 = vpack.c.bf16 %v4547, %v4544
      %v4650 = vpack.c.bf16 %v4555, %v4552
      %v4651 = vpack.c.bf16 %v4563, %v4560
      %v4652 = vpack.c.bf16 %v4571, %v4568
      %v4653 = vpack.c.bf16 %v4579, %v4576
      %v4654 = vpack.c.bf16 %v4587, %v4584
      %v4655 = vpack.c.bf16 %v4595, %v4592
      %v4656 = vpack.c.bf16 %v4603, %v4600
      %v4657 = vpack.c.bf16 %v4611, %v4608
      %v4658 = vpack.c.bf16 %v4619, %v4616
      %v4659 = vpack.c.bf16 %v4627, %v4624
      %v4660 = vpack.c.bf16 %v4635, %v4632
      %v4661 = vpack.c.bf16 %v4643, %v4640
      %v4662 = vld [vmem:[%s17] sm:$0xf]
      %v4663 = vld [vmem:[%s17 + $0x4] sm:$0xf]
      %v4664 = vld [vmem:[%s17 + $0x8] sm:$0xf]
      %v4665 = vld [vmem:[%s17 + $0xc] sm:$0xf]
      %v4666 = vld [vmem:[%s18] sm:$0x1]
      %v4668 = vlaneseq
      %v4669 = vshrl.u32 %v4668, 7
      %v4670 = vsub.s32 0, %v4669
      %v4671 = vrot.slane %v4666, %v4670
      %v4677 = vunpack.c.l.b16 %v4662
      %v4678 = vunpack.c.l.b16 %v4663
      %v4679 = vunpack.c.l.b16 %v4664
      %v4680 = vunpack.c.l.b16 %v4665
      %v4681 = vpack.c.b16 %v4678, %v4677
      %v4682 = vpack.c.b16 %v4680, %v4679
      %v4686 = vsel %vm763, %v4646, 0
      %v4689 = vsel %vm763, %v4647, 0
      %v4692 = vsel %vm763, %v4648, 0
      %v4695 = vsel %vm763, %v4649, 0
      %v4698 = vsel %vm763, %v4650, 0
      %v4701 = vsel %vm763, %v4651, 0
      %v4704 = vsel %vm763, %v4652, 0
      %v4707 = vsel %vm763, %v4653, 0
      %v4710 = vsel %vm763, %v4654, 0
      %v4713 = vsel %vm763, %v4655, 0
      %v4716 = vsel %vm763, %v4656, 0
      %v4719 = vsel %vm763, %v4657, 0
      %v4722 = vsel %vm763, %v4658, 0
      %v4725 = vsel %vm763, %v4659, 0
      %v4728 = vsel %vm763, %v4660, 0
      %v4731 = vsel %vm763, %v4661, 0
      %4733 = vmatprep.subr.bf16.mxu0 0
      %4734 = vmatpush1.bf16.msra.mxu0 0
      %4735 = vmatprep.subr.bf16.mxu0 0
      %4736 = vmatpush1.bf16.msra.mxu0 0
      %4737 = vmatprep.subr.bf16.mxu0 0
      %4738 = vmatpush1.bf16.msra.mxu0 0
      %4739 = vmatprep.subr.bf16.mxu0 0
      %4740 = vmatpush1.bf16.msra.mxu0 0
      %4741 = vmatprep.subr.bf16.mxu0 0
      %4742 = vmatpush1.bf16.msra.mxu0 0
      %4743 = vmatprep.subr.bf16.mxu0 0
      %4744 = vmatpush1.bf16.msra.mxu0 0
      %4745 = vmatprep.subr.bf16.mxu0 0
      %4746 = vmatpush1.bf16.msra.mxu0 %v4682
      %4747 = vmatprep.subr.bf16.mxu0 0
      %4748 = vmatpush1.bf16.msra.mxu0 %v4681
      %4749 = vmatprep.subr.bf16.mxu0 0
      %4750 = vmatpush2.bf16.msra.mxu0 0
      %4751 = vmatprep.subr.bf16.mxu0 0
      %4752 = vmatpush2.bf16.msra.mxu0 0
      %4753 = vmatprep.subr.bf16.mxu0 0
      %4754 = vmatpush2.bf16.msra.mxu0 0
      %4755 = vmatprep.subr.bf16.mxu0 0
      %4756 = vmatpush2.bf16.msra.mxu0 0
      %4757 = vmatprep.subr.bf16.mxu0 0
      %4758 = vmatpush2.bf16.msra.mxu0 0
      %4759 = vmatprep.subr.bf16.mxu0 0
      %4760 = vmatpush2.bf16.msra.mxu0 0
      %4761 = vmatprep.subr.bf16.mxu0 0
      %4762 = vmatpush2.bf16.msra.mxu0 0
      %4763 = vmatprep.subr.bf16.mxu0 0
      %4764 = vmatpush2.bf16.msra.mxu0 0
      %4765 = vmatprep.mubr.bf16.mxu0 0
      %4766 = vmatmul.mubr.bf16.gmra.mxu0 %v4686
      %v4767 = vpop.f32.mrf.mxu0
      %v4768 = vadd.f32 %v4671, %v4767
      %v4769 = vpop.f32.mrf.mxu0
      %v4770 = vpop.f32.mrf.mxu0
      %v4771 = vadd.f32 %v4671, %v4770
      %v4772 = vpop.f32.mrf.mxu0
      %4773 = vmatprep.mubr.bf16.mxu0 0
      %4774 = vmatmul.mubr.bf16.gmra.mxu0 %v4689
      %v4775 = vpop.f32.mrf.mxu0
      %v4776 = vadd.f32 %v4671, %v4775
      %v4777 = vpop.f32.mrf.mxu0
      %v4778 = vpop.f32.mrf.mxu0
      %v4779 = vadd.f32 %v4671, %v4778
      %v4780 = vpop.f32.mrf.mxu0
      %4781 = vmatprep.mubr.bf16.mxu0 0
      %4782 = vmatmul.mubr.bf16.gmra.mxu0 %v4692
      %v4783 = vpop.f32.mrf.mxu0
      %v4784 = vadd.f32 %v4671, %v4783
      %v4785 = vpop.f32.mrf.mxu0
      %v4786 = vpop.f32.mrf.mxu0
      %v4787 = vadd.f32 %v4671, %v4786
      %v4788 = vpop.f32.mrf.mxu0
      %4789 = vmatprep.mubr.bf16.mxu0 0
      %4790 = vmatmul.mubr.bf16.gmra.mxu0 %v4695
      %v4791 = vpop.f32.mrf.mxu0
      %v4792 = vadd.f32 %v4671, %v4791
      %v4793 = vpop.f32.mrf.mxu0
      %v4794 = vpop.f32.mrf.mxu0
      %v4795 = vadd.f32 %v4671, %v4794
      %v4796 = vpop.f32.mrf.mxu0
      %4797 = vmatprep.mubr.bf16.mxu0 0
      %4798 = vmatmul.mubr.bf16.gmra.mxu0 %v4698
      %v4799 = vpop.f32.mrf.mxu0
      %v4800 = vadd.f32 %v4671, %v4799
      %v4801 = vpop.f32.mrf.mxu0
      %v4802 = vpop.f32.mrf.mxu0
      %v4803 = vadd.f32 %v4671, %v4802
      %v4804 = vpop.f32.mrf.mxu0
      %4805 = vmatprep.mubr.bf16.mxu0 0
      %4806 = vmatmul.mubr.bf16.gmra.mxu0 %v4701
      %v4807 = vpop.f32.mrf.mxu0
      %v4808 = vadd.f32 %v4671, %v4807
      %v4809 = vpop.f32.mrf.mxu0
      %v4810 = vpop.f32.mrf.mxu0
      %v4811 = vadd.f32 %v4671, %v4810
      %v4812 = vpop.f32.mrf.mxu0
      %4813 = vmatprep.mubr.bf16.mxu0 0
      %4814 = vmatmul.mubr.bf16.gmra.mxu0 %v4704
      %v4815 = vpop.f32.mrf.mxu0
      %v4816 = vadd.f32 %v4671, %v4815
      %v4817 = vpop.f32.mrf.mxu0
      %v4818 = vpop.f32.mrf.mxu0
      %v4819 = vadd.f32 %v4671, %v4818
      %v4820 = vpop.f32.mrf.mxu0
      %4821 = vmatprep.mubr.bf16.mxu0 0
      %4822 = vmatmul.mubr.bf16.gmra.mxu0 %v4707
      %v4823 = vpop.f32.mrf.mxu0
      %v4824 = vadd.f32 %v4671, %v4823
      %v4825 = vpop.f32.mrf.mxu0
      %v4826 = vpop.f32.mrf.mxu0
      %v4827 = vadd.f32 %v4671, %v4826
      %v4828 = vpop.f32.mrf.mxu0
      %4829 = vmatprep.mubr.bf16.mxu0 0
      %4830 = vmatmul.mubr.bf16.gmra.mxu0 %v4710
      %v4831 = vpop.f32.mrf.mxu0
      %v4832 = vadd.f32 %v4671, %v4831
      %v4833 = vpop.f32.mrf.mxu0
      %v4834 = vpop.f32.mrf.mxu0
      %v4835 = vadd.f32 %v4671, %v4834
      %v4836 = vpop.f32.mrf.mxu0
      %4837 = vmatprep.mubr.bf16.mxu0 0
      %4838 = vmatmul.mubr.bf16.gmra.mxu0 %v4713
      %v4839 = vpop.f32.mrf.mxu0
      %v4840 = vadd.f32 %v4671, %v4839
      %v4841 = vpop.f32.mrf.mxu0
      %v4842 = vpop.f32.mrf.mxu0
      %v4843 = vadd.f32 %v4671, %v4842
      %v4844 = vpop.f32.mrf.mxu0
      %4845 = vmatprep.mubr.bf16.mxu0 0
      %4846 = vmatmul.mubr.bf16.gmra.mxu0 %v4716
      %v4847 = vpop.f32.mrf.mxu0
      %v4848 = vadd.f32 %v4671, %v4847
      %v4849 = vpop.f32.mrf.mxu0
      %v4850 = vpop.f32.mrf.mxu0
      %v4851 = vadd.f32 %v4671, %v4850
      %v4852 = vpop.f32.mrf.mxu0
      %4853 = vmatprep.mubr.bf16.mxu0 0
      %4854 = vmatmul.mubr.bf16.gmra.mxu0 %v4719
      %v4855 = vpop.f32.mrf.mxu0
      %v4856 = vadd.f32 %v4671, %v4855
      %v4857 = vpop.f32.mrf.mxu0
      %v4858 = vpop.f32.mrf.mxu0
      %v4859 = vadd.f32 %v4671, %v4858
      %v4860 = vpop.f32.mrf.mxu0
      %4861 = vmatprep.mubr.bf16.mxu0 0
      %4862 = vmatmul.mubr.bf16.gmra.mxu0 %v4722
      %v4863 = vpop.f32.mrf.mxu0
      %v4864 = vadd.f32 %v4671, %v4863
      %v4865 = vpop.f32.mrf.mxu0
      %v4866 = vpop.f32.mrf.mxu0
      %v4867 = vadd.f32 %v4671, %v4866
      %v4868 = vpop.f32.mrf.mxu0
      %4869 = vmatprep.mubr.bf16.mxu0 0
      %4870 = vmatmul.mubr.bf16.gmra.mxu0 %v4725
      %v4871 = vpop.f32.mrf.mxu0
      %v4872 = vadd.f32 %v4671, %v4871
      %v4873 = vpop.f32.mrf.mxu0
      %v4874 = vpop.f32.mrf.mxu0
      %v4875 = vadd.f32 %v4671, %v4874
      %v4876 = vpop.f32.mrf.mxu0
      %4877 = vmatprep.mubr.bf16.mxu0 0
      %4878 = vmatmul.mubr.bf16.gmra.mxu0 %v4728
      %v4879 = vpop.f32.mrf.mxu0
      %v4880 = vadd.f32 %v4671, %v4879
      %v4881 = vpop.f32.mrf.mxu0
      %v4882 = vpop.f32.mrf.mxu0
      %v4883 = vadd.f32 %v4671, %v4882
      %v4884 = vpop.f32.mrf.mxu0
      %4885 = vmatprep.mubr.bf16.mxu0 0
      %4886 = vmatmul.mubr.bf16.gmra.mxu0 %v4731
      %v4887 = vpop.f32.mrf.mxu0
      %v4888 = vadd.f32 %v4671, %v4887
      %v4889 = vpop.f32.mrf.mxu0
      %v4890 = vpop.f32.mrf.mxu0
      %v4891 = vadd.f32 %v4671, %v4890
      %v4892 = vpop.f32.mrf.mxu0
      %4893 = vdwg.mxu0
      %v4894 = vadd.f32 %v2985, %v4768
      %v4895 = vadd.f32 %v2986, %v4771
      %v4896 = vadd.f32 %v2987, %v4776
      %v4897 = vadd.f32 %v2988, %v4779
      %v4898 = vadd.f32 %v2989, %v4784
      %v4899 = vadd.f32 %v2990, %v4787
      %v4900 = vadd.f32 %v2991, %v4792
      %v4901 = vadd.f32 %v2992, %v4795
      %v4902 = vadd.f32 %v2993, %v4800
      %v4903 = vadd.f32 %v2994, %v4803
      %v4904 = vadd.f32 %v2995, %v4808
      %v4905 = vadd.f32 %v2996, %v4811
      %v4906 = vadd.f32 %v2997, %v4816
      %v4907 = vadd.f32 %v2998, %v4819
      %v4908 = vadd.f32 %v2999, %v4824
      %v4909 = vadd.f32 %v3000, %v4827
      %v4910 = vadd.f32 %v3001, %v4832
      %v4911 = vadd.f32 %v3002, %v4835
      %v4912 = vadd.f32 %v3003, %v4840
      %v4913 = vadd.f32 %v3004, %v4843
      %v4914 = vadd.f32 %v3005, %v4848
      %v4915 = vadd.f32 %v3006, %v4851
      %v4916 = vadd.f32 %v3007, %v4856
      %v4917 = vadd.f32 %v3008, %v4859
      %v4918 = vadd.f32 %v3009, %v4864
      %v4919 = vadd.f32 %v3010, %v4867
      %v4920 = vadd.f32 %v3011, %v4872
      %v4921 = vadd.f32 %v3012, %v4875
      %v4922 = vadd.f32 %v3013, %v4880
      %v4923 = vadd.f32 %v3014, %v4883
      %v4924 = vadd.f32 %v3015, %v4888
      %v4925 = vadd.f32 %v3016, %v4891
      %v4926 = vmul.f32 %v4894, %v4894
      %v4927 = vmul.f32 %v4895, %v4895
      %v4928 = vmul.f32 %v4896, %v4896
      %v4929 = vmul.f32 %v4897, %v4897
      %v4930 = vmul.f32 %v4898, %v4898
      %v4931 = vmul.f32 %v4899, %v4899
      %v4932 = vmul.f32 %v4900, %v4900
      %v4933 = vmul.f32 %v4901, %v4901
      %v4934 = vmul.f32 %v4902, %v4902
      %v4935 = vmul.f32 %v4903, %v4903
      %v4936 = vmul.f32 %v4904, %v4904
      %v4937 = vmul.f32 %v4905, %v4905
      %v4938 = vmul.f32 %v4906, %v4906
      %v4939 = vmul.f32 %v4907, %v4907
      %v4940 = vmul.f32 %v4908, %v4908
      %v4941 = vmul.f32 %v4909, %v4909
      %v4942 = vmul.f32 %v4910, %v4910
      %v4943 = vmul.f32 %v4911, %v4911
      %v4944 = vmul.f32 %v4912, %v4912
      %v4945 = vmul.f32 %v4913, %v4913
      %v4946 = vmul.f32 %v4914, %v4914
      %v4947 = vmul.f32 %v4915, %v4915
      %v4948 = vmul.f32 %v4916, %v4916
      %v4949 = vmul.f32 %v4917, %v4917
      %v4950 = vmul.f32 %v4918, %v4918
      %v4951 = vmul.f32 %v4919, %v4919
      %v4952 = vmul.f32 %v4920, %v4920
      %v4953 = vmul.f32 %v4921, %v4921
      %v4954 = vmul.f32 %v4922, %v4922
      %v4955 = vmul.f32 %v4923, %v4923
      %v4956 = vmul.f32 %v4924, %v4924
      %v4957 = vmul.f32 %v4925, %v4925
      %v4958 = vsel %vm763, %v4926, 0.0
      %4959 = vadd.xlane.f32.xlu0 %v4958
      %v4960 = vpop.xlane.xlu0 %4959
      %v4961 = vsel %vm763, %v4927, 0.0
      %4962 = vadd.xlane.f32.xlu0 %v4961
      %v4963 = vpop.xlane.xlu0 %4962
      %v4964 = vsel %vm763, %v4928, 0.0
      %4965 = vadd.xlane.f32.xlu0 %v4964
      %v4966 = vpop.xlane.xlu0 %4965
      %v4967 = vsel %vm763, %v4929, 0.0
      %4968 = vadd.xlane.f32.xlu0 %v4967
      %v4969 = vpop.xlane.xlu0 %4968
      %v4970 = vsel %vm763, %v4930, 0.0
      %4971 = vadd.xlane.f32.xlu0 %v4970
      %v4972 = vpop.xlane.xlu0 %4971
      %v4973 = vsel %vm763, %v4931, 0.0
      %4974 = vadd.xlane.f32.xlu0 %v4973
      %v4975 = vpop.xlane.xlu0 %4974
      %v4976 = vsel %vm763, %v4932, 0.0
      %4977 = vadd.xlane.f32.xlu0 %v4976
      %v4978 = vpop.xlane.xlu0 %4977
      %v4979 = vsel %vm763, %v4933, 0.0
      %4980 = vadd.xlane.f32.xlu0 %v4979
      %v4981 = vpop.xlane.xlu0 %4980
      %v4982 = vsel %vm763, %v4934, 0.0
      %4983 = vadd.xlane.f32.xlu0 %v4982
      %v4984 = vpop.xlane.xlu0 %4983
      %v4985 = vsel %vm763, %v4935, 0.0
      %4986 = vadd.xlane.f32.xlu0 %v4985
      %v4987 = vpop.xlane.xlu0 %4986
      %v4988 = vsel %vm763, %v4936, 0.0
      %4989 = vadd.xlane.f32.xlu0 %v4988
      %v4990 = vpop.xlane.xlu0 %4989
      %v4991 = vsel %vm763, %v4937, 0.0
      %4992 = vadd.xlane.f32.xlu0 %v4991
      %v4993 = vpop.xlane.xlu0 %4992
      %v4994 = vsel %vm763, %v4938, 0.0
      %4995 = vadd.xlane.f32.xlu0 %v4994
      %v4996 = vpop.xlane.xlu0 %4995
      %v4997 = vsel %vm763, %v4939, 0.0
      %4998 = vadd.xlane.f32.xlu0 %v4997
      %v4999 = vpop.xlane.xlu0 %4998
      %v5000 = vsel %vm763, %v4940, 0.0
      %5001 = vadd.xlane.f32.xlu0 %v5000
      %v5002 = vpop.xlane.xlu0 %5001
      %v5003 = vsel %vm763, %v4941, 0.0
      %5004 = vadd.xlane.f32.xlu0 %v5003
      %v5005 = vpop.xlane.xlu0 %5004
      %v5006 = vsel %vm763, %v4942, 0.0
      %5007 = vadd.xlane.f32.xlu0 %v5006
      %v5008 = vpop.xlane.xlu0 %5007
      %v5009 = vsel %vm763, %v4943, 0.0
      %5010 = vadd.xlane.f32.xlu0 %v5009
      %v5011 = vpop.xlane.xlu0 %5010
      %v5012 = vsel %vm763, %v4944, 0.0
      %5013 = vadd.xlane.f32.xlu0 %v5012
      %v5014 = vpop.xlane.xlu0 %5013
      %v5015 = vsel %vm763, %v4945, 0.0
      %5016 = vadd.xlane.f32.xlu0 %v5015
      %v5017 = vpop.xlane.xlu0 %5016
      %v5018 = vsel %vm763, %v4946, 0.0
      %5019 = vadd.xlane.f32.xlu0 %v5018
      %v5020 = vpop.xlane.xlu0 %5019
      %v5021 = vsel %vm763, %v4947, 0.0
      %5022 = vadd.xlane.f32.xlu0 %v5021
      %v5023 = vpop.xlane.xlu0 %5022
      %v5024 = vsel %vm763, %v4948, 0.0
      %5025 = vadd.xlane.f32.xlu0 %v5024
      %v5026 = vpop.xlane.xlu0 %5025
      %v5027 = vsel %vm763, %v4949, 0.0
      %5028 = vadd.xlane.f32.xlu0 %v5027
      %v5029 = vpop.xlane.xlu0 %5028
      %v5030 = vsel %vm763, %v4950, 0.0
      %5031 = vadd.xlane.f32.xlu0 %v5030
      %v5032 = vpop.xlane.xlu0 %5031
      %v5033 = vsel %vm763, %v4951, 0.0
      %5034 = vadd.xlane.f32.xlu0 %v5033
      %v5035 = vpop.xlane.xlu0 %5034
      %v5036 = vsel %vm763, %v4952, 0.0
      %5037 = vadd.xlane.f32.xlu0 %v5036
      %v5038 = vpop.xlane.xlu0 %5037
      %v5039 = vsel %vm763, %v4953, 0.0
      %5040 = vadd.xlane.f32.xlu0 %v5039
      %v5041 = vpop.xlane.xlu0 %5040
      %v5042 = vsel %vm763, %v4954, 0.0
      %5043 = vadd.xlane.f32.xlu0 %v5042
      %v5044 = vpop.xlane.xlu0 %5043
      %v5045 = vsel %vm763, %v4955, 0.0
      %5046 = vadd.xlane.f32.xlu0 %v5045
      %v5047 = vpop.xlane.xlu0 %5046
      %v5048 = vsel %vm763, %v4956, 0.0
      %5049 = vadd.xlane.f32.xlu0 %v5048
      %v5050 = vpop.xlane.xlu0 %5049
      %v5051 = vsel %vm763, %v4957, 0.0
      %5052 = vadd.xlane.f32.xlu0 %v5051
      %v5053 = vpop.xlane.xlu0 %5052
      %v5054 = vmul.f32 %v4960, %v1729
      %v5055 = vmul.f32 %v4963, %v1729
      %v5056 = vmul.f32 %v4966, %v1729
      %v5057 = vmul.f32 %v4969, %v1729
      %v5058 = vmul.f32 %v4972, %v1729
      %v5059 = vmul.f32 %v4975, %v1729
      %v5060 = vmul.f32 %v4978, %v1729
      %v5061 = vmul.f32 %v4981, %v1729
      %v5062 = vmul.f32 %v4984, %v1729
      %v5063 = vmul.f32 %v4987, %v1729
      %v5064 = vmul.f32 %v4990, %v1729
      %v5065 = vmul.f32 %v4993, %v1729
      %v5066 = vmul.f32 %v4996, %v1729
      %v5067 = vmul.f32 %v4999, %v1729
      %v5068 = vmul.f32 %v5002, %v1729
      %v5069 = vmul.f32 %v5005, %v1729
      %v5070 = vmul.f32 %v5008, %v1729
      %v5071 = vmul.f32 %v5011, %v1729
      %v5072 = vmul.f32 %v5014, %v1729
      %v5073 = vmul.f32 %v5017, %v1729
      %v5074 = vmul.f32 %v5020, %v1729
      %v5075 = vmul.f32 %v5023, %v1729
      %v5076 = vmul.f32 %v5026, %v1729
      %v5077 = vmul.f32 %v5029, %v1729
      %v5078 = vmul.f32 %v5032, %v1729
      %v5079 = vmul.f32 %v5035, %v1729
      %v5080 = vmul.f32 %v5038, %v1729
      %v5081 = vmul.f32 %v5041, %v1729
      %v5082 = vmul.f32 %v5044, %v1729
      %v5083 = vmul.f32 %v5047, %v1729
      %v5084 = vmul.f32 %v5050, %v1729
      %v5085 = vmul.f32 %v5053, %v1729
      %v5086 = vadd.f32 %v5054, 1e-06
      %v5087 = vadd.f32 %v5055, 1e-06
      %v5088 = vadd.f32 %v5056, 1e-06
      %v5089 = vadd.f32 %v5057, 1e-06
      %v5090 = vadd.f32 %v5058, 1e-06
      %v5091 = vadd.f32 %v5059, 1e-06
      %v5092 = vadd.f32 %v5060, 1e-06
      %v5093 = vadd.f32 %v5061, 1e-06
      %v5094 = vadd.f32 %v5062, 1e-06
      %v5095 = vadd.f32 %v5063, 1e-06
      %v5096 = vadd.f32 %v5064, 1e-06
      %v5097 = vadd.f32 %v5065, 1e-06
      %v5098 = vadd.f32 %v5066, 1e-06
      %v5099 = vadd.f32 %v5067, 1e-06
      %v5100 = vadd.f32 %v5068, 1e-06
      %v5101 = vadd.f32 %v5069, 1e-06
      %v5102 = vadd.f32 %v5070, 1e-06
      %v5103 = vadd.f32 %v5071, 1e-06
      %v5104 = vadd.f32 %v5072, 1e-06
      %v5105 = vadd.f32 %v5073, 1e-06
      %v5106 = vadd.f32 %v5074, 1e-06
      %v5107 = vadd.f32 %v5075, 1e-06
      %v5108 = vadd.f32 %v5076, 1e-06
      %v5109 = vadd.f32 %v5077, 1e-06
      %v5110 = vadd.f32 %v5078, 1e-06
      %v5111 = vadd.f32 %v5079, 1e-06
      %v5112 = vadd.f32 %v5080, 1e-06
      %v5113 = vadd.f32 %v5081, 1e-06
      %v5114 = vadd.f32 %v5082, 1e-06
      %v5115 = vadd.f32 %v5083, 1e-06
      %v5116 = vadd.f32 %v5084, 1e-06
      %v5117 = vadd.f32 %v5085, 1e-06
      %v5118 = vrsqrt.pop %v5086
      %v5119 = vrsqrt.pop %v5087
      %v5120 = vrsqrt.pop %v5088
      %v5121 = vrsqrt.pop %v5089
      %v5122 = vrsqrt.pop %v5090
      %v5123 = vrsqrt.pop %v5091
      %v5124 = vrsqrt.pop %v5092
      %v5125 = vrsqrt.pop %v5093
      %v5126 = vrsqrt.pop %v5094
      %v5127 = vrsqrt.pop %v5095
      %v5128 = vrsqrt.pop %v5096
      %v5129 = vrsqrt.pop %v5097
      %v5130 = vrsqrt.pop %v5098
      %v5131 = vrsqrt.pop %v5099
      %v5132 = vrsqrt.pop %v5100
      %v5133 = vrsqrt.pop %v5101
      %v5134 = vrsqrt.pop %v5102
      %v5135 = vrsqrt.pop %v5103
      %v5136 = vrsqrt.pop %v5104
      %v5137 = vrsqrt.pop %v5105
      %v5138 = vrsqrt.pop %v5106
      %v5139 = vrsqrt.pop %v5107
      %v5140 = vrsqrt.pop %v5108
      %v5141 = vrsqrt.pop %v5109
      %v5142 = vrsqrt.pop %v5110
      %v5143 = vrsqrt.pop %v5111
      %v5144 = vrsqrt.pop %v5112
      %v5145 = vrsqrt.pop %v5113
      %v5146 = vrsqrt.pop %v5114
      %v5147 = vrsqrt.pop %v5115
      %v5148 = vrsqrt.pop %v5116
      %v5149 = vrsqrt.pop %v5117
      %v5150 = vmul.f32 %v4894, %v5118
      %v5151 = vmul.f32 %v4895, %v5119
      %v5152 = vmul.f32 %v4896, %v5120
      %v5153 = vmul.f32 %v4897, %v5121
      %v5154 = vmul.f32 %v4898, %v5122
      %v5155 = vmul.f32 %v4899, %v5123
      %v5156 = vmul.f32 %v4900, %v5124
      %v5157 = vmul.f32 %v4901, %v5125
      %v5158 = vmul.f32 %v4902, %v5126
      %v5159 = vmul.f32 %v4903, %v5127
      %v5160 = vmul.f32 %v4904, %v5128
      %v5161 = vmul.f32 %v4905, %v5129
      %v5162 = vmul.f32 %v4906, %v5130
      %v5163 = vmul.f32 %v4907, %v5131
      %v5164 = vmul.f32 %v4908, %v5132
      %v5165 = vmul.f32 %v4909, %v5133
      %v5166 = vmul.f32 %v4910, %v5134
      %v5167 = vmul.f32 %v4911, %v5135
      %v5168 = vmul.f32 %v4912, %v5136
      %v5169 = vmul.f32 %v4913, %v5137
      %v5170 = vmul.f32 %v4914, %v5138
      %v5171 = vmul.f32 %v4915, %v5139
      %v5172 = vmul.f32 %v4916, %v5140
      %v5173 = vmul.f32 %v4917, %v5141
      %v5174 = vmul.f32 %v4918, %v5142
      %v5175 = vmul.f32 %v4919, %v5143
      %v5176 = vmul.f32 %v4920, %v5144
      %v5177 = vmul.f32 %v4921, %v5145
      %v5178 = vmul.f32 %v4922, %v5146
      %v5179 = vmul.f32 %v4923, %v5147
      %v5180 = vmul.f32 %v4924, %v5148
      %v5181 = vmul.f32 %v4925, %v5149
      %s5182 = scalar_lea.vmem %s14, 1
      %v5183 = vld [vmem:[%s5182] sm:$0x1]
      %v5185 = vlaneseq
      %v5186 = vshrl.u32 %v5185, 7
      %v5187 = vsub.s32 0, %v5186
      %v5188 = vrot.slane %v5183, %v5187
      %v5190 = vmul.f32 %v5150, %v5188
      %v5191 = vmul.f32 %v5151, %v5188
      %v5192 = vmul.f32 %v5152, %v5188
      %v5193 = vmul.f32 %v5153, %v5188
      %v5194 = vmul.f32 %v5154, %v5188
      %v5195 = vmul.f32 %v5155, %v5188
      %v5196 = vmul.f32 %v5156, %v5188
      %v5197 = vmul.f32 %v5157, %v5188
      %v5198 = vmul.f32 %v5158, %v5188
      %v5199 = vmul.f32 %v5159, %v5188
      %v5200 = vmul.f32 %v5160, %v5188
      %v5201 = vmul.f32 %v5161, %v5188
      %v5202 = vmul.f32 %v5162, %v5188
      %v5203 = vmul.f32 %v5163, %v5188
      %v5204 = vmul.f32 %v5164, %v5188
      %v5205 = vmul.f32 %v5165, %v5188
      %v5206 = vmul.f32 %v5166, %v5188
      %v5207 = vmul.f32 %v5167, %v5188
      %v5208 = vmul.f32 %v5168, %v5188
      %v5209 = vmul.f32 %v5169, %v5188
      %v5210 = vmul.f32 %v5170, %v5188
      %v5211 = vmul.f32 %v5171, %v5188
      %v5212 = vmul.f32 %v5172, %v5188
      %v5213 = vmul.f32 %v5173, %v5188
      %v5214 = vmul.f32 %v5174, %v5188
      %v5215 = vmul.f32 %v5175, %v5188
      %v5216 = vmul.f32 %v5176, %v5188
      %v5217 = vmul.f32 %v5177, %v5188
      %v5218 = vmul.f32 %v5178, %v5188
      %v5219 = vmul.f32 %v5179, %v5188
      %v5220 = vmul.f32 %v5180, %v5188
      %v5221 = vmul.f32 %v5181, %v5188
      %v5222 = vpack.c.bf16 %v5191, %v5190
      %v5223 = vpack.c.bf16 %v5193, %v5192
      %v5224 = vpack.c.bf16 %v5195, %v5194
      %v5225 = vpack.c.bf16 %v5197, %v5196
      %v5226 = vpack.c.bf16 %v5199, %v5198
      %v5227 = vpack.c.bf16 %v5201, %v5200
      %v5228 = vpack.c.bf16 %v5203, %v5202
      %v5229 = vpack.c.bf16 %v5205, %v5204
      %v5230 = vpack.c.bf16 %v5207, %v5206
      %v5231 = vpack.c.bf16 %v5209, %v5208
      %v5232 = vpack.c.bf16 %v5211, %v5210
      %v5233 = vpack.c.bf16 %v5213, %v5212
      %v5234 = vpack.c.bf16 %v5215, %v5214
      %v5235 = vpack.c.bf16 %v5217, %v5216
      %v5236 = vpack.c.bf16 %v5219, %v5218
      %v5237 = vpack.c.bf16 %v5221, %v5220
      %s5238 = scalar_lea.vmem %s15, 16
      %v5239 = vld [vmem:[%s5238] sm:$0xf]
      %v5240 = vld [vmem:[%s5238 + $0x4] sm:$0xf]
      %v5241 = vld [vmem:[%s5238 + $0x8] sm:$0xf]
      %v5242 = vld [vmem:[%s5238 + $0xc] sm:$0xf]
      %s5243 = scalar_lea.vmem %s16, 1
      %v5244 = vld [vmem:[%s5243] sm:$0x1]
      %v5246 = vlaneseq
      %v5247 = vshrl.u32 %v5246, 7
      %v5248 = vsub.s32 0, %v5247
      %v5249 = vrot.slane %v5244, %v5248
      %v5255 = vunpack.c.l.b16 %v5239
      %v5256 = vunpack.c.l.b16 %v5240
      %v5257 = vunpack.c.l.b16 %v5241
      %v5258 = vunpack.c.l.b16 %v5242
      %v5259 = vpack.c.b16 %v5256, %v5255
      %v5260 = vpack.c.b16 %v5258, %v5257
      %v5264 = vsel %vm763, %v5222, 0
      %v5267 = vsel %vm763, %v5223, 0
      %v5270 = vsel %vm763, %v5224, 0
      %v5273 = vsel %vm763, %v5225, 0
      %v5276 = vsel %vm763, %v5226, 0
      %v5279 = vsel %vm763, %v5227, 0
      %v5282 = vsel %vm763, %v5228, 0
      %v5285 = vsel %vm763, %v5229, 0
      %v5288 = vsel %vm763, %v5230, 0
      %v5291 = vsel %vm763, %v5231, 0
      %v5294 = vsel %vm763, %v5232, 0
      %v5297 = vsel %vm763, %v5233, 0
      %v5300 = vsel %vm763, %v5234, 0
      %v5303 = vsel %vm763, %v5235, 0
      %v5306 = vsel %vm763, %v5236, 0
      %v5309 = vsel %vm763, %v5237, 0
      %5311 = vmatprep.subr.bf16.mxu0 0
      %5312 = vmatpush1.bf16.msra.mxu0 0
      %5313 = vmatprep.subr.bf16.mxu0 0
      %5314 = vmatpush1.bf16.msra.mxu0 0
      %5315 = vmatprep.subr.bf16.mxu0 0
      %5316 = vmatpush1.bf16.msra.mxu0 0
      %5317 = vmatprep.subr.bf16.mxu0 0
      %5318 = vmatpush1.bf16.msra.mxu0 0
      %5319 = vmatprep.subr.bf16.mxu0 0
      %5320 = vmatpush1.bf16.msra.mxu0 0
      %5321 = vmatprep.subr.bf16.mxu0 0
      %5322 = vmatpush1.bf16.msra.mxu0 0
      %5323 = vmatprep.subr.bf16.mxu0 0
      %5324 = vmatpush1.bf16.msra.mxu0 %v5260
      %5325 = vmatprep.subr.bf16.mxu0 0
      %5326 = vmatpush1.bf16.msra.mxu0 %v5259
      %5327 = vmatprep.subr.bf16.mxu0 0
      %5328 = vmatpush2.bf16.msra.mxu0 0
      %5329 = vmatprep.subr.bf16.mxu0 0
      %5330 = vmatpush2.bf16.msra.mxu0 0
      %5331 = vmatprep.subr.bf16.mxu0 0
      %5332 = vmatpush2.bf16.msra.mxu0 0
      %5333 = vmatprep.subr.bf16.mxu0 0
      %5334 = vmatpush2.bf16.msra.mxu0 0
      %5335 = vmatprep.subr.bf16.mxu0 0
      %5336 = vmatpush2.bf16.msra.mxu0 0
      %5337 = vmatprep.subr.bf16.mxu0 0
      %5338 = vmatpush2.bf16.msra.mxu0 0
      %5339 = vmatprep.subr.bf16.mxu0 0
      %5340 = vmatpush2.bf16.msra.mxu0 0
      %5341 = vmatprep.subr.bf16.mxu0 0
      %5342 = vmatpush2.bf16.msra.mxu0 0
      %5343 = vmatprep.mubr.bf16.mxu0 0
      %5344 = vmatmul.mubr.bf16.gmra.mxu0 %v5264
      %v5345 = vpop.f32.mrf.mxu0
      %v5346 = vadd.f32 %v5249, %v5345
      %v5347 = vpop.f32.mrf.mxu0
      %v5348 = vpop.f32.mrf.mxu0
      %v5349 = vadd.f32 %v5249, %v5348
      %v5350 = vpop.f32.mrf.mxu0
      %5351 = vmatprep.mubr.bf16.mxu0 0
      %5352 = vmatmul.mubr.bf16.gmra.mxu0 %v5267
      %v5353 = vpop.f32.mrf.mxu0
      %v5354 = vadd.f32 %v5249, %v5353
      %v5355 = vpop.f32.mrf.mxu0
      %v5356 = vpop.f32.mrf.mxu0
      %v5357 = vadd.f32 %v5249, %v5356
      %v5358 = vpop.f32.mrf.mxu0
      %5359 = vmatprep.mubr.bf16.mxu0 0
      %5360 = vmatmul.mubr.bf16.gmra.mxu0 %v5270
      %v5361 = vpop.f32.mrf.mxu0
      %v5362 = vadd.f32 %v5249, %v5361
      %v5363 = vpop.f32.mrf.mxu0
      %v5364 = vpop.f32.mrf.mxu0
      %v5365 = vadd.f32 %v5249, %v5364
      %v5366 = vpop.f32.mrf.mxu0
      %5367 = vmatprep.mubr.bf16.mxu0 0
      %5368 = vmatmul.mubr.bf16.gmra.mxu0 %v5273
      %v5369 = vpop.f32.mrf.mxu0
      %v5370 = vadd.f32 %v5249, %v5369
      %v5371 = vpop.f32.mrf.mxu0
      %v5372 = vpop.f32.mrf.mxu0
      %v5373 = vadd.f32 %v5249, %v5372
      %v5374 = vpop.f32.mrf.mxu0
      %5375 = vmatprep.mubr.bf16.mxu0 0
      %5376 = vmatmul.mubr.bf16.gmra.mxu0 %v5276
      %v5377 = vpop.f32.mrf.mxu0
      %v5378 = vadd.f32 %v5249, %v5377
      %v5379 = vpop.f32.mrf.mxu0
      %v5380 = vpop.f32.mrf.mxu0
      %v5381 = vadd.f32 %v5249, %v5380
      %v5382 = vpop.f32.mrf.mxu0
      %5383 = vmatprep.mubr.bf16.mxu0 0
      %5384 = vmatmul.mubr.bf16.gmra.mxu0 %v5279
      %v5385 = vpop.f32.mrf.mxu0
      %v5386 = vadd.f32 %v5249, %v5385
      %v5387 = vpop.f32.mrf.mxu0
      %v5388 = vpop.f32.mrf.mxu0
      %v5389 = vadd.f32 %v5249, %v5388
      %v5390 = vpop.f32.mrf.mxu0
      %5391 = vmatprep.mubr.bf16.mxu0 0
      %5392 = vmatmul.mubr.bf16.gmra.mxu0 %v5282
      %v5393 = vpop.f32.mrf.mxu0
      %v5394 = vadd.f32 %v5249, %v5393
      %v5395 = vpop.f32.mrf.mxu0
      %v5396 = vpop.f32.mrf.mxu0
      %v5397 = vadd.f32 %v5249, %v5396
      %v5398 = vpop.f32.mrf.mxu0
      %5399 = vmatprep.mubr.bf16.mxu0 0
      %5400 = vmatmul.mubr.bf16.gmra.mxu0 %v5285
      %v5401 = vpop.f32.mrf.mxu0
      %v5402 = vadd.f32 %v5249, %v5401
      %v5403 = vpop.f32.mrf.mxu0
      %v5404 = vpop.f32.mrf.mxu0
      %v5405 = vadd.f32 %v5249, %v5404
      %v5406 = vpop.f32.mrf.mxu0
      %5407 = vmatprep.mubr.bf16.mxu0 0
      %5408 = vmatmul.mubr.bf16.gmra.mxu0 %v5288
      %v5409 = vpop.f32.mrf.mxu0
      %v5410 = vadd.f32 %v5249, %v5409
      %v5411 = vpop.f32.mrf.mxu0
      %v5412 = vpop.f32.mrf.mxu0
      %v5413 = vadd.f32 %v5249, %v5412
      %v5414 = vpop.f32.mrf.mxu0
      %5415 = vmatprep.mubr.bf16.mxu0 0
      %5416 = vmatmul.mubr.bf16.gmra.mxu0 %v5291
      %v5417 = vpop.f32.mrf.mxu0
      %v5418 = vadd.f32 %v5249, %v5417
      %v5419 = vpop.f32.mrf.mxu0
      %v5420 = vpop.f32.mrf.mxu0
      %v5421 = vadd.f32 %v5249, %v5420
      %v5422 = vpop.f32.mrf.mxu0
      %5423 = vmatprep.mubr.bf16.mxu0 0
      %5424 = vmatmul.mubr.bf16.gmra.mxu0 %v5294
      %v5425 = vpop.f32.mrf.mxu0
      %v5426 = vadd.f32 %v5249, %v5425
      %v5427 = vpop.f32.mrf.mxu0
      %v5428 = vpop.f32.mrf.mxu0
      %v5429 = vadd.f32 %v5249, %v5428
      %v5430 = vpop.f32.mrf.mxu0
      %5431 = vmatprep.mubr.bf16.mxu0 0
      %5432 = vmatmul.mubr.bf16.gmra.mxu0 %v5297
      %v5433 = vpop.f32.mrf.mxu0
      %v5434 = vadd.f32 %v5249, %v5433
      %v5435 = vpop.f32.mrf.mxu0
      %v5436 = vpop.f32.mrf.mxu0
      %v5437 = vadd.f32 %v5249, %v5436
      %v5438 = vpop.f32.mrf.mxu0
      %5439 = vmatprep.mubr.bf16.mxu0 0
      %5440 = vmatmul.mubr.bf16.gmra.mxu0 %v5300
      %v5441 = vpop.f32.mrf.mxu0
      %v5442 = vadd.f32 %v5249, %v5441
      %v5443 = vpop.f32.mrf.mxu0
      %v5444 = vpop.f32.mrf.mxu0
      %v5445 = vadd.f32 %v5249, %v5444
      %v5446 = vpop.f32.mrf.mxu0
      %5447 = vmatprep.mubr.bf16.mxu0 0
      %5448 = vmatmul.mubr.bf16.gmra.mxu0 %v5303
      %v5449 = vpop.f32.mrf.mxu0
      %v5450 = vadd.f32 %v5249, %v5449
      %v5451 = vpop.f32.mrf.mxu0
      %v5452 = vpop.f32.mrf.mxu0
      %v5453 = vadd.f32 %v5249, %v5452
      %v5454 = vpop.f32.mrf.mxu0
      %5455 = vmatprep.mubr.bf16.mxu0 0
      %5456 = vmatmul.mubr.bf16.gmra.mxu0 %v5306
      %v5457 = vpop.f32.mrf.mxu0
      %v5458 = vadd.f32 %v5249, %v5457
      %v5459 = vpop.f32.mrf.mxu0
      %v5460 = vpop.f32.mrf.mxu0
      %v5461 = vadd.f32 %v5249, %v5460
      %v5462 = vpop.f32.mrf.mxu0
      %5463 = vmatprep.mubr.bf16.mxu0 0
      %5464 = vmatmul.mubr.bf16.gmra.mxu0 %v5309
      %v5465 = vpop.f32.mrf.mxu0
      %v5466 = vadd.f32 %v5249, %v5465
      %v5467 = vpop.f32.mrf.mxu0
      %v5468 = vpop.f32.mrf.mxu0
      %v5469 = vadd.f32 %v5249, %v5468
      %v5470 = vpop.f32.mrf.mxu0
      %5471 = vdwg.mxu0
      %v5472 = vpack.c.bf16 %v5349, %v5346
      %v5473 = vpack.c.bf16 %v5357, %v5354
      %v5474 = vpack.c.bf16 %v5365, %v5362
      %v5475 = vpack.c.bf16 %v5373, %v5370
      %v5476 = vpack.c.bf16 %v5381, %v5378
      %v5477 = vpack.c.bf16 %v5389, %v5386
      %v5478 = vpack.c.bf16 %v5397, %v5394
      %v5479 = vpack.c.bf16 %v5405, %v5402
      %v5480 = vpack.c.bf16 %v5413, %v5410
      %v5481 = vpack.c.bf16 %v5421, %v5418
      %v5482 = vpack.c.bf16 %v5429, %v5426
      %v5483 = vpack.c.bf16 %v5437, %v5434
      %v5484 = vpack.c.bf16 %v5445, %v5442
      %v5485 = vpack.c.bf16 %v5453, %v5450
      %v5486 = vpack.c.bf16 %v5461, %v5458
      %v5487 = vpack.c.bf16 %v5469, %v5466
      %s5488 = scalar_lea.vmem %s687, 16
      %v5489 = vld [vmem:[%s5488] sm:$0xf]
      %v5490 = vld [vmem:[%s5488 + $0x4] sm:$0xf]
      %v5491 = vld [vmem:[%s5488 + $0x8] sm:$0xf]
      %v5492 = vld [vmem:[%s5488 + $0xc] sm:$0xf]
      %v5497 = vunpack.c.l.b16 %v5489
      %v5498 = vunpack.c.l.b16 %v5490
      %v5499 = vunpack.c.l.b16 %v5491
      %v5500 = vunpack.c.l.b16 %v5492
      %v5501 = vpack.c.b16 %v5498, %v5497
      %v5502 = vpack.c.b16 %v5500, %v5499
      %v5506 = vsel %vm763, %v5472, 0
      %v5509 = vsel %vm763, %v5473, 0
      %v5512 = vsel %vm763, %v5474, 0
      %v5515 = vsel %vm763, %v5475, 0
      %v5518 = vsel %vm763, %v5476, 0
      %v5521 = vsel %vm763, %v5477, 0
      %v5524 = vsel %vm763, %v5478, 0
      %v5527 = vsel %vm763, %v5479, 0
      %v5530 = vsel %vm763, %v5480, 0
      %v5533 = vsel %vm763, %v5481, 0
      %v5536 = vsel %vm763, %v5482, 0
      %v5539 = vsel %vm763, %v5483, 0
      %v5542 = vsel %vm763, %v5484, 0
      %v5545 = vsel %vm763, %v5485, 0
      %v5548 = vsel %vm763, %v5486, 0
      %v5551 = vsel %vm763, %v5487, 0
      %5553 = vmatprep.subr.bf16.mxu0 0
      %5554 = vmatpush1.bf16.msra.mxu0 0
      %5555 = vmatprep.subr.bf16.mxu0 0
      %5556 = vmatpush1.bf16.msra.mxu0 0
      %5557 = vmatprep.subr.bf16.mxu0 0
      %5558 = vmatpush1.bf16.msra.mxu0 0
      %5559 = vmatprep.subr.bf16.mxu0 0
      %5560 = vmatpush1.bf16.msra.mxu0 0
      %5561 = vmatprep.subr.bf16.mxu0 0
      %5562 = vmatpush1.bf16.msra.mxu0 0
      %5563 = vmatprep.subr.bf16.mxu0 0
      %5564 = vmatpush1.bf16.msra.mxu0 0
      %5565 = vmatprep.subr.bf16.mxu0 0
      %5566 = vmatpush1.bf16.msra.mxu0 %v5502
      %5567 = vmatprep.subr.bf16.mxu0 0
      %5568 = vmatpush1.bf16.msra.mxu0 %v5501
      %5569 = vmatprep.subr.bf16.mxu0 0
      %5570 = vmatpush2.bf16.msra.mxu0 0
      %5571 = vmatprep.subr.bf16.mxu0 0
      %5572 = vmatpush2.bf16.msra.mxu0 0
      %5573 = vmatprep.subr.bf16.mxu0 0
      %5574 = vmatpush2.bf16.msra.mxu0 0
      %5575 = vmatprep.subr.bf16.mxu0 0
      %5576 = vmatpush2.bf16.msra.mxu0 0
      %5577 = vmatprep.subr.bf16.mxu0 0
      %5578 = vmatpush2.bf16.msra.mxu0 0
      %5579 = vmatprep.subr.bf16.mxu0 0
      %5580 = vmatpush2.bf16.msra.mxu0 0
      %5581 = vmatprep.subr.bf16.mxu0 0
      %5582 = vmatpush2.bf16.msra.mxu0 0
      %5583 = vmatprep.subr.bf16.mxu0 0
      %5584 = vmatpush2.bf16.msra.mxu0 0
      %5585 = vmatprep.mubr.bf16.mxu0 0
      %5586 = vmatmul.mubr.bf16.gmra.mxu0 %v5506
      %v5587 = vpop.f32.mrf.mxu0
      %v5588 = vadd.f32 0.0, %v5587
      %v5589 = vpop.f32.mrf.mxu0
      %v5590 = vpop.f32.mrf.mxu0
      %v5591 = vadd.f32 0.0, %v5590
      %v5592 = vpop.f32.mrf.mxu0
      %5593 = vmatprep.mubr.bf16.mxu0 0
      %5594 = vmatmul.mubr.bf16.gmra.mxu0 %v5509
      %v5595 = vpop.f32.mrf.mxu0
      %v5596 = vadd.f32 0.0, %v5595
      %v5597 = vpop.f32.mrf.mxu0
      %v5598 = vpop.f32.mrf.mxu0
      %v5599 = vadd.f32 0.0, %v5598
      %v5600 = vpop.f32.mrf.mxu0
      %5601 = vmatprep.mubr.bf16.mxu0 0
      %5602 = vmatmul.mubr.bf16.gmra.mxu0 %v5512
      %v5603 = vpop.f32.mrf.mxu0
      %v5604 = vadd.f32 0.0, %v5603
      %v5605 = vpop.f32.mrf.mxu0
      %v5606 = vpop.f32.mrf.mxu0
      %v5607 = vadd.f32 0.0, %v5606
      %v5608 = vpop.f32.mrf.mxu0
      %5609 = vmatprep.mubr.bf16.mxu0 0
      %5610 = vmatmul.mubr.bf16.gmra.mxu0 %v5515
      %v5611 = vpop.f32.mrf.mxu0
      %v5612 = vadd.f32 0.0, %v5611
      %v5613 = vpop.f32.mrf.mxu0
      %v5614 = vpop.f32.mrf.mxu0
      %v5615 = vadd.f32 0.0, %v5614
      %v5616 = vpop.f32.mrf.mxu0
      %5617 = vmatprep.mubr.bf16.mxu0 0
      %5618 = vmatmul.mubr.bf16.gmra.mxu0 %v5518
      %v5619 = vpop.f32.mrf.mxu0
      %v5620 = vadd.f32 0.0, %v5619
      %v5621 = vpop.f32.mrf.mxu0
      %v5622 = vpop.f32.mrf.mxu0
      %v5623 = vadd.f32 0.0, %v5622
      %v5624 = vpop.f32.mrf.mxu0
      %5625 = vmatprep.mubr.bf16.mxu0 0
      %5626 = vmatmul.mubr.bf16.gmra.mxu0 %v5521
      %v5627 = vpop.f32.mrf.mxu0
      %v5628 = vadd.f32 0.0, %v5627
      %v5629 = vpop.f32.mrf.mxu0
      %v5630 = vpop.f32.mrf.mxu0
      %v5631 = vadd.f32 0.0, %v5630
      %v5632 = vpop.f32.mrf.mxu0
      %5633 = vmatprep.mubr.bf16.mxu0 0
      %5634 = vmatmul.mubr.bf16.gmra.mxu0 %v5524
      %v5635 = vpop.f32.mrf.mxu0
      %v5636 = vadd.f32 0.0, %v5635
      %v5637 = vpop.f32.mrf.mxu0
      %v5638 = vpop.f32.mrf.mxu0
      %v5639 = vadd.f32 0.0, %v5638
      %v5640 = vpop.f32.mrf.mxu0
      %5641 = vmatprep.mubr.bf16.mxu0 0
      %5642 = vmatmul.mubr.bf16.gmra.mxu0 %v5527
      %v5643 = vpop.f32.mrf.mxu0
      %v5644 = vadd.f32 0.0, %v5643
      %v5645 = vpop.f32.mrf.mxu0
      %v5646 = vpop.f32.mrf.mxu0
      %v5647 = vadd.f32 0.0, %v5646
      %v5648 = vpop.f32.mrf.mxu0
      %5649 = vmatprep.mubr.bf16.mxu0 0
      %5650 = vmatmul.mubr.bf16.gmra.mxu0 %v5530
      %v5651 = vpop.f32.mrf.mxu0
      %v5652 = vadd.f32 0.0, %v5651
      %v5653 = vpop.f32.mrf.mxu0
      %v5654 = vpop.f32.mrf.mxu0
      %v5655 = vadd.f32 0.0, %v5654
      %v5656 = vpop.f32.mrf.mxu0
      %5657 = vmatprep.mubr.bf16.mxu0 0
      %5658 = vmatmul.mubr.bf16.gmra.mxu0 %v5533
      %v5659 = vpop.f32.mrf.mxu0
      %v5660 = vadd.f32 0.0, %v5659
      %v5661 = vpop.f32.mrf.mxu0
      %v5662 = vpop.f32.mrf.mxu0
      %v5663 = vadd.f32 0.0, %v5662
      %v5664 = vpop.f32.mrf.mxu0
      %5665 = vmatprep.mubr.bf16.mxu0 0
      %5666 = vmatmul.mubr.bf16.gmra.mxu0 %v5536
      %v5667 = vpop.f32.mrf.mxu0
      %v5668 = vadd.f32 0.0, %v5667
      %v5669 = vpop.f32.mrf.mxu0
      %v5670 = vpop.f32.mrf.mxu0
      %v5671 = vadd.f32 0.0, %v5670
      %v5672 = vpop.f32.mrf.mxu0
      %5673 = vmatprep.mubr.bf16.mxu0 0
      %5674 = vmatmul.mubr.bf16.gmra.mxu0 %v5539
      %v5675 = vpop.f32.mrf.mxu0
      %v5676 = vadd.f32 0.0, %v5675
      %v5677 = vpop.f32.mrf.mxu0
      %v5678 = vpop.f32.mrf.mxu0
      %v5679 = vadd.f32 0.0, %v5678
      %v5680 = vpop.f32.mrf.mxu0
      %5681 = vmatprep.mubr.bf16.mxu0 0
      %5682 = vmatmul.mubr.bf16.gmra.mxu0 %v5542
      %v5683 = vpop.f32.mrf.mxu0
      %v5684 = vadd.f32 0.0, %v5683
      %v5685 = vpop.f32.mrf.mxu0
      %v5686 = vpop.f32.mrf.mxu0
      %v5687 = vadd.f32 0.0, %v5686
      %v5688 = vpop.f32.mrf.mxu0
      %5689 = vmatprep.mubr.bf16.mxu0 0
      %5690 = vmatmul.mubr.bf16.gmra.mxu0 %v5545
      %v5691 = vpop.f32.mrf.mxu0
      %v5692 = vadd.f32 0.0, %v5691
      %v5693 = vpop.f32.mrf.mxu0
      %v5694 = vpop.f32.mrf.mxu0
      %v5695 = vadd.f32 0.0, %v5694
      %v5696 = vpop.f32.mrf.mxu0
      %5697 = vmatprep.mubr.bf16.mxu0 0
      %5698 = vmatmul.mubr.bf16.gmra.mxu0 %v5548
      %v5699 = vpop.f32.mrf.mxu0
      %v5700 = vadd.f32 0.0, %v5699
      %v5701 = vpop.f32.mrf.mxu0
      %v5702 = vpop.f32.mrf.mxu0
      %v5703 = vadd.f32 0.0, %v5702
      %v5704 = vpop.f32.mrf.mxu0
      %5705 = vmatprep.mubr.bf16.mxu0 0
      %5706 = vmatmul.mubr.bf16.gmra.mxu0 %v5551
      %v5707 = vpop.f32.mrf.mxu0
      %v5708 = vadd.f32 0.0, %v5707
      %v5709 = vpop.f32.mrf.mxu0
      %v5710 = vpop.f32.mrf.mxu0
      %v5711 = vadd.f32 0.0, %v5710
      %v5712 = vpop.f32.mrf.mxu0
      %5713 = vdwg.mxu0
      %v5714 = vmul.f32 %v5588, 0.25
      %v5715 = vmul.f32 %v5591, 0.25
      %v5716 = vmul.f32 %v5596, 0.25
      %v5717 = vmul.f32 %v5599, 0.25
      %v5718 = vmul.f32 %v5604, 0.25
      %v5719 = vmul.f32 %v5607, 0.25
      %v5720 = vmul.f32 %v5612, 0.25
      %v5721 = vmul.f32 %v5615, 0.25
      %v5722 = vmul.f32 %v5620, 0.25
      %v5723 = vmul.f32 %v5623, 0.25
      %v5724 = vmul.f32 %v5628, 0.25
      %v5725 = vmul.f32 %v5631, 0.25
      %v5726 = vmul.f32 %v5636, 0.25
      %v5727 = vmul.f32 %v5639, 0.25
      %v5728 = vmul.f32 %v5644, 0.25
      %v5729 = vmul.f32 %v5647, 0.25
      %v5730 = vmul.f32 %v5652, 0.25
      %v5731 = vmul.f32 %v5655, 0.25
      %v5732 = vmul.f32 %v5660, 0.25
      %v5733 = vmul.f32 %v5663, 0.25
      %v5734 = vmul.f32 %v5668, 0.25
      %v5735 = vmul.f32 %v5671, 0.25
      %v5736 = vmul.f32 %v5676, 0.25
      %v5737 = vmul.f32 %v5679, 0.25
      %v5738 = vmul.f32 %v5684, 0.25
      %v5739 = vmul.f32 %v5687, 0.25
      %v5740 = vmul.f32 %v5692, 0.25
      %v5741 = vmul.f32 %v5695, 0.25
      %v5742 = vmul.f32 %v5700, 0.25
      %v5743 = vmul.f32 %v5703, 0.25
      %v5744 = vmul.f32 %v5708, 0.25
      %v5745 = vmul.f32 %v5711, 0.25
      %v5746 = vsel %vm3833, %v5714, -inf
      %5747 = vmax.xlane.f32.xlu0 %v5746
      %v5748 = vpop.xlane.xlu0 %5747
      %v5749 = vsel %vm3833, %v5715, -inf
      %5750 = vmax.xlane.f32.xlu0 %v5749
      %v5751 = vpop.xlane.xlu0 %5750
      %v5752 = vsel %vm3833, %v5716, -inf
      %5753 = vmax.xlane.f32.xlu0 %v5752
      %v5754 = vpop.xlane.xlu0 %5753
      %v5755 = vsel %vm3833, %v5717, -inf
      %5756 = vmax.xlane.f32.xlu0 %v5755
      %v5757 = vpop.xlane.xlu0 %5756
      %v5758 = vsel %vm3833, %v5718, -inf
      %5759 = vmax.xlane.f32.xlu0 %v5758
      %v5760 = vpop.xlane.xlu0 %5759
      %v5761 = vsel %vm3833, %v5719, -inf
      %5762 = vmax.xlane.f32.xlu0 %v5761
      %v5763 = vpop.xlane.xlu0 %5762
      %v5764 = vsel %vm3833, %v5720, -inf
      %5765 = vmax.xlane.f32.xlu0 %v5764
      %v5766 = vpop.xlane.xlu0 %5765
      %v5767 = vsel %vm3833, %v5721, -inf
      %5768 = vmax.xlane.f32.xlu0 %v5767
      %v5769 = vpop.xlane.xlu0 %5768
      %v5770 = vsel %vm3833, %v5722, -inf
      %5771 = vmax.xlane.f32.xlu0 %v5770
      %v5772 = vpop.xlane.xlu0 %5771
      %v5773 = vsel %vm3833, %v5723, -inf
      %5774 = vmax.xlane.f32.xlu0 %v5773
      %v5775 = vpop.xlane.xlu0 %5774
      %v5776 = vsel %vm3833, %v5724, -inf
      %5777 = vmax.xlane.f32.xlu0 %v5776
      %v5778 = vpop.xlane.xlu0 %5777
      %v5779 = vsel %vm3833, %v5725, -inf
      %5780 = vmax.xlane.f32.xlu0 %v5779
      %v5781 = vpop.xlane.xlu0 %5780
      %v5782 = vsel %vm3833, %v5726, -inf
      %5783 = vmax.xlane.f32.xlu0 %v5782
      %v5784 = vpop.xlane.xlu0 %5783
      %v5785 = vsel %vm3833, %v5727, -inf
      %5786 = vmax.xlane.f32.xlu0 %v5785
      %v5787 = vpop.xlane.xlu0 %5786
      %v5788 = vsel %vm3833, %v5728, -inf
      %5789 = vmax.xlane.f32.xlu0 %v5788
      %v5790 = vpop.xlane.xlu0 %5789
      %v5791 = vsel %vm3833, %v5729, -inf
      %5792 = vmax.xlane.f32.xlu0 %v5791
      %v5793 = vpop.xlane.xlu0 %5792
      %v5794 = vsel %vm3833, %v5730, -inf
      %5795 = vmax.xlane.f32.xlu0 %v5794
      %v5796 = vpop.xlane.xlu0 %5795
      %v5797 = vsel %vm3833, %v5731, -inf
      %5798 = vmax.xlane.f32.xlu0 %v5797
      %v5799 = vpop.xlane.xlu0 %5798
      %v5800 = vsel %vm3833, %v5732, -inf
      %5801 = vmax.xlane.f32.xlu0 %v5800
      %v5802 = vpop.xlane.xlu0 %5801
      %v5803 = vsel %vm3833, %v5733, -inf
      %5804 = vmax.xlane.f32.xlu0 %v5803
      %v5805 = vpop.xlane.xlu0 %5804
      %v5806 = vsel %vm3833, %v5734, -inf
      %5807 = vmax.xlane.f32.xlu0 %v5806
      %v5808 = vpop.xlane.xlu0 %5807
      %v5809 = vsel %vm3833, %v5735, -inf
      %5810 = vmax.xlane.f32.xlu0 %v5809
      %v5811 = vpop.xlane.xlu0 %5810
      %v5812 = vsel %vm3833, %v5736, -inf
      %5813 = vmax.xlane.f32.xlu0 %v5812
      %v5814 = vpop.xlane.xlu0 %5813
      %v5815 = vsel %vm3833, %v5737, -inf
      %5816 = vmax.xlane.f32.xlu0 %v5815
      %v5817 = vpop.xlane.xlu0 %5816
      %v5818 = vsel %vm3833, %v5738, -inf
      %5819 = vmax.xlane.f32.xlu0 %v5818
      %v5820 = vpop.xlane.xlu0 %5819
      %v5821 = vsel %vm3833, %v5739, -inf
      %5822 = vmax.xlane.f32.xlu0 %v5821
      %v5823 = vpop.xlane.xlu0 %5822
      %v5824 = vsel %vm3833, %v5740, -inf
      %5825 = vmax.xlane.f32.xlu0 %v5824
      %v5826 = vpop.xlane.xlu0 %5825
      %v5827 = vsel %vm3833, %v5741, -inf
      %5828 = vmax.xlane.f32.xlu0 %v5827
      %v5829 = vpop.xlane.xlu0 %5828
      %v5830 = vsel %vm3833, %v5742, -inf
      %5831 = vmax.xlane.f32.xlu0 %v5830
      %v5832 = vpop.xlane.xlu0 %5831
      %v5833 = vsel %vm3833, %v5743, -inf
      %5834 = vmax.xlane.f32.xlu0 %v5833
      %v5835 = vpop.xlane.xlu0 %5834
      %v5836 = vsel %vm3833, %v5744, -inf
      %5837 = vmax.xlane.f32.xlu0 %v5836
      %v5838 = vpop.xlane.xlu0 %5837
      %v5839 = vsel %vm3833, %v5745, -inf
      %5840 = vmax.xlane.f32.xlu0 %v5839
      %v5841 = vpop.xlane.xlu0 %5840
      %v5842 = vsub.f32 %v5714, %v5748
      %v5843 = vsub.f32 %v5715, %v5751
      %v5844 = vsub.f32 %v5716, %v5754
      %v5845 = vsub.f32 %v5717, %v5757
      %v5846 = vsub.f32 %v5718, %v5760
      %v5847 = vsub.f32 %v5719, %v5763
      %v5848 = vsub.f32 %v5720, %v5766
      %v5849 = vsub.f32 %v5721, %v5769
      %v5850 = vsub.f32 %v5722, %v5772
      %v5851 = vsub.f32 %v5723, %v5775
      %v5852 = vsub.f32 %v5724, %v5778
      %v5853 = vsub.f32 %v5725, %v5781
      %v5854 = vsub.f32 %v5726, %v5784
      %v5855 = vsub.f32 %v5727, %v5787
      %v5856 = vsub.f32 %v5728, %v5790
      %v5857 = vsub.f32 %v5729, %v5793
      %v5858 = vsub.f32 %v5730, %v5796
      %v5859 = vsub.f32 %v5731, %v5799
      %v5860 = vsub.f32 %v5732, %v5802
      %v5861 = vsub.f32 %v5733, %v5805
      %v5862 = vsub.f32 %v5734, %v5808
      %v5863 = vsub.f32 %v5735, %v5811
      %v5864 = vsub.f32 %v5736, %v5814
      %v5865 = vsub.f32 %v5737, %v5817
      %v5866 = vsub.f32 %v5738, %v5820
      %v5867 = vsub.f32 %v5739, %v5823
      %v5868 = vsub.f32 %v5740, %v5826
      %v5869 = vsub.f32 %v5741, %v5829
      %v5870 = vsub.f32 %v5742, %v5832
      %v5871 = vsub.f32 %v5743, %v5835
      %v5872 = vsub.f32 %v5744, %v5838
      %v5873 = vsub.f32 %v5745, %v5841
      %v5874 = vmul.f32 %v5842, 1.442695
      %v5875 = vpow.pop %v5874
      %v5876 = vmul.f32 %v5843, 1.442695
      %v5877 = vpow.pop %v5876
      %v5878 = vmul.f32 %v5844, 1.442695
      %v5879 = vpow.pop %v5878
      %v5880 = vmul.f32 %v5845, 1.442695
      %v5881 = vpow.pop %v5880
      %v5882 = vmul.f32 %v5846, 1.442695
      %v5883 = vpow.pop %v5882
      %v5884 = vmul.f32 %v5847, 1.442695
      %v5885 = vpow.pop %v5884
      %v5886 = vmul.f32 %v5848, 1.442695
      %v5887 = vpow.pop %v5886
      %v5888 = vmul.f32 %v5849, 1.442695
      %v5889 = vpow.pop %v5888
      %v5890 = vmul.f32 %v5850, 1.442695
      %v5891 = vpow.pop %v5890
      %v5892 = vmul.f32 %v5851, 1.442695
      %v5893 = vpow.pop %v5892
      %v5894 = vmul.f32 %v5852, 1.442695
      %v5895 = vpow.pop %v5894
      %v5896 = vmul.f32 %v5853, 1.442695
      %v5897 = vpow.pop %v5896
      %v5898 = vmul.f32 %v5854, 1.442695
      %v5899 = vpow.pop %v5898
      %v5900 = vmul.f32 %v5855, 1.442695
      %v5901 = vpow.pop %v5900
      %v5902 = vmul.f32 %v5856, 1.442695
      %v5903 = vpow.pop %v5902
      %v5904 = vmul.f32 %v5857, 1.442695
      %v5905 = vpow.pop %v5904
      %v5906 = vmul.f32 %v5858, 1.442695
      %v5907 = vpow.pop %v5906
      %v5908 = vmul.f32 %v5859, 1.442695
      %v5909 = vpow.pop %v5908
      %v5910 = vmul.f32 %v5860, 1.442695
      %v5911 = vpow.pop %v5910
      %v5912 = vmul.f32 %v5861, 1.442695
      %v5913 = vpow.pop %v5912
      %v5914 = vmul.f32 %v5862, 1.442695
      %v5915 = vpow.pop %v5914
      %v5916 = vmul.f32 %v5863, 1.442695
      %v5917 = vpow.pop %v5916
      %v5918 = vmul.f32 %v5864, 1.442695
      %v5919 = vpow.pop %v5918
      %v5920 = vmul.f32 %v5865, 1.442695
      %v5921 = vpow.pop %v5920
      %v5922 = vmul.f32 %v5866, 1.442695
      %v5923 = vpow.pop %v5922
      %v5924 = vmul.f32 %v5867, 1.442695
      %v5925 = vpow.pop %v5924
      %v5926 = vmul.f32 %v5868, 1.442695
      %v5927 = vpow.pop %v5926
      %v5928 = vmul.f32 %v5869, 1.442695
      %v5929 = vpow.pop %v5928
      %v5930 = vmul.f32 %v5870, 1.442695
      %v5931 = vpow.pop %v5930
      %v5932 = vmul.f32 %v5871, 1.442695
      %v5933 = vpow.pop %v5932
      %v5934 = vmul.f32 %v5872, 1.442695
      %v5935 = vpow.pop %v5934
      %v5936 = vmul.f32 %v5873, 1.442695
      %v5937 = vpow.pop %v5936
      %v5939 = vsel %vm3833, %v5875, 0
      %v5942 = vsel %vm3833, %v5877, 0
      %v5945 = vsel %vm3833, %v5879, 0
      %v5948 = vsel %vm3833, %v5881, 0
      %v5951 = vsel %vm3833, %v5883, 0
      %v5954 = vsel %vm3833, %v5885, 0
      %v5957 = vsel %vm3833, %v5887, 0
      %v5960 = vsel %vm3833, %v5889, 0
      %v5963 = vsel %vm3833, %v5891, 0
      %v5966 = vsel %vm3833, %v5893, 0
      %v5969 = vsel %vm3833, %v5895, 0
      %v5972 = vsel %vm3833, %v5897, 0
      %v5975 = vsel %vm3833, %v5899, 0
      %v5978 = vsel %vm3833, %v5901, 0
      %v5981 = vsel %vm3833, %v5903, 0
      %v5984 = vsel %vm3833, %v5905, 0
      %v5987 = vsel %vm3833, %v5907, 0
      %v5990 = vsel %vm3833, %v5909, 0
      %v5993 = vsel %vm3833, %v5911, 0
      %v5996 = vsel %vm3833, %v5913, 0
      %v5999 = vsel %vm3833, %v5915, 0
      %v6002 = vsel %vm3833, %v5917, 0
      %v6005 = vsel %vm3833, %v5919, 0
      %v6008 = vsel %vm3833, %v5921, 0
      %v6011 = vsel %vm3833, %v5923, 0
      %v6014 = vsel %vm3833, %v5925, 0
      %v6017 = vsel %vm3833, %v5927, 0
      %v6020 = vsel %vm3833, %v5929, 0
      %v6023 = vsel %vm3833, %v5931, 0
      %v6026 = vsel %vm3833, %v5933, 0
      %v6029 = vsel %vm3833, %v5935, 0
      %v6032 = vsel %vm3833, %v5937, 0
      %6034 = vmatprep.subr.mxu0 0.0
      %6035 = vmatpush1.msra.mxu0 0.0
      %6036 = vmatprep.subr.mxu0 0.0
      %6037 = vmatpush1.msra.mxu0 0.0
      %6038 = vmatprep.subr.mxu0 0.0
      %6039 = vmatpush1.msra.mxu0 0.0
      %6040 = vmatprep.subr.mxu0 0.0
      %6041 = vmatpush1.msra.mxu0 0.0
      %6042 = vmatprep.subr.mxu0 0.0
      %6043 = vmatpush1.msra.mxu0 0.0
      %6044 = vmatprep.subr.mxu0 0.0
      %6045 = vmatpush1.msra.mxu0 0.0
      %6046 = vmatprep.subr.mxu0 0.0
      %6047 = vmatpush1.msra.mxu0 0.0
      %6048 = vmatprep.subr.mxu0 0.0
      %6049 = vmatpush1.msra.mxu0 0.0
      %6050 = vmatprep.subr.mxu0 0.0
      %6051 = vmatpush1.msra.mxu0 0.0
      %6052 = vmatprep.subr.mxu0 0.0
      %6053 = vmatpush1.msra.mxu0 0.0
      %6054 = vmatprep.subr.mxu0 0.0
      %6055 = vmatpush1.msra.mxu0 0.0
      %6056 = vmatprep.subr.mxu0 0.0
      %6057 = vmatpush1.msra.mxu0 0.0
      %6058 = vmatprep.subr.mxu0 0.0
      %6059 = vmatpush1.msra.mxu0 0.0
      %6060 = vmatprep.subr.mxu0 0.0
      %6061 = vmatpush1.msra.mxu0 0.0
      %6062 = vmatprep.subr.mxu0 0.0
      %6063 = vmatpush1.msra.mxu0 %v4027
      %6064 = vmatprep.subr.mxu0 0.0
      %6065 = vmatpush1.msra.mxu0 %v4026
      %6066 = vmatprep.subr.mxu0 0.0
      %6067 = vmatpush2.msra.mxu0 0.0
      %6068 = vmatprep.subr.mxu0 0.0
      %6069 = vmatpush2.msra.mxu0 0.0
      %6070 = vmatprep.subr.mxu0 0.0
      %6071 = vmatpush2.msra.mxu0 0.0
      %6072 = vmatprep.subr.mxu0 0.0
      %6073 = vmatpush2.msra.mxu0 0.0
      %6074 = vmatprep.subr.mxu0 0.0
      %6075 = vmatpush2.msra.mxu0 0.0
      %6076 = vmatprep.subr.mxu0 0.0
      %6077 = vmatpush2.msra.mxu0 0.0
      %6078 = vmatprep.subr.mxu0 0.0
      %6079 = vmatpush2.msra.mxu0 0.0
      %6080 = vmatprep.subr.mxu0 0.0
      %6081 = vmatpush2.msra.mxu0 0.0
      %6082 = vmatprep.subr.mxu0 0.0
      %6083 = vmatpush2.msra.mxu0 0.0
      %6084 = vmatprep.subr.mxu0 0.0
      %6085 = vmatpush2.msra.mxu0 0.0
      %6086 = vmatprep.subr.mxu0 0.0
      %6087 = vmatpush2.msra.mxu0 0.0
      %6088 = vmatprep.subr.mxu0 0.0
      %6089 = vmatpush2.msra.mxu0 0.0
      %6090 = vmatprep.subr.mxu0 0.0
      %6091 = vmatpush2.msra.mxu0 0.0
      %6092 = vmatprep.subr.mxu0 0.0
      %6093 = vmatpush2.msra.mxu0 0.0
      %6094 = vmatprep.subr.mxu0 0.0
      %6095 = vmatpush2.msra.mxu0 0.0
      %6096 = vmatprep.subr.mxu0 0.0
      %6097 = vmatpush2.msra.mxu0 0.0
      %6098 = vmatprep.mubr.f32.mxu0 0.0
      %6099 = vmatmul.mubr.f32.gmra.mxu0 %v5939
      %v6100 = vpop.f32.mrf.mxu0
      %v6101 = vadd.f32 0.0, %v6100
      %v6102 = vpop.f32.mrf.mxu0
      %6103 = vmatprep.mubr.f32.mxu0 0.0
      %6104 = vmatmul.mubr.f32.gmra.mxu0 %v5942
      %v6105 = vpop.f32.mrf.mxu0
      %v6106 = vadd.f32 0.0, %v6105
      %v6107 = vpop.f32.mrf.mxu0
      %6108 = vmatprep.mubr.f32.mxu0 0.0
      %6109 = vmatmul.mubr.f32.gmra.mxu0 %v5945
      %v6110 = vpop.f32.mrf.mxu0
      %v6111 = vadd.f32 0.0, %v6110
      %v6112 = vpop.f32.mrf.mxu0
      %6113 = vmatprep.mubr.f32.mxu0 0.0
      %6114 = vmatmul.mubr.f32.gmra.mxu0 %v5948
      %v6115 = vpop.f32.mrf.mxu0
      %v6116 = vadd.f32 0.0, %v6115
      %v6117 = vpop.f32.mrf.mxu0
      %6118 = vmatprep.mubr.f32.mxu0 0.0
      %6119 = vmatmul.mubr.f32.gmra.mxu0 %v5951
      %v6120 = vpop.f32.mrf.mxu0
      %v6121 = vadd.f32 0.0, %v6120
      %v6122 = vpop.f32.mrf.mxu0
      %6123 = vmatprep.mubr.f32.mxu0 0.0
      %6124 = vmatmul.mubr.f32.gmra.mxu0 %v5954
      %v6125 = vpop.f32.mrf.mxu0
      %v6126 = vadd.f32 0.0, %v6125
      %v6127 = vpop.f32.mrf.mxu0
      %6128 = vmatprep.mubr.f32.mxu0 0.0
      %6129 = vmatmul.mubr.f32.gmra.mxu0 %v5957
      %v6130 = vpop.f32.mrf.mxu0
      %v6131 = vadd.f32 0.0, %v6130
      %v6132 = vpop.f32.mrf.mxu0
      %6133 = vmatprep.mubr.f32.mxu0 0.0
      %6134 = vmatmul.mubr.f32.gmra.mxu0 %v5960
      %v6135 = vpop.f32.mrf.mxu0
      %v6136 = vadd.f32 0.0, %v6135
      %v6137 = vpop.f32.mrf.mxu0
      %6138 = vmatprep.mubr.f32.mxu0 0.0
      %6139 = vmatmul.mubr.f32.gmra.mxu0 %v5963
      %v6140 = vpop.f32.mrf.mxu0
      %v6141 = vadd.f32 0.0, %v6140
      %v6142 = vpop.f32.mrf.mxu0
      %6143 = vmatprep.mubr.f32.mxu0 0.0
      %6144 = vmatmul.mubr.f32.gmra.mxu0 %v5966
      %v6145 = vpop.f32.mrf.mxu0
      %v6146 = vadd.f32 0.0, %v6145
      %v6147 = vpop.f32.mrf.mxu0
      %6148 = vmatprep.mubr.f32.mxu0 0.0
      %6149 = vmatmul.mubr.f32.gmra.mxu0 %v5969
      %v6150 = vpop.f32.mrf.mxu0
      %v6151 = vadd.f32 0.0, %v6150
      %v6152 = vpop.f32.mrf.mxu0
      %6153 = vmatprep.mubr.f32.mxu0 0.0
      %6154 = vmatmul.mubr.f32.gmra.mxu0 %v5972
      %v6155 = vpop.f32.mrf.mxu0
      %v6156 = vadd.f32 0.0, %v6155
      %v6157 = vpop.f32.mrf.mxu0
      %6158 = vmatprep.mubr.f32.mxu0 0.0
      %6159 = vmatmul.mubr.f32.gmra.mxu0 %v5975
      %v6160 = vpop.f32.mrf.mxu0
      %v6161 = vadd.f32 0.0, %v6160
      %v6162 = vpop.f32.mrf.mxu0
      %6163 = vmatprep.mubr.f32.mxu0 0.0
      %6164 = vmatmul.mubr.f32.gmra.mxu0 %v5978
      %v6165 = vpop.f32.mrf.mxu0
      %v6166 = vadd.f32 0.0, %v6165
      %v6167 = vpop.f32.mrf.mxu0
      %6168 = vmatprep.mubr.f32.mxu0 0.0
      %6169 = vmatmul.mubr.f32.gmra.mxu0 %v5981
      %v6170 = vpop.f32.mrf.mxu0
      %v6171 = vadd.f32 0.0, %v6170
      %v6172 = vpop.f32.mrf.mxu0
      %6173 = vmatprep.mubr.f32.mxu0 0.0
      %6174 = vmatmul.mubr.f32.gmra.mxu0 %v5984
      %v6175 = vpop.f32.mrf.mxu0
      %v6176 = vadd.f32 0.0, %v6175
      %v6177 = vpop.f32.mrf.mxu0
      %6178 = vmatprep.mubr.f32.mxu0 0.0
      %6179 = vmatmul.mubr.f32.gmra.mxu0 %v5987
      %v6180 = vpop.f32.mrf.mxu0
      %v6181 = vadd.f32 0.0, %v6180
      %v6182 = vpop.f32.mrf.mxu0
      %6183 = vmatprep.mubr.f32.mxu0 0.0
      %6184 = vmatmul.mubr.f32.gmra.mxu0 %v5990
      %v6185 = vpop.f32.mrf.mxu0
      %v6186 = vadd.f32 0.0, %v6185
      %v6187 = vpop.f32.mrf.mxu0
      %6188 = vmatprep.mubr.f32.mxu0 0.0
      %6189 = vmatmul.mubr.f32.gmra.mxu0 %v5993
      %v6190 = vpop.f32.mrf.mxu0
      %v6191 = vadd.f32 0.0, %v6190
      %v6192 = vpop.f32.mrf.mxu0
      %6193 = vmatprep.mubr.f32.mxu0 0.0
      %6194 = vmatmul.mubr.f32.gmra.mxu0 %v5996
      %v6195 = vpop.f32.mrf.mxu0
      %v6196 = vadd.f32 0.0, %v6195
      %v6197 = vpop.f32.mrf.mxu0
      %6198 = vmatprep.mubr.f32.mxu0 0.0
      %6199 = vmatmul.mubr.f32.gmra.mxu0 %v5999
      %v6200 = vpop.f32.mrf.mxu0
      %v6201 = vadd.f32 0.0, %v6200
      %v6202 = vpop.f32.mrf.mxu0
      %6203 = vmatprep.mubr.f32.mxu0 0.0
      %6204 = vmatmul.mubr.f32.gmra.mxu0 %v6002
      %v6205 = vpop.f32.mrf.mxu0
      %v6206 = vadd.f32 0.0, %v6205
      %v6207 = vpop.f32.mrf.mxu0
      %6208 = vmatprep.mubr.f32.mxu0 0.0
      %6209 = vmatmul.mubr.f32.gmra.mxu0 %v6005
      %v6210 = vpop.f32.mrf.mxu0
      %v6211 = vadd.f32 0.0, %v6210
      %v6212 = vpop.f32.mrf.mxu0
      %6213 = vmatprep.mubr.f32.mxu0 0.0
      %6214 = vmatmul.mubr.f32.gmra.mxu0 %v6008
      %v6215 = vpop.f32.mrf.mxu0
      %v6216 = vadd.f32 0.0, %v6215
      %v6217 = vpop.f32.mrf.mxu0
      %6218 = vmatprep.mubr.f32.mxu0 0.0
      %6219 = vmatmul.mubr.f32.gmra.mxu0 %v6011
      %v6220 = vpop.f32.mrf.mxu0
      %v6221 = vadd.f32 0.0, %v6220
      %v6222 = vpop.f32.mrf.mxu0
      %6223 = vmatprep.mubr.f32.mxu0 0.0
      %6224 = vmatmul.mubr.f32.gmra.mxu0 %v6014
      %v6225 = vpop.f32.mrf.mxu0
      %v6226 = vadd.f32 0.0, %v6225
      %v6227 = vpop.f32.mrf.mxu0
      %6228 = vmatprep.mubr.f32.mxu0 0.0
      %6229 = vmatmul.mubr.f32.gmra.mxu0 %v6017
      %v6230 = vpop.f32.mrf.mxu0
      %v6231 = vadd.f32 0.0, %v6230
      %v6232 = vpop.f32.mrf.mxu0
      %6233 = vmatprep.mubr.f32.mxu0 0.0
      %6234 = vmatmul.mubr.f32.gmra.mxu0 %v6020
      %v6235 = vpop.f32.mrf.mxu0
      %v6236 = vadd.f32 0.0, %v6235
      %v6237 = vpop.f32.mrf.mxu0
      %6238 = vmatprep.mubr.f32.mxu0 0.0
      %6239 = vmatmul.mubr.f32.gmra.mxu0 %v6023
      %v6240 = vpop.f32.mrf.mxu0
      %v6241 = vadd.f32 0.0, %v6240
      %v6242 = vpop.f32.mrf.mxu0
      %6243 = vmatprep.mubr.f32.mxu0 0.0
      %6244 = vmatmul.mubr.f32.gmra.mxu0 %v6026
      %v6245 = vpop.f32.mrf.mxu0
      %v6246 = vadd.f32 0.0, %v6245
      %v6247 = vpop.f32.mrf.mxu0
      %6248 = vmatprep.mubr.f32.mxu0 0.0
      %6249 = vmatmul.mubr.f32.gmra.mxu0 %v6029
      %v6250 = vpop.f32.mrf.mxu0
      %v6251 = vadd.f32 0.0, %v6250
      %v6252 = vpop.f32.mrf.mxu0
      %6253 = vmatprep.mubr.f32.mxu0 0.0
      %6254 = vmatmul.mubr.f32.gmra.mxu0 %v6032
      %v6255 = vpop.f32.mrf.mxu0
      %v6256 = vadd.f32 0.0, %v6255
      %v6257 = vpop.f32.mrf.mxu0
      %6258 = vdwg.mxu0
      %v6259 = vrcp.pop %v6101
      %v6260 = vrcp.pop %v6106
      %v6261 = vrcp.pop %v6111
      %v6262 = vrcp.pop %v6116
      %v6263 = vrcp.pop %v6121
      %v6264 = vrcp.pop %v6126
      %v6265 = vrcp.pop %v6131
      %v6266 = vrcp.pop %v6136
      %v6267 = vrcp.pop %v6141
      %v6268 = vrcp.pop %v6146
      %v6269 = vrcp.pop %v6151
      %v6270 = vrcp.pop %v6156
      %v6271 = vrcp.pop %v6161
      %v6272 = vrcp.pop %v6166
      %v6273 = vrcp.pop %v6171
      %v6274 = vrcp.pop %v6176
      %v6275 = vrcp.pop %v6181
      %v6276 = vrcp.pop %v6186
      %v6277 = vrcp.pop %v6191
      %v6278 = vrcp.pop %v6196
      %v6279 = vrcp.pop %v6201
      %v6280 = vrcp.pop %v6206
      %v6281 = vrcp.pop %v6211
      %v6282 = vrcp.pop %v6216
      %v6283 = vrcp.pop %v6221
      %v6284 = vrcp.pop %v6226
      %v6285 = vrcp.pop %v6231
      %v6286 = vrcp.pop %v6236
      %v6287 = vrcp.pop %v6241
      %v6288 = vrcp.pop %v6246
      %v6289 = vrcp.pop %v6251
      %v6290 = vrcp.pop %v6256
      %v6291 = vmul.f32 %v5875, %v6259
      %v6292 = vmul.f32 %v5877, %v6260
      %v6293 = vmul.f32 %v5879, %v6261
      %v6294 = vmul.f32 %v5881, %v6262
      %v6295 = vmul.f32 %v5883, %v6263
      %v6296 = vmul.f32 %v5885, %v6264
      %v6297 = vmul.f32 %v5887, %v6265
      %v6298 = vmul.f32 %v5889, %v6266
      %v6299 = vmul.f32 %v5891, %v6267
      %v6300 = vmul.f32 %v5893, %v6268
      %v6301 = vmul.f32 %v5895, %v6269
      %v6302 = vmul.f32 %v5897, %v6270
      %v6303 = vmul.f32 %v5899, %v6271
      %v6304 = vmul.f32 %v5901, %v6272
      %v6305 = vmul.f32 %v5903, %v6273
      %v6306 = vmul.f32 %v5905, %v6274
      %v6307 = vmul.f32 %v5907, %v6275
      %v6308 = vmul.f32 %v5909, %v6276
      %v6309 = vmul.f32 %v5911, %v6277
      %v6310 = vmul.f32 %v5913, %v6278
      %v6311 = vmul.f32 %v5915, %v6279
      %v6312 = vmul.f32 %v5917, %v6280
      %v6313 = vmul.f32 %v5919, %v6281
      %v6314 = vmul.f32 %v5921, %v6282
      %v6315 = vmul.f32 %v5923, %v6283
      %v6316 = vmul.f32 %v5925, %v6284
      %v6317 = vmul.f32 %v5927, %v6285
      %v6318 = vmul.f32 %v5929, %v6286
      %v6319 = vmul.f32 %v5931, %v6287
      %v6320 = vmul.f32 %v5933, %v6288
      %v6321 = vmul.f32 %v5935, %v6289
      %v6322 = vmul.f32 %v5937, %v6290
      %v6323 = vpack.c.bf16 %v6292, %v6291
      %v6324 = vpack.c.bf16 %v6294, %v6293
      %v6325 = vpack.c.bf16 %v6296, %v6295
      %v6326 = vpack.c.bf16 %v6298, %v6297
      %v6327 = vpack.c.bf16 %v6300, %v6299
      %v6328 = vpack.c.bf16 %v6302, %v6301
      %v6329 = vpack.c.bf16 %v6304, %v6303
      %v6330 = vpack.c.bf16 %v6306, %v6305
      %v6331 = vpack.c.bf16 %v6308, %v6307
      %v6332 = vpack.c.bf16 %v6310, %v6309
      %v6333 = vpack.c.bf16 %v6312, %v6311
      %v6334 = vpack.c.bf16 %v6314, %v6313
      %v6335 = vpack.c.bf16 %v6316, %v6315
      %v6336 = vpack.c.bf16 %v6318, %v6317
      %v6337 = vpack.c.bf16 %v6320, %v6319
      %v6338 = vpack.c.bf16 %v6322, %v6321
      %s6339 = scalar_lea.vmem %s692, 8
      %v6340 = vld [vmem:[%s6339] sm:$0xf]
      %v6341 = vld [vmem:[%s6339 + $0x4] sm:$0xf]
      %v6344 = vunpack.c.l.b16 %v6340
      %v6345 = vunpack.c.l.b16 %v6341
      %v6346 = vpack.c.b16 %v6345, %v6344
      %v6349 = vsel %vm3833, %v6323, 0
      %v6352 = vsel %vm3833, %v6324, 0
      %v6355 = vsel %vm3833, %v6325, 0
      %v6358 = vsel %vm3833, %v6326, 0
      %v6361 = vsel %vm3833, %v6327, 0
      %v6364 = vsel %vm3833, %v6328, 0
      %v6367 = vsel %vm3833, %v6329, 0
      %v6370 = vsel %vm3833, %v6330, 0
      %v6373 = vsel %vm3833, %v6331, 0
      %v6376 = vsel %vm3833, %v6332, 0
      %v6379 = vsel %vm3833, %v6333, 0
      %v6382 = vsel %vm3833, %v6334, 0
      %v6385 = vsel %vm3833, %v6335, 0
      %v6388 = vsel %vm3833, %v6336, 0
      %v6391 = vsel %vm3833, %v6337, 0
      %v6394 = vsel %vm3833, %v6338, 0
      %6396 = vmatprep.subr.bf16.mxu0 0
      %6397 = vmatpush1.bf16.msra.mxu0 0
      %6398 = vmatprep.subr.bf16.mxu0 0
      %6399 = vmatpush1.bf16.msra.mxu0 0
      %6400 = vmatprep.subr.bf16.mxu0 0
      %6401 = vmatpush1.bf16.msra.mxu0 0
      %6402 = vmatprep.subr.bf16.mxu0 0
      %6403 = vmatpush1.bf16.msra.mxu0 0
      %6404 = vmatprep.subr.bf16.mxu0 0
      %6405 = vmatpush1.bf16.msra.mxu0 0
      %6406 = vmatprep.subr.bf16.mxu0 0
      %6407 = vmatpush1.bf16.msra.mxu0 0
      %6408 = vmatprep.subr.bf16.mxu0 0
      %6409 = vmatpush1.bf16.msra.mxu0 0
      %6410 = vmatprep.subr.bf16.mxu0 0
      %6411 = vmatpush1.bf16.msra.mxu0 %v6346
      %6412 = vmatprep.subr.bf16.mxu0 0
      %6413 = vmatpush2.bf16.msra.mxu0 0
      %6414 = vmatprep.subr.bf16.mxu0 0
      %6415 = vmatpush2.bf16.msra.mxu0 0
      %6416 = vmatprep.subr.bf16.mxu0 0
      %6417 = vmatpush2.bf16.msra.mxu0 0
      %6418 = vmatprep.subr.bf16.mxu0 0
      %6419 = vmatpush2.bf16.msra.mxu0 0
      %6420 = vmatprep.subr.bf16.mxu0 0
      %6421 = vmatpush2.bf16.msra.mxu0 0
      %6422 = vmatprep.subr.bf16.mxu0 0
      %6423 = vmatpush2.bf16.msra.mxu0 0
      %6424 = vmatprep.subr.bf16.mxu0 0
      %6425 = vmatpush2.bf16.msra.mxu0 0
      %6426 = vmatprep.subr.bf16.mxu0 0
      %6427 = vmatpush2.bf16.msra.mxu0 0
      %6428 = vmatprep.mubr.bf16.mxu0 0
      %6429 = vmatmul.mubr.bf16.gmra.mxu0 %v6349
      %v6430 = vpop.f32.mrf.mxu0
      %v6431 = vadd.f32 0.0, %v6430
      %v6432 = vpop.f32.mrf.mxu0
      %v6433 = vpop.f32.mrf.mxu0
      %v6434 = vadd.f32 0.0, %v6433
      %v6435 = vpop.f32.mrf.mxu0
      %6436 = vmatprep.mubr.bf16.mxu0 0
      %6437 = vmatmul.mubr.bf16.gmra.mxu0 %v6352
      %v6438 = vpop.f32.mrf.mxu0
      %v6439 = vadd.f32 0.0, %v6438
      %v6440 = vpop.f32.mrf.mxu0
      %v6441 = vpop.f32.mrf.mxu0
      %v6442 = vadd.f32 0.0, %v6441
      %v6443 = vpop.f32.mrf.mxu0
      %6444 = vmatprep.mubr.bf16.mxu0 0
      %6445 = vmatmul.mubr.bf16.gmra.mxu0 %v6355
      %v6446 = vpop.f32.mrf.mxu0
      %v6447 = vadd.f32 0.0, %v6446
      %v6448 = vpop.f32.mrf.mxu0
      %v6449 = vpop.f32.mrf.mxu0
      %v6450 = vadd.f32 0.0, %v6449
      %v6451 = vpop.f32.mrf.mxu0
      %6452 = vmatprep.mubr.bf16.mxu0 0
      %6453 = vmatmul.mubr.bf16.gmra.mxu0 %v6358
      %v6454 = vpop.f32.mrf.mxu0
      %v6455 = vadd.f32 0.0, %v6454
      %v6456 = vpop.f32.mrf.mxu0
      %v6457 = vpop.f32.mrf.mxu0
      %v6458 = vadd.f32 0.0, %v6457
      %v6459 = vpop.f32.mrf.mxu0
      %6460 = vmatprep.mubr.bf16.mxu0 0
      %6461 = vmatmul.mubr.bf16.gmra.mxu0 %v6361
      %v6462 = vpop.f32.mrf.mxu0
      %v6463 = vadd.f32 0.0, %v6462
      %v6464 = vpop.f32.mrf.mxu0
      %v6465 = vpop.f32.mrf.mxu0
      %v6466 = vadd.f32 0.0, %v6465
      %v6467 = vpop.f32.mrf.mxu0
      %6468 = vmatprep.mubr.bf16.mxu0 0
      %6469 = vmatmul.mubr.bf16.gmra.mxu0 %v6364
      %v6470 = vpop.f32.mrf.mxu0
      %v6471 = vadd.f32 0.0, %v6470
      %v6472 = vpop.f32.mrf.mxu0
      %v6473 = vpop.f32.mrf.mxu0
      %v6474 = vadd.f32 0.0, %v6473
      %v6475 = vpop.f32.mrf.mxu0
      %6476 = vmatprep.mubr.bf16.mxu0 0
      %6477 = vmatmul.mubr.bf16.gmra.mxu0 %v6367
      %v6478 = vpop.f32.mrf.mxu0
      %v6479 = vadd.f32 0.0, %v6478
      %v6480 = vpop.f32.mrf.mxu0
      %v6481 = vpop.f32.mrf.mxu0
      %v6482 = vadd.f32 0.0, %v6481
      %v6483 = vpop.f32.mrf.mxu0
      %6484 = vmatprep.mubr.bf16.mxu0 0
      %6485 = vmatmul.mubr.bf16.gmra.mxu0 %v6370
      %v6486 = vpop.f32.mrf.mxu0
      %v6487 = vadd.f32 0.0, %v6486
      %v6488 = vpop.f32.mrf.mxu0
      %v6489 = vpop.f32.mrf.mxu0
      %v6490 = vadd.f32 0.0, %v6489
      %v6491 = vpop.f32.mrf.mxu0
      %6492 = vmatprep.mubr.bf16.mxu0 0
      %6493 = vmatmul.mubr.bf16.gmra.mxu0 %v6373
      %v6494 = vpop.f32.mrf.mxu0
      %v6495 = vadd.f32 0.0, %v6494
      %v6496 = vpop.f32.mrf.mxu0
      %v6497 = vpop.f32.mrf.mxu0
      %v6498 = vadd.f32 0.0, %v6497
      %v6499 = vpop.f32.mrf.mxu0
      %6500 = vmatprep.mubr.bf16.mxu0 0
      %6501 = vmatmul.mubr.bf16.gmra.mxu0 %v6376
      %v6502 = vpop.f32.mrf.mxu0
      %v6503 = vadd.f32 0.0, %v6502
      %v6504 = vpop.f32.mrf.mxu0
      %v6505 = vpop.f32.mrf.mxu0
      %v6506 = vadd.f32 0.0, %v6505
      %v6507 = vpop.f32.mrf.mxu0
      %6508 = vmatprep.mubr.bf16.mxu0 0
      %6509 = vmatmul.mubr.bf16.gmra.mxu0 %v6379
      %v6510 = vpop.f32.mrf.mxu0
      %v6511 = vadd.f32 0.0, %v6510
      %v6512 = vpop.f32.mrf.mxu0
      %v6513 = vpop.f32.mrf.mxu0
      %v6514 = vadd.f32 0.0, %v6513
      %v6515 = vpop.f32.mrf.mxu0
      %6516 = vmatprep.mubr.bf16.mxu0 0
      %6517 = vmatmul.mubr.bf16.gmra.mxu0 %v6382
      %v6518 = vpop.f32.mrf.mxu0
      %v6519 = vadd.f32 0.0, %v6518
      %v6520 = vpop.f32.mrf.mxu0
      %v6521 = vpop.f32.mrf.mxu0
      %v6522 = vadd.f32 0.0, %v6521
      %v6523 = vpop.f32.mrf.mxu0
      %6524 = vmatprep.mubr.bf16.mxu0 0
      %6525 = vmatmul.mubr.bf16.gmra.mxu0 %v6385
      %v6526 = vpop.f32.mrf.mxu0
      %v6527 = vadd.f32 0.0, %v6526
      %v6528 = vpop.f32.mrf.mxu0
      %v6529 = vpop.f32.mrf.mxu0
      %v6530 = vadd.f32 0.0, %v6529
      %v6531 = vpop.f32.mrf.mxu0
      %6532 = vmatprep.mubr.bf16.mxu0 0
      %6533 = vmatmul.mubr.bf16.gmra.mxu0 %v6388
      %v6534 = vpop.f32.mrf.mxu0
      %v6535 = vadd.f32 0.0, %v6534
      %v6536 = vpop.f32.mrf.mxu0
      %v6537 = vpop.f32.mrf.mxu0
      %v6538 = vadd.f32 0.0, %v6537
      %v6539 = vpop.f32.mrf.mxu0
      %6540 = vmatprep.mubr.bf16.mxu0 0
      %6541 = vmatmul.mubr.bf16.gmra.mxu0 %v6391
      %v6542 = vpop.f32.mrf.mxu0
      %v6543 = vadd.f32 0.0, %v6542
      %v6544 = vpop.f32.mrf.mxu0
      %v6545 = vpop.f32.mrf.mxu0
      %v6546 = vadd.f32 0.0, %v6545
      %v6547 = vpop.f32.mrf.mxu0
      %6548 = vmatprep.mubr.bf16.mxu0 0
      %6549 = vmatmul.mubr.bf16.gmra.mxu0 %v6394
      %v6550 = vpop.f32.mrf.mxu0
      %v6551 = vadd.f32 0.0, %v6550
      %v6552 = vpop.f32.mrf.mxu0
      %v6553 = vpop.f32.mrf.mxu0
      %v6554 = vadd.f32 0.0, %v6553
      %v6555 = vpop.f32.mrf.mxu0
      %6556 = vdwg.mxu0
      %v6557 = vpack.c.bf16 %v6434, %v6431
      %v6558 = vpack.c.bf16 %v6442, %v6439
      %v6559 = vpack.c.bf16 %v6450, %v6447
      %v6560 = vpack.c.bf16 %v6458, %v6455
      %v6561 = vpack.c.bf16 %v6466, %v6463
      %v6562 = vpack.c.bf16 %v6474, %v6471
      %v6563 = vpack.c.bf16 %v6482, %v6479
      %v6564 = vpack.c.bf16 %v6490, %v6487
      %v6565 = vpack.c.bf16 %v6498, %v6495
      %v6566 = vpack.c.bf16 %v6506, %v6503
      %v6567 = vpack.c.bf16 %v6514, %v6511
      %v6568 = vpack.c.bf16 %v6522, %v6519
      %v6569 = vpack.c.bf16 %v6530, %v6527
      %v6570 = vpack.c.bf16 %v6538, %v6535
      %v6571 = vpack.c.bf16 %v6546, %v6543
      %v6572 = vpack.c.bf16 %v6554, %v6551
      %s6573 = scalar_lea.vmem %s17, 16
      %v6574 = vld [vmem:[%s6573] sm:$0xf]
      %v6575 = vld [vmem:[%s6573 + $0x4] sm:$0xf]
      %v6576 = vld [vmem:[%s6573 + $0x8] sm:$0xf]
      %v6577 = vld [vmem:[%s6573 + $0xc] sm:$0xf]
      %s6578 = scalar_lea.vmem %s18, 1
      %v6579 = vld [vmem:[%s6578] sm:$0x1]
      %v6581 = vlaneseq
      %v6582 = vshrl.u32 %v6581, 7
      %v6583 = vsub.s32 0, %v6582
      %v6584 = vrot.slane %v6579, %v6583
      %v6590 = vunpack.c.l.b16 %v6574
      %v6591 = vunpack.c.l.b16 %v6575
      %v6592 = vunpack.c.l.b16 %v6576
      %v6593 = vunpack.c.l.b16 %v6577
      %v6594 = vpack.c.b16 %v6591, %v6590
      %v6595 = vpack.c.b16 %v6593, %v6592
      %v6599 = vsel %vm763, %v6557, 0
      %v6602 = vsel %vm763, %v6558, 0
      %v6605 = vsel %vm763, %v6559, 0
      %v6608 = vsel %vm763, %v6560, 0
      %v6611 = vsel %vm763, %v6561, 0
      %v6614 = vsel %vm763, %v6562, 0
      %v6617 = vsel %vm763, %v6563, 0
      %v6620 = vsel %vm763, %v6564, 0
      %v6623 = vsel %vm763, %v6565, 0
      %v6626 = vsel %vm763, %v6566, 0
      %v6629 = vsel %vm763, %v6567, 0
      %v6632 = vsel %vm763, %v6568, 0
      %v6635 = vsel %vm763, %v6569, 0
      %v6638 = vsel %vm763, %v6570, 0
      %v6641 = vsel %vm763, %v6571, 0
      %v6644 = vsel %vm763, %v6572, 0
      %6646 = vmatprep.subr.bf16.mxu0 0
      %6647 = vmatpush1.bf16.msra.mxu0 0
      %6648 = vmatprep.subr.bf16.mxu0 0
      %6649 = vmatpush1.bf16.msra.mxu0 0
      %6650 = vmatprep.subr.bf16.mxu0 0
      %6651 = vmatpush1.bf16.msra.mxu0 0
      %6652 = vmatprep.subr.bf16.mxu0 0
      %6653 = vmatpush1.bf16.msra.mxu0 0
      %6654 = vmatprep.subr.bf16.mxu0 0
      %6655 = vmatpush1.bf16.msra.mxu0 0
      %6656 = vmatprep.subr.bf16.mxu0 0
      %6657 = vmatpush1.bf16.msra.mxu0 0
      %6658 = vmatprep.subr.bf16.mxu0 0
      %6659 = vmatpush1.bf16.msra.mxu0 %v6595
      %6660 = vmatprep.subr.bf16.mxu0 0
      %6661 = vmatpush1.bf16.msra.mxu0 %v6594
      %6662 = vmatprep.subr.bf16.mxu0 0
      %6663 = vmatpush2.bf16.msra.mxu0 0
      %6664 = vmatprep.subr.bf16.mxu0 0
      %6665 = vmatpush2.bf16.msra.mxu0 0
      %6666 = vmatprep.subr.bf16.mxu0 0
      %6667 = vmatpush2.bf16.msra.mxu0 0
      %6668 = vmatprep.subr.bf16.mxu0 0
      %6669 = vmatpush2.bf16.msra.mxu0 0
      %6670 = vmatprep.subr.bf16.mxu0 0
      %6671 = vmatpush2.bf16.msra.mxu0 0
      %6672 = vmatprep.subr.bf16.mxu0 0
      %6673 = vmatpush2.bf16.msra.mxu0 0
      %6674 = vmatprep.subr.bf16.mxu0 0
      %6675 = vmatpush2.bf16.msra.mxu0 0
      %6676 = vmatprep.subr.bf16.mxu0 0
      %6677 = vmatpush2.bf16.msra.mxu0 0
      %6678 = vmatprep.mubr.bf16.mxu0 0
      %6679 = vmatmul.mubr.bf16.gmra.mxu0 %v6599
      %v6680 = vpop.f32.mrf.mxu0
      %v6681 = vadd.f32 %v6584, %v6680
      %v6682 = vpop.f32.mrf.mxu0
      %v6683 = vpop.f32.mrf.mxu0
      %v6684 = vadd.f32 %v6584, %v6683
      %v6685 = vpop.f32.mrf.mxu0
      %6686 = vmatprep.mubr.bf16.mxu0 0
      %6687 = vmatmul.mubr.bf16.gmra.mxu0 %v6602
      %v6688 = vpop.f32.mrf.mxu0
      %v6689 = vadd.f32 %v6584, %v6688
      %v6690 = vpop.f32.mrf.mxu0
      %v6691 = vpop.f32.mrf.mxu0
      %v6692 = vadd.f32 %v6584, %v6691
      %v6693 = vpop.f32.mrf.mxu0
      %6694 = vmatprep.mubr.bf16.mxu0 0
      %6695 = vmatmul.mubr.bf16.gmra.mxu0 %v6605
      %v6696 = vpop.f32.mrf.mxu0
      %v6697 = vadd.f32 %v6584, %v6696
      %v6698 = vpop.f32.mrf.mxu0
      %v6699 = vpop.f32.mrf.mxu0
      %v6700 = vadd.f32 %v6584, %v6699
      %v6701 = vpop.f32.mrf.mxu0
      %6702 = vmatprep.mubr.bf16.mxu0 0
      %6703 = vmatmul.mubr.bf16.gmra.mxu0 %v6608
      %v6704 = vpop.f32.mrf.mxu0
      %v6705 = vadd.f32 %v6584, %v6704
      %v6706 = vpop.f32.mrf.mxu0
      %v6707 = vpop.f32.mrf.mxu0
      %v6708 = vadd.f32 %v6584, %v6707
      %v6709 = vpop.f32.mrf.mxu0
      %6710 = vmatprep.mubr.bf16.mxu0 0
      %6711 = vmatmul.mubr.bf16.gmra.mxu0 %v6611
      %v6712 = vpop.f32.mrf.mxu0
      %v6713 = vadd.f32 %v6584, %v6712
      %v6714 = vpop.f32.mrf.mxu0
      %v6715 = vpop.f32.mrf.mxu0
      %v6716 = vadd.f32 %v6584, %v6715
      %v6717 = vpop.f32.mrf.mxu0
      %6718 = vmatprep.mubr.bf16.mxu0 0
      %6719 = vmatmul.mubr.bf16.gmra.mxu0 %v6614
      %v6720 = vpop.f32.mrf.mxu0
      %v6721 = vadd.f32 %v6584, %v6720
      %v6722 = vpop.f32.mrf.mxu0
      %v6723 = vpop.f32.mrf.mxu0
      %v6724 = vadd.f32 %v6584, %v6723
      %v6725 = vpop.f32.mrf.mxu0
      %6726 = vmatprep.mubr.bf16.mxu0 0
      %6727 = vmatmul.mubr.bf16.gmra.mxu0 %v6617
      %v6728 = vpop.f32.mrf.mxu0
      %v6729 = vadd.f32 %v6584, %v6728
      %v6730 = vpop.f32.mrf.mxu0
      %v6731 = vpop.f32.mrf.mxu0
      %v6732 = vadd.f32 %v6584, %v6731
      %v6733 = vpop.f32.mrf.mxu0
      %6734 = vmatprep.mubr.bf16.mxu0 0
      %6735 = vmatmul.mubr.bf16.gmra.mxu0 %v6620
      %v6736 = vpop.f32.mrf.mxu0
      %v6737 = vadd.f32 %v6584, %v6736
      %v6738 = vpop.f32.mrf.mxu0
      %v6739 = vpop.f32.mrf.mxu0
      %v6740 = vadd.f32 %v6584, %v6739
      %v6741 = vpop.f32.mrf.mxu0
      %6742 = vmatprep.mubr.bf16.mxu0 0
      %6743 = vmatmul.mubr.bf16.gmra.mxu0 %v6623
      %v6744 = vpop.f32.mrf.mxu0
      %v6745 = vadd.f32 %v6584, %v6744
      %v6746 = vpop.f32.mrf.mxu0
      %v6747 = vpop.f32.mrf.mxu0
      %v6748 = vadd.f32 %v6584, %v6747
      %v6749 = vpop.f32.mrf.mxu0
      %6750 = vmatprep.mubr.bf16.mxu0 0
      %6751 = vmatmul.mubr.bf16.gmra.mxu0 %v6626
      %v6752 = vpop.f32.mrf.mxu0
      %v6753 = vadd.f32 %v6584, %v6752
      %v6754 = vpop.f32.mrf.mxu0
      %v6755 = vpop.f32.mrf.mxu0
      %v6756 = vadd.f32 %v6584, %v6755
      %v6757 = vpop.f32.mrf.mxu0
      %6758 = vmatprep.mubr.bf16.mxu0 0
      %6759 = vmatmul.mubr.bf16.gmra.mxu0 %v6629
      %v6760 = vpop.f32.mrf.mxu0
      %v6761 = vadd.f32 %v6584, %v6760
      %v6762 = vpop.f32.mrf.mxu0
      %v6763 = vpop.f32.mrf.mxu0
      %v6764 = vadd.f32 %v6584, %v6763
      %v6765 = vpop.f32.mrf.mxu0
      %6766 = vmatprep.mubr.bf16.mxu0 0
      %6767 = vmatmul.mubr.bf16.gmra.mxu0 %v6632
      %v6768 = vpop.f32.mrf.mxu0
      %v6769 = vadd.f32 %v6584, %v6768
      %v6770 = vpop.f32.mrf.mxu0
      %v6771 = vpop.f32.mrf.mxu0
      %v6772 = vadd.f32 %v6584, %v6771
      %v6773 = vpop.f32.mrf.mxu0
      %6774 = vmatprep.mubr.bf16.mxu0 0
      %6775 = vmatmul.mubr.bf16.gmra.mxu0 %v6635
      %v6776 = vpop.f32.mrf.mxu0
      %v6777 = vadd.f32 %v6584, %v6776
      %v6778 = vpop.f32.mrf.mxu0
      %v6779 = vpop.f32.mrf.mxu0
      %v6780 = vadd.f32 %v6584, %v6779
      %v6781 = vpop.f32.mrf.mxu0
      %6782 = vmatprep.mubr.bf16.mxu0 0
      %6783 = vmatmul.mubr.bf16.gmra.mxu0 %v6638
      %v6784 = vpop.f32.mrf.mxu0
      %v6785 = vadd.f32 %v6584, %v6784
      %v6786 = vpop.f32.mrf.mxu0
      %v6787 = vpop.f32.mrf.mxu0
      %v6788 = vadd.f32 %v6584, %v6787
      %v6789 = vpop.f32.mrf.mxu0
      %6790 = vmatprep.mubr.bf16.mxu0 0
      %6791 = vmatmul.mubr.bf16.gmra.mxu0 %v6641
      %v6792 = vpop.f32.mrf.mxu0
      %v6793 = vadd.f32 %v6584, %v6792
      %v6794 = vpop.f32.mrf.mxu0
      %v6795 = vpop.f32.mrf.mxu0
      %v6796 = vadd.f32 %v6584, %v6795
      %v6797 = vpop.f32.mrf.mxu0
      %6798 = vmatprep.mubr.bf16.mxu0 0
      %6799 = vmatmul.mubr.bf16.gmra.mxu0 %v6644
      %v6800 = vpop.f32.mrf.mxu0
      %v6801 = vadd.f32 %v6584, %v6800
      %v6802 = vpop.f32.mrf.mxu0
      %v6803 = vpop.f32.mrf.mxu0
      %v6804 = vadd.f32 %v6584, %v6803
      %v6805 = vpop.f32.mrf.mxu0
      %6806 = vdwg.mxu0
      %v6807 = vadd.f32 %v4894, %v6681
      %v6808 = vadd.f32 %v4895, %v6684
      %v6809 = vadd.f32 %v4896, %v6689
      %v6810 = vadd.f32 %v4897, %v6692
      %v6811 = vadd.f32 %v4898, %v6697
      %v6812 = vadd.f32 %v4899, %v6700
      %v6813 = vadd.f32 %v4900, %v6705
      %v6814 = vadd.f32 %v4901, %v6708
      %v6815 = vadd.f32 %v4902, %v6713
      %v6816 = vadd.f32 %v4903, %v6716
      %v6817 = vadd.f32 %v4904, %v6721
      %v6818 = vadd.f32 %v4905, %v6724
      %v6819 = vadd.f32 %v4906, %v6729
      %v6820 = vadd.f32 %v4907, %v6732
      %v6821 = vadd.f32 %v4908, %v6737
      %v6822 = vadd.f32 %v4909, %v6740
      %v6823 = vadd.f32 %v4910, %v6745
      %v6824 = vadd.f32 %v4911, %v6748
      %v6825 = vadd.f32 %v4912, %v6753
      %v6826 = vadd.f32 %v4913, %v6756
      %v6827 = vadd.f32 %v4914, %v6761
      %v6828 = vadd.f32 %v4915, %v6764
      %v6829 = vadd.f32 %v4916, %v6769
      %v6830 = vadd.f32 %v4917, %v6772
      %v6831 = vadd.f32 %v4918, %v6777
      %v6832 = vadd.f32 %v4919, %v6780
      %v6833 = vadd.f32 %v4920, %v6785
      %v6834 = vadd.f32 %v4921, %v6788
      %v6835 = vadd.f32 %v4922, %v6793
      %v6836 = vadd.f32 %v4923, %v6796
      %v6837 = vadd.f32 %v4924, %v6801
      %v6838 = vadd.f32 %v4925, %v6804
      %v6839 = vpack.c.bf16 %v6808, %v6807
      %v6840 = vpack.c.bf16 %v6810, %v6809
      %v6841 = vpack.c.bf16 %v6812, %v6811
      %v6842 = vpack.c.bf16 %v6814, %v6813
      %v6843 = vpack.c.bf16 %v6816, %v6815
      %v6844 = vpack.c.bf16 %v6818, %v6817
      %v6845 = vpack.c.bf16 %v6820, %v6819
      %v6846 = vpack.c.bf16 %v6822, %v6821
      %v6847 = vpack.c.bf16 %v6824, %v6823
      %v6848 = vpack.c.bf16 %v6826, %v6825
      %v6849 = vpack.c.bf16 %v6828, %v6827
      %v6850 = vpack.c.bf16 %v6830, %v6829
      %v6851 = vpack.c.bf16 %v6832, %v6831
      %v6852 = vpack.c.bf16 %v6834, %v6833
      %v6853 = vpack.c.bf16 %v6836, %v6835
      %v6854 = vpack.c.bf16 %v6838, %v6837
      %v6871 = vunpack.c.l.b16 %v6839
      %v6872 = vunpack.c.h.b16 %v6839
      %v6873 = vunpack.c.l.b16 %v6840
      %v6874 = vunpack.c.h.b16 %v6840
      %v6875 = vunpack.c.l.b16 %v6841
      %v6876 = vunpack.c.h.b16 %v6841
      %v6877 = vunpack.c.l.b16 %v6842
      %v6878 = vunpack.c.h.b16 %v6842
      %v6879 = vunpack.c.l.b16 %v6843
      %v6880 = vunpack.c.h.b16 %v6843
      %v6881 = vunpack.c.l.b16 %v6844
      %v6882 = vunpack.c.h.b16 %v6844
      %v6883 = vunpack.c.l.b16 %v6845
      %v6884 = vunpack.c.h.b16 %v6845
      %v6885 = vunpack.c.l.b16 %v6846
      %v6886 = vunpack.c.h.b16 %v6846
      %v6887 = vunpack.c.l.b16 %v6847
      %v6888 = vunpack.c.h.b16 %v6847
      %v6889 = vunpack.c.l.b16 %v6848
      %v6890 = vunpack.c.h.b16 %v6848
      %v6891 = vunpack.c.l.b16 %v6849
      %v6892 = vunpack.c.h.b16 %v6849
      %v6893 = vunpack.c.l.b16 %v6850
      %v6894 = vunpack.c.h.b16 %v6850
      %v6895 = vunpack.c.l.b16 %v6851
      %v6896 = vunpack.c.h.b16 %v6851
      %v6897 = vunpack.c.l.b16 %v6852
      %v6898 = vunpack.c.h.b16 %v6852
      %v6899 = vunpack.c.l.b16 %v6853
      %v6900 = vunpack.c.h.b16 %v6853
      %v6901 = vunpack.c.l.b16 %v6854
      %v6902 = vunpack.c.h.b16 %v6854
      %v6903 = vpack.c.b16 %v6871, %v6871
      %v6904 = vpack.c.b16 %v6872, %v6872
      %v6905 = vpack.c.b16 %v6873, %v6873
      %v6906 = vpack.c.b16 %v6874, %v6874
      %v6907 = vpack.c.b16 %v6875, %v6875
      %v6908 = vpack.c.b16 %v6876, %v6876
      %v6909 = vpack.c.b16 %v6877, %v6877
      %v6910 = vpack.c.b16 %v6878, %v6878
      %v6911 = vpack.c.b16 %v6879, %v6879
      %v6912 = vpack.c.b16 %v6880, %v6880
      %v6913 = vpack.c.b16 %v6881, %v6881
      %v6914 = vpack.c.b16 %v6882, %v6882
      %v6915 = vpack.c.b16 %v6883, %v6883
      %v6916 = vpack.c.b16 %v6884, %v6884
      %v6917 = vpack.c.b16 %v6885, %v6885
      %v6918 = vpack.c.b16 %v6886, %v6886
      %v6919 = vpack.c.b16 %v6887, %v6887
      %v6920 = vpack.c.b16 %v6888, %v6888
      %v6921 = vpack.c.b16 %v6889, %v6889
      %v6922 = vpack.c.b16 %v6890, %v6890
      %v6923 = vpack.c.b16 %v6891, %v6891
      %v6924 = vpack.c.b16 %v6892, %v6892
      %v6925 = vpack.c.b16 %v6893, %v6893
      %v6926 = vpack.c.b16 %v6894, %v6894
      %v6927 = vpack.c.b16 %v6895, %v6895
      %v6928 = vpack.c.b16 %v6896, %v6896
      %v6929 = vpack.c.b16 %v6897, %v6897
      %v6930 = vpack.c.b16 %v6898, %v6898
      %v6931 = vpack.c.b16 %v6899, %v6899
      %v6932 = vpack.c.b16 %v6900, %v6900
      %v6933 = vpack.c.b16 %v6901, %v6901
      %v6934 = vpack.c.b16 %v6902, %v6902
      %vm6967 = vcmask 257024
      %6968 = vst.msk [vmem:[%s697] sm:$0xf] %vm6967, %v6903
      %6969 = vst.msk [vmem:[%s697 + $0x4] sm:$0xf] %vm6967, %v6904
      %6970 = vst.msk [vmem:[%s697 + $0x8] sm:$0xf] %vm6967, %v6905
      %6971 = vst.msk [vmem:[%s697 + $0xc] sm:$0xf] %vm6967, %v6906
      %6972 = vst.msk [vmem:[%s697 + $0x10] sm:$0xf] %vm6967, %v6907
      %6973 = vst.msk [vmem:[%s697 + $0x14] sm:$0xf] %vm6967, %v6908
      %6974 = vst.msk [vmem:[%s697 + $0x18] sm:$0xf] %vm6967, %v6909
      %6975 = vst.msk [vmem:[%s697 + $0x1c] sm:$0xf] %vm6967, %v6910
      %6976 = vst.msk [vmem:[%s697 + $0x20] sm:$0xf] %vm6967, %v6911
      %6977 = vst.msk [vmem:[%s697 + $0x24] sm:$0xf] %vm6967, %v6912
      %6978 = vst.msk [vmem:[%s697 + $0x28] sm:$0xf] %vm6967, %v6913
      %6979 = vst.msk [vmem:[%s697 + $0x2c] sm:$0xf] %vm6967, %v6914
      %6980 = vst.msk [vmem:[%s697 + $0x30] sm:$0xf] %vm6967, %v6915
      %6981 = vst.msk [vmem:[%s697 + $0x34] sm:$0xf] %vm6967, %v6916
      %6982 = vst.msk [vmem:[%s697 + $0x38] sm:$0xf] %vm6967, %v6917
      %6983 = vst.msk [vmem:[%s697 + $0x3c] sm:$0xf] %vm6967, %v6918
      %6984 = vst.msk [vmem:[%s697 + $0x40] sm:$0xf] %vm6967, %v6919
      %6985 = vst.msk [vmem:[%s697 + $0x44] sm:$0xf] %vm6967, %v6920
      %6986 = vst.msk [vmem:[%s697 + $0x48] sm:$0xf] %vm6967, %v6921
      %6987 = vst.msk [vmem:[%s697 + $0x4c] sm:$0xf] %vm6967, %v6922
      %6988 = vst.msk [vmem:[%s697 + $0x50] sm:$0xf] %vm6967, %v6923
      %6989 = vst.msk [vmem:[%s697 + $0x54] sm:$0xf] %vm6967, %v6924
      %6990 = vst.msk [vmem:[%s697 + $0x58] sm:$0xf] %vm6967, %v6925
      %6991 = vst.msk [vmem:[%s697 + $0x5c] sm:$0xf] %vm6967, %v6926
      %6992 = vst.msk [vmem:[%s697 + $0x60] sm:$0xf] %vm6967, %v6927
      %6993 = vst.msk [vmem:[%s697 + $0x64] sm:$0xf] %vm6967, %v6928
      %6994 = vst.msk [vmem:[%s697 + $0x68] sm:$0xf] %vm6967, %v6929
      %6995 = vst.msk [vmem:[%s697 + $0x6c] sm:$0xf] %vm6967, %v6930
      %6996 = vst.msk [vmem:[%s697 + $0x70] sm:$0xf] %vm6967, %v6931
      %6997 = vst.msk [vmem:[%s697 + $0x74] sm:$0xf] %vm6967, %v6932
      %6998 = vst.msk [vmem:[%s697 + $0x78] sm:$0xf] %vm6967, %v6933
      %6999 = vst.msk [vmem:[%s697 + $0x7c] sm:$0xf] %vm6967, %v6934
      %p7000 = scmp.lt.s32.totalorder %s31, 1
      %s7001 = scalar_select %p7000, %s31, 1
      %s7002 = smul.addr %s7001, 32
      %s7003 = smul.addr %s7002, 4
      %s7004 = scalar_lea.vmem %s20, %s7003
      // Predicated region
      $region101: #{uvit_block_forward.2} parent=99 // pred_check
        %p7005 = pneg %p494
      $region102: #{uvit_block_forward.2} parent=99 // pred_check_branch
        %7007 = sbr.rel (%p7005) target = $region104
      $region103: #{uvit_block_forward.2} parent=99 // pred_region
        _
      $region104: #{uvit_block_forward.2} parent=99 // pred_fallthru
        _
    $region100: #{uvit_block_forward.2} parent=5 // pred_fallthru
      _
    %p7008 = scmp.le.s32.totalorder 2, %s26
    // Predicated region
    $region105: #{uvit_block_forward.2} parent=5 // pred_check
      %p7009 = pneg %p7008
    $region106: #{uvit_block_forward.2} parent=5 // pred_check_branch
      %7011 = sbr.rel (%p7009) target = $region108
    $region107: #{uvit_block_forward.2} parent=5 // pred_region
      %s7012 = ssub.s32 %s26, 2
      // Predicated region
      $region109: #{uvit_block_forward.2} parent=107 // pred_check
        %p7013 = pneg %p500
      $region110: #{uvit_block_forward.2} parent=107 // pred_check_branch
        %7015 = sbr.rel (%p7013) target = $region112
      $region111: #{uvit_block_forward.2} parent=107 // pred_region
        %p7016 = scmp.lt.s32.totalorder %s32, 1
        %s7017 = scalar_select %p7016, %s32, 1
        %s7018 = smul.addr %s7017, 32
        %s7019 = smul.addr %s7018, 4
        %s7020 = scalar_lea.vmem %s20, %s7019
      $region112: #{uvit_block_forward.2} parent=107 // pred_fallthru
        _
    $region108: #{uvit_block_forward.2} parent=5 // pred_fallthru
      _
  $region6: #{uvit_block_forward.2} parent=0 // loop_footer
    %s30 = sadd.s32 1, %s26
  $region7: #{uvit_block_forward.2} parent=0 // loop_footer_branch
    %25 = sbr.rel target = $region3
  $region8: #{uvit_block_forward.2} parent=0 // loop_exit
    _

</llo_original>
